<compile_context>
chip_gen: v6e
topology: v6e:2x2x1
jax: 0.10.0
libtpu: 0.0.40
codegen_flags: <defaults>
</compile_context>

<pallas_src>
import jax
import jax.numpy as jnp
from jax.experimental import pallas as pl
from jax.experimental.pallas import tpu as pltpu


# ----------------------------------------------------------------------------
# Weight preprocessing (tiny, runs once in the wrapper)
# ----------------------------------------------------------------------------
def _fold_conv_w(w):
    """(KH, KW, Cin, Cout) HWIO -> (Cout, KH*KW*Cin), tap-major / channel-minor."""
    KH, KW, Ci, Co = w.shape
    return jnp.transpose(w, (3, 0, 1, 2)).reshape(Co, KH * KW * Ci)


def _deconv_subpixel(w_t, b, scale, pad, K):
    """Sub-pixel decomposition of ConvTranspose2d(Cin, Cout, K, stride=scale,
    padding=pad, output_padding=scale-1)  [exactly the module's deconv].

    w_t: PyTorch layout (Cin, Cout, K, K).
    Returns (Wc, bc, dmin, dmax, D) with
      Wc: (scale^2*Cout, D*D*Cin),  row = (r*scale + c)*Cout + co,
                                    col = ((dh-dmin)*D + (dw-dmin))*Cin + ci
      out[co, s*i+r, s*j+c] = sum Wc[row, col] * x[ci, i+dh, j+dw] + b[co]
    (out-of-range x treated as 0).
    """
    Ci, Co, KH, KW = w_t.shape
    q = [(r + pad) % scale for r in range(scale)]
    dmax_r = [(r + pad) // scale for r in range(scale)]
    n_taps = [(K - q[r] + scale - 1) // scale for r in range(scale)]
    dmax = max(dmax_r)
    dmin = min(dmax_r[r] - n_taps[r] + 1 for r in range(scale))
    D = dmax - dmin + 1
    zero = jnp.zeros((Co, Ci), w_t.dtype)
    phase_rows = []
    for r in range(scale):
        for c in range(scale):
            taps = []
            for ai in range(D):
                kh = q[r] + scale * (dmax_r[r] - (dmin + ai))
                for bi in range(D):
                    kw = q[c] + scale * (dmax_r[c] - (dmin + bi))
                    if 0 <= kh < K and 0 <= kw < K:
                        taps.append(jnp.transpose(w_t[:, :, kh, kw], (1, 0)))
                    else:
                        taps.append(zero)
            phase_rows.append(jnp.concatenate(taps, axis=1))      # (Cout, D*D*Cin)
    Wc = jnp.concatenate(phase_rows, axis=0)                       # (ss*Cout, D*D*Cin)
    bc = jnp.tile(b, (scale * scale,)).reshape(scale * scale * Co, 1)
    return Wc, bc, dmin, dmax, D


# ----------------------------------------------------------------------------
# Fused Pallas kernel (one grid step = one batch element x one output row tile)
# ----------------------------------------------------------------------------
def _make_fused_kernel(*, H, W, TH, Cin, Cout, scale, pd, dmin, D, PW):
    Wp = W + 2 * PW                     # uniform padded row width of all buffers
    ss = scale * scale
    E1 = TH + 2 * (pd + 4)              # rows held for fea1 / fea2
    E7 = TH + 2 * pd                    # rows held for fea6 / fea7

    def im2col(buf, taps, n_rows):
        """buf: (C, L) value; flattened (rows, Wp) data begins at index PW.
        Each tap (row_off, col_off) is one contiguous slice -> (T*C, n_rows*Wp)."""
        P = n_rows * Wp
        pieces = [buf[:, PW + r * Wp + c: PW + r * Wp + c + P] for (r, c) in taps]
        return jnp.concatenate(pieces, axis=0)

    def prelu(z, a):
        return jnp.where(z > 0, z, z * a)

    def conv(buf, taps, n_rows, w, b, a):
        z = jnp.dot(w, im2col(buf, taps, n_rows),
                    preferred_element_type=jnp.float32) + b
        return prelu(z, a)

    def mask(z, n_rows, margin, t, cmask):
        """Re-create per-layer zero padding under row tiling: zero rows whose
        global row index is outside [0, H) and all width-padding columns."""
        g0 = t * TH - margin
        lo = jnp.maximum(0, -g0) * Wp
        hi = jnp.minimum(n_rows, H - g0) * Wp
        idx = jax.lax.broadcasted_iota(jnp.int32, z.shape, 1)
        z = jnp.where((idx >= lo) & (idx < hi), z, 0.0)
        return z * cmask[:, : n_rows * Wp]

    taps5 = [(kh, kw - 2) for kh in range(5) for kw in range(5)]
    taps3 = [(kh, kw - 1) for kh in range(3) for kw in range(3)]
    tapsd = [(pd + dmin + ai, dmin + bi) for ai in range(D) for bi in range(D)]

    def kernel(x_ref, cm_ref,
               wf_ref, bf_ref, af_ref,
               ws_ref, bs_ref, as_ref,
               wm_ref, bm_ref, am_ref,
               we_ref, be_ref, ae_ref,
               wd_ref, bd_ref,
               o_ref,
               s12a, s12b, s56):
        t = pl.program_id(1)
        cmask = cm_ref[...]

        # feature_extraction: 5x5 (Cin->56) + PReLU   (single 25*Cin-deep matmul)
        fea1 = conv(x_ref[0, 0], taps5, E1, wf_ref[...], bf_ref[...], af_ref[...])

        # shrink: 1x1 (56->12) + PReLU
        fea2 = prelu(jnp.dot(ws_ref[...], fea1,
                             preferred_element_type=jnp.float32) + bs_ref[...],
                     as_ref[...])
        fea2 = mask(fea2, E1, pd + 4, t, cmask)

        s12a[...] = jnp.zeros_like(s12a)
        s12b[...] = jnp.zeros_like(s12b)
        s12a[:, PW: PW + E1 * Wp] = fea2

        # map1..map4: 3x3 (12->12) + PReLU            (108-deep matmuls)
        bufs = (s12a, s12b)
        cur, n_rows = 0, E1
        fea6 = None
        for k in range(4):
            n_out = n_rows - 2
            z = conv(bufs[cur][...], taps3, n_out,
                     wm_ref[k], bm_ref[k], am_ref[k])
            z = mask(z, n_out, pd + 3 - k, t, cmask)
            if k < 3:
                bufs[1 - cur][:, PW: PW + n_out * Wp] = z
                cur = 1 - cur
            else:
                fea6 = z
            n_rows = n_out

        # expand: 1x1 (12->56) + PReLU
        fea7 = prelu(jnp.dot(we_ref[...], fea6,
                             preferred_element_type=jnp.float32) + be_ref[...],
                     ae_ref[...])
        fea7 = mask(fea7, E7, pd, t, cmask)
        s56[...] = jnp.zeros_like(s56)
        s56[:, PW: PW + E7 * Wp] = fea7

        # deconv: scale^2 sub-pixel convs fused into ONE (D*D*56)-deep matmul
        patch = im2col(s56[...], tapsd, TH)                 # (D*D*56, TH*Wp)
        out = jnp.dot(wd_ref[...], patch,
                      preferred_element_type=jnp.float32) + bd_ref[...]
        o_ref[...] = out.reshape(1, 1, ss * Cout, TH * Wp)

    return kernel


# ----------------------------------------------------------------------------
# Wrapper
# ----------------------------------------------------------------------------
def _auto_tile_rows(H, W, Cin, Cout, scale, pd, D, budget_bytes=12 * 1024 * 1024):
    """Largest row tile whose VMEM working set stays well under v7x's 64 MiB."""
    PW = max(2, pd)
    Wp = W + 2 * PW

    def est(TH):
        E_in = TH + 2 * (pd + 6)
        E1 = TH + 2 * (pd + 4)
        E7 = TH + 2 * pd
        elems = (2 * Cin * (E_in * Wp + 2 * PW)
                 + 2 * scale * scale * Cout * TH * Wp
                 + (25 * Cin + 3 * 56) * E1 * Wp
                 + (2 * 12 + 9 * 12) * E1 * Wp
                 + D * D * 56 * TH * Wp
                 + 2 * 56 * E7 * Wp)
        return 4 * elems

    for TH in sorted((d for d in range(1, H + 1) if H % d == 0), reverse=True):
        if est(TH) <= budget_bytes:
            return TH
    return 1


def bifsrcnnv5_forward(x_nchw, params, scale, tile_rows=None):
    """BIFSRCNNV5.forward(x, y=None): NCHW in, upscaled NCHW out."""
    N, Cin, H, W = x_nchw.shape
    x = x_nchw.astype(jnp.float32)

    wf, bf, af = params["feat"]
    ws, bs, as_ = params["shrink"]
    we, be, ae = params["expand"]
    w_dec, b_dec = params["deconv_w"], params["deconv_b"]
    Cout = w_dec.shape[1]
    K = w_dec.shape[2]
    pad_t = (K - 1) // 2                              # module: padding=4, out_pad=scale-1

    wd, bd, dmin, dmax, D = _deconv_subpixel(w_dec, b_dec, scale, pad_t, K)
    pd = max(dmax, -dmin)                             # fea7 context rows/cols needed
    PW = max(2, pd)                                   # uniform width padding
    Wp = W + 2 * PW

    if tile_rows is None:
        tile_rows = _auto_tile_rows(H, W, Cin, Cout, scale, pd, D)
    TH = tile_rows
    assert H % TH == 0, (H, TH)
    T = H // TH
    m_in = pd + 6                                     # total halo: 5x5 + 4*3x3 + deconv
    E_in = TH + 2 * m_in
    E1 = TH + 2 * (pd + 4)
    E7 = TH + 2 * pd
    ss = scale * scale
    L_in = E_in * Wp + 2 * PW

    # fold stride-1 conv weights (taps into contraction dim); reshape bias/slope
    wfm = _fold_conv_w(wf)
    wsm = _fold_conv_w(ws)
    wem = _fold_conv_w(we)
    wmm = jnp.stack([_fold_conv_w(params[f"map{i}"][0]) for i in range(1, 5)])
    bmm = jnp.stack([params[f"map{i}"][1].reshape(-1, 1) for i in range(1, 5)])
    amm = jnp.stack([params[f"map{i}"][2].reshape(-1, 1) for i in range(1, 5)])
    bf2, af2 = bf.reshape(-1, 1), af.reshape(-1, 1)
    bs2, as2 = bs.reshape(-1, 1), as_.reshape(-1, 1)
    be2, ae2 = be.reshape(-1, 1), ae.reshape(-1, 1)

    # width-padding column mask (periodic per row)
    col = jnp.zeros((Wp,), jnp.float32).at[PW:PW + W].set(1.0)
    cmask = jnp.tile(col, E1).reshape(1, E1 * Wp)

    # overlapping row windows of the (tiny, Cin-channel) low-res input,
    # flattened per row, with small slop at both ends for contiguous tap slices
    xp = jnp.pad(x, ((0, 0), (0, 0), (m_in, m_in), (PW, PW)))
    x_tiles = jnp.stack(
        [xp[:, :, t * TH: t * TH + E_in, :].reshape(N, Cin, E_in * Wp)
         for t in range(T)], axis=1)
    x_tiles = jnp.pad(x_tiles, ((0, 0), (0, 0), (0, 0), (PW, PW)))

    kernel = _make_fused_kernel(H=H, W=W, TH=TH, Cin=Cin, Cout=Cout, scale=scale,
                                pd=pd, dmin=dmin, D=D, PW=PW)

    def full(shape):
        return pl.BlockSpec(shape, lambda n, t: (0,) * len(shape))

    grid_spec = pltpu.PrefetchScalarGridSpec(
        num_scalar_prefetch=0,
        grid=(N, T),
        in_specs=[
            pl.BlockSpec((1, 1, Cin, L_in), lambda n, t: (n, t, 0, 0)),
            full(cmask.shape),
            full(wfm.shape), full(bf2.shape), full(af2.shape),
            full(wsm.shape), full(bs2.shape), full(as2.shape),
            full(wmm.shape), full(bmm.shape), full(amm.shape),
            full(wem.shape), full(be2.shape), full(ae2.shape),
            full(wd.shape), full(bd.shape),
        ],
        out_specs=pl.BlockSpec((1, 1, ss * Cout, TH * Wp),
                               lambda n, t: (n, t, 0, 0)),
        scratch_shapes=[
            pltpu.VMEM((12, E1 * Wp + 2 * PW), jnp.float32),
            pltpu.VMEM((12, E1 * Wp + 2 * PW), jnp.float32),
            pltpu.VMEM((56, E7 * Wp + 2 * PW), jnp.float32),
        ],
    )

    out = pl.pallas_call(
        kernel,
        out_shape=jax.ShapeDtypeStruct((N, T, ss * Cout, TH * Wp), jnp.float32),
        grid_spec=grid_spec,
        compiler_params=pltpu.CompilerParams(
            dimension_semantics=("parallel", "parallel"),   # both TCs on v7x
            vmem_limit_bytes=48 * 1024 * 1024),
    )(x_tiles, cmask,
      wfm, bf2, af2,
      wsm, bs2, as2,
      wmm, bmm, amm,
      wem, be2, ae2,
      wd, bd)

    # tiny depth-to-space + strip width padding (Cout=3 channels only)
    y = out.reshape(N, T, scale, scale, Cout, TH, Wp)[..., PW:PW + W]
    y = jnp.transpose(y, (0, 4, 1, 5, 2, 6, 3))
    return y.reshape(N, Cout, H * scale, W * scale)
    # TODO(synk): the y-branch of forward (bideconv/biexpand/bishrink/bifeature)
    # and the unused MeanShift layers are not implemented; this is the y=None path.


# ----------------------------------------------------------------------------
# Pure-JAX reference (for correctness check)
# ----------------------------------------------------------------------------
def _ref_conv(x, w, b, a, pad):
    y = jax.lax.conv_general_dilated(
        x, w, window_strides=(1, 1), padding=[(pad, pad), (pad, pad)],
        dimension_numbers=("NHWC", "HWIO", "NHWC"))
    y = y + b
    return jnp.where(y > 0, y, y * a)


def ref_forward(x_nchw, p, scale):
    x = jnp.transpose(x_nchw, (0, 2, 3, 1)).astype(jnp.float32)
    fea1 = _ref_conv(x, *p["feat"], 2)
    fea2 = _ref_conv(fea1, *p["shrink"], 0)
    fea3 = _ref_conv(fea2, *p["map1"], 1)
    fea4 = _ref_conv(fea3, *p["map2"], 1)
    fea5 = _ref_conv(fea4, *p["map3"], 1)
    fea6 = _ref_conv(fea5, *p["map4"], 1)
    fea7 = _ref_conv(fea6, *p["expand"], 0)
    w_t = p["deconv_w"]
    K = w_t.shape[-1]
    pad, out_pad = (K - 1) // 2, scale - 1
    w_eq = jnp.transpose(jnp.flip(w_t, axis=(2, 3)), (2, 3, 0, 1))
    y = jax.lax.conv_general_dilated(
        fea7, w_eq, window_strides=(1, 1),
        padding=[(K - 1 - pad, K - 1 - pad + out_pad)] * 2,
        lhs_dilation=(scale, scale),
        dimension_numbers=("NHWC", "HWIO", "NHWC"))
    y = y + p["deconv_b"]
    return jnp.transpose(y, (0, 3, 1, 2))


# ----------------------------------------------------------------------------
# Deterministic synthetic parameters (shapes mirror the PyTorch __init__)
# ----------------------------------------------------------------------------
def init_params(key, n_colors=3):
    def conv_p(k, kh, kw, cin, cout, w_std=0.1):
        kw_, kb_ = jax.random.split(k)
        w = jax.random.normal(kw_, (kh, kw, cin, cout), jnp.float32) * w_std
        b = jax.random.normal(kb_, (cout,), jnp.float32) * 0.01
        a = jnp.full((cout,), 0.25, jnp.float32)      # PReLU default slope
        return (w, b, a)

    keys = jax.random.split(key, 9)
    return {
        "feat":   conv_p(keys[0], 5, 5, n_colors, 56),
        "shrink": conv_p(keys[1], 1, 1, 56, 12),
        "map1":   conv_p(keys[2], 3, 3, 12, 12),
        "map2":   conv_p(keys[3], 3, 3, 12, 12),
        "map3":   conv_p(keys[4], 3, 3, 12, 12),
        "map4":   conv_p(keys[5], 3, 3, 12, 12),
        "expand": conv_p(keys[6], 1, 1, 12, 56),
        # ConvTranspose2d weight in PyTorch layout (Cin, Cout, KH, KW)
        "deconv_w": jax.random.normal(keys[7], (56, n_colors, 9, 9), jnp.float32) * 0.02,
        "deconv_b": jax.random.normal(keys[8], (n_colors,), jnp.float32) * 0.01,
    }


if __name__ == "__main__":
    scale = 2          # args.scale[0]
    n_colors = 3       # args.n_colors
    N, H, W = 2, 16, 16

    root = jax.random.PRNGKey(0)
    k_x, k_p = jax.random.split(root)
    x = jax.random.normal(k_x, (N, n_colors, H, W), jnp.float32)  # NCHW like PyTorch
    params = init_params(k_p, n_colors)

    ref = jax.block_until_ready(ref_forward(x, params, scale))

    # Run whole-image tiles (auto) and a 2-way spatial row split (halo+mask path).
    for th in (None, 8):
        out = jax.block_until_ready(bifsrcnnv5_forward(x, params, scale, tile_rows=th))
        assert out.shape == (N, n_colors, H * scale, W * scale), out.shape
        err = float(jnp.max(jnp.abs(out - ref)))
        assert jnp.allclose(out, ref, rtol=1e-4, atol=1e-3), err

    print("KERNEL_OK")
</pallas_src>

<mosaic_0001>
module attributes {stable_mosaic.version = 11 : i64} {
  func.func @kernel(%arg0: i32, %arg1: i32, %arg2: memref<1x1x3x644xf32, #tpu.memory_space<vmem>>, %arg3: memref<1x560xf32, #tpu.memory_space<vmem>>, %arg4: memref<56x75xf32, #tpu.memory_space<vmem>>, %arg5: memref<56x1xf32, #tpu.memory_space<vmem>>, %arg6: memref<56x1xf32, #tpu.memory_space<vmem>>, %arg7: memref<12x56xf32, #tpu.memory_space<vmem>>, %arg8: memref<12x1xf32, #tpu.memory_space<vmem>>, %arg9: memref<12x1xf32, #tpu.memory_space<vmem>>, %arg10: memref<4x12x108xf32, #tpu.memory_space<vmem>>, %arg11: memref<4x12x1xf32, #tpu.memory_space<vmem>>, %arg12: memref<4x12x1xf32, #tpu.memory_space<vmem>>, %arg13: memref<56x12xf32, #tpu.memory_space<vmem>>, %arg14: memref<56x1xf32, #tpu.memory_space<vmem>>, %arg15: memref<56x1xf32, #tpu.memory_space<vmem>>, %arg16: memref<12x1400xf32, #tpu.memory_space<vmem>>, %arg17: memref<12x1xf32, #tpu.memory_space<vmem>>, %arg18: memref<1x1x12x320xf32, #tpu.memory_space<vmem>>, %arg19: memref<12x564xf32, #tpu.memory_space<vmem>>, %arg20: memref<12x564xf32, #tpu.memory_space<vmem>>, %arg21: memref<56x404xf32, #tpu.memory_space<vmem>>) attributes {dimension_semantics = [#tpu.dimension_semantics<parallel>, #tpu.dimension_semantics<parallel>], iteration_bounds = array<i64: 2, 1>, scalar_prefetch = 0 : i64, scratch_operands = 3 : i64, tpu.core_type = #tpu.core_type<tc>, window_params = [{transform_indices = @transform_0, window_bounds = array<i64: 1, 1, 3, 644>}, {pipeline_mode = #tpu.pipeline_mode<synchronous>, transform_indices = @transform_1, window_bounds = array<i64: 1, 560>}, {pipeline_mode = #tpu.pipeline_mode<synchronous>, transform_indices = @transform_2, window_bounds = array<i64: 56, 75>}, {pipeline_mode = #tpu.pipeline_mode<synchronous>, transform_indices = @transform_3, window_bounds = array<i64: 56, 1>}, {pipeline_mode = #tpu.pipeline_mode<synchronous>, transform_indices = @transform_4, window_bounds = array<i64: 56, 1>}, {pipeline_mode = #tpu.pipeline_mode<synchronous>, transform_indices = @transform_5, window_bounds = array<i64: 12, 56>}, {pipeline_mode = #tpu.pipeline_mode<synchronous>, transform_indices = @transform_6, window_bounds = array<i64: 12, 1>}, {pipeline_mode = #tpu.pipeline_mode<synchronous>, transform_indices = @transform_7, window_bounds = array<i64: 12, 1>}, {pipeline_mode = #tpu.pipeline_mode<synchronous>, transform_indices = @transform_8, window_bounds = array<i64: 4, 12, 108>}, {pipeline_mode = #tpu.pipeline_mode<synchronous>, transform_indices = @transform_9, window_bounds = array<i64: 4, 12, 1>}, {pipeline_mode = #tpu.pipeline_mode<synchronous>, transform_indices = @transform_10, window_bounds = array<i64: 4, 12, 1>}, {pipeline_mode = #tpu.pipeline_mode<synchronous>, transform_indices = @transform_11, window_bounds = array<i64: 56, 12>}, {pipeline_mode = #tpu.pipeline_mode<synchronous>, transform_indices = @transform_12, window_bounds = array<i64: 56, 1>}, {pipeline_mode = #tpu.pipeline_mode<synchronous>, transform_indices = @transform_13, window_bounds = array<i64: 56, 1>}, {pipeline_mode = #tpu.pipeline_mode<synchronous>, transform_indices = @transform_14, window_bounds = array<i64: 12, 1400>}, {pipeline_mode = #tpu.pipeline_mode<synchronous>, transform_indices = @transform_15, window_bounds = array<i64: 12, 1>}, {transform_indices = @transform_16, window_bounds = array<i64: 1, 1, 12, 320>}]} {
    %c0 = arith.constant 0 : index
    %c0_0 = arith.constant 0 : index
    %0 = vector.load %arg3[%c0, %c0_0] : memref<1x560xf32, #tpu.memory_space<vmem>>, vector<1x560xf32>
    %c0_1 = arith.constant 0 : index
    %c0_2 = arith.constant 0 : index
    %c0_3 = arith.constant 0 : index
    %c0_4 = arith.constant 0 : index
    %1 = vector.load %arg2[%c0_1, %c0_2, %c0_3, %c0_4] : memref<1x1x3x644xf32, #tpu.memory_space<vmem>>, vector<1x1x3x644xf32>
    %2 = vector.shape_cast %1 : vector<1x1x3x644xf32> to vector<3x644xf32>
    %c0_5 = arith.constant 0 : index
    %c0_6 = arith.constant 0 : index
    %3 = vector.load %arg4[%c0_5, %c0_6] : memref<56x75xf32, #tpu.memory_space<vmem>>, vector<56x75xf32>
    %c0_7 = arith.constant 0 : index
    %c0_8 = arith.constant 0 : index
    %4 = vector.load %arg5[%c0_7, %c0_8] : memref<56x1xf32, #tpu.memory_space<vmem>>, vector<56x1xf32>
    %c0_9 = arith.constant 0 : index
    %c0_10 = arith.constant 0 : index
    %5 = vector.load %arg6[%c0_9, %c0_10] : memref<56x1xf32, #tpu.memory_space<vmem>>, vector<56x1xf32>
    %6 = vector.extract_strided_slice %2 {offsets = [0, 0], sizes = [3, 560], strides = [1, 1]} : vector<3x644xf32> to vector<3x560xf32>
    %7 = vector.extract_strided_slice %2 {offsets = [0, 1], sizes = [3, 560], strides = [1, 1]} : vector<3x644xf32> to vector<3x560xf32>
    %8 = vector.extract_strided_slice %2 {offsets = [0, 2], sizes = [3, 560], strides = [1, 1]} : vector<3x644xf32> to vector<3x560xf32>
    %9 = vector.extract_strided_slice %2 {offsets = [0, 3], sizes = [3, 560], strides = [1, 1]} : vector<3x644xf32> to vector<3x560xf32>
    %10 = vector.extract_strided_slice %2 {offsets = [0, 4], sizes = [3, 560], strides = [1, 1]} : vector<3x644xf32> to vector<3x560xf32>
    %11 = vector.extract_strided_slice %2 {offsets = [0, 20], sizes = [3, 560], strides = [1, 1]} : vector<3x644xf32> to vector<3x560xf32>
    %12 = vector.extract_strided_slice %2 {offsets = [0, 21], sizes = [3, 560], strides = [1, 1]} : vector<3x644xf32> to vector<3x560xf32>
    %13 = vector.extract_strided_slice %2 {offsets = [0, 22], sizes = [3, 560], strides = [1, 1]} : vector<3x644xf32> to vector<3x560xf32>
    %14 = vector.extract_strided_slice %2 {offsets = [0, 23], sizes = [3, 560], strides = [1, 1]} : vector<3x644xf32> to vector<3x560xf32>
    %15 = vector.extract_strided_slice %2 {offsets = [0, 24], sizes = [3, 560], strides = [1, 1]} : vector<3x644xf32> to vector<3x560xf32>
    %16 = vector.extract_strided_slice %2 {offsets = [0, 40], sizes = [3, 560], strides = [1, 1]} : vector<3x644xf32> to vector<3x560xf32>
    %17 = vector.extract_strided_slice %2 {offsets = [0, 41], sizes = [3, 560], strides = [1, 1]} : vector<3x644xf32> to vector<3x560xf32>
    %18 = vector.extract_strided_slice %2 {offsets = [0, 42], sizes = [3, 560], strides = [1, 1]} : vector<3x644xf32> to vector<3x560xf32>
    %19 = vector.extract_strided_slice %2 {offsets = [0, 43], sizes = [3, 560], strides = [1, 1]} : vector<3x644xf32> to vector<3x560xf32>
    %20 = vector.extract_strided_slice %2 {offsets = [0, 44], sizes = [3, 560], strides = [1, 1]} : vector<3x644xf32> to vector<3x560xf32>
    %21 = vector.extract_strided_slice %2 {offsets = [0, 60], sizes = [3, 560], strides = [1, 1]} : vector<3x644xf32> to vector<3x560xf32>
    %22 = vector.extract_strided_slice %2 {offsets = [0, 61], sizes = [3, 560], strides = [1, 1]} : vector<3x644xf32> to vector<3x560xf32>
    %23 = vector.extract_strided_slice %2 {offsets = [0, 62], sizes = [3, 560], strides = [1, 1]} : vector<3x644xf32> to vector<3x560xf32>
    %24 = vector.extract_strided_slice %2 {offsets = [0, 63], sizes = [3, 560], strides = [1, 1]} : vector<3x644xf32> to vector<3x560xf32>
    %25 = vector.extract_strided_slice %2 {offsets = [0, 64], sizes = [3, 560], strides = [1, 1]} : vector<3x644xf32> to vector<3x560xf32>
    %26 = vector.extract_strided_slice %2 {offsets = [0, 80], sizes = [3, 560], strides = [1, 1]} : vector<3x644xf32> to vector<3x560xf32>
    %27 = vector.extract_strided_slice %2 {offsets = [0, 81], sizes = [3, 560], strides = [1, 1]} : vector<3x644xf32> to vector<3x560xf32>
    %28 = vector.extract_strided_slice %2 {offsets = [0, 82], sizes = [3, 560], strides = [1, 1]} : vector<3x644xf32> to vector<3x560xf32>
    %29 = vector.extract_strided_slice %2 {offsets = [0, 83], sizes = [3, 560], strides = [1, 1]} : vector<3x644xf32> to vector<3x560xf32>
    %30 = vector.extract_strided_slice %2 {offsets = [0, 84], sizes = [3, 560], strides = [1, 1]} : vector<3x644xf32> to vector<3x560xf32>
    %31 = tpu.concatenate %6, %7, %8, %9, %10, %11, %12, %13, %14, %15, %16, %17, %18, %19, %20, %21 in 0 : vector<3x560xf32>, vector<3x560xf32>, vector<3x560xf32>, vector<3x560xf32>, vector<3x560xf32>, vector<3x560xf32>, vector<3x560xf32>, vector<3x560xf32>, vector<3x560xf32>, vector<3x560xf32>, vector<3x560xf32>, vector<3x560xf32>, vector<3x560xf32>, vector<3x560xf32>, vector<3x560xf32>, vector<3x560xf32> -> vector<48x560xf32>
    %32 = tpu.concatenate %22, %23, %24, %25, %26, %27, %28, %29, %30 in 0 : vector<3x560xf32>, vector<3x560xf32>, vector<3x560xf32>, vector<3x560xf32>, vector<3x560xf32>, vector<3x560xf32>, vector<3x560xf32>, vector<3x560xf32>, vector<3x560xf32> -> vector<27x560xf32>
    %33 = tpu.concatenate %31, %32 in 0 : vector<48x560xf32>, vector<27x560xf32> -> vector<75x560xf32>
    %cst = arith.constant dense<0.000000e+00> : vector<56x560xf32>
    %34 = tpu.matmul %3, %33, %cst {dimension_numbers = #tpu.dot_dimension_numbers<[1], [0], [0], [1], [0, 0, 1, 1], [], []>} : vector<56x75xf32>, vector<75x560xf32>, vector<56x560xf32> -> vector<56x560xf32>
    %35 = vector.broadcast %4 : vector<56x1xf32> to vector<56x560xf32>
    %36 = arith.addf %34, %35 : vector<56x560xf32>
    %cst_11 = arith.constant 0.000000e+00 : f32
    %37 = vector.broadcast %cst_11 : f32 to vector<56x560xf32>
    %38 = arith.cmpf ogt, %36, %37 : vector<56x560xf32>
    %39 = vector.broadcast %5 : vector<56x1xf32> to vector<56x560xf32>
    %40 = arith.mulf %36, %39 : vector<56x560xf32>
    %41 = arith.select %38, %36, %40 : vector<56x560xi1>, vector<56x560xf32>
    %c0_12 = arith.constant 0 : index
    %c0_13 = arith.constant 0 : index
    %42 = vector.load %arg7[%c0_12, %c0_13] : memref<12x56xf32, #tpu.memory_space<vmem>>, vector<12x56xf32>
    %cst_14 = arith.constant dense<0.000000e+00> : vector<12x560xf32>
    %43 = tpu.matmul %42, %41, %cst_14 {dimension_numbers = #tpu.dot_dimension_numbers<[1], [0], [0], [1], [0, 0, 1, 1], [], []>} : vector<12x56xf32>, vector<56x560xf32>, vector<12x560xf32> -> vector<12x560xf32>
    %c0_15 = arith.constant 0 : index
    %c0_16 = arith.constant 0 : index
    %44 = vector.load %arg8[%c0_15, %c0_16] : memref<12x1xf32, #tpu.memory_space<vmem>>, vector<12x1xf32>
    %45 = vector.broadcast %44 : vector<12x1xf32> to vector<12x560xf32>
    %46 = arith.addf %43, %45 : vector<12x560xf32>
    %c0_17 = arith.constant 0 : index
    %c0_18 = arith.constant 0 : index
    %47 = vector.load %arg9[%c0_17, %c0_18] : memref<12x1xf32, #tpu.memory_space<vmem>>, vector<12x1xf32>
    %cst_19 = arith.constant 0.000000e+00 : f32
    %48 = vector.broadcast %cst_19 : f32 to vector<12x560xf32>
    %49 = arith.cmpf ogt, %46, %48 : vector<12x560xf32>
    %50 = vector.broadcast %47 : vector<12x1xf32> to vector<12x560xf32>
    %51 = arith.mulf %46, %50 : vector<12x560xf32>
    %52 = arith.select %49, %46, %51 : vector<12x560xi1>, vector<12x560xf32>
    %c16_i32 = arith.constant 16 : i32
    %53 = arith.muli %arg1, %c16_i32 : i32
    %c6_i32 = arith.constant 6 : i32
    %54 = arith.subi %53, %c6_i32 : i32
    %c0_i32 = arith.constant 0 : i32
    %55 = arith.subi %c0_i32, %54 : i32
    %c0_i32_20 = arith.constant 0 : i32
    %56 = arith.maxsi %c0_i32_20, %55 : i32
    %c20_i32 = arith.constant 20 : i32
    %57 = arith.muli %56, %c20_i32 : i32
    %c16_i32_21 = arith.constant 16 : i32
    %58 = arith.subi %c16_i32_21, %54 : i32
    %c28_i32 = arith.constant 28 : i32
    %59 = arith.minsi %c28_i32, %58 : i32
    %c20_i32_22 = arith.constant 20 : i32
    %60 = arith.muli %59, %c20_i32_22 : i32
    %61 = tpu.iota {dimensions = array<i32: 1>} : vector<12x560xi32>
    %62 = vector.broadcast %57 : i32 to vector<12x560xi32>
    %63 = arith.cmpi sge, %61, %62 : vector<12x560xi32>
    %64 = vector.broadcast %60 : i32 to vector<12x560xi32>
    %65 = arith.cmpi slt, %61, %64 : vector<12x560xi32>
    %66 = arith.andi %63, %65 : vector<12x560xi1>
    %cst_23 = arith.constant 0.000000e+00 : f32
    %67 = vector.broadcast %cst_23 : f32 to vector<12x560xf32>
    %68 = arith.select %66, %52, %67 : vector<12x560xi1>, vector<12x560xf32>
    %69 = vector.broadcast %0 : vector<1x560xf32> to vector<12x560xf32>
    %70 = arith.mulf %68, %69 : vector<12x560xf32>
    %cst_24 = arith.constant 0.000000e+00 : f32
    %71 = vector.broadcast %cst_24 : f32 to vector<12x564xf32>
    %c0_25 = arith.constant 0 : index
    %c0_26 = arith.constant 0 : index
    %72 = vector.load %arg19[%c0_25, %c0_26] : memref<12x564xf32, #tpu.memory_space<vmem>>, vector<12x564xf32>
    tpu.vector_store %arg19[%c0_25, %c0_26], %71 {strides = array<i32>} : memref<12x564xf32, #tpu.memory_space<vmem>>, vector<12x564xf32>,
    %cst_27 = arith.constant 0.000000e+00 : f32
    %73 = vector.broadcast %cst_27 : f32 to vector<12x564xf32>
    %c0_28 = arith.constant 0 : index
    %c0_29 = arith.constant 0 : index
    %74 = vector.load %arg20[%c0_28, %c0_29] : memref<12x564xf32, #tpu.memory_space<vmem>>, vector<12x564xf32>
    tpu.vector_store %arg20[%c0_28, %c0_29], %73 {strides = array<i32>} : memref<12x564xf32, #tpu.memory_space<vmem>>, vector<12x564xf32>,
    %c0_30 = arith.constant 0 : index
    %c2 = arith.constant 2 : index
    %75 = vector.load %arg19[%c0_30, %c2] : memref<12x564xf32, #tpu.memory_space<vmem>>, vector<12x560xf32>
    tpu.vector_store %arg19[%c0_30, %c2], %70 {strides = array<i32>} : memref<12x564xf32, #tpu.memory_space<vmem>>, vector<12x560xf32>,
    %c0_31 = arith.constant 0 : index
    %c0_32 = arith.constant 0 : index
    %76 = vector.load %arg19[%c0_31, %c0_32] : memref<12x564xf32, #tpu.memory_space<vmem>>, vector<12x564xf32>
    %c0_33 = arith.constant 0 : index
    %c0_34 = arith.constant 0 : index
    %c0_35 = arith.constant 0 : index
    %77 = vector.load %arg10[%c0_33, %c0_34, %c0_35] : memref<4x12x108xf32, #tpu.memory_space<vmem>>, vector<1x12x108xf32>
    %78 = vector.shape_cast %77 : vector<1x12x108xf32> to vector<12x108xf32>
    %c0_36 = arith.constant 0 : index
    %c0_37 = arith.constant 0 : index
    %c0_38 = arith.constant 0 : index
    %79 = vector.load %arg11[%c0_36, %c0_37, %c0_38] : memref<4x12x1xf32, #tpu.memory_space<vmem>>, vector<1x12x1xf32>
    %80 = vector.shape_cast %79 : vector<1x12x1xf32> to vector<12x1xf32>
    %c0_39 = arith.constant 0 : index
    %c0_40 = arith.constant 0 : index
    %c0_41 = arith.constant 0 : index
    %81 = vector.load %arg12[%c0_39, %c0_40, %c0_41] : memref<4x12x1xf32, #tpu.memory_space<vmem>>, vector<1x12x1xf32>
    %82 = vector.shape_cast %81 : vector<1x12x1xf32> to vector<12x1xf32>
    %83 = vector.extract_strided_slice %76 {offsets = [0, 1], sizes = [12, 520], strides = [1, 1]} : vector<12x564xf32> to vector<12x520xf32>
    %84 = vector.extract_strided_slice %76 {offsets = [0, 2], sizes = [12, 520], strides = [1, 1]} : vector<12x564xf32> to vector<12x520xf32>
    %85 = vector.extract_strided_slice %76 {offsets = [0, 3], sizes = [12, 520], strides = [1, 1]} : vector<12x564xf32> to vector<12x520xf32>
    %86 = vector.extract_strided_slice %76 {offsets = [0, 21], sizes = [12, 520], strides = [1, 1]} : vector<12x564xf32> to vector<12x520xf32>
    %87 = vector.extract_strided_slice %76 {offsets = [0, 22], sizes = [12, 520], strides = [1, 1]} : vector<12x564xf32> to vector<12x520xf32>
    %88 = vector.extract_strided_slice %76 {offsets = [0, 23], sizes = [12, 520], strides = [1, 1]} : vector<12x564xf32> to vector<12x520xf32>
    %89 = vector.extract_strided_slice %76 {offsets = [0, 41], sizes = [12, 520], strides = [1, 1]} : vector<12x564xf32> to vector<12x520xf32>
    %90 = vector.extract_strided_slice %76 {offsets = [0, 42], sizes = [12, 520], strides = [1, 1]} : vector<12x564xf32> to vector<12x520xf32>
    %91 = vector.extract_strided_slice %76 {offsets = [0, 43], sizes = [12, 520], strides = [1, 1]} : vector<12x564xf32> to vector<12x520xf32>
    %92 = tpu.concatenate %83, %84, %85, %86, %87, %88, %89, %90, %91 in 0 : vector<12x520xf32>, vector<12x520xf32>, vector<12x520xf32>, vector<12x520xf32>, vector<12x520xf32>, vector<12x520xf32>, vector<12x520xf32>, vector<12x520xf32>, vector<12x520xf32> -> vector<108x520xf32>
    %cst_42 = arith.constant dense<0.000000e+00> : vector<12x520xf32>
    %93 = tpu.matmul %78, %92, %cst_42 {dimension_numbers = #tpu.dot_dimension_numbers<[1], [0], [0], [1], [0, 0, 1, 1], [], []>} : vector<12x108xf32>, vector<108x520xf32>, vector<12x520xf32> -> vector<12x520xf32>
    %94 = vector.broadcast %80 : vector<12x1xf32> to vector<12x520xf32>
    %95 = arith.addf %93, %94 : vector<12x520xf32>
    %cst_43 = arith.constant 0.000000e+00 : f32
    %96 = vector.broadcast %cst_43 : f32 to vector<12x520xf32>
    %97 = arith.cmpf ogt, %95, %96 : vector<12x520xf32>
    %98 = vector.broadcast %82 : vector<12x1xf32> to vector<12x520xf32>
    %99 = arith.mulf %95, %98 : vector<12x520xf32>
    %100 = arith.select %97, %95, %99 : vector<12x520xi1>, vector<12x520xf32>
    %c16_i32_44 = arith.constant 16 : i32
    %101 = arith.muli %arg1, %c16_i32_44 : i32
    %c5_i32 = arith.constant 5 : i32
    %102 = arith.subi %101, %c5_i32 : i32
    %c0_i32_45 = arith.constant 0 : i32
    %103 = arith.subi %c0_i32_45, %102 : i32
    %c0_i32_46 = arith.constant 0 : i32
    %104 = arith.maxsi %c0_i32_46, %103 : i32
    %c20_i32_47 = arith.constant 20 : i32
    %105 = arith.muli %104, %c20_i32_47 : i32
    %c16_i32_48 = arith.constant 16 : i32
    %106 = arith.subi %c16_i32_48, %102 : i32
    %c26_i32 = arith.constant 26 : i32
    %107 = arith.minsi %c26_i32, %106 : i32
    %c20_i32_49 = arith.constant 20 : i32
    %108 = arith.muli %107, %c20_i32_49 : i32
    %109 = tpu.iota {dimensions = array<i32: 1>} : vector<12x520xi32>
    %110 = vector.broadcast %105 : i32 to vector<12x520xi32>
    %111 = arith.cmpi sge, %109, %110 : vector<12x520xi32>
    %112 = vector.broadcast %108 : i32 to vector<12x520xi32>
    %113 = arith.cmpi slt, %109, %112 : vector<12x520xi32>
    %114 = arith.andi %111, %113 : vector<12x520xi1>
    %cst_50 = arith.constant 0.000000e+00 : f32
    %115 = vector.broadcast %cst_50 : f32 to vector<12x520xf32>
    %116 = arith.select %114, %100, %115 : vector<12x520xi1>, vector<12x520xf32>
    %117 = vector.extract_strided_slice %0 {offsets = [0, 0], sizes = [1, 520], strides = [1, 1]} : vector<1x560xf32> to vector<1x520xf32>
    %118 = vector.broadcast %117 : vector<1x520xf32> to vector<12x520xf32>
    %119 = arith.mulf %116, %118 : vector<12x520xf32>
    %c0_51 = arith.constant 0 : index
    %c2_52 = arith.constant 2 : index
    %120 = vector.load %arg20[%c0_51, %c2_52] : memref<12x564xf32, #tpu.memory_space<vmem>>, vector<12x520xf32>
    tpu.vector_store %arg20[%c0_51, %c2_52], %119 {strides = array<i32>} : memref<12x564xf32, #tpu.memory_space<vmem>>, vector<12x520xf32>,
    %c0_53 = arith.constant 0 : index
    %c0_54 = arith.constant 0 : index
    %121 = vector.load %arg20[%c0_53, %c0_54] : memref<12x564xf32, #tpu.memory_space<vmem>>, vector<12x564xf32>
    %c1 = arith.constant 1 : index
    %c0_55 = arith.constant 0 : index
    %c0_56 = arith.constant 0 : index
    %122 = vector.load %arg10[%c1, %c0_55, %c0_56] : memref<4x12x108xf32, #tpu.memory_space<vmem>>, vector<1x12x108xf32>
    %123 = vector.shape_cast %122 : vector<1x12x108xf32> to vector<12x108xf32>
    %c1_57 = arith.constant 1 : index
    %c0_58 = arith.constant 0 : index
    %c0_59 = arith.constant 0 : index
    %124 = vector.load %arg11[%c1_57, %c0_58, %c0_59] : memref<4x12x1xf32, #tpu.memory_space<vmem>>, vector<1x12x1xf32>
    %125 = vector.shape_cast %124 : vector<1x12x1xf32> to vector<12x1xf32>
    %c1_60 = arith.constant 1 : index
    %c0_61 = arith.constant 0 : index
    %c0_62 = arith.constant 0 : index
    %126 = vector.load %arg12[%c1_60, %c0_61, %c0_62] : memref<4x12x1xf32, #tpu.memory_space<vmem>>, vector<1x12x1xf32>
    %127 = vector.shape_cast %126 : vector<1x12x1xf32> to vector<12x1xf32>
    %128 = vector.extract_strided_slice %121 {offsets = [0, 1], sizes = [12, 480], strides = [1, 1]} : vector<12x564xf32> to vector<12x480xf32>
    %129 = vector.extract_strided_slice %121 {offsets = [0, 2], sizes = [12, 480], strides = [1, 1]} : vector<12x564xf32> to vector<12x480xf32>
    %130 = vector.extract_strided_slice %121 {offsets = [0, 3], sizes = [12, 480], strides = [1, 1]} : vector<12x564xf32> to vector<12x480xf32>
    %131 = vector.extract_strided_slice %121 {offsets = [0, 21], sizes = [12, 480], strides = [1, 1]} : vector<12x564xf32> to vector<12x480xf32>
    %132 = vector.extract_strided_slice %121 {offsets = [0, 22], sizes = [12, 480], strides = [1, 1]} : vector<12x564xf32> to vector<12x480xf32>
    %133 = vector.extract_strided_slice %121 {offsets = [0, 23], sizes = [12, 480], strides = [1, 1]} : vector<12x564xf32> to vector<12x480xf32>
    %134 = vector.extract_strided_slice %121 {offsets = [0, 41], sizes = [12, 480], strides = [1, 1]} : vector<12x564xf32> to vector<12x480xf32>
    %135 = vector.extract_strided_slice %121 {offsets = [0, 42], sizes = [12, 480], strides = [1, 1]} : vector<12x564xf32> to vector<12x480xf32>
    %136 = vector.extract_strided_slice %121 {offsets = [0, 43], sizes = [12, 480], strides = [1, 1]} : vector<12x564xf32> to vector<12x480xf32>
    %137 = tpu.concatenate %128, %129, %130, %131, %132, %133, %134, %135, %136 in 0 : vector<12x480xf32>, vector<12x480xf32>, vector<12x480xf32>, vector<12x480xf32>, vector<12x480xf32>, vector<12x480xf32>, vector<12x480xf32>, vector<12x480xf32>, vector<12x480xf32> -> vector<108x480xf32>
    %cst_63 = arith.constant dense<0.000000e+00> : vector<12x480xf32>
    %138 = tpu.matmul %123, %137, %cst_63 {dimension_numbers = #tpu.dot_dimension_numbers<[1], [0], [0], [1], [0, 0, 1, 1], [], []>} : vector<12x108xf32>, vector<108x480xf32>, vector<12x480xf32> -> vector<12x480xf32>
    %139 = vector.broadcast %125 : vector<12x1xf32> to vector<12x480xf32>
    %140 = arith.addf %138, %139 : vector<12x480xf32>
    %cst_64 = arith.constant 0.000000e+00 : f32
    %141 = vector.broadcast %cst_64 : f32 to vector<12x480xf32>
    %142 = arith.cmpf ogt, %140, %141 : vector<12x480xf32>
    %143 = vector.broadcast %127 : vector<12x1xf32> to vector<12x480xf32>
    %144 = arith.mulf %140, %143 : vector<12x480xf32>
    %145 = arith.select %142, %140, %144 : vector<12x480xi1>, vector<12x480xf32>
    %c16_i32_65 = arith.constant 16 : i32
    %146 = arith.muli %arg1, %c16_i32_65 : i32
    %c4_i32 = arith.constant 4 : i32
    %147 = arith.subi %146, %c4_i32 : i32
    %c0_i32_66 = arith.constant 0 : i32
    %148 = arith.subi %c0_i32_66, %147 : i32
    %c0_i32_67 = arith.constant 0 : i32
    %149 = arith.maxsi %c0_i32_67, %148 : i32
    %c20_i32_68 = arith.constant 20 : i32
    %150 = arith.muli %149, %c20_i32_68 : i32
    %c16_i32_69 = arith.constant 16 : i32
    %151 = arith.subi %c16_i32_69, %147 : i32
    %c24_i32 = arith.constant 24 : i32
    %152 = arith.minsi %c24_i32, %151 : i32
    %c20_i32_70 = arith.constant 20 : i32
    %153 = arith.muli %152, %c20_i32_70 : i32
    %154 = tpu.iota {dimensions = array<i32: 1>} : vector<12x480xi32>
    %155 = vector.broadcast %150 : i32 to vector<12x480xi32>
    %156 = arith.cmpi sge, %154, %155 : vector<12x480xi32>
    %157 = vector.broadcast %153 : i32 to vector<12x480xi32>
    %158 = arith.cmpi slt, %154, %157 : vector<12x480xi32>
    %159 = arith.andi %156, %158 : vector<12x480xi1>
    %cst_71 = arith.constant 0.000000e+00 : f32
    %160 = vector.broadcast %cst_71 : f32 to vector<12x480xf32>
    %161 = arith.select %159, %145, %160 : vector<12x480xi1>, vector<12x480xf32>
    %162 = vector.extract_strided_slice %0 {offsets = [0, 0], sizes = [1, 480], strides = [1, 1]} : vector<1x560xf32> to vector<1x480xf32>
    %163 = vector.broadcast %162 : vector<1x480xf32> to vector<12x480xf32>
    %164 = arith.mulf %161, %163 : vector<12x480xf32>
    %c0_72 = arith.constant 0 : index
    %c2_73 = arith.constant 2 : index
    %165 = vector.load %arg19[%c0_72, %c2_73] : memref<12x564xf32, #tpu.memory_space<vmem>>, vector<12x480xf32>
    tpu.vector_store %arg19[%c0_72, %c2_73], %164 {strides = array<i32>} : memref<12x564xf32, #tpu.memory_space<vmem>>, vector<12x480xf32>,
    %c0_74 = arith.constant 0 : index
    %c0_75 = arith.constant 0 : index
    %166 = vector.load %arg19[%c0_74, %c0_75] : memref<12x564xf32, #tpu.memory_space<vmem>>, vector<12x564xf32>
    %c2_76 = arith.constant 2 : index
    %c0_77 = arith.constant 0 : index
    %c0_78 = arith.constant 0 : index
    %167 = vector.load %arg10[%c2_76, %c0_77, %c0_78] : memref<4x12x108xf32, #tpu.memory_space<vmem>>, vector<1x12x108xf32>
    %168 = vector.shape_cast %167 : vector<1x12x108xf32> to vector<12x108xf32>
    %c2_79 = arith.constant 2 : index
    %c0_80 = arith.constant 0 : index
    %c0_81 = arith.constant 0 : index
    %169 = vector.load %arg11[%c2_79, %c0_80, %c0_81] : memref<4x12x1xf32, #tpu.memory_space<vmem>>, vector<1x12x1xf32>
    %170 = vector.shape_cast %169 : vector<1x12x1xf32> to vector<12x1xf32>
    %c2_82 = arith.constant 2 : index
    %c0_83 = arith.constant 0 : index
    %c0_84 = arith.constant 0 : index
    %171 = vector.load %arg12[%c2_82, %c0_83, %c0_84] : memref<4x12x1xf32, #tpu.memory_space<vmem>>, vector<1x12x1xf32>
    %172 = vector.shape_cast %171 : vector<1x12x1xf32> to vector<12x1xf32>
    %173 = vector.extract_strided_slice %166 {offsets = [0, 1], sizes = [12, 440], strides = [1, 1]} : vector<12x564xf32> to vector<12x440xf32>
    %174 = vector.extract_strided_slice %166 {offsets = [0, 2], sizes = [12, 440], strides = [1, 1]} : vector<12x564xf32> to vector<12x440xf32>
    %175 = vector.extract_strided_slice %166 {offsets = [0, 3], sizes = [12, 440], strides = [1, 1]} : vector<12x564xf32> to vector<12x440xf32>
    %176 = vector.extract_strided_slice %166 {offsets = [0, 21], sizes = [12, 440], strides = [1, 1]} : vector<12x564xf32> to vector<12x440xf32>
    %177 = vector.extract_strided_slice %166 {offsets = [0, 22], sizes = [12, 440], strides = [1, 1]} : vector<12x564xf32> to vector<12x440xf32>
    %178 = vector.extract_strided_slice %166 {offsets = [0, 23], sizes = [12, 440], strides = [1, 1]} : vector<12x564xf32> to vector<12x440xf32>
    %179 = vector.extract_strided_slice %166 {offsets = [0, 41], sizes = [12, 440], strides = [1, 1]} : vector<12x564xf32> to vector<12x440xf32>
    %180 = vector.extract_strided_slice %166 {offsets = [0, 42], sizes = [12, 440], strides = [1, 1]} : vector<12x564xf32> to vector<12x440xf32>
    %181 = vector.extract_strided_slice %166 {offsets = [0, 43], sizes = [12, 440], strides = [1, 1]} : vector<12x564xf32> to vector<12x440xf32>
    %182 = tpu.concatenate %173, %174, %175, %176, %177, %178, %179, %180, %181 in 0 : vector<12x440xf32>, vector<12x440xf32>, vector<12x440xf32>, vector<12x440xf32>, vector<12x440xf32>, vector<12x440xf32>, vector<12x440xf32>, vector<12x440xf32>, vector<12x440xf32> -> vector<108x440xf32>
    %cst_85 = arith.constant dense<0.000000e+00> : vector<12x440xf32>
    %183 = tpu.matmul %168, %182, %cst_85 {dimension_numbers = #tpu.dot_dimension_numbers<[1], [0], [0], [1], [0, 0, 1, 1], [], []>} : vector<12x108xf32>, vector<108x440xf32>, vector<12x440xf32> -> vector<12x440xf32>
    %184 = vector.broadcast %170 : vector<12x1xf32> to vector<12x440xf32>
    %185 = arith.addf %183, %184 : vector<12x440xf32>
    %cst_86 = arith.constant 0.000000e+00 : f32
    %186 = vector.broadcast %cst_86 : f32 to vector<12x440xf32>
    %187 = arith.cmpf ogt, %185, %186 : vector<12x440xf32>
    %188 = vector.broadcast %172 : vector<12x1xf32> to vector<12x440xf32>
    %189 = arith.mulf %185, %188 : vector<12x440xf32>
    %190 = arith.select %187, %185, %189 : vector<12x440xi1>, vector<12x440xf32>
    %c16_i32_87 = arith.constant 16 : i32
    %191 = arith.muli %arg1, %c16_i32_87 : i32
    %c3_i32 = arith.constant 3 : i32
    %192 = arith.subi %191, %c3_i32 : i32
    %c0_i32_88 = arith.constant 0 : i32
    %193 = arith.subi %c0_i32_88, %192 : i32
    %c0_i32_89 = arith.constant 0 : i32
    %194 = arith.maxsi %c0_i32_89, %193 : i32
    %c20_i32_90 = arith.constant 20 : i32
    %195 = arith.muli %194, %c20_i32_90 : i32
    %c16_i32_91 = arith.constant 16 : i32
    %196 = arith.subi %c16_i32_91, %192 : i32
    %c22_i32 = arith.constant 22 : i32
    %197 = arith.minsi %c22_i32, %196 : i32
    %c20_i32_92 = arith.constant 20 : i32
    %198 = arith.muli %197, %c20_i32_92 : i32
    %199 = tpu.iota {dimensions = array<i32: 1>} : vector<12x440xi32>
    %200 = vector.broadcast %195 : i32 to vector<12x440xi32>
    %201 = arith.cmpi sge, %199, %200 : vector<12x440xi32>
    %202 = vector.broadcast %198 : i32 to vector<12x440xi32>
    %203 = arith.cmpi slt, %199, %202 : vector<12x440xi32>
    %204 = arith.andi %201, %203 : vector<12x440xi1>
    %cst_93 = arith.constant 0.000000e+00 : f32
    %205 = vector.broadcast %cst_93 : f32 to vector<12x440xf32>
    %206 = arith.select %204, %190, %205 : vector<12x440xi1>, vector<12x440xf32>
    %207 = vector.extract_strided_slice %0 {offsets = [0, 0], sizes = [1, 440], strides = [1, 1]} : vector<1x560xf32> to vector<1x440xf32>
    %208 = vector.broadcast %207 : vector<1x440xf32> to vector<12x440xf32>
    %209 = arith.mulf %206, %208 : vector<12x440xf32>
    %c0_94 = arith.constant 0 : index
    %c2_95 = arith.constant 2 : index
    %210 = vector.load %arg20[%c0_94, %c2_95] : memref<12x564xf32, #tpu.memory_space<vmem>>, vector<12x440xf32>
    tpu.vector_store %arg20[%c0_94, %c2_95], %209 {strides = array<i32>} : memref<12x564xf32, #tpu.memory_space<vmem>>, vector<12x440xf32>,
    %c0_96 = arith.constant 0 : index
    %c0_97 = arith.constant 0 : index
    %211 = vector.load %arg20[%c0_96, %c0_97] : memref<12x564xf32, #tpu.memory_space<vmem>>, vector<12x564xf32>
    %c3 = arith.constant 3 : index
    %c0_98 = arith.constant 0 : index
    %c0_99 = arith.constant 0 : index
    %212 = vector.load %arg10[%c3, %c0_98, %c0_99] : memref<4x12x108xf32, #tpu.memory_space<vmem>>, vector<1x12x108xf32>
    %213 = vector.shape_cast %212 : vector<1x12x108xf32> to vector<12x108xf32>
    %c3_100 = arith.constant 3 : index
    %c0_101 = arith.constant 0 : index
    %c0_102 = arith.constant 0 : index
    %214 = vector.load %arg11[%c3_100, %c0_101, %c0_102] : memref<4x12x1xf32, #tpu.memory_space<vmem>>, vector<1x12x1xf32>
    %215 = vector.shape_cast %214 : vector<1x12x1xf32> to vector<12x1xf32>
    %c3_103 = arith.constant 3 : index
    %c0_104 = arith.constant 0 : index
    %c0_105 = arith.constant 0 : index
    %216 = vector.load %arg12[%c3_103, %c0_104, %c0_105] : memref<4x12x1xf32, #tpu.memory_space<vmem>>, vector<1x12x1xf32>
    %217 = vector.shape_cast %216 : vector<1x12x1xf32> to vector<12x1xf32>
    %218 = vector.extract_strided_slice %211 {offsets = [0, 1], sizes = [12, 400], strides = [1, 1]} : vector<12x564xf32> to vector<12x400xf32>
    %219 = vector.extract_strided_slice %211 {offsets = [0, 2], sizes = [12, 400], strides = [1, 1]} : vector<12x564xf32> to vector<12x400xf32>
    %220 = vector.extract_strided_slice %211 {offsets = [0, 3], sizes = [12, 400], strides = [1, 1]} : vector<12x564xf32> to vector<12x400xf32>
    %221 = vector.extract_strided_slice %211 {offsets = [0, 21], sizes = [12, 400], strides = [1, 1]} : vector<12x564xf32> to vector<12x400xf32>
    %222 = vector.extract_strided_slice %211 {offsets = [0, 22], sizes = [12, 400], strides = [1, 1]} : vector<12x564xf32> to vector<12x400xf32>
    %223 = vector.extract_strided_slice %211 {offsets = [0, 23], sizes = [12, 400], strides = [1, 1]} : vector<12x564xf32> to vector<12x400xf32>
    %224 = vector.extract_strided_slice %211 {offsets = [0, 41], sizes = [12, 400], strides = [1, 1]} : vector<12x564xf32> to vector<12x400xf32>
    %225 = vector.extract_strided_slice %211 {offsets = [0, 42], sizes = [12, 400], strides = [1, 1]} : vector<12x564xf32> to vector<12x400xf32>
    %226 = vector.extract_strided_slice %211 {offsets = [0, 43], sizes = [12, 400], strides = [1, 1]} : vector<12x564xf32> to vector<12x400xf32>
    %227 = tpu.concatenate %218, %219, %220, %221, %222, %223, %224, %225, %226 in 0 : vector<12x400xf32>, vector<12x400xf32>, vector<12x400xf32>, vector<12x400xf32>, vector<12x400xf32>, vector<12x400xf32>, vector<12x400xf32>, vector<12x400xf32>, vector<12x400xf32> -> vector<108x400xf32>
    %cst_106 = arith.constant dense<0.000000e+00> : vector<12x400xf32>
    %228 = tpu.matmul %213, %227, %cst_106 {dimension_numbers = #tpu.dot_dimension_numbers<[1], [0], [0], [1], [0, 0, 1, 1], [], []>} : vector<12x108xf32>, vector<108x400xf32>, vector<12x400xf32> -> vector<12x400xf32>
    %229 = vector.broadcast %215 : vector<12x1xf32> to vector<12x400xf32>
    %230 = arith.addf %228, %229 : vector<12x400xf32>
    %cst_107 = arith.constant 0.000000e+00 : f32
    %231 = vector.broadcast %cst_107 : f32 to vector<12x400xf32>
    %232 = arith.cmpf ogt, %230, %231 : vector<12x400xf32>
    %233 = vector.broadcast %217 : vector<12x1xf32> to vector<12x400xf32>
    %234 = arith.mulf %230, %233 : vector<12x400xf32>
    %235 = arith.select %232, %230, %234 : vector<12x400xi1>, vector<12x400xf32>
    %c16_i32_108 = arith.constant 16 : i32
    %236 = arith.muli %arg1, %c16_i32_108 : i32
    %c2_i32 = arith.constant 2 : i32
    %237 = arith.subi %236, %c2_i32 : i32
    %c0_i32_109 = arith.constant 0 : i32
    %238 = arith.subi %c0_i32_109, %237 : i32
    %c0_i32_110 = arith.constant 0 : i32
    %239 = arith.maxsi %c0_i32_110, %238 : i32
    %c20_i32_111 = arith.constant 20 : i32
    %240 = arith.muli %239, %c20_i32_111 : i32
    %c16_i32_112 = arith.constant 16 : i32
    %241 = arith.subi %c16_i32_112, %237 : i32
    %c20_i32_113 = arith.constant 20 : i32
    %242 = arith.minsi %c20_i32_113, %241 : i32
    %c20_i32_114 = arith.constant 20 : i32
    %243 = arith.muli %242, %c20_i32_114 : i32
    %244 = tpu.iota {dimensions = array<i32: 1>} : vector<12x400xi32>
    %245 = vector.broadcast %240 : i32 to vector<12x400xi32>
    %246 = arith.cmpi sge, %244, %245 : vector<12x400xi32>
    %247 = vector.broadcast %243 : i32 to vector<12x400xi32>
    %248 = arith.cmpi slt, %244, %247 : vector<12x400xi32>
    %249 = arith.andi %246, %248 : vector<12x400xi1>
    %cst_115 = arith.constant 0.000000e+00 : f32
    %250 = vector.broadcast %cst_115 : f32 to vector<12x400xf32>
    %251 = arith.select %249, %235, %250 : vector<12x400xi1>, vector<12x400xf32>
    %252 = vector.extract_strided_slice %0 {offsets = [0, 0], sizes = [1, 400], strides = [1, 1]} : vector<1x560xf32> to vector<1x400xf32>
    %253 = vector.broadcast %252 : vector<1x400xf32> to vector<12x400xf32>
    %254 = arith.mulf %251, %253 : vector<12x400xf32>
    %c0_116 = arith.constant 0 : index
    %c0_117 = arith.constant 0 : index
    %255 = vector.load %arg13[%c0_116, %c0_117] : memref<56x12xf32, #tpu.memory_space<vmem>>, vector<56x12xf32>
    %cst_118 = arith.constant dense<0.000000e+00> : vector<56x400xf32>
    %256 = tpu.matmul %255, %254, %cst_118 {dimension_numbers = #tpu.dot_dimension_numbers<[1], [0], [0], [1], [0, 0, 1, 1], [], []>} : vector<56x12xf32>, vector<12x400xf32>, vector<56x400xf32> -> vector<56x400xf32>
    %c0_119 = arith.constant 0 : index
    %c0_120 = arith.constant 0 : index
    %257 = vector.load %arg14[%c0_119, %c0_120] : memref<56x1xf32, #tpu.memory_space<vmem>>, vector<56x1xf32>
    %258 = vector.broadcast %257 : vector<56x1xf32> to vector<56x400xf32>
    %259 = arith.addf %256, %258 : vector<56x400xf32>
    %c0_121 = arith.constant 0 : index
    %c0_122 = arith.constant 0 : index
    %260 = vector.load %arg15[%c0_121, %c0_122] : memref<56x1xf32, #tpu.memory_space<vmem>>, vector<56x1xf32>
    %cst_123 = arith.constant 0.000000e+00 : f32
    %261 = vector.broadcast %cst_123 : f32 to vector<56x400xf32>
    %262 = arith.cmpf ogt, %259, %261 : vector<56x400xf32>
    %263 = vector.broadcast %260 : vector<56x1xf32> to vector<56x400xf32>
    %264 = arith.mulf %259, %263 : vector<56x400xf32>
    %265 = arith.select %262, %259, %264 : vector<56x400xi1>, vector<56x400xf32>
    %c16_i32_124 = arith.constant 16 : i32
    %266 = arith.muli %arg1, %c16_i32_124 : i32
    %c2_i32_125 = arith.constant 2 : i32
    %267 = arith.subi %266, %c2_i32_125 : i32
    %c0_i32_126 = arith.constant 0 : i32
    %268 = arith.subi %c0_i32_126, %267 : i32
    %c0_i32_127 = arith.constant 0 : i32
    %269 = arith.maxsi %c0_i32_127, %268 : i32
    %c20_i32_128 = arith.constant 20 : i32
    %270 = arith.muli %269, %c20_i32_128 : i32
    %c16_i32_129 = arith.constant 16 : i32
    %271 = arith.subi %c16_i32_129, %267 : i32
    %c20_i32_130 = arith.constant 20 : i32
    %272 = arith.minsi %c20_i32_130, %271 : i32
    %c20_i32_131 = arith.constant 20 : i32
    %273 = arith.muli %272, %c20_i32_131 : i32
    %274 = tpu.iota {dimensions = array<i32: 1>} : vector<56x400xi32>
    %275 = vector.broadcast %270 : i32 to vector<56x400xi32>
    %276 = arith.cmpi sge, %274, %275 : vector<56x400xi32>
    %277 = vector.broadcast %273 : i32 to vector<56x400xi32>
    %278 = arith.cmpi slt, %274, %277 : vector<56x400xi32>
    %279 = arith.andi %276, %278 : vector<56x400xi1>
    %cst_132 = arith.constant 0.000000e+00 : f32
    %280 = vector.broadcast %cst_132 : f32 to vector<56x400xf32>
    %281 = arith.select %279, %265, %280 : vector<56x400xi1>, vector<56x400xf32>
    %282 = vector.extract_strided_slice %0 {offsets = [0, 0], sizes = [1, 400], strides = [1, 1]} : vector<1x560xf32> to vector<1x400xf32>
    %283 = vector.broadcast %282 : vector<1x400xf32> to vector<56x400xf32>
    %284 = arith.mulf %281, %283 : vector<56x400xf32>
    %cst_133 = arith.constant 0.000000e+00 : f32
    %285 = vector.broadcast %cst_133 : f32 to vector<56x404xf32>
    %c0_134 = arith.constant 0 : index
    %c0_135 = arith.constant 0 : index
    %286 = vector.load %arg21[%c0_134, %c0_135] : memref<56x404xf32, #tpu.memory_space<vmem>>, vector<56x404xf32>
    tpu.vector_store %arg21[%c0_134, %c0_135], %285 {strides = array<i32>} : memref<56x404xf32, #tpu.memory_space<vmem>>, vector<56x404xf32>,
    %c0_136 = arith.constant 0 : index
    %c2_137 = arith.constant 2 : index
    %287 = vector.load %arg21[%c0_136, %c2_137] : memref<56x404xf32, #tpu.memory_space<vmem>>, vector<56x400xf32>
    tpu.vector_store %arg21[%c0_136, %c2_137], %284 {strides = array<i32>} : memref<56x404xf32, #tpu.memory_space<vmem>>, vector<56x400xf32>,
    %c0_138 = arith.constant 0 : index
    %c0_139 = arith.constant 0 : index
    %288 = vector.load %arg21[%c0_138, %c0_139] : memref<56x404xf32, #tpu.memory_space<vmem>>, vector<56x404xf32>
    %289 = vector.extract_strided_slice %288 {offsets = [0, 0], sizes = [56, 320], strides = [1, 1]} : vector<56x404xf32> to vector<56x320xf32>
    %290 = vector.extract_strided_slice %288 {offsets = [0, 1], sizes = [56, 320], strides = [1, 1]} : vector<56x404xf32> to vector<56x320xf32>
    %291 = vector.extract_strided_slice %288 {offsets = [0, 2], sizes = [56, 320], strides = [1, 1]} : vector<56x404xf32> to vector<56x320xf32>
    %292 = vector.extract_strided_slice %288 {offsets = [0, 3], sizes = [56, 320], strides = [1, 1]} : vector<56x404xf32> to vector<56x320xf32>
    %293 = vector.extract_strided_slice %288 {offsets = [0, 4], sizes = [56, 320], strides = [1, 1]} : vector<56x404xf32> to vector<56x320xf32>
    %294 = vector.extract_strided_slice %288 {offsets = [0, 20], sizes = [56, 320], strides = [1, 1]} : vector<56x404xf32> to vector<56x320xf32>
    %295 = vector.extract_strided_slice %288 {offsets = [0, 21], sizes = [56, 320], strides = [1, 1]} : vector<56x404xf32> to vector<56x320xf32>
    %296 = vector.extract_strided_slice %288 {offsets = [0, 22], sizes = [56, 320], strides = [1, 1]} : vector<56x404xf32> to vector<56x320xf32>
    %297 = vector.extract_strided_slice %288 {offsets = [0, 23], sizes = [56, 320], strides = [1, 1]} : vector<56x404xf32> to vector<56x320xf32>
    %298 = vector.extract_strided_slice %288 {offsets = [0, 24], sizes = [56, 320], strides = [1, 1]} : vector<56x404xf32> to vector<56x320xf32>
    %299 = vector.extract_strided_slice %288 {offsets = [0, 40], sizes = [56, 320], strides = [1, 1]} : vector<56x404xf32> to vector<56x320xf32>
    %300 = vector.extract_strided_slice %288 {offsets = [0, 41], sizes = [56, 320], strides = [1, 1]} : vector<56x404xf32> to vector<56x320xf32>
    %301 = vector.extract_strided_slice %288 {offsets = [0, 42], sizes = [56, 320], strides = [1, 1]} : vector<56x404xf32> to vector<56x320xf32>
    %302 = vector.extract_strided_slice %288 {offsets = [0, 43], sizes = [56, 320], strides = [1, 1]} : vector<56x404xf32> to vector<56x320xf32>
    %303 = vector.extract_strided_slice %288 {offsets = [0, 44], sizes = [56, 320], strides = [1, 1]} : vector<56x404xf32> to vector<56x320xf32>
    %304 = vector.extract_strided_slice %288 {offsets = [0, 60], sizes = [56, 320], strides = [1, 1]} : vector<56x404xf32> to vector<56x320xf32>
    %305 = vector.extract_strided_slice %288 {offsets = [0, 61], sizes = [56, 320], strides = [1, 1]} : vector<56x404xf32> to vector<56x320xf32>
    %306 = vector.extract_strided_slice %288 {offsets = [0, 62], sizes = [56, 320], strides = [1, 1]} : vector<56x404xf32> to vector<56x320xf32>
    %307 = vector.extract_strided_slice %288 {offsets = [0, 63], sizes = [56, 320], strides = [1, 1]} : vector<56x404xf32> to vector<56x320xf32>
    %308 = vector.extract_strided_slice %288 {offsets = [0, 64], sizes = [56, 320], strides = [1, 1]} : vector<56x404xf32> to vector<56x320xf32>
    %309 = vector.extract_strided_slice %288 {offsets = [0, 80], sizes = [56, 320], strides = [1, 1]} : vector<56x404xf32> to vector<56x320xf32>
    %310 = vector.extract_strided_slice %288 {offsets = [0, 81], sizes = [56, 320], strides = [1, 1]} : vector<56x404xf32> to vector<56x320xf32>
    %311 = vector.extract_strided_slice %288 {offsets = [0, 82], sizes = [56, 320], strides = [1, 1]} : vector<56x404xf32> to vector<56x320xf32>
    %312 = vector.extract_strided_slice %288 {offsets = [0, 83], sizes = [56, 320], strides = [1, 1]} : vector<56x404xf32> to vector<56x320xf32>
    %313 = vector.extract_strided_slice %288 {offsets = [0, 84], sizes = [56, 320], strides = [1, 1]} : vector<56x404xf32> to vector<56x320xf32>
    %314 = tpu.concatenate %289, %290, %291, %292, %293, %294, %295, %296, %297, %298, %299, %300, %301, %302, %303, %304 in 0 : vector<56x320xf32>, vector<56x320xf32>, vector<56x320xf32>, vector<56x320xf32>, vector<56x320xf32>, vector<56x320xf32>, vector<56x320xf32>, vector<56x320xf32>, vector<56x320xf32>, vector<56x320xf32>, vector<56x320xf32>, vector<56x320xf32>, vector<56x320xf32>, vector<56x320xf32>, vector<56x320xf32>, vector<56x320xf32> -> vector<896x320xf32>
    %315 = tpu.concatenate %305, %306, %307, %308, %309, %310, %311, %312, %313 in 0 : vector<56x320xf32>, vector<56x320xf32>, vector<56x320xf32>, vector<56x320xf32>, vector<56x320xf32>, vector<56x320xf32>, vector<56x320xf32>, vector<56x320xf32>, vector<56x320xf32> -> vector<504x320xf32>
    %316 = tpu.concatenate %314, %315 in 0 : vector<896x320xf32>, vector<504x320xf32> -> vector<1400x320xf32>
    %c0_140 = arith.constant 0 : index
    %c0_141 = arith.constant 0 : index
    %317 = vector.load %arg16[%c0_140, %c0_141] : memref<12x1400xf32, #tpu.memory_space<vmem>>, vector<12x1400xf32>
    %cst_142 = arith.constant dense<0.000000e+00> : vector<12x320xf32>
    %318 = tpu.matmul %317, %316, %cst_142 {dimension_numbers = #tpu.dot_dimension_numbers<[1], [0], [0], [1], [0, 0, 1, 1], [], []>} : vector<12x1400xf32>, vector<1400x320xf32>, vector<12x320xf32> -> vector<12x320xf32>
    %c0_143 = arith.constant 0 : index
    %c0_144 = arith.constant 0 : index
    %319 = vector.load %arg17[%c0_143, %c0_144] : memref<12x1xf32, #tpu.memory_space<vmem>>, vector<12x1xf32>
    %320 = vector.broadcast %319 : vector<12x1xf32> to vector<12x320xf32>
    %321 = arith.addf %318, %320 : vector<12x320xf32>
    %322 = vector.shape_cast %321 : vector<12x320xf32> to vector<1x1x12x320xf32>
    %c0_145 = arith.constant 0 : index
    %c0_146 = arith.constant 0 : index
    %c0_147 = arith.constant 0 : index
    %c0_148 = arith.constant 0 : index
    %323 = vector.load %arg18[%c0_145, %c0_146, %c0_147, %c0_148] : memref<1x1x12x320xf32, #tpu.memory_space<vmem>>, vector<1x1x12x320xf32>
    tpu.vector_store %arg18[%c0_145, %c0_146, %c0_147, %c0_148], %322 {strides = array<i32>} : memref<1x1x12x320xf32, #tpu.memory_space<vmem>>, vector<1x1x12x320xf32>,
    return
  }
  func.func @transform_0(%arg0: i32, %arg1: i32) -> (i32, i32, i32, i32) {
    %c0_i32 = arith.constant 0 : i32
    %c0_i32_0 = arith.constant 0 : i32
    %c0_i32_1 = arith.constant 0 : i32
    return %arg0, %arg1, %c0_i32, %c0_i32_0 : i32, i32, i32, i32
  }
  func.func @transform_1(%arg0: i32, %arg1: i32) -> (i32, i32) {
    %c0_i32 = arith.constant 0 : i32
    %c0_i32_0 = arith.constant 0 : i32
    %c0_i32_1 = arith.constant 0 : i32
    return %c0_i32, %c0_i32_0 : i32, i32
  }
  func.func @transform_2(%arg0: i32, %arg1: i32) -> (i32, i32) {
    %c0_i32 = arith.constant 0 : i32
    %c0_i32_0 = arith.constant 0 : i32
    %c0_i32_1 = arith.constant 0 : i32
    return %c0_i32, %c0_i32_0 : i32, i32
  }
  func.func @transform_3(%arg0: i32, %arg1: i32) -> (i32, i32) {
    %c0_i32 = arith.constant 0 : i32
    %c0_i32_0 = arith.constant 0 : i32
    %c0_i32_1 = arith.constant 0 : i32
    return %c0_i32, %c0_i32_0 : i32, i32
  }
  func.func @transform_4(%arg0: i32, %arg1: i32) -> (i32, i32) {
    %c0_i32 = arith.constant 0 : i32
    %c0_i32_0 = arith.constant 0 : i32
    %c0_i32_1 = arith.constant 0 : i32
    return %c0_i32, %c0_i32_0 : i32, i32
  }
  func.func @transform_5(%arg0: i32, %arg1: i32) -> (i32, i32) {
    %c0_i32 = arith.constant 0 : i32
    %c0_i32_0 = arith.constant 0 : i32
    %c0_i32_1 = arith.constant 0 : i32
    return %c0_i32, %c0_i32_0 : i32, i32
  }
  func.func @transform_6(%arg0: i32, %arg1: i32) -> (i32, i32) {
    %c0_i32 = arith.constant 0 : i32
    %c0_i32_0 = arith.constant 0 : i32
    %c0_i32_1 = arith.constant 0 : i32
    return %c0_i32, %c0_i32_0 : i32, i32
  }
  func.func @transform_7(%arg0: i32, %arg1: i32) -> (i32, i32) {
    %c0_i32 = arith.constant 0 : i32
    %c0_i32_0 = arith.constant 0 : i32
    %c0_i32_1 = arith.constant 0 : i32
    return %c0_i32, %c0_i32_0 : i32, i32
  }
  func.func @transform_8(%arg0: i32, %arg1: i32) -> (i32, i32, i32) {
    %c0_i32 = arith.constant 0 : i32
    %c0_i32_0 = arith.constant 0 : i32
    %c0_i32_1 = arith.constant 0 : i32
    %c0_i32_2 = arith.constant 0 : i32
    return %c0_i32, %c0_i32_0, %c0_i32_1 : i32, i32, i32
  }
  func.func @transform_9(%arg0: i32, %arg1: i32) -> (i32, i32, i32) {
    %c0_i32 = arith.constant 0 : i32
    %c0_i32_0 = arith.constant 0 : i32
    %c0_i32_1 = arith.constant 0 : i32
    %c0_i32_2 = arith.constant 0 : i32
    return %c0_i32, %c0_i32_0, %c0_i32_1 : i32, i32, i32
  }
  func.func @transform_10(%arg0: i32, %arg1: i32) -> (i32, i32, i32) {
    %c0_i32 = arith.constant 0 : i32
    %c0_i32_0 = arith.constant 0 : i32
    %c0_i32_1 = arith.constant 0 : i32
    %c0_i32_2 = arith.constant 0 : i32
    return %c0_i32, %c0_i32_0, %c0_i32_1 : i32, i32, i32
  }
  func.func @transform_11(%arg0: i32, %arg1: i32) -> (i32, i32) {
    %c0_i32 = arith.constant 0 : i32
    %c0_i32_0 = arith.constant 0 : i32
    %c0_i32_1 = arith.constant 0 : i32
    return %c0_i32, %c0_i32_0 : i32, i32
  }
  func.func @transform_12(%arg0: i32, %arg1: i32) -> (i32, i32) {
    %c0_i32 = arith.constant 0 : i32
    %c0_i32_0 = arith.constant 0 : i32
    %c0_i32_1 = arith.constant 0 : i32
    return %c0_i32, %c0_i32_0 : i32, i32
  }
  func.func @transform_13(%arg0: i32, %arg1: i32) -> (i32, i32) {
    %c0_i32 = arith.constant 0 : i32
    %c0_i32_0 = arith.constant 0 : i32
    %c0_i32_1 = arith.constant 0 : i32
    return %c0_i32, %c0_i32_0 : i32, i32
  }
  func.func @transform_14(%arg0: i32, %arg1: i32) -> (i32, i32) {
    %c0_i32 = arith.constant 0 : i32
    %c0_i32_0 = arith.constant 0 : i32
    %c0_i32_1 = arith.constant 0 : i32
    return %c0_i32, %c0_i32_0 : i32, i32
  }
  func.func @transform_15(%arg0: i32, %arg1: i32) -> (i32, i32) {
    %c0_i32 = arith.constant 0 : i32
    %c0_i32_0 = arith.constant 0 : i32
    %c0_i32_1 = arith.constant 0 : i32
    return %c0_i32, %c0_i32_0 : i32, i32
  }
  func.func @transform_16(%arg0: i32, %arg1: i32) -> (i32, i32, i32, i32) {
    %c0_i32 = arith.constant 0 : i32
    %c0_i32_0 = arith.constant 0 : i32
    %c0_i32_1 = arith.constant 0 : i32
    return %arg0, %arg1, %c0_i32, %c0_i32_0 : i32, i32, i32, i32
  }
}

</mosaic_0001>

<llo_original>
// kernel: tpu_custom_call.1
$region0: #{tpu_custom_call.1}
  #allocation0 [shape = 'u32[]', space=smem, size = 0x4, offset = 0x4, fixed_abs, tag = 'smem constant byte address 0x4 - core index']
  #allocation1 [shape = 'u32[144,128]{1,0:T(1,128)}', space=vmem, size = 0x12000, scoped, tag = 'internal scratch']
  #allocation2 [shape = 'f32[12,564]{1,0:T(8,128)}', space=vmem, size = 0xa000, scoped, tag = 'scratch operand']
  #allocation3 [shape = 'f32[12,564]{1,0:T(8,128)}', space=vmem, size = 0xa000, scoped, tag = 'scratch operand']
  #allocation4 [shape = 'f32[56,404]{1,0:T(8,128)}', space=vmem, size = 0x1c000, scoped, tag = 'scratch operand']
  %s0 = inlined_call_operand.vmem [shape: f32[2,1,3,644], index: 0, kind: input, shape index: {}]
  %s1 = inlined_call_operand.vmem [shape: f32[1,560], index: 1, kind: input, shape index: {}]
  %s2 = inlined_call_operand.vmem [shape: f32[56,75], index: 2, kind: input, shape index: {}]
  %s3 = inlined_call_operand.vmem [shape: f32[56,1], index: 3, kind: input, shape index: {}]
  %s4 = inlined_call_operand.vmem [shape: f32[56,1], index: 4, kind: input, shape index: {}]
  %s5 = inlined_call_operand.vmem [shape: f32[12,56], index: 5, kind: input, shape index: {}]
  %s6 = inlined_call_operand.vmem [shape: f32[12,1], index: 6, kind: input, shape index: {}]
  %s7 = inlined_call_operand.vmem [shape: f32[12,1], index: 7, kind: input, shape index: {}]
  %s8 = inlined_call_operand.vmem [shape: f32[4,12,108], index: 8, kind: input, shape index: {}]
  %s9 = inlined_call_operand.vmem [shape: f32[4,12,1], index: 9, kind: input, shape index: {}]
  %s10 = inlined_call_operand.vmem [shape: f32[4,12,1], index: 10, kind: input, shape index: {}]
  %s11 = inlined_call_operand.vmem [shape: f32[56,12], index: 11, kind: input, shape index: {}]
  %s12 = inlined_call_operand.vmem [shape: f32[56,1], index: 12, kind: input, shape index: {}]
  %s13 = inlined_call_operand.vmem [shape: f32[56,1], index: 13, kind: input, shape index: {}]
  %s14 = inlined_call_operand.vmem [shape: f32[12,1400], index: 14, kind: input, shape index: {}]
  %s15 = inlined_call_operand.vmem [shape: f32[12,1], index: 15, kind: input, shape index: {}]
  %s16 = inlined_call_operand.vmem [shape: f32[2,1,12,320], index: 16, kind: output, shape index: {}]
  %s17 = sld [smem:[#allocation0]]
  $region97: #{tpu_custom_call.1} parent=0
    _
  %s19 = ssub.s32 1, %s17
  %s20 = scalar_select 0, %s19, %s17
  loop: start=0, step=1, limit=4
  $region2: #{tpu_custom_call.1} parent=0 // loop_pre_header
    _
  $region3: #{tpu_custom_call.1} parent=0 // loop_header
    %s22 = sphi 0, %s26
    %p23 = scmp.ge.s32.totalorder %s22, 4
    %s29 = sphi 0, %s41
    %s30 = sphi 0, %s37
    %s31 = sphi 0, %s29
    %s32 = sphi 0, %s30
    %s33 = sphi 0, %s31
    %s34 = sphi 0, %s32
    %s46 = sphi 0, %s48
    %s49 = sphi 0, %s46
    %s50 = sphi 0, %s49
    %s66 = sphi 0, %s50
    %s70 = sphi 0, %s70
    %s72 = sphi 0, %s70
    %s73 = sphi 0, %s72
    %s87 = sphi 0, %s73
    %s91 = sphi 0, %s91
    %s93 = sphi 0, %s91
    %s94 = sphi 0, %s93
    %s108 = sphi 0, %s94
    %s112 = sphi 0, %s112
    %s114 = sphi 0, %s112
    %s115 = sphi 0, %s114
    %s129 = sphi 0, %s115
    %s133 = sphi 0, %s133
    %s135 = sphi 0, %s133
    %s136 = sphi 0, %s135
    %s150 = sphi 0, %s136
    %s154 = sphi 0, %s154
    %s156 = sphi 0, %s154
    %s157 = sphi 0, %s156
    %s171 = sphi 0, %s157
    %s175 = sphi 0, %s175
    %s177 = sphi 0, %s175
    %s178 = sphi 0, %s177
    %s192 = sphi 0, %s178
    %s196 = sphi 0, %s196
    %s198 = sphi 0, %s196
    %s199 = sphi 0, %s198
    %s213 = sphi 0, %s199
    %s217 = sphi 0, %s217
    %s219 = sphi 0, %s217
    %s220 = sphi 0, %s219
    %s234 = sphi 0, %s220
    %s238 = sphi 0, %s238
    %s240 = sphi 0, %s238
    %s241 = sphi 0, %s240
    %s255 = sphi 0, %s241
    %s259 = sphi 0, %s259
    %s261 = sphi 0, %s259
    %s262 = sphi 0, %s261
    %s276 = sphi 0, %s262
    %s280 = sphi 0, %s280
    %s282 = sphi 0, %s280
    %s283 = sphi 0, %s282
    %s297 = sphi 0, %s283
    %s301 = sphi 0, %s301
    %s303 = sphi 0, %s301
    %s304 = sphi 0, %s303
    %s318 = sphi 0, %s304
    %s322 = sphi 0, %s322
    %s324 = sphi 0, %s322
    %s325 = sphi 0, %s324
    %s339 = sphi 0, %s325
    %s343 = sphi 0, %s343
    %s345 = sphi 0, %s343
    %s346 = sphi 0, %s345
    %s360 = sphi 0, %s346
    %s364 = sphi 0, %s364
    %s366 = sphi 0, %s364
    %s367 = sphi 0, %s366
    %s381 = sphi 0, %s367
    %s389 = sphi 0, %s391
    %s392 = sphi 0, %s389
    %s393 = sphi 0, %s392
    %s409 = sphi 0, %s393
  $region4: #{tpu_custom_call.1} parent=0 // loop_header_branch
    %25 = sbr.rel (%p23) target = $region8
  $region5: #{tpu_custom_call.1} parent=0 // loop_body
    %s27 = ssub.s32 %s22, 1
    %s28 = ssub.s32 %s22, 2
    %s35 = sadd.s32 1, %s30
    %p36 = scmp.ge.s32.totalorder %s35, 1
    %s37 = scalar_select %p36, 0, %s35
    %s38 = sadd.s32 1, %s29
    %s39 = scalar_select %p36, %s38, %s29
    %p40 = scmp.ge.s32.totalorder %s39, 2
    %s41 = scalar_select %p40, 0, %s39
    %s42 = ssub.s32 %s29, %s41
    %s43 = ssub.s32 %s30, %s37
    %s44 = sor.u32 %s42, %s43
    %p45 = scmp.eq.s32.totalorder %s44, 0
    %s47 = sadd.s32 %s46, 1
    %s48 = scalar_select %p45, %s46, %s47
    %p51 = pneg %p45
    %p52 = scmp.eq.s32.totalorder %s22, 1
    %p53 = por %p51, %p52
    %p54 = scmp.ne.s32.totalorder %s46, %s49
    %p55 = scmp.eq.s32.totalorder %s22, 0
    %p56 = por %p54, %p55
    %p57 = scmp.ne.s32.totalorder %s46, %s49
    %p58 = scmp.eq.s32.totalorder %s27, 1
    %p59 = por %p57, %p58
    %p60 = scmp.ne.s32.totalorder %s49, %s50
    %p61 = scmp.eq.s32.totalorder %s27, 0
    %p62 = por %p60, %p61
    %p63 = scmp.ne.s32.totalorder %s49, %s50
    %p64 = scmp.eq.s32.totalorder %s28, 1
    %p65 = por %p63, %p64
    %p67 = scmp.ne.s32.totalorder %s50, %s66
    %p68 = scmp.eq.s32.totalorder %s28, 0
    %p69 = por %p67, %p68
    %s71 = sadd.s32 %s70, 1
    %p74 = scmp.eq.s32.totalorder %s22, 1
    %p75 = scmp.ne.s32.totalorder %s70, %s72
    %p76 = scmp.eq.s32.totalorder %s22, 0
    %p77 = por %p75, %p76
    %p78 = scmp.ne.s32.totalorder %s70, %s72
    %p79 = scmp.eq.s32.totalorder %s27, 1
    %p80 = por %p78, %p79
    %p81 = scmp.ne.s32.totalorder %s72, %s73
    %p82 = scmp.eq.s32.totalorder %s27, 0
    %p83 = por %p81, %p82
    %p84 = scmp.ne.s32.totalorder %s72, %s73
    %p85 = scmp.eq.s32.totalorder %s28, 1
    %p86 = por %p84, %p85
    %p88 = scmp.ne.s32.totalorder %s73, %s87
    %p89 = scmp.eq.s32.totalorder %s28, 0
    %p90 = por %p88, %p89
    %s92 = sadd.s32 %s91, 1
    %p95 = scmp.eq.s32.totalorder %s22, 1
    %p96 = scmp.ne.s32.totalorder %s91, %s93
    %p97 = scmp.eq.s32.totalorder %s22, 0
    %p98 = por %p96, %p97
    %p99 = scmp.ne.s32.totalorder %s91, %s93
    %p100 = scmp.eq.s32.totalorder %s27, 1
    %p101 = por %p99, %p100
    %p102 = scmp.ne.s32.totalorder %s93, %s94
    %p103 = scmp.eq.s32.totalorder %s27, 0
    %p104 = por %p102, %p103
    %p105 = scmp.ne.s32.totalorder %s93, %s94
    %p106 = scmp.eq.s32.totalorder %s28, 1
    %p107 = por %p105, %p106
    %p109 = scmp.ne.s32.totalorder %s94, %s108
    %p110 = scmp.eq.s32.totalorder %s28, 0
    %p111 = por %p109, %p110
    %s113 = sadd.s32 %s112, 1
    %p116 = scmp.eq.s32.totalorder %s22, 1
    %p117 = scmp.ne.s32.totalorder %s112, %s114
    %p118 = scmp.eq.s32.totalorder %s22, 0
    %p119 = por %p117, %p118
    %p120 = scmp.ne.s32.totalorder %s112, %s114
    %p121 = scmp.eq.s32.totalorder %s27, 1
    %p122 = por %p120, %p121
    %p123 = scmp.ne.s32.totalorder %s114, %s115
    %p124 = scmp.eq.s32.totalorder %s27, 0
    %p125 = por %p123, %p124
    %p126 = scmp.ne.s32.totalorder %s114, %s115
    %p127 = scmp.eq.s32.totalorder %s28, 1
    %p128 = por %p126, %p127
    %p130 = scmp.ne.s32.totalorder %s115, %s129
    %p131 = scmp.eq.s32.totalorder %s28, 0
    %p132 = por %p130, %p131
    %s134 = sadd.s32 %s133, 1
    %p137 = scmp.eq.s32.totalorder %s22, 1
    %p138 = scmp.ne.s32.totalorder %s133, %s135
    %p139 = scmp.eq.s32.totalorder %s22, 0
    %p140 = por %p138, %p139
    %p141 = scmp.ne.s32.totalorder %s133, %s135
    %p142 = scmp.eq.s32.totalorder %s27, 1
    %p143 = por %p141, %p142
    %p144 = scmp.ne.s32.totalorder %s135, %s136
    %p145 = scmp.eq.s32.totalorder %s27, 0
    %p146 = por %p144, %p145
    %p147 = scmp.ne.s32.totalorder %s135, %s136
    %p148 = scmp.eq.s32.totalorder %s28, 1
    %p149 = por %p147, %p148
    %p151 = scmp.ne.s32.totalorder %s136, %s150
    %p152 = scmp.eq.s32.totalorder %s28, 0
    %p153 = por %p151, %p152
    %s155 = sadd.s32 %s154, 1
    %p158 = scmp.eq.s32.totalorder %s22, 1
    %p159 = scmp.ne.s32.totalorder %s154, %s156
    %p160 = scmp.eq.s32.totalorder %s22, 0
    %p161 = por %p159, %p160
    %p162 = scmp.ne.s32.totalorder %s154, %s156
    %p163 = scmp.eq.s32.totalorder %s27, 1
    %p164 = por %p162, %p163
    %p165 = scmp.ne.s32.totalorder %s156, %s157
    %p166 = scmp.eq.s32.totalorder %s27, 0
    %p167 = por %p165, %p166
    %p168 = scmp.ne.s32.totalorder %s156, %s157
    %p169 = scmp.eq.s32.totalorder %s28, 1
    %p170 = por %p168, %p169
    %p172 = scmp.ne.s32.totalorder %s157, %s171
    %p173 = scmp.eq.s32.totalorder %s28, 0
    %p174 = por %p172, %p173
    %s176 = sadd.s32 %s175, 1
    %p179 = scmp.eq.s32.totalorder %s22, 1
    %p180 = scmp.ne.s32.totalorder %s175, %s177
    %p181 = scmp.eq.s32.totalorder %s22, 0
    %p182 = por %p180, %p181
    %p183 = scmp.ne.s32.totalorder %s175, %s177
    %p184 = scmp.eq.s32.totalorder %s27, 1
    %p185 = por %p183, %p184
    %p186 = scmp.ne.s32.totalorder %s177, %s178
    %p187 = scmp.eq.s32.totalorder %s27, 0
    %p188 = por %p186, %p187
    %p189 = scmp.ne.s32.totalorder %s177, %s178
    %p190 = scmp.eq.s32.totalorder %s28, 1
    %p191 = por %p189, %p190
    %p193 = scmp.ne.s32.totalorder %s178, %s192
    %p194 = scmp.eq.s32.totalorder %s28, 0
    %p195 = por %p193, %p194
    %s197 = sadd.s32 %s196, 1
    %p200 = scmp.eq.s32.totalorder %s22, 1
    %p201 = scmp.ne.s32.totalorder %s196, %s198
    %p202 = scmp.eq.s32.totalorder %s22, 0
    %p203 = por %p201, %p202
    %p204 = scmp.ne.s32.totalorder %s196, %s198
    %p205 = scmp.eq.s32.totalorder %s27, 1
    %p206 = por %p204, %p205
    %p207 = scmp.ne.s32.totalorder %s198, %s199
    %p208 = scmp.eq.s32.totalorder %s27, 0
    %p209 = por %p207, %p208
    %p210 = scmp.ne.s32.totalorder %s198, %s199
    %p211 = scmp.eq.s32.totalorder %s28, 1
    %p212 = por %p210, %p211
    %p214 = scmp.ne.s32.totalorder %s199, %s213
    %p215 = scmp.eq.s32.totalorder %s28, 0
    %p216 = por %p214, %p215
    %s218 = sadd.s32 %s217, 1
    %p221 = scmp.eq.s32.totalorder %s22, 1
    %p222 = scmp.ne.s32.totalorder %s217, %s219
    %p223 = scmp.eq.s32.totalorder %s22, 0
    %p224 = por %p222, %p223
    %p225 = scmp.ne.s32.totalorder %s217, %s219
    %p226 = scmp.eq.s32.totalorder %s27, 1
    %p227 = por %p225, %p226
    %p228 = scmp.ne.s32.totalorder %s219, %s220
    %p229 = scmp.eq.s32.totalorder %s27, 0
    %p230 = por %p228, %p229
    %p231 = scmp.ne.s32.totalorder %s219, %s220
    %p232 = scmp.eq.s32.totalorder %s28, 1
    %p233 = por %p231, %p232
    %p235 = scmp.ne.s32.totalorder %s220, %s234
    %p236 = scmp.eq.s32.totalorder %s28, 0
    %p237 = por %p235, %p236
    %s239 = sadd.s32 %s238, 1
    %p242 = scmp.eq.s32.totalorder %s22, 1
    %p243 = scmp.ne.s32.totalorder %s238, %s240
    %p244 = scmp.eq.s32.totalorder %s22, 0
    %p245 = por %p243, %p244
    %p246 = scmp.ne.s32.totalorder %s238, %s240
    %p247 = scmp.eq.s32.totalorder %s27, 1
    %p248 = por %p246, %p247
    %p249 = scmp.ne.s32.totalorder %s240, %s241
    %p250 = scmp.eq.s32.totalorder %s27, 0
    %p251 = por %p249, %p250
    %p252 = scmp.ne.s32.totalorder %s240, %s241
    %p253 = scmp.eq.s32.totalorder %s28, 1
    %p254 = por %p252, %p253
    %p256 = scmp.ne.s32.totalorder %s241, %s255
    %p257 = scmp.eq.s32.totalorder %s28, 0
    %p258 = por %p256, %p257
    %s260 = sadd.s32 %s259, 1
    %p263 = scmp.eq.s32.totalorder %s22, 1
    %p264 = scmp.ne.s32.totalorder %s259, %s261
    %p265 = scmp.eq.s32.totalorder %s22, 0
    %p266 = por %p264, %p265
    %p267 = scmp.ne.s32.totalorder %s259, %s261
    %p268 = scmp.eq.s32.totalorder %s27, 1
    %p269 = por %p267, %p268
    %p270 = scmp.ne.s32.totalorder %s261, %s262
    %p271 = scmp.eq.s32.totalorder %s27, 0
    %p272 = por %p270, %p271
    %p273 = scmp.ne.s32.totalorder %s261, %s262
    %p274 = scmp.eq.s32.totalorder %s28, 1
    %p275 = por %p273, %p274
    %p277 = scmp.ne.s32.totalorder %s262, %s276
    %p278 = scmp.eq.s32.totalorder %s28, 0
    %p279 = por %p277, %p278
    %s281 = sadd.s32 %s280, 1
    %p284 = scmp.eq.s32.totalorder %s22, 1
    %p285 = scmp.ne.s32.totalorder %s280, %s282
    %p286 = scmp.eq.s32.totalorder %s22, 0
    %p287 = por %p285, %p286
    %p288 = scmp.ne.s32.totalorder %s280, %s282
    %p289 = scmp.eq.s32.totalorder %s27, 1
    %p290 = por %p288, %p289
    %p291 = scmp.ne.s32.totalorder %s282, %s283
    %p292 = scmp.eq.s32.totalorder %s27, 0
    %p293 = por %p291, %p292
    %p294 = scmp.ne.s32.totalorder %s282, %s283
    %p295 = scmp.eq.s32.totalorder %s28, 1
    %p296 = por %p294, %p295
    %p298 = scmp.ne.s32.totalorder %s283, %s297
    %p299 = scmp.eq.s32.totalorder %s28, 0
    %p300 = por %p298, %p299
    %s302 = sadd.s32 %s301, 1
    %p305 = scmp.eq.s32.totalorder %s22, 1
    %p306 = scmp.ne.s32.totalorder %s301, %s303
    %p307 = scmp.eq.s32.totalorder %s22, 0
    %p308 = por %p306, %p307
    %p309 = scmp.ne.s32.totalorder %s301, %s303
    %p310 = scmp.eq.s32.totalorder %s27, 1
    %p311 = por %p309, %p310
    %p312 = scmp.ne.s32.totalorder %s303, %s304
    %p313 = scmp.eq.s32.totalorder %s27, 0
    %p314 = por %p312, %p313
    %p315 = scmp.ne.s32.totalorder %s303, %s304
    %p316 = scmp.eq.s32.totalorder %s28, 1
    %p317 = por %p315, %p316
    %p319 = scmp.ne.s32.totalorder %s304, %s318
    %p320 = scmp.eq.s32.totalorder %s28, 0
    %p321 = por %p319, %p320
    %s323 = sadd.s32 %s322, 1
    %p326 = scmp.eq.s32.totalorder %s22, 1
    %p327 = scmp.ne.s32.totalorder %s322, %s324
    %p328 = scmp.eq.s32.totalorder %s22, 0
    %p329 = por %p327, %p328
    %p330 = scmp.ne.s32.totalorder %s322, %s324
    %p331 = scmp.eq.s32.totalorder %s27, 1
    %p332 = por %p330, %p331
    %p333 = scmp.ne.s32.totalorder %s324, %s325
    %p334 = scmp.eq.s32.totalorder %s27, 0
    %p335 = por %p333, %p334
    %p336 = scmp.ne.s32.totalorder %s324, %s325
    %p337 = scmp.eq.s32.totalorder %s28, 1
    %p338 = por %p336, %p337
    %p340 = scmp.ne.s32.totalorder %s325, %s339
    %p341 = scmp.eq.s32.totalorder %s28, 0
    %p342 = por %p340, %p341
    %s344 = sadd.s32 %s343, 1
    %p347 = scmp.eq.s32.totalorder %s22, 1
    %p348 = scmp.ne.s32.totalorder %s343, %s345
    %p349 = scmp.eq.s32.totalorder %s22, 0
    %p350 = por %p348, %p349
    %p351 = scmp.ne.s32.totalorder %s343, %s345
    %p352 = scmp.eq.s32.totalorder %s27, 1
    %p353 = por %p351, %p352
    %p354 = scmp.ne.s32.totalorder %s345, %s346
    %p355 = scmp.eq.s32.totalorder %s27, 0
    %p356 = por %p354, %p355
    %p357 = scmp.ne.s32.totalorder %s345, %s346
    %p358 = scmp.eq.s32.totalorder %s28, 1
    %p359 = por %p357, %p358
    %p361 = scmp.ne.s32.totalorder %s346, %s360
    %p362 = scmp.eq.s32.totalorder %s28, 0
    %p363 = por %p361, %p362
    %s365 = sadd.s32 %s364, 1
    %p368 = scmp.eq.s32.totalorder %s22, 1
    %p369 = scmp.ne.s32.totalorder %s364, %s366
    %p370 = scmp.eq.s32.totalorder %s22, 0
    %p371 = por %p369, %p370
    %p372 = scmp.ne.s32.totalorder %s364, %s366
    %p373 = scmp.eq.s32.totalorder %s27, 1
    %p374 = por %p372, %p373
    %p375 = scmp.ne.s32.totalorder %s366, %s367
    %p376 = scmp.eq.s32.totalorder %s27, 0
    %p377 = por %p375, %p376
    %p378 = scmp.ne.s32.totalorder %s366, %s367
    %p379 = scmp.eq.s32.totalorder %s28, 1
    %p380 = por %p378, %p379
    %p382 = scmp.ne.s32.totalorder %s367, %s381
    %p383 = scmp.eq.s32.totalorder %s28, 0
    %p384 = por %p382, %p383
    %s385 = ssub.s32 %s29, %s41
    %s386 = ssub.s32 %s30, %s37
    %s387 = sor.u32 %s385, %s386
    %p388 = scmp.eq.s32.totalorder %s387, 0
    %s390 = sadd.s32 %s389, 1
    %s391 = scalar_select %p388, %s389, %s390
    %p394 = pneg %p388
    %p395 = scmp.eq.s32.totalorder %s22, 1
    %p396 = por %p394, %p395
    %p397 = scmp.ne.s32.totalorder %s389, %s392
    %p398 = scmp.eq.s32.totalorder %s22, 0
    %p399 = por %p397, %p398
    %p400 = scmp.ne.s32.totalorder %s389, %s392
    %p401 = scmp.eq.s32.totalorder %s27, 1
    %p402 = por %p400, %p401
    %p403 = scmp.ne.s32.totalorder %s392, %s393
    %p404 = scmp.eq.s32.totalorder %s27, 0
    %p405 = por %p403, %p404
    %p406 = scmp.ne.s32.totalorder %s392, %s393
    %p407 = scmp.eq.s32.totalorder %s28, 1
    %p408 = por %p406, %p407
    %p410 = scmp.ne.s32.totalorder %s393, %s409
    %p411 = scmp.eq.s32.totalorder %s28, 0
    %p412 = por %p410, %p411
    %p413 = scmp.le.s32.totalorder 1, %s22
    %p414 = scmp.lt.s32.totalorder %s22, 3
    %p415 = pnand %p413, %p414
    %p416 = pneg %p415
    // Predicated region
    $region9: #{tpu_custom_call.1} parent=5 // pred_check
      _
    $region10: #{tpu_custom_call.1} parent=5 // pred_check_branch
      %418 = sbr.rel (%p415) target = $region12
    $region11: #{tpu_custom_call.1} parent=5 // pred_region
      %s419 = ssub.s32 %s22, 1
      // Predicated region
      $region13: #{tpu_custom_call.1} parent=11 // pred_check
        %p420 = pneg %p83
      $region14: #{tpu_custom_call.1} parent=11 // pred_check_branch
        %422 = sbr.rel (%p420) target = $region16
      $region15: #{tpu_custom_call.1} parent=11 // pred_region
        _
      $region16: #{tpu_custom_call.1} parent=11 // pred_fallthru
        _
      // Predicated region
      $region17: #{tpu_custom_call.1} parent=11 // pred_check
        %p423 = pneg %p104
      $region18: #{tpu_custom_call.1} parent=11 // pred_check_branch
        %425 = sbr.rel (%p423) target = $region20
      $region19: #{tpu_custom_call.1} parent=11 // pred_region
        _
      $region20: #{tpu_custom_call.1} parent=11 // pred_fallthru
        _
      // Predicated region
      $region21: #{tpu_custom_call.1} parent=11 // pred_check
        %p426 = pneg %p125
      $region22: #{tpu_custom_call.1} parent=11 // pred_check_branch
        %428 = sbr.rel (%p426) target = $region24
      $region23: #{tpu_custom_call.1} parent=11 // pred_region
        _
      $region24: #{tpu_custom_call.1} parent=11 // pred_fallthru
        _
      // Predicated region
      $region25: #{tpu_custom_call.1} parent=11 // pred_check
        %p429 = pneg %p146
      $region26: #{tpu_custom_call.1} parent=11 // pred_check_branch
        %431 = sbr.rel (%p429) target = $region28
      $region27: #{tpu_custom_call.1} parent=11 // pred_region
        _
      $region28: #{tpu_custom_call.1} parent=11 // pred_fallthru
        _
      // Predicated region
      $region29: #{tpu_custom_call.1} parent=11 // pred_check
        %p432 = pneg %p167
      $region30: #{tpu_custom_call.1} parent=11 // pred_check_branch
        %434 = sbr.rel (%p432) target = $region32
      $region31: #{tpu_custom_call.1} parent=11 // pred_region
        _
      $region32: #{tpu_custom_call.1} parent=11 // pred_fallthru
        _
      // Predicated region
      $region33: #{tpu_custom_call.1} parent=11 // pred_check
        %p435 = pneg %p188
      $region34: #{tpu_custom_call.1} parent=11 // pred_check_branch
        %437 = sbr.rel (%p435) target = $region36
      $region35: #{tpu_custom_call.1} parent=11 // pred_region
        _
      $region36: #{tpu_custom_call.1} parent=11 // pred_fallthru
        _
      // Predicated region
      $region37: #{tpu_custom_call.1} parent=11 // pred_check
        %p438 = pneg %p209
      $region38: #{tpu_custom_call.1} parent=11 // pred_check_branch
        %440 = sbr.rel (%p438) target = $region40
      $region39: #{tpu_custom_call.1} parent=11 // pred_region
        _
      $region40: #{tpu_custom_call.1} parent=11 // pred_fallthru
        _
      // Predicated region
      $region41: #{tpu_custom_call.1} parent=11 // pred_check
        %p441 = pneg %p230
      $region42: #{tpu_custom_call.1} parent=11 // pred_check_branch
        %443 = sbr.rel (%p441) target = $region44
      $region43: #{tpu_custom_call.1} parent=11 // pred_region
        _
      $region44: #{tpu_custom_call.1} parent=11 // pred_fallthru
        _
      // Predicated region
      $region45: #{tpu_custom_call.1} parent=11 // pred_check
        %p444 = pneg %p251
      $region46: #{tpu_custom_call.1} parent=11 // pred_check_branch
        %446 = sbr.rel (%p444) target = $region48
      $region47: #{tpu_custom_call.1} parent=11 // pred_region
        _
      $region48: #{tpu_custom_call.1} parent=11 // pred_fallthru
        _
      // Predicated region
      $region49: #{tpu_custom_call.1} parent=11 // pred_check
        %p447 = pneg %p272
      $region50: #{tpu_custom_call.1} parent=11 // pred_check_branch
        %449 = sbr.rel (%p447) target = $region52
      $region51: #{tpu_custom_call.1} parent=11 // pred_region
        _
      $region52: #{tpu_custom_call.1} parent=11 // pred_fallthru
        _
      // Predicated region
      $region53: #{tpu_custom_call.1} parent=11 // pred_check
        %p450 = pneg %p293
      $region54: #{tpu_custom_call.1} parent=11 // pred_check_branch
        %452 = sbr.rel (%p450) target = $region56
      $region55: #{tpu_custom_call.1} parent=11 // pred_region
        _
      $region56: #{tpu_custom_call.1} parent=11 // pred_fallthru
        _
      // Predicated region
      $region57: #{tpu_custom_call.1} parent=11 // pred_check
        %p453 = pneg %p314
      $region58: #{tpu_custom_call.1} parent=11 // pred_check_branch
        %455 = sbr.rel (%p453) target = $region60
      $region59: #{tpu_custom_call.1} parent=11 // pred_region
        _
      $region60: #{tpu_custom_call.1} parent=11 // pred_fallthru
        _
      // Predicated region
      $region61: #{tpu_custom_call.1} parent=11 // pred_check
        %p456 = pneg %p335
      $region62: #{tpu_custom_call.1} parent=11 // pred_check_branch
        %458 = sbr.rel (%p456) target = $region64
      $region63: #{tpu_custom_call.1} parent=11 // pred_region
        _
      $region64: #{tpu_custom_call.1} parent=11 // pred_fallthru
        _
      // Predicated region
      $region65: #{tpu_custom_call.1} parent=11 // pred_check
        %p459 = pneg %p356
      $region66: #{tpu_custom_call.1} parent=11 // pred_check_branch
        %461 = sbr.rel (%p459) target = $region68
      $region67: #{tpu_custom_call.1} parent=11 // pred_region
        _
      $region68: #{tpu_custom_call.1} parent=11 // pred_fallthru
        _
      // Predicated region
      $region69: #{tpu_custom_call.1} parent=11 // pred_check
        %p462 = pneg %p377
      $region70: #{tpu_custom_call.1} parent=11 // pred_check_branch
        %464 = sbr.rel (%p462) target = $region72
      $region71: #{tpu_custom_call.1} parent=11 // pred_region
        _
      $region72: #{tpu_custom_call.1} parent=11 // pred_fallthru
        _
    $region12: #{tpu_custom_call.1} parent=5 // pred_fallthru
      _
    %p465 = scmp.lt.s32.totalorder %s22, 2
    // Predicated region
    $region73: #{tpu_custom_call.1} parent=5 // pred_check
      %p466 = pneg %p465
    $region74: #{tpu_custom_call.1} parent=5 // pred_check_branch
      %468 = sbr.rel (%p466) target = $region76
    $region75: #{tpu_custom_call.1} parent=5 // pred_region
      // Predicated region
      $region77: #{tpu_custom_call.1} parent=75 // pred_check
        %p469 = pneg %p56
      $region78: #{tpu_custom_call.1} parent=75 // pred_check_branch
        %471 = sbr.rel (%p469) target = $region80
      $region79: #{tpu_custom_call.1} parent=75 // pred_region
        %p472 = scmp.lt.s32.totalorder %s29, 1
        %s473 = scalar_select %p472, %s29, 1
        %p474 = scmp.lt.s32.totalorder %s30, 0
        %s475 = scalar_select %p474, %s30, 0
        %s476 = smul.addr %s475, 6
        %s477 = smul.addr %s473, 6
        %s478 = sadd.s32 %s476, %s477
        %s479 = smul.addr %s478, 4
        %s480 = scalar_lea.vmem %s0, %s479
      $region80: #{tpu_custom_call.1} parent=75 // pred_fallthru
        _
    $region76: #{tpu_custom_call.1} parent=5 // pred_fallthru
      _
    %p481 = scmp.le.s32.totalorder 1, %s22
    %p482 = scmp.lt.s32.totalorder %s22, 3
    %p483 = pnand %p481, %p482
    %p484 = pneg %p483
    // Predicated region
    $region81: #{tpu_custom_call.1} parent=5 // pred_check
      _
    $region82: #{tpu_custom_call.1} parent=5 // pred_check_branch
      %486 = sbr.rel (%p483) target = $region84
    $region83: #{tpu_custom_call.1} parent=5 // pred_region
      %s487 = ssub.s32 %s22, 1
      %p488 = scmp.lt.s32.totalorder %s31, 1
      %s489 = scalar_select %p488, %s31, 1
      %p490 = scmp.lt.s32.totalorder %s32, 0
      %s491 = scalar_select %p490, %s32, 0
      %s492 = smul.addr %s491, 6
      %s493 = smul.addr %s489, 6
      %s494 = sadd.s32 %s492, %s493
      %s495 = smul.addr %s494, 4
      %s496 = scalar_lea.vmem %s0, %s495
      %p497 = pneg %p62
      %p498 = pneg %p59
      %p499 = pneg %p83
      %p500 = pneg %p80
      %p501 = pneg %p104
      %p502 = pneg %p101
      %p503 = pneg %p125
      %p504 = pneg %p122
      %p505 = pneg %p146
      %p506 = pneg %p143
      %p507 = pneg %p167
      %p508 = pneg %p164
      %p509 = pneg %p188
      %p510 = pneg %p185
      %p511 = pneg %p209
      %p512 = pneg %p206
      %p513 = pneg %p230
      %p514 = pneg %p227
      %p515 = pneg %p251
      %p516 = pneg %p248
      %p517 = pneg %p272
      %p518 = pneg %p269
      %p519 = pneg %p293
      %p520 = pneg %p290
      %p521 = pneg %p314
      %p522 = pneg %p311
      %p523 = pneg %p335
      %p524 = pneg %p332
      %p525 = pneg %p356
      %p526 = pneg %p353
      %p527 = pneg %p377
      %p528 = pneg %p374
      %p529 = pneg %p405
      %p530 = pneg %p402
      %p531 = scmp.lt.s32.totalorder %s31, 1
      %s532 = scalar_select %p531, %s31, 1
      %p533 = scmp.lt.s32.totalorder %s32, 0
      %s534 = scalar_select %p533, %s32, 0
      %s535 = smul.addr %s534, 6
      %s536 = smul.addr %s532, 6
      %s537 = sadd.s32 %s535, %s536
      %s538 = smul.addr %s537, 8
      %s539 = scalar_lea.vmem %s16, %s538
      %p540 = scmp.lt.s32.totalorder %s31, 1
      %s541 = scalar_select %p540, %s31, 1
      %p542 = scmp.lt.s32.totalorder %s32, 0
      %s543 = scalar_select %p542, %s32, 0
      %s544 = smul.addr %s543, 6
      %s545 = smul.addr %s541, 6
      %s546 = sadd.s32 %s544, %s545
      %s547 = smul.addr %s546, 4
      %s548 = scalar_lea.vmem %s0, %s547
      %p549 = scmp.lt.s32.totalorder %s31, 1
      %s550 = scalar_select %p549, %s31, 1
      %p551 = scmp.lt.s32.totalorder %s32, 0
      %s552 = scalar_select %p551, %s32, 0
      %s553 = smul.addr %s552, 6
      %s554 = smul.addr %s550, 6
      %s555 = sadd.s32 %s553, %s554
      %s556 = smul.addr %s555, 8
      %s557 = scalar_lea.vmem %s16, %s556
      %v558 = vld [vmem:[%s1] sm:$0x1f]
      %v559 = vld [vmem:[%s548] sm:$0x77]
      %v560 = vld [vmem:[%s548 + $0x8] sm:$0x77]
      %v561 = vld [vmem:[%s548 + $0x10] sm:$0x77]
      %v562 = vld [vmem:[%s2] sm:$0xff]
      %v563 = vld [vmem:[%s2 + $0x8] sm:$0xff]
      %v564 = vld [vmem:[%s2 + $0x10] sm:$0xff]
      %v565 = vld [vmem:[%s2 + $0x18] sm:$0xff]
      %v566 = vld [vmem:[%s2 + $0x20] sm:$0xff]
      %v567 = vld [vmem:[%s2 + $0x28] sm:$0xff]
      %v568 = vld [vmem:[%s2 + $0x30] sm:$0xff]
      %v569 = vld [vmem:[%s3] sm:$0xff]
      %v570 = vld [vmem:[%s3 + $0x8] sm:$0xff]
      %v571 = vld [vmem:[%s3 + $0x10] sm:$0xff]
      %v572 = vld [vmem:[%s3 + $0x18] sm:$0xff]
      %v573 = vld [vmem:[%s3 + $0x20] sm:$0xff]
      %v574 = vld [vmem:[%s3 + $0x28] sm:$0xff]
      %v575 = vld [vmem:[%s3 + $0x30] sm:$0xff]
      %v576 = vld [vmem:[%s4] sm:$0xff]
      %v577 = vld [vmem:[%s4 + $0x8] sm:$0xff]
      %v578 = vld [vmem:[%s4 + $0x10] sm:$0xff]
      %v579 = vld [vmem:[%s4 + $0x18] sm:$0xff]
      %v580 = vld [vmem:[%s4 + $0x20] sm:$0xff]
      %v581 = vld [vmem:[%s4 + $0x28] sm:$0xff]
      %v582 = vld [vmem:[%s4 + $0x30] sm:$0xff]
      %v586 = vcombine.high %v559, %v559
      %v587 = vcombine.high %v560, %v560
      %v590 = vrot.slane %v559, 5
      %v591 = vrot.slane %v586, 5
      %v592 = vrot.slane %v560, 5
      %v593 = vrot.slane %v587, 5
      %v594 = vrot.slane %v561, 5
      %595 = vrot.lane.b32.xlu0 %v590, 127
      %v596 = vpop.permute.xlu0 %595
      %597 = vrot.lane.b32.xlu0 %v591, 127
      %v598 = vpop.permute.xlu0 %597
      %599 = vrot.lane.b32.xlu0 %v592, 127
      %v600 = vpop.permute.xlu0 %599
      %601 = vrot.lane.b32.xlu0 %v593, 127
      %v602 = vpop.permute.xlu0 %601
      %603 = vrot.lane.b32.xlu0 %v594, 127
      %v604 = vpop.permute.xlu0 %603
      %vm605 = vcmask 1039360
      %v606 = vsel %vm605, %v596, %v598
      %v607 = vsel %vm605, %v598, %v600
      %v608 = vsel %vm605, %v600, %v602
      %v609 = vsel %vm605, %v602, %v604
      %v615 = vrot.slane %v559, 2
      %v616 = vrot.slane %v586, 2
      %v617 = vrot.slane %v560, 2
      %v618 = vrot.slane %v587, 2
      %v619 = vrot.slane %v561, 2
      %620 = vrot.lane.b32.xlu0 %v615, 126
      %v621 = vpop.permute.xlu0 %620
      %622 = vrot.lane.b32.xlu0 %v616, 126
      %v623 = vpop.permute.xlu0 %622
      %624 = vrot.lane.b32.xlu0 %v617, 126
      %v625 = vpop.permute.xlu0 %624
      %626 = vrot.lane.b32.xlu0 %v618, 126
      %v627 = vpop.permute.xlu0 %626
      %628 = vrot.lane.b32.xlu0 %v619, 126
      %v629 = vpop.permute.xlu0 %628
      %vm630 = vcmask 1031168
      %v631 = vsel %vm630, %v621, %v623
      %v632 = vsel %vm630, %v623, %v625
      %v633 = vsel %vm630, %v625, %v627
      %v634 = vsel %vm630, %v627, %v629
      %v640 = vrot.slane %v559, 7
      %v641 = vrot.slane %v586, 7
      %v642 = vrot.slane %v560, 7
      %v643 = vrot.slane %v587, 7
      %v644 = vrot.slane %v561, 7
      %645 = vrot.lane.b32.xlu0 %v640, 125
      %v646 = vpop.permute.xlu0 %645
      %647 = vrot.lane.b32.xlu0 %v641, 125
      %v648 = vpop.permute.xlu0 %647
      %649 = vrot.lane.b32.xlu0 %v642, 125
      %v650 = vpop.permute.xlu0 %649
      %651 = vrot.lane.b32.xlu0 %v643, 125
      %v652 = vpop.permute.xlu0 %651
      %653 = vrot.lane.b32.xlu0 %v644, 125
      %v654 = vpop.permute.xlu0 %653
      %vm655 = vcmask 1022976
      %v656 = vsel %vm655, %v646, %v648
      %v657 = vsel %vm655, %v648, %v650
      %v658 = vsel %vm655, %v650, %v652
      %v659 = vsel %vm655, %v652, %v654
      %v665 = vcombine.low %v559, %v559
      %v666 = vcombine.low %v560, %v560
      %v667 = vcombine.low %v561, %v561
      %668 = vrot.lane.b32.xlu0 %v665, 124
      %v669 = vpop.permute.xlu0 %668
      %670 = vrot.lane.b32.xlu0 %v559, 124
      %v671 = vpop.permute.xlu0 %670
      %672 = vrot.lane.b32.xlu0 %v666, 124
      %v673 = vpop.permute.xlu0 %672
      %674 = vrot.lane.b32.xlu0 %v560, 124
      %v675 = vpop.permute.xlu0 %674
      %676 = vrot.lane.b32.xlu0 %v667, 124
      %v677 = vpop.permute.xlu0 %676
      %vm678 = vcmask 1014784
      %v679 = vsel %vm678, %v669, %v671
      %v680 = vsel %vm678, %v671, %v673
      %v681 = vsel %vm678, %v673, %v675
      %v682 = vsel %vm678, %v675, %v677
      %v688 = vrot.slane %v559, 1
      %v689 = vrot.slane %v586, 1
      %v690 = vrot.slane %v560, 1
      %v691 = vrot.slane %v587, 1
      %v692 = vrot.slane %v561, 1
      %693 = vrot.lane.b32.xlu0 %v688, 108
      %v694 = vpop.permute.xlu0 %693
      %695 = vrot.lane.b32.xlu0 %v689, 108
      %v696 = vpop.permute.xlu0 %695
      %697 = vrot.lane.b32.xlu0 %v690, 108
      %v698 = vpop.permute.xlu0 %697
      %699 = vrot.lane.b32.xlu0 %v691, 108
      %v700 = vpop.permute.xlu0 %699
      %701 = vrot.lane.b32.xlu0 %v692, 108
      %v702 = vpop.permute.xlu0 %701
      %vm703 = vcmask 883712
      %v704 = vsel %vm703, %v694, %v696
      %v705 = vsel %vm703, %v696, %v698
      %v706 = vsel %vm703, %v698, %v700
      %v707 = vsel %vm703, %v700, %v702
      %v713 = vrot.slane %v559, 6
      %v714 = vrot.slane %v586, 6
      %v715 = vrot.slane %v560, 6
      %v716 = vrot.slane %v587, 6
      %v717 = vrot.slane %v561, 6
      %718 = vrot.lane.b32.xlu0 %v713, 107
      %v719 = vpop.permute.xlu0 %718
      %720 = vrot.lane.b32.xlu0 %v714, 107
      %v721 = vpop.permute.xlu0 %720
      %722 = vrot.lane.b32.xlu0 %v715, 107
      %v723 = vpop.permute.xlu0 %722
      %724 = vrot.lane.b32.xlu0 %v716, 107
      %v725 = vpop.permute.xlu0 %724
      %726 = vrot.lane.b32.xlu0 %v717, 107
      %v727 = vpop.permute.xlu0 %726
      %vm728 = vcmask 875520
      %v729 = vsel %vm728, %v719, %v721
      %v730 = vsel %vm728, %v721, %v723
      %v731 = vsel %vm728, %v723, %v725
      %v732 = vsel %vm728, %v725, %v727
      %v738 = vrot.slane %v559, 3
      %v739 = vrot.slane %v586, 3
      %v740 = vrot.slane %v560, 3
      %v741 = vrot.slane %v587, 3
      %v742 = vrot.slane %v561, 3
      %743 = vrot.lane.b32.xlu0 %v738, 106
      %v744 = vpop.permute.xlu0 %743
      %745 = vrot.lane.b32.xlu0 %v739, 106
      %v746 = vpop.permute.xlu0 %745
      %747 = vrot.lane.b32.xlu0 %v740, 106
      %v748 = vpop.permute.xlu0 %747
      %749 = vrot.lane.b32.xlu0 %v741, 106
      %v750 = vpop.permute.xlu0 %749
      %751 = vrot.lane.b32.xlu0 %v742, 106
      %v752 = vpop.permute.xlu0 %751
      %vm753 = vcmask 867328
      %v754 = vsel %vm753, %v744, %v746
      %v755 = vsel %vm753, %v746, %v748
      %v756 = vsel %vm753, %v748, %v750
      %v757 = vsel %vm753, %v750, %v752
      %763 = vrot.lane.b32.xlu0 %v559, 105
      %v764 = vpop.permute.xlu0 %763
      %765 = vrot.lane.b32.xlu0 %v586, 105
      %v766 = vpop.permute.xlu0 %765
      %767 = vrot.lane.b32.xlu0 %v560, 105
      %v768 = vpop.permute.xlu0 %767
      %769 = vrot.lane.b32.xlu0 %v587, 105
      %v770 = vpop.permute.xlu0 %769
      %771 = vrot.lane.b32.xlu0 %v561, 105
      %v772 = vpop.permute.xlu0 %771
      %vm773 = vcmask 859136
      %v774 = vsel %vm773, %v764, %v766
      %v775 = vsel %vm773, %v766, %v768
      %v776 = vsel %vm773, %v768, %v770
      %v777 = vsel %vm773, %v770, %v772
      %783 = vrot.lane.b32.xlu0 %v590, 104
      %v784 = vpop.permute.xlu0 %783
      %785 = vrot.lane.b32.xlu0 %v591, 104
      %v786 = vpop.permute.xlu0 %785
      %787 = vrot.lane.b32.xlu0 %v592, 104
      %v788 = vpop.permute.xlu0 %787
      %789 = vrot.lane.b32.xlu0 %v593, 104
      %v790 = vpop.permute.xlu0 %789
      %791 = vrot.lane.b32.xlu0 %v594, 104
      %v792 = vpop.permute.xlu0 %791
      %vm793 = vcmask 850944
      %v794 = vsel %vm793, %v784, %v786
      %v795 = vsel %vm793, %v786, %v788
      %v796 = vsel %vm793, %v788, %v790
      %v797 = vsel %vm793, %v790, %v792
      %803 = vrot.lane.b32.xlu0 %v615, 88
      %v804 = vpop.permute.xlu0 %803
      %805 = vrot.lane.b32.xlu0 %v616, 88
      %v806 = vpop.permute.xlu0 %805
      %807 = vrot.lane.b32.xlu0 %v617, 88
      %v808 = vpop.permute.xlu0 %807
      %809 = vrot.lane.b32.xlu0 %v618, 88
      %v810 = vpop.permute.xlu0 %809
      %811 = vrot.lane.b32.xlu0 %v619, 88
      %v812 = vpop.permute.xlu0 %811
      %vm813 = vcmask 719872
      %v814 = vsel %vm813, %v804, %v806
      %v815 = vsel %vm813, %v806, %v808
      %v816 = vsel %vm813, %v808, %v810
      %v817 = vsel %vm813, %v810, %v812
      %823 = vrot.lane.b32.xlu0 %v640, 87
      %v824 = vpop.permute.xlu0 %823
      %825 = vrot.lane.b32.xlu0 %v641, 87
      %v826 = vpop.permute.xlu0 %825
      %827 = vrot.lane.b32.xlu0 %v642, 87
      %v828 = vpop.permute.xlu0 %827
      %829 = vrot.lane.b32.xlu0 %v643, 87
      %v830 = vpop.permute.xlu0 %829
      %831 = vrot.lane.b32.xlu0 %v644, 87
      %v832 = vpop.permute.xlu0 %831
      %vm833 = vcmask 711680
      %v834 = vsel %vm833, %v824, %v826
      %v835 = vsel %vm833, %v826, %v828
      %v836 = vsel %vm833, %v828, %v830
      %v837 = vsel %vm833, %v830, %v832
      %843 = vrot.lane.b32.xlu0 %v665, 86
      %v844 = vpop.permute.xlu0 %843
      %845 = vrot.lane.b32.xlu0 %v559, 86
      %v846 = vpop.permute.xlu0 %845
      %847 = vrot.lane.b32.xlu0 %v666, 86
      %v848 = vpop.permute.xlu0 %847
      %849 = vrot.lane.b32.xlu0 %v560, 86
      %v850 = vpop.permute.xlu0 %849
      %851 = vrot.lane.b32.xlu0 %v667, 86
      %v852 = vpop.permute.xlu0 %851
      %vm853 = vcmask 703488
      %v854 = vsel %vm853, %v844, %v846
      %v855 = vsel %vm853, %v846, %v848
      %v856 = vsel %vm853, %v848, %v850
      %v857 = vsel %vm853, %v850, %v852
      %863 = vrot.lane.b32.xlu0 %v688, 85
      %v864 = vpop.permute.xlu0 %863
      %865 = vrot.lane.b32.xlu0 %v689, 85
      %v866 = vpop.permute.xlu0 %865
      %867 = vrot.lane.b32.xlu0 %v690, 85
      %v868 = vpop.permute.xlu0 %867
      %869 = vrot.lane.b32.xlu0 %v691, 85
      %v870 = vpop.permute.xlu0 %869
      %871 = vrot.lane.b32.xlu0 %v692, 85
      %v872 = vpop.permute.xlu0 %871
      %vm873 = vcmask 695296
      %v874 = vsel %vm873, %v864, %v866
      %v875 = vsel %vm873, %v866, %v868
      %v876 = vsel %vm873, %v868, %v870
      %v877 = vsel %vm873, %v870, %v872
      %883 = vrot.lane.b32.xlu0 %v713, 84
      %v884 = vpop.permute.xlu0 %883
      %885 = vrot.lane.b32.xlu0 %v714, 84
      %v886 = vpop.permute.xlu0 %885
      %887 = vrot.lane.b32.xlu0 %v715, 84
      %v888 = vpop.permute.xlu0 %887
      %889 = vrot.lane.b32.xlu0 %v716, 84
      %v890 = vpop.permute.xlu0 %889
      %891 = vrot.lane.b32.xlu0 %v717, 84
      %v892 = vpop.permute.xlu0 %891
      %vm893 = vcmask 687104
      %v894 = vsel %vm893, %v884, %v886
      %v895 = vsel %vm893, %v886, %v888
      %v896 = vsel %vm893, %v888, %v890
      %v897 = vsel %vm893, %v890, %v892
      %903 = vrot.lane.b32.xlu0 %v738, 68
      %v904 = vpop.permute.xlu0 %903
      %905 = vrot.lane.b32.xlu0 %v739, 68
      %v906 = vpop.permute.xlu0 %905
      %907 = vrot.lane.b32.xlu0 %v740, 68
      %v908 = vpop.permute.xlu0 %907
      %909 = vrot.lane.b32.xlu0 %v741, 68
      %v910 = vpop.permute.xlu0 %909
      %911 = vrot.lane.b32.xlu0 %v742, 68
      %v912 = vpop.permute.xlu0 %911
      %vm913 = vcmask 556032
      %v914 = vsel %vm913, %v904, %v906
      %v915 = vsel %vm913, %v906, %v908
      %v916 = vsel %vm913, %v908, %v910
      %v917 = vsel %vm913, %v910, %v912
      %vm923 = vcmask 1042432
      %v924 = vsel %vm923, %v559, %v606
      %v925 = vsel %vm923, %v586, %v607
      %v926 = vsel %vm923, %v560, %v608
      %v927 = vsel %vm923, %v587, %v609
      %v928 = vsel %vm923, %v561, %v604
      %vm929 = vcmask 1045504
      %v930 = vsel %vm929, %v924, %v631
      %v931 = vsel %vm929, %v925, %v632
      %v932 = vsel %vm929, %v926, %v633
      %v933 = vsel %vm929, %v927, %v634
      %v934 = vsel %vm929, %v928, %v629
      %vm935 = vcmask 1040384
      %v936 = vsel %vm935, %v631, %v656
      %v937 = vsel %vm935, %v632, %v657
      %v938 = vsel %vm935, %v633, %v658
      %v939 = vsel %vm935, %v634, %v659
      %v940 = vsel %vm935, %v629, %v654
      %vm941 = vcmask 1043456
      %v942 = vsel %vm941, %v936, %v679
      %v943 = vsel %vm941, %v937, %v680
      %v944 = vsel %vm941, %v938, %v681
      %v945 = vsel %vm941, %v939, %v682
      %v946 = vsel %vm941, %v940, %v677
      %vm947 = vcmask 1046528
      %v948 = vsel %vm947, %v942, %v704
      %v949 = vsel %vm947, %v943, %v705
      %v950 = vsel %vm947, %v944, %v706
      %v951 = vsel %vm947, %v945, %v707
      %v952 = vsel %vm947, %v946, %v702
      %vm953 = vcmask 1041408
      %v954 = vsel %vm953, %v704, %v729
      %v955 = vsel %vm953, %v705, %v730
      %v956 = vsel %vm953, %v706, %v731
      %v957 = vsel %vm953, %v707, %v732
      %v958 = vsel %vm953, %v702, %v727
      %vm959 = vcmask 1044480
      %v960 = vsel %vm959, %v954, %v754
      %v961 = vsel %vm959, %v955, %v755
      %v962 = vsel %vm959, %v956, %v756
      %v963 = vsel %vm959, %v957, %v757
      %v964 = vsel %vm959, %v958, %v752
      %v965 = vsel %vm923, %v774, %v794
      %v966 = vsel %vm923, %v775, %v795
      %v967 = vsel %vm923, %v776, %v796
      %v968 = vsel %vm923, %v777, %v797
      %v969 = vsel %vm923, %v772, %v792
      %v970 = vsel %vm929, %v965, %v814
      %v971 = vsel %vm929, %v966, %v815
      %v972 = vsel %vm929, %v967, %v816
      %v973 = vsel %vm929, %v968, %v817
      %v974 = vsel %vm929, %v969, %v812
      %v975 = vsel %vm935, %v814, %v834
      %v976 = vsel %vm935, %v815, %v835
      %v977 = vsel %vm935, %v816, %v836
      %v978 = vsel %vm935, %v817, %v837
      %v979 = vsel %vm935, %v812, %v832
      %v980 = vsel %vm941, %v975, %v854
      %v981 = vsel %vm941, %v976, %v855
      %v982 = vsel %vm941, %v977, %v856
      %v983 = vsel %vm941, %v978, %v857
      %v984 = vsel %vm941, %v979, %v852
      %v985 = vsel %vm947, %v980, %v874
      %v986 = vsel %vm947, %v981, %v875
      %v987 = vsel %vm947, %v982, %v876
      %v988 = vsel %vm947, %v983, %v877
      %v989 = vsel %vm947, %v984, %v872
      %v990 = vsel %vm953, %v874, %v894
      %v991 = vsel %vm953, %v875, %v895
      %v992 = vsel %vm953, %v876, %v896
      %v993 = vsel %vm953, %v877, %v897
      %v994 = vsel %vm953, %v872, %v892
      %v995 = vsel %vm959, %v990, %v914
      %v996 = vsel %vm959, %v991, %v915
      %v997 = vsel %vm959, %v992, %v916
      %v998 = vsel %vm959, %v993, %v917
      %v999 = vsel %vm959, %v994, %v912
      %1000 = vrot.lane.b32.xlu0 %v665, 109
      %v1001 = vpop.permute.xlu0 %1000
      %1002 = vrot.lane.b32.xlu0 %v559, 109
      %v1003 = vpop.permute.xlu0 %1002
      %1004 = vrot.lane.b32.xlu0 %v666, 109
      %v1005 = vpop.permute.xlu0 %1004
      %1006 = vrot.lane.b32.xlu0 %v560, 109
      %v1007 = vpop.permute.xlu0 %1006
      %1008 = vrot.lane.b32.xlu0 %v667, 109
      %v1009 = vpop.permute.xlu0 %1008
      %vm1010 = vcmask 891904
      %v1011 = vsel %vm1010, %v1001, %v1003
      %v1012 = vsel %vm1010, %v1003, %v1005
      %v1013 = vsel %vm1010, %v1005, %v1007
      %v1014 = vsel %vm1010, %v1007, %v1009
      %v1020 = vcombine.high %v561, %v561
      %v1021 = vrot.slane %v1020, 1
      %1022 = vrot.lane.b32.xlu0 %v1021, 108
      %v1023 = vpop.permute.xlu0 %1022
      %v1024 = vsel %vm703, %v702, %v1023
      %v1026 = vrot.slane %v1020, 6
      %1027 = vrot.lane.b32.xlu0 %v1026, 107
      %v1028 = vpop.permute.xlu0 %1027
      %v1029 = vsel %vm728, %v727, %v1028
      %v1031 = vrot.slane %v1020, 3
      %1032 = vrot.lane.b32.xlu0 %v1031, 106
      %v1033 = vpop.permute.xlu0 %1032
      %v1034 = vsel %vm753, %v752, %v1033
      %1036 = vrot.lane.b32.xlu0 %v1020, 105
      %v1037 = vpop.permute.xlu0 %1036
      %v1038 = vsel %vm773, %v772, %v1037
      %v1039 = vsel %vm941, %v936, %v1011
      %v1040 = vsel %vm941, %v937, %v1012
      %v1041 = vsel %vm941, %v938, %v1013
      %v1042 = vsel %vm941, %v939, %v1014
      %v1043 = vsel %vm941, %v940, %v1009
      %v1044 = vsel %vm947, %v1039, %v704
      %v1045 = vsel %vm947, %v1040, %v705
      %v1046 = vsel %vm947, %v1041, %v706
      %v1047 = vsel %vm947, %v1042, %v707
      %v1048 = vsel %vm947, %v1043, %v1024
      %v1049 = vsel %vm953, %v1024, %v1029
      %v1050 = vsel %vm959, %v1049, %v1034
      %1066 = vrot.lane.b32.xlu0 %v930, 67
      %v1067 = vpop.permute.xlu0 %1066
      %1068 = vrot.lane.b32.xlu0 %v931, 67
      %v1069 = vpop.permute.xlu0 %1068
      %1070 = vrot.lane.b32.xlu0 %v932, 67
      %v1071 = vpop.permute.xlu0 %1070
      %1072 = vrot.lane.b32.xlu0 %v933, 67
      %v1073 = vpop.permute.xlu0 %1072
      %1074 = vrot.lane.b32.xlu0 %v934, 67
      %v1075 = vpop.permute.xlu0 %1074
      %1076 = vrot.lane.b32.xlu0 %v1044, 67
      %v1077 = vpop.permute.xlu0 %1076
      %1078 = vrot.lane.b32.xlu0 %v1045, 67
      %v1079 = vpop.permute.xlu0 %1078
      %1080 = vrot.lane.b32.xlu0 %v1046, 67
      %v1081 = vpop.permute.xlu0 %1080
      %1082 = vrot.lane.b32.xlu0 %v1047, 67
      %v1083 = vpop.permute.xlu0 %1082
      %1084 = vrot.lane.b32.xlu0 %v1048, 67
      %v1085 = vpop.permute.xlu0 %1084
      %1086 = vrot.lane.b32.xlu0 %v960, 67
      %v1087 = vpop.permute.xlu0 %1086
      %1088 = vrot.lane.b32.xlu0 %v961, 67
      %v1089 = vpop.permute.xlu0 %1088
      %1090 = vrot.lane.b32.xlu0 %v962, 67
      %v1091 = vpop.permute.xlu0 %1090
      %1092 = vrot.lane.b32.xlu0 %v963, 67
      %v1093 = vpop.permute.xlu0 %1092
      %1094 = vrot.lane.b32.xlu0 %v1050, 67
      %v1095 = vpop.permute.xlu0 %1094
      %1096 = vrot.lane.b32.xlu0 %v774, 67
      %v1097 = vpop.permute.xlu0 %1096
      %1098 = vrot.lane.b32.xlu0 %v775, 67
      %v1099 = vpop.permute.xlu0 %1098
      %1100 = vrot.lane.b32.xlu0 %v776, 67
      %v1101 = vpop.permute.xlu0 %1100
      %1102 = vrot.lane.b32.xlu0 %v777, 67
      %v1103 = vpop.permute.xlu0 %1102
      %1104 = vrot.lane.b32.xlu0 %v1038, 67
      %v1105 = vpop.permute.xlu0 %1104
      %vm1106 = vcmask 547840
      %v1107 = vsel %vm1106, %v1067, %v1069
      %v1108 = vsel %vm1106, %v1069, %v1071
      %v1109 = vsel %vm1106, %v1071, %v1073
      %v1110 = vsel %vm1106, %v1073, %v1075
      %v1111 = vsel %vm1106, %v1077, %v1079
      %v1112 = vsel %vm1106, %v1079, %v1081
      %v1113 = vsel %vm1106, %v1081, %v1083
      %v1114 = vsel %vm1106, %v1083, %v1085
      %v1115 = vsel %vm1106, %v1087, %v1089
      %v1116 = vsel %vm1106, %v1089, %v1091
      %v1117 = vsel %vm1106, %v1091, %v1093
      %v1118 = vsel %vm1106, %v1093, %v1095
      %v1119 = vsel %vm1106, %v1097, %v1099
      %v1120 = vsel %vm1106, %v1099, %v1101
      %v1121 = vsel %vm1106, %v1101, %v1103
      %v1122 = vsel %vm1106, %v1103, %v1105
      %1139 = vset.pattern.permute.xlu0 0
      %1140 = vperm.xlu0 %1139, %v569
      %v1141 = vpop.permute.xlu0 %1140
      %1144 = vset.pattern.permute.xlu0 0
      %1145 = vperm.xlu0 %1144, %v570
      %v1146 = vpop.permute.xlu0 %1145
      %1149 = vset.pattern.permute.xlu0 0
      %1150 = vperm.xlu0 %1149, %v571
      %v1151 = vpop.permute.xlu0 %1150
      %1154 = vset.pattern.permute.xlu0 0
      %1155 = vperm.xlu0 %1154, %v572
      %v1156 = vpop.permute.xlu0 %1155
      %1159 = vset.pattern.permute.xlu0 0
      %1160 = vperm.xlu0 %1159, %v573
      %v1161 = vpop.permute.xlu0 %1160
      %1164 = vset.pattern.permute.xlu0 0
      %1165 = vperm.xlu0 %1164, %v574
      %v1166 = vpop.permute.xlu0 %1165
      %1169 = vset.pattern.permute.xlu0 0
      %1170 = vperm.xlu0 %1169, %v575
      %v1171 = vpop.permute.xlu0 %1170
      %vm1173 = vcmask 613376
      %v1175 = vsel %vm1173, %v562, 0
      %v1178 = vsel %vm1173, %v563, 0
      %v1181 = vsel %vm1173, %v564, 0
      %v1184 = vsel %vm1173, %v565, 0
      %v1187 = vsel %vm1173, %v566, 0
      %v1190 = vsel %vm1173, %v567, 0
      %v1193 = vsel %vm1173, %v568, 0
      %v1195 = vsel %vm923, %v1119, 0
      %v1197 = vsel %vm923, %v1120, 0
      %v1199 = vsel %vm923, %v1121, 0
      %v1201 = vsel %vm923, %v1122, 0
      %v1203 = vsel %vm923, %v1105, 0
      %1205 = vmatprep.subr.mxu0 0.0
      %1206 = vmatpush1.msra.mxu0 0.0
      %1207 = vmatprep.subr.mxu0 0.0
      %1208 = vmatpush1.msra.mxu0 0.0
      %1209 = vmatprep.subr.mxu0 0.0
      %1210 = vmatpush1.msra.mxu0 0.0
      %1211 = vmatprep.subr.mxu0 0.0
      %1212 = vmatpush1.msra.mxu0 0.0
      %1213 = vmatprep.subr.mxu0 0.0
      %1214 = vmatpush1.msra.mxu0 0.0
      %1215 = vmatprep.subr.mxu0 0.0
      %1216 = vmatpush1.msra.mxu0 0.0
      %1217 = vmatprep.subr.mxu0 %v1197
      %1218 = vmatpush1.msra.mxu0 %v1195
      %1219 = vmatprep.subr.mxu0 %v1116
      %1220 = vmatpush1.msra.mxu0 %v1115
      %1221 = vmatprep.subr.mxu0 %v1112
      %1222 = vmatpush1.msra.mxu0 %v1111
      %1223 = vmatprep.subr.mxu0 %v1108
      %1224 = vmatpush1.msra.mxu0 %v1107
      %1225 = vmatprep.subr.mxu0 %v996
      %1226 = vmatpush1.msra.mxu0 %v995
      %1227 = vmatprep.subr.mxu0 %v986
      %1228 = vmatpush1.msra.mxu0 %v985
      %1229 = vmatprep.subr.mxu0 %v971
      %1230 = vmatpush1.msra.mxu0 %v970
      %1231 = vmatprep.subr.mxu0 %v961
      %1232 = vmatpush1.msra.mxu0 %v960
      %1233 = vmatprep.subr.mxu0 %v949
      %1234 = vmatpush1.msra.mxu0 %v948
      %1235 = vmatprep.subr.mxu0 %v931
      %1236 = vmatpush1.msra.mxu0 %v930
      %1237 = vmatprep.subr.mxu0 0.0
      %1238 = vmatpush2.msra.mxu0 0.0
      %1239 = vmatprep.subr.mxu0 0.0
      %1240 = vmatpush2.msra.mxu0 0.0
      %1241 = vmatprep.subr.mxu0 0.0
      %1242 = vmatpush2.msra.mxu0 0.0
      %1243 = vmatprep.subr.mxu0 0.0
      %1244 = vmatpush2.msra.mxu0 0.0
      %1245 = vmatprep.subr.mxu0 0.0
      %1246 = vmatpush2.msra.mxu0 0.0
      %1247 = vmatprep.subr.mxu0 0.0
      %1248 = vmatpush2.msra.mxu0 0.0
      %1249 = vmatprep.subr.mxu0 0.0
      %1250 = vmatpush2.msra.mxu0 0.0
      %1251 = vmatprep.subr.mxu0 0.0
      %1252 = vmatpush2.msra.mxu0 0.0
      %1253 = vmatprep.subr.mxu0 0.0
      %1254 = vmatpush2.msra.mxu0 0.0
      %1255 = vmatprep.subr.mxu0 0.0
      %1256 = vmatpush2.msra.mxu0 0.0
      %1257 = vmatprep.subr.mxu0 0.0
      %1258 = vmatpush2.msra.mxu0 0.0
      %1259 = vmatprep.subr.mxu0 0.0
      %1260 = vmatpush2.msra.mxu0 0.0
      %1261 = vmatprep.subr.mxu0 0.0
      %1262 = vmatpush2.msra.mxu0 0.0
      %1263 = vmatprep.subr.mxu0 0.0
      %1264 = vmatpush2.msra.mxu0 0.0
      %1265 = vmatprep.subr.mxu0 0.0
      %1266 = vmatpush2.msra.mxu0 0.0
      %1267 = vmatprep.subr.mxu0 0.0
      %1268 = vmatpush2.msra.mxu0 0.0
      %1269 = vmatprep.mubr.f32.mxu0 0.0
      %1270 = vmatmul.mubr.f32.gmra.mxu0 %v1175
      %v1271 = vpop.f32.mrf.mxu0
      %v1272 = vadd.f32 %v1141, %v1271
      %v1273 = vpop.f32.mrf.mxu0
      %v1274 = vadd.f32 %v1141, %v1273
      %1275 = vmatprep.mubr.f32.mxu0 0.0
      %1276 = vmatmul.mubr.f32.gmra.mxu0 %v1178
      %v1277 = vpop.f32.mrf.mxu0
      %v1278 = vadd.f32 %v1146, %v1277
      %v1279 = vpop.f32.mrf.mxu0
      %v1280 = vadd.f32 %v1146, %v1279
      %1281 = vmatprep.mubr.f32.mxu0 0.0
      %1282 = vmatmul.mubr.f32.gmra.mxu0 %v1181
      %v1283 = vpop.f32.mrf.mxu0
      %v1284 = vadd.f32 %v1151, %v1283
      %v1285 = vpop.f32.mrf.mxu0
      %v1286 = vadd.f32 %v1151, %v1285
      %1287 = vmatprep.mubr.f32.mxu0 0.0
      %1288 = vmatmul.mubr.f32.gmra.mxu0 %v1184
      %v1289 = vpop.f32.mrf.mxu0
      %v1290 = vadd.f32 %v1156, %v1289
      %v1291 = vpop.f32.mrf.mxu0
      %v1292 = vadd.f32 %v1156, %v1291
      %1293 = vmatprep.mubr.f32.mxu0 0.0
      %1294 = vmatmul.mubr.f32.gmra.mxu0 %v1187
      %v1295 = vpop.f32.mrf.mxu0
      %v1296 = vadd.f32 %v1161, %v1295
      %v1297 = vpop.f32.mrf.mxu0
      %v1298 = vadd.f32 %v1161, %v1297
      %1299 = vmatprep.mubr.f32.mxu0 0.0
      %1300 = vmatmul.mubr.f32.gmra.mxu0 %v1190
      %v1301 = vpop.f32.mrf.mxu0
      %v1302 = vadd.f32 %v1166, %v1301
      %v1303 = vpop.f32.mrf.mxu0
      %v1304 = vadd.f32 %v1166, %v1303
      %1305 = vmatprep.mubr.f32.mxu0 0.0
      %1306 = vmatmul.mubr.f32.gmra.mxu0 %v1193
      %v1307 = vpop.f32.mrf.mxu0
      %v1308 = vadd.f32 %v1171, %v1307
      %v1309 = vpop.f32.mrf.mxu0
      %v1310 = vadd.f32 %v1171, %v1309
      %1311 = vdwg.mxu0
      %1312 = vmatprep.subr.mxu0 0.0
      %1313 = vmatpush1.msra.mxu0 0.0
      %1314 = vmatprep.subr.mxu0 0.0
      %1315 = vmatpush1.msra.mxu0 0.0
      %1316 = vmatprep.subr.mxu0 0.0
      %1317 = vmatpush1.msra.mxu0 0.0
      %1318 = vmatprep.subr.mxu0 0.0
      %1319 = vmatpush1.msra.mxu0 0.0
      %1320 = vmatprep.subr.mxu0 0.0
      %1321 = vmatpush1.msra.mxu0 0.0
      %1322 = vmatprep.subr.mxu0 0.0
      %1323 = vmatpush1.msra.mxu0 0.0
      %1324 = vmatprep.subr.mxu0 %v1201
      %1325 = vmatpush1.msra.mxu0 %v1199
      %1326 = vmatprep.subr.mxu0 %v1118
      %1327 = vmatpush1.msra.mxu0 %v1117
      %1328 = vmatprep.subr.mxu0 %v1114
      %1329 = vmatpush1.msra.mxu0 %v1113
      %1330 = vmatprep.subr.mxu0 %v1110
      %1331 = vmatpush1.msra.mxu0 %v1109
      %1332 = vmatprep.subr.mxu0 %v998
      %1333 = vmatpush1.msra.mxu0 %v997
      %1334 = vmatprep.subr.mxu0 %v988
      %1335 = vmatpush1.msra.mxu0 %v987
      %1336 = vmatprep.subr.mxu0 %v973
      %1337 = vmatpush1.msra.mxu0 %v972
      %1338 = vmatprep.subr.mxu0 %v963
      %1339 = vmatpush1.msra.mxu0 %v962
      %1340 = vmatprep.subr.mxu0 %v951
      %1341 = vmatpush1.msra.mxu0 %v950
      %1342 = vmatprep.subr.mxu0 %v933
      %1343 = vmatpush1.msra.mxu0 %v932
      %1344 = vmatprep.subr.mxu0 0.0
      %1345 = vmatpush2.msra.mxu0 0.0
      %1346 = vmatprep.subr.mxu0 0.0
      %1347 = vmatpush2.msra.mxu0 0.0
      %1348 = vmatprep.subr.mxu0 0.0
      %1349 = vmatpush2.msra.mxu0 0.0
      %1350 = vmatprep.subr.mxu0 0.0
      %1351 = vmatpush2.msra.mxu0 0.0
      %1352 = vmatprep.subr.mxu0 0.0
      %1353 = vmatpush2.msra.mxu0 0.0
      %1354 = vmatprep.subr.mxu0 0.0
      %1355 = vmatpush2.msra.mxu0 0.0
      %1356 = vmatprep.subr.mxu0 0.0
      %1357 = vmatpush2.msra.mxu0 0.0
      %1358 = vmatprep.subr.mxu0 0.0
      %1359 = vmatpush2.msra.mxu0 0.0
      %1360 = vmatprep.subr.mxu0 0.0
      %1361 = vmatpush2.msra.mxu0 0.0
      %1362 = vmatprep.subr.mxu0 0.0
      %1363 = vmatpush2.msra.mxu0 0.0
      %1364 = vmatprep.subr.mxu0 0.0
      %1365 = vmatpush2.msra.mxu0 0.0
      %1366 = vmatprep.subr.mxu0 0.0
      %1367 = vmatpush2.msra.mxu0 0.0
      %1368 = vmatprep.subr.mxu0 0.0
      %1369 = vmatpush2.msra.mxu0 0.0
      %1370 = vmatprep.subr.mxu0 0.0
      %1371 = vmatpush2.msra.mxu0 0.0
      %1372 = vmatprep.subr.mxu0 0.0
      %1373 = vmatpush2.msra.mxu0 0.0
      %1374 = vmatprep.subr.mxu0 0.0
      %1375 = vmatpush2.msra.mxu0 0.0
      %1376 = vmatprep.mubr.f32.mxu0 0.0
      %1377 = vmatmul.mubr.f32.gmra.mxu0 %v1175
      %v1378 = vpop.f32.mrf.mxu0
      %v1379 = vadd.f32 %v1141, %v1378
      %v1380 = vpop.f32.mrf.mxu0
      %v1381 = vadd.f32 %v1141, %v1380
      %1382 = vmatprep.mubr.f32.mxu0 0.0
      %1383 = vmatmul.mubr.f32.gmra.mxu0 %v1178
      %v1384 = vpop.f32.mrf.mxu0
      %v1385 = vadd.f32 %v1146, %v1384
      %v1386 = vpop.f32.mrf.mxu0
      %v1387 = vadd.f32 %v1146, %v1386
      %1388 = vmatprep.mubr.f32.mxu0 0.0
      %1389 = vmatmul.mubr.f32.gmra.mxu0 %v1181
      %v1390 = vpop.f32.mrf.mxu0
      %v1391 = vadd.f32 %v1151, %v1390
      %v1392 = vpop.f32.mrf.mxu0
      %v1393 = vadd.f32 %v1151, %v1392
      %1394 = vmatprep.mubr.f32.mxu0 0.0
      %1395 = vmatmul.mubr.f32.gmra.mxu0 %v1184
      %v1396 = vpop.f32.mrf.mxu0
      %v1397 = vadd.f32 %v1156, %v1396
      %v1398 = vpop.f32.mrf.mxu0
      %v1399 = vadd.f32 %v1156, %v1398
      %1400 = vmatprep.mubr.f32.mxu0 0.0
      %1401 = vmatmul.mubr.f32.gmra.mxu0 %v1187
      %v1402 = vpop.f32.mrf.mxu0
      %v1403 = vadd.f32 %v1161, %v1402
      %v1404 = vpop.f32.mrf.mxu0
      %v1405 = vadd.f32 %v1161, %v1404
      %1406 = vmatprep.mubr.f32.mxu0 0.0
      %1407 = vmatmul.mubr.f32.gmra.mxu0 %v1190
      %v1408 = vpop.f32.mrf.mxu0
      %v1409 = vadd.f32 %v1166, %v1408
      %v1410 = vpop.f32.mrf.mxu0
      %v1411 = vadd.f32 %v1166, %v1410
      %1412 = vmatprep.mubr.f32.mxu0 0.0
      %1413 = vmatmul.mubr.f32.gmra.mxu0 %v1193
      %v1414 = vpop.f32.mrf.mxu0
      %v1415 = vadd.f32 %v1171, %v1414
      %v1416 = vpop.f32.mrf.mxu0
      %v1417 = vadd.f32 %v1171, %v1416
      %1418 = vdwg.mxu0
      %1419 = vmatprep.subr.mxu0 0.0
      %1420 = vmatpush1.msra.mxu0 0.0
      %1421 = vmatprep.subr.mxu0 0.0
      %1422 = vmatpush1.msra.mxu0 0.0
      %1423 = vmatprep.subr.mxu0 0.0
      %1424 = vmatpush1.msra.mxu0 0.0
      %1425 = vmatprep.subr.mxu0 0.0
      %1426 = vmatpush1.msra.mxu0 0.0
      %1427 = vmatprep.subr.mxu0 0.0
      %1428 = vmatpush1.msra.mxu0 0.0
      %1429 = vmatprep.subr.mxu0 0.0
      %1430 = vmatpush1.msra.mxu0 0.0
      %1431 = vmatprep.subr.mxu0 0.0
      %1432 = vmatpush1.msra.mxu0 %v1203
      %1433 = vmatprep.subr.mxu0 0.0
      %1434 = vmatpush1.msra.mxu0 %v1095
      %1435 = vmatprep.subr.mxu0 0.0
      %1436 = vmatpush1.msra.mxu0 %v1085
      %1437 = vmatprep.subr.mxu0 0.0
      %1438 = vmatpush1.msra.mxu0 %v1075
      %1439 = vmatprep.subr.mxu0 0.0
      %1440 = vmatpush1.msra.mxu0 %v999
      %1441 = vmatprep.subr.mxu0 0.0
      %1442 = vmatpush1.msra.mxu0 %v989
      %1443 = vmatprep.subr.mxu0 0.0
      %1444 = vmatpush1.msra.mxu0 %v974
      %1445 = vmatprep.subr.mxu0 0.0
      %1446 = vmatpush1.msra.mxu0 %v964
      %1447 = vmatprep.subr.mxu0 0.0
      %1448 = vmatpush1.msra.mxu0 %v952
      %1449 = vmatprep.subr.mxu0 0.0
      %1450 = vmatpush1.msra.mxu0 %v934
      %1451 = vmatprep.subr.mxu0 0.0
      %1452 = vmatpush2.msra.mxu0 0.0
      %1453 = vmatprep.subr.mxu0 0.0
      %1454 = vmatpush2.msra.mxu0 0.0
      %1455 = vmatprep.subr.mxu0 0.0
      %1456 = vmatpush2.msra.mxu0 0.0
      %1457 = vmatprep.subr.mxu0 0.0
      %1458 = vmatpush2.msra.mxu0 0.0
      %1459 = vmatprep.subr.mxu0 0.0
      %1460 = vmatpush2.msra.mxu0 0.0
      %1461 = vmatprep.subr.mxu0 0.0
      %1462 = vmatpush2.msra.mxu0 0.0
      %1463 = vmatprep.subr.mxu0 0.0
      %1464 = vmatpush2.msra.mxu0 0.0
      %1465 = vmatprep.subr.mxu0 0.0
      %1466 = vmatpush2.msra.mxu0 0.0
      %1467 = vmatprep.subr.mxu0 0.0
      %1468 = vmatpush2.msra.mxu0 0.0
      %1469 = vmatprep.subr.mxu0 0.0
      %1470 = vmatpush2.msra.mxu0 0.0
      %1471 = vmatprep.subr.mxu0 0.0
      %1472 = vmatpush2.msra.mxu0 0.0
      %1473 = vmatprep.subr.mxu0 0.0
      %1474 = vmatpush2.msra.mxu0 0.0
      %1475 = vmatprep.subr.mxu0 0.0
      %1476 = vmatpush2.msra.mxu0 0.0
      %1477 = vmatprep.subr.mxu0 0.0
      %1478 = vmatpush2.msra.mxu0 0.0
      %1479 = vmatprep.subr.mxu0 0.0
      %1480 = vmatpush2.msra.mxu0 0.0
      %1481 = vmatprep.subr.mxu0 0.0
      %1482 = vmatpush2.msra.mxu0 0.0
      %1483 = vmatprep.mubr.f32.mxu0 0.0
      %1484 = vmatmul.mubr.f32.gmra.mxu0 %v1175
      %v1485 = vpop.f32.mrf.mxu0
      %v1486 = vadd.f32 %v1141, %v1485
      %v1487 = vpop.f32.mrf.mxu0
      %1488 = vmatprep.mubr.f32.mxu0 0.0
      %1489 = vmatmul.mubr.f32.gmra.mxu0 %v1178
      %v1490 = vpop.f32.mrf.mxu0
      %v1491 = vadd.f32 %v1146, %v1490
      %v1492 = vpop.f32.mrf.mxu0
      %1493 = vmatprep.mubr.f32.mxu0 0.0
      %1494 = vmatmul.mubr.f32.gmra.mxu0 %v1181
      %v1495 = vpop.f32.mrf.mxu0
      %v1496 = vadd.f32 %v1151, %v1495
      %v1497 = vpop.f32.mrf.mxu0
      %1498 = vmatprep.mubr.f32.mxu0 0.0
      %1499 = vmatmul.mubr.f32.gmra.mxu0 %v1184
      %v1500 = vpop.f32.mrf.mxu0
      %v1501 = vadd.f32 %v1156, %v1500
      %v1502 = vpop.f32.mrf.mxu0
      %1503 = vmatprep.mubr.f32.mxu0 0.0
      %1504 = vmatmul.mubr.f32.gmra.mxu0 %v1187
      %v1505 = vpop.f32.mrf.mxu0
      %v1506 = vadd.f32 %v1161, %v1505
      %v1507 = vpop.f32.mrf.mxu0
      %1508 = vmatprep.mubr.f32.mxu0 0.0
      %1509 = vmatmul.mubr.f32.gmra.mxu0 %v1190
      %v1510 = vpop.f32.mrf.mxu0
      %v1511 = vadd.f32 %v1166, %v1510
      %v1512 = vpop.f32.mrf.mxu0
      %1513 = vmatprep.mubr.f32.mxu0 0.0
      %1514 = vmatmul.mubr.f32.gmra.mxu0 %v1193
      %v1515 = vpop.f32.mrf.mxu0
      %v1516 = vadd.f32 %v1171, %v1515
      %v1517 = vpop.f32.mrf.mxu0
      %1518 = vdwg.mxu0
      %vm1519 = vcmp.gt.f32.partialorder %v1272, 0.0
      %vm1520 = vcmp.gt.f32.partialorder %v1274, 0.0
      %vm1521 = vcmp.gt.f32.partialorder %v1379, 0.0
      %vm1522 = vcmp.gt.f32.partialorder %v1381, 0.0
      %vm1523 = vcmp.gt.f32.partialorder %v1486, 0.0
      %vm1524 = vcmp.gt.f32.partialorder %v1278, 0.0
      %vm1525 = vcmp.gt.f32.partialorder %v1280, 0.0
      %vm1526 = vcmp.gt.f32.partialorder %v1385, 0.0
      %vm1527 = vcmp.gt.f32.partialorder %v1387, 0.0
      %vm1528 = vcmp.gt.f32.partialorder %v1491, 0.0
      %vm1529 = vcmp.gt.f32.partialorder %v1284, 0.0
      %vm1530 = vcmp.gt.f32.partialorder %v1286, 0.0
      %vm1531 = vcmp.gt.f32.partialorder %v1391, 0.0
      %vm1532 = vcmp.gt.f32.partialorder %v1393, 0.0
      %vm1533 = vcmp.gt.f32.partialorder %v1496, 0.0
      %vm1534 = vcmp.gt.f32.partialorder %v1290, 0.0
      %vm1535 = vcmp.gt.f32.partialorder %v1292, 0.0
      %vm1536 = vcmp.gt.f32.partialorder %v1397, 0.0
      %vm1537 = vcmp.gt.f32.partialorder %v1399, 0.0
      %vm1538 = vcmp.gt.f32.partialorder %v1501, 0.0
      %vm1539 = vcmp.gt.f32.partialorder %v1296, 0.0
      %vm1540 = vcmp.gt.f32.partialorder %v1298, 0.0
      %vm1541 = vcmp.gt.f32.partialorder %v1403, 0.0
      %vm1542 = vcmp.gt.f32.partialorder %v1405, 0.0
      %vm1543 = vcmp.gt.f32.partialorder %v1506, 0.0
      %vm1544 = vcmp.gt.f32.partialorder %v1302, 0.0
      %vm1545 = vcmp.gt.f32.partialorder %v1304, 0.0
      %vm1546 = vcmp.gt.f32.partialorder %v1409, 0.0
      %vm1547 = vcmp.gt.f32.partialorder %v1411, 0.0
      %vm1548 = vcmp.gt.f32.partialorder %v1511, 0.0
      %vm1549 = vcmp.gt.f32.partialorder %v1308, 0.0
      %vm1550 = vcmp.gt.f32.partialorder %v1310, 0.0
      %vm1551 = vcmp.gt.f32.partialorder %v1415, 0.0
      %vm1552 = vcmp.gt.f32.partialorder %v1417, 0.0
      %vm1553 = vcmp.gt.f32.partialorder %v1516, 0.0
      %1555 = vset.pattern.permute.xlu0 0
      %1556 = vperm.xlu0 %1555, %v576
      %v1557 = vpop.permute.xlu0 %1556
      %1560 = vset.pattern.permute.xlu0 0
      %1561 = vperm.xlu0 %1560, %v577
      %v1562 = vpop.permute.xlu0 %1561
      %1565 = vset.pattern.permute.xlu0 0
      %1566 = vperm.xlu0 %1565, %v578
      %v1567 = vpop.permute.xlu0 %1566
      %1570 = vset.pattern.permute.xlu0 0
      %1571 = vperm.xlu0 %1570, %v579
      %v1572 = vpop.permute.xlu0 %1571
      %1575 = vset.pattern.permute.xlu0 0
      %1576 = vperm.xlu0 %1575, %v580
      %v1577 = vpop.permute.xlu0 %1576
      %1580 = vset.pattern.permute.xlu0 0
      %1581 = vperm.xlu0 %1580, %v581
      %v1582 = vpop.permute.xlu0 %1581
      %1585 = vset.pattern.permute.xlu0 0
      %1586 = vperm.xlu0 %1585, %v582
      %v1587 = vpop.permute.xlu0 %1586
      %v1589 = vmul.f32 %v1272, %v1557
      %v1590 = vmul.f32 %v1274, %v1557
      %v1591 = vmul.f32 %v1379, %v1557
      %v1592 = vmul.f32 %v1381, %v1557
      %v1593 = vmul.f32 %v1486, %v1557
      %v1594 = vmul.f32 %v1278, %v1562
      %v1595 = vmul.f32 %v1280, %v1562
      %v1596 = vmul.f32 %v1385, %v1562
      %v1597 = vmul.f32 %v1387, %v1562
      %v1598 = vmul.f32 %v1491, %v1562
      %v1599 = vmul.f32 %v1284, %v1567
      %v1600 = vmul.f32 %v1286, %v1567
      %v1601 = vmul.f32 %v1391, %v1567
      %v1602 = vmul.f32 %v1393, %v1567
      %v1603 = vmul.f32 %v1496, %v1567
      %v1604 = vmul.f32 %v1290, %v1572
      %v1605 = vmul.f32 %v1292, %v1572
      %v1606 = vmul.f32 %v1397, %v1572
      %v1607 = vmul.f32 %v1399, %v1572
      %v1608 = vmul.f32 %v1501, %v1572
      %v1609 = vmul.f32 %v1296, %v1577
      %v1610 = vmul.f32 %v1298, %v1577
      %v1611 = vmul.f32 %v1403, %v1577
      %v1612 = vmul.f32 %v1405, %v1577
      %v1613 = vmul.f32 %v1506, %v1577
      %v1614 = vmul.f32 %v1302, %v1582
      %v1615 = vmul.f32 %v1304, %v1582
      %v1616 = vmul.f32 %v1409, %v1582
      %v1617 = vmul.f32 %v1411, %v1582
      %v1618 = vmul.f32 %v1511, %v1582
      %v1619 = vmul.f32 %v1308, %v1587
      %v1620 = vmul.f32 %v1310, %v1587
      %v1621 = vmul.f32 %v1415, %v1587
      %v1622 = vmul.f32 %v1417, %v1587
      %v1623 = vmul.f32 %v1516, %v1587
      %v1624 = vsel %vm1519, %v1272, %v1589
      %v1625 = vsel %vm1520, %v1274, %v1590
      %v1626 = vsel %vm1521, %v1379, %v1591
      %v1627 = vsel %vm1522, %v1381, %v1592
      %v1628 = vsel %vm1523, %v1486, %v1593
      %v1629 = vsel %vm1524, %v1278, %v1594
      %v1630 = vsel %vm1525, %v1280, %v1595
      %v1631 = vsel %vm1526, %v1385, %v1596
      %v1632 = vsel %vm1527, %v1387, %v1597
      %v1633 = vsel %vm1528, %v1491, %v1598
      %v1634 = vsel %vm1529, %v1284, %v1599
      %v1635 = vsel %vm1530, %v1286, %v1600
      %v1636 = vsel %vm1531, %v1391, %v1601
      %v1637 = vsel %vm1532, %v1393, %v1602
      %v1638 = vsel %vm1533, %v1496, %v1603
      %v1639 = vsel %vm1534, %v1290, %v1604
      %v1640 = vsel %vm1535, %v1292, %v1605
      %v1641 = vsel %vm1536, %v1397, %v1606
      %v1642 = vsel %vm1537, %v1399, %v1607
      %v1643 = vsel %vm1538, %v1501, %v1608
      %v1644 = vsel %vm1539, %v1296, %v1609
      %v1645 = vsel %vm1540, %v1298, %v1610
      %v1646 = vsel %vm1541, %v1403, %v1611
      %v1647 = vsel %vm1542, %v1405, %v1612
      %v1648 = vsel %vm1543, %v1506, %v1613
      %v1649 = vsel %vm1544, %v1302, %v1614
      %v1650 = vsel %vm1545, %v1304, %v1615
      %v1651 = vsel %vm1546, %v1409, %v1616
      %v1652 = vsel %vm1547, %v1411, %v1617
      %v1653 = vsel %vm1548, %v1511, %v1618
      %v1654 = vsel %vm1549, %v1308, %v1619
      %v1655 = vsel %vm1550, %v1310, %v1620
      %v1656 = vsel %vm1551, %v1415, %v1621
      %v1657 = vsel %vm1552, %v1417, %v1622
      %v1658 = vsel %vm1553, %v1516, %v1623
      %v1659 = vld [vmem:[%s5] sm:$0xff]
      %v1660 = vld [vmem:[%s5 + $0x8] sm:$0xf]
      %v1661 = vld [vmem:[%s6] sm:$0xff]
      %v1662 = vld [vmem:[%s6 + $0x8] sm:$0xf]
      %1664 = vset.pattern.permute.xlu0 0
      %1665 = vperm.xlu0 %1664, %v1661
      %v1666 = vpop.permute.xlu0 %1665
      %1669 = vset.pattern.permute.xlu0 0
      %1670 = vperm.xlu0 %1669, %v1662
      %v1671 = vpop.permute.xlu0 %1670
      %vm1673 = vcmask 457728
      %v1675 = vsel %vm1673, %v1659, 0
      %v1678 = vsel %vm1673, %v1660, 0
      %1680 = vmatprep.subr.mxu0 0.0
      %1681 = vmatpush1.msra.mxu0 0.0
      %1682 = vmatprep.subr.mxu0 0.0
      %1683 = vmatpush1.msra.mxu0 0.0
      %1684 = vmatprep.subr.mxu0 0.0
      %1685 = vmatpush1.msra.mxu0 0.0
      %1686 = vmatprep.subr.mxu0 0.0
      %1687 = vmatpush1.msra.mxu0 0.0
      %1688 = vmatprep.subr.mxu0 0.0
      %1689 = vmatpush1.msra.mxu0 0.0
      %1690 = vmatprep.subr.mxu0 0.0
      %1691 = vmatpush1.msra.mxu0 0.0
      %1692 = vmatprep.subr.mxu0 0.0
      %1693 = vmatpush1.msra.mxu0 0.0
      %1694 = vmatprep.subr.mxu0 0.0
      %1695 = vmatpush1.msra.mxu0 0.0
      %1696 = vmatprep.subr.mxu0 0.0
      %1697 = vmatpush1.msra.mxu0 0.0
      %1698 = vmatprep.subr.mxu0 %v1655
      %1699 = vmatpush1.msra.mxu0 %v1654
      %1700 = vmatprep.subr.mxu0 %v1650
      %1701 = vmatpush1.msra.mxu0 %v1649
      %1702 = vmatprep.subr.mxu0 %v1645
      %1703 = vmatpush1.msra.mxu0 %v1644
      %1704 = vmatprep.subr.mxu0 %v1640
      %1705 = vmatpush1.msra.mxu0 %v1639
      %1706 = vmatprep.subr.mxu0 %v1635
      %1707 = vmatpush1.msra.mxu0 %v1634
      %1708 = vmatprep.subr.mxu0 %v1630
      %1709 = vmatpush1.msra.mxu0 %v1629
      %1710 = vmatprep.subr.mxu0 %v1625
      %1711 = vmatpush1.msra.mxu0 %v1624
      %1712 = vmatprep.subr.mxu0 0.0
      %1713 = vmatpush2.msra.mxu0 0.0
      %1714 = vmatprep.subr.mxu0 0.0
      %1715 = vmatpush2.msra.mxu0 0.0
      %1716 = vmatprep.subr.mxu0 0.0
      %1717 = vmatpush2.msra.mxu0 0.0
      %1718 = vmatprep.subr.mxu0 0.0
      %1719 = vmatpush2.msra.mxu0 0.0
      %1720 = vmatprep.subr.mxu0 0.0
      %1721 = vmatpush2.msra.mxu0 0.0
      %1722 = vmatprep.subr.mxu0 0.0
      %1723 = vmatpush2.msra.mxu0 0.0
      %1724 = vmatprep.subr.mxu0 0.0
      %1725 = vmatpush2.msra.mxu0 0.0
      %1726 = vmatprep.subr.mxu0 0.0
      %1727 = vmatpush2.msra.mxu0 0.0
      %1728 = vmatprep.subr.mxu0 0.0
      %1729 = vmatpush2.msra.mxu0 0.0
      %1730 = vmatprep.subr.mxu0 0.0
      %1731 = vmatpush2.msra.mxu0 0.0
      %1732 = vmatprep.subr.mxu0 0.0
      %1733 = vmatpush2.msra.mxu0 0.0
      %1734 = vmatprep.subr.mxu0 0.0
      %1735 = vmatpush2.msra.mxu0 0.0
      %1736 = vmatprep.subr.mxu0 0.0
      %1737 = vmatpush2.msra.mxu0 0.0
      %1738 = vmatprep.subr.mxu0 0.0
      %1739 = vmatpush2.msra.mxu0 0.0
      %1740 = vmatprep.subr.mxu0 0.0
      %1741 = vmatpush2.msra.mxu0 0.0
      %1742 = vmatprep.subr.mxu0 0.0
      %1743 = vmatpush2.msra.mxu0 0.0
      %1744 = vmatprep.mubr.f32.mxu0 0.0
      %1745 = vmatmul.mubr.f32.gmra.mxu0 %v1675
      %v1746 = vpop.f32.mrf.mxu0
      %v1747 = vadd.f32 %v1666, %v1746
      %v1748 = vpop.f32.mrf.mxu0
      %v1749 = vadd.f32 %v1666, %v1748
      %1750 = vmatprep.mubr.f32.mxu0 0.0
      %1751 = vmatmul.mubr.f32.gmra.mxu0 %v1678
      %v1752 = vpop.f32.mrf.mxu0
      %v1753 = vadd.f32 %v1671, %v1752
      %v1754 = vpop.f32.mrf.mxu0
      %v1755 = vadd.f32 %v1671, %v1754
      %1756 = vdwg.mxu0
      %1757 = vmatprep.subr.mxu0 0.0
      %1758 = vmatpush1.msra.mxu0 0.0
      %1759 = vmatprep.subr.mxu0 0.0
      %1760 = vmatpush1.msra.mxu0 0.0
      %1761 = vmatprep.subr.mxu0 0.0
      %1762 = vmatpush1.msra.mxu0 0.0
      %1763 = vmatprep.subr.mxu0 0.0
      %1764 = vmatpush1.msra.mxu0 0.0
      %1765 = vmatprep.subr.mxu0 0.0
      %1766 = vmatpush1.msra.mxu0 0.0
      %1767 = vmatprep.subr.mxu0 0.0
      %1768 = vmatpush1.msra.mxu0 0.0
      %1769 = vmatprep.subr.mxu0 0.0
      %1770 = vmatpush1.msra.mxu0 0.0
      %1771 = vmatprep.subr.mxu0 0.0
      %1772 = vmatpush1.msra.mxu0 0.0
      %1773 = vmatprep.subr.mxu0 0.0
      %1774 = vmatpush1.msra.mxu0 0.0
      %1775 = vmatprep.subr.mxu0 %v1657
      %1776 = vmatpush1.msra.mxu0 %v1656
      %1777 = vmatprep.subr.mxu0 %v1652
      %1778 = vmatpush1.msra.mxu0 %v1651
      %1779 = vmatprep.subr.mxu0 %v1647
      %1780 = vmatpush1.msra.mxu0 %v1646
      %1781 = vmatprep.subr.mxu0 %v1642
      %1782 = vmatpush1.msra.mxu0 %v1641
      %1783 = vmatprep.subr.mxu0 %v1637
      %1784 = vmatpush1.msra.mxu0 %v1636
      %1785 = vmatprep.subr.mxu0 %v1632
      %1786 = vmatpush1.msra.mxu0 %v1631
      %1787 = vmatprep.subr.mxu0 %v1627
      %1788 = vmatpush1.msra.mxu0 %v1626
      %1789 = vmatprep.subr.mxu0 0.0
      %1790 = vmatpush2.msra.mxu0 0.0
      %1791 = vmatprep.subr.mxu0 0.0
      %1792 = vmatpush2.msra.mxu0 0.0
      %1793 = vmatprep.subr.mxu0 0.0
      %1794 = vmatpush2.msra.mxu0 0.0
      %1795 = vmatprep.subr.mxu0 0.0
      %1796 = vmatpush2.msra.mxu0 0.0
      %1797 = vmatprep.subr.mxu0 0.0
      %1798 = vmatpush2.msra.mxu0 0.0
      %1799 = vmatprep.subr.mxu0 0.0
      %1800 = vmatpush2.msra.mxu0 0.0
      %1801 = vmatprep.subr.mxu0 0.0
      %1802 = vmatpush2.msra.mxu0 0.0
      %1803 = vmatprep.subr.mxu0 0.0
      %1804 = vmatpush2.msra.mxu0 0.0
      %1805 = vmatprep.subr.mxu0 0.0
      %1806 = vmatpush2.msra.mxu0 0.0
      %1807 = vmatprep.subr.mxu0 0.0
      %1808 = vmatpush2.msra.mxu0 0.0
      %1809 = vmatprep.subr.mxu0 0.0
      %1810 = vmatpush2.msra.mxu0 0.0
      %1811 = vmatprep.subr.mxu0 0.0
      %1812 = vmatpush2.msra.mxu0 0.0
      %1813 = vmatprep.subr.mxu0 0.0
      %1814 = vmatpush2.msra.mxu0 0.0
      %1815 = vmatprep.subr.mxu0 0.0
      %1816 = vmatpush2.msra.mxu0 0.0
      %1817 = vmatprep.subr.mxu0 0.0
      %1818 = vmatpush2.msra.mxu0 0.0
      %1819 = vmatprep.subr.mxu0 0.0
      %1820 = vmatpush2.msra.mxu0 0.0
      %1821 = vmatprep.mubr.f32.mxu0 0.0
      %1822 = vmatmul.mubr.f32.gmra.mxu0 %v1675
      %v1823 = vpop.f32.mrf.mxu0
      %v1824 = vadd.f32 %v1666, %v1823
      %v1825 = vpop.f32.mrf.mxu0
      %v1826 = vadd.f32 %v1666, %v1825
      %1827 = vmatprep.mubr.f32.mxu0 0.0
      %1828 = vmatmul.mubr.f32.gmra.mxu0 %v1678
      %v1829 = vpop.f32.mrf.mxu0
      %v1830 = vadd.f32 %v1671, %v1829
      %v1831 = vpop.f32.mrf.mxu0
      %v1832 = vadd.f32 %v1671, %v1831
      %1833 = vdwg.mxu0
      %1834 = vmatprep.subr.mxu0 0.0
      %1835 = vmatpush1.msra.mxu0 0.0
      %1836 = vmatprep.subr.mxu0 0.0
      %1837 = vmatpush1.msra.mxu0 0.0
      %1838 = vmatprep.subr.mxu0 0.0
      %1839 = vmatpush1.msra.mxu0 0.0
      %1840 = vmatprep.subr.mxu0 0.0
      %1841 = vmatpush1.msra.mxu0 0.0
      %1842 = vmatprep.subr.mxu0 0.0
      %1843 = vmatpush1.msra.mxu0 0.0
      %1844 = vmatprep.subr.mxu0 0.0
      %1845 = vmatpush1.msra.mxu0 0.0
      %1846 = vmatprep.subr.mxu0 0.0
      %1847 = vmatpush1.msra.mxu0 0.0
      %1848 = vmatprep.subr.mxu0 0.0
      %1849 = vmatpush1.msra.mxu0 0.0
      %1850 = vmatprep.subr.mxu0 0.0
      %1851 = vmatpush1.msra.mxu0 0.0
      %1852 = vmatprep.subr.mxu0 0.0
      %1853 = vmatpush1.msra.mxu0 %v1658
      %1854 = vmatprep.subr.mxu0 0.0
      %1855 = vmatpush1.msra.mxu0 %v1653
      %1856 = vmatprep.subr.mxu0 0.0
      %1857 = vmatpush1.msra.mxu0 %v1648
      %1858 = vmatprep.subr.mxu0 0.0
      %1859 = vmatpush1.msra.mxu0 %v1643
      %1860 = vmatprep.subr.mxu0 0.0
      %1861 = vmatpush1.msra.mxu0 %v1638
      %1862 = vmatprep.subr.mxu0 0.0
      %1863 = vmatpush1.msra.mxu0 %v1633
      %1864 = vmatprep.subr.mxu0 0.0
      %1865 = vmatpush1.msra.mxu0 %v1628
      %1866 = vmatprep.subr.mxu0 0.0
      %1867 = vmatpush2.msra.mxu0 0.0
      %1868 = vmatprep.subr.mxu0 0.0
      %1869 = vmatpush2.msra.mxu0 0.0
      %1870 = vmatprep.subr.mxu0 0.0
      %1871 = vmatpush2.msra.mxu0 0.0
      %1872 = vmatprep.subr.mxu0 0.0
      %1873 = vmatpush2.msra.mxu0 0.0
      %1874 = vmatprep.subr.mxu0 0.0
      %1875 = vmatpush2.msra.mxu0 0.0
      %1876 = vmatprep.subr.mxu0 0.0
      %1877 = vmatpush2.msra.mxu0 0.0
      %1878 = vmatprep.subr.mxu0 0.0
      %1879 = vmatpush2.msra.mxu0 0.0
      %1880 = vmatprep.subr.mxu0 0.0
      %1881 = vmatpush2.msra.mxu0 0.0
      %1882 = vmatprep.subr.mxu0 0.0
      %1883 = vmatpush2.msra.mxu0 0.0
      %1884 = vmatprep.subr.mxu0 0.0
      %1885 = vmatpush2.msra.mxu0 0.0
      %1886 = vmatprep.subr.mxu0 0.0
      %1887 = vmatpush2.msra.mxu0 0.0
      %1888 = vmatprep.subr.mxu0 0.0
      %1889 = vmatpush2.msra.mxu0 0.0
      %1890 = vmatprep.subr.mxu0 0.0
      %1891 = vmatpush2.msra.mxu0 0.0
      %1892 = vmatprep.subr.mxu0 0.0
      %1893 = vmatpush2.msra.mxu0 0.0
      %1894 = vmatprep.subr.mxu0 0.0
      %1895 = vmatpush2.msra.mxu0 0.0
      %1896 = vmatprep.subr.mxu0 0.0
      %1897 = vmatpush2.msra.mxu0 0.0
      %1898 = vmatprep.mubr.f32.mxu0 0.0
      %1899 = vmatmul.mubr.f32.gmra.mxu0 %v1675
      %v1900 = vpop.f32.mrf.mxu0
      %v1901 = vadd.f32 %v1666, %v1900
      %v1902 = vpop.f32.mrf.mxu0
      %1903 = vmatprep.mubr.f32.mxu0 0.0
      %1904 = vmatmul.mubr.f32.gmra.mxu0 %v1678
      %v1905 = vpop.f32.mrf.mxu0
      %v1906 = vadd.f32 %v1671, %v1905
      %v1907 = vpop.f32.mrf.mxu0
      %1908 = vdwg.mxu0
      %v1909 = vld [vmem:[%s7] sm:$0xff]
      %v1910 = vld [vmem:[%s7 + $0x8] sm:$0xf]
      %vm1911 = vcmp.gt.f32.partialorder %v1747, 0.0
      %vm1912 = vcmp.gt.f32.partialorder %v1749, 0.0
      %vm1913 = vcmp.gt.f32.partialorder %v1824, 0.0
      %vm1914 = vcmp.gt.f32.partialorder %v1826, 0.0
      %vm1915 = vcmp.gt.f32.partialorder %v1901, 0.0
      %vm1916 = vcmp.gt.f32.partialorder %v1753, 0.0
      %vm1917 = vcmp.gt.f32.partialorder %v1755, 0.0
      %vm1918 = vcmp.gt.f32.partialorder %v1830, 0.0
      %vm1919 = vcmp.gt.f32.partialorder %v1832, 0.0
      %vm1920 = vcmp.gt.f32.partialorder %v1906, 0.0
      %1922 = vset.pattern.permute.xlu0 0
      %1923 = vperm.xlu0 %1922, %v1909
      %v1924 = vpop.permute.xlu0 %1923
      %1927 = vset.pattern.permute.xlu0 0
      %1928 = vperm.xlu0 %1927, %v1910
      %v1929 = vpop.permute.xlu0 %1928
      %v1931 = vmul.f32 %v1747, %v1924
      %v1932 = vmul.f32 %v1749, %v1924
      %v1933 = vmul.f32 %v1824, %v1924
      %v1934 = vmul.f32 %v1826, %v1924
      %v1935 = vmul.f32 %v1901, %v1924
      %v1936 = vmul.f32 %v1753, %v1929
      %v1937 = vmul.f32 %v1755, %v1929
      %v1938 = vmul.f32 %v1830, %v1929
      %v1939 = vmul.f32 %v1832, %v1929
      %v1940 = vmul.f32 %v1906, %v1929
      %v1941 = vsel %vm1911, %v1747, %v1931
      %v1942 = vsel %vm1912, %v1749, %v1932
      %v1943 = vsel %vm1913, %v1824, %v1933
      %v1944 = vsel %vm1914, %v1826, %v1934
      %v1945 = vsel %vm1915, %v1901, %v1935
      %v1946 = vsel %vm1916, %v1753, %v1936
      %v1947 = vsel %vm1917, %v1755, %v1937
      %v1948 = vsel %vm1918, %v1830, %v1938
      %v1949 = vsel %vm1919, %v1832, %v1939
      %v1950 = vsel %vm1920, %v1906, %v1940
      %s1951 = smul.u32 %s32, 16
      %s1952 = ssub.s32 6, %s1951
      %p1953 = scmp.gt.s32.totalorder %s1952, 0
      %s1954 = scalar_select %p1953, %s1952, 0
      %s1955 = smul.u32 %s1954, 20
      %s1956 = ssub.s32 22, %s1951
      %p1957 = scmp.lt.s32.totalorder %s1956, 28
      %s1958 = scalar_select %p1957, %s1956, 28
      %s1959 = smul.u32 %s1958, 20
      %v1960 = vlaneseq
      %v1961 = vand.u32 %v1960, 127
      %v1962 = vadd.s32 %v1961, 128
      %v1963 = vadd.s32 %v1961, 256
      %v1964 = vadd.s32 %v1961, 384
      %v1965 = vadd.s32 %v1961, 512
      %v1966 = vstv %s1955
      %vm1967 = vcmp.ge.s32.totalorder %v1961, %v1966
      %vm1968 = vcmp.ge.s32.totalorder %v1962, %v1966
      %vm1969 = vcmp.ge.s32.totalorder %v1963, %v1966
      %vm1970 = vcmp.ge.s32.totalorder %v1964, %v1966
      %vm1971 = vcmp.ge.s32.totalorder %v1965, %v1966
      %v1972 = vstv %s1959
      %vm1973 = vcmp.lt.s32.totalorder %v1961, %v1972
      %vm1974 = vcmp.lt.s32.totalorder %v1962, %v1972
      %vm1975 = vcmp.lt.s32.totalorder %v1963, %v1972
      %vm1976 = vcmp.lt.s32.totalorder %v1964, %v1972
      %vm1977 = vcmp.lt.s32.totalorder %v1965, %v1972
      %vm1978 = vmand %vm1967, %vm1973
      %vm1979 = vmand %vm1968, %vm1974
      %vm1980 = vmand %vm1969, %vm1975
      %vm1981 = vmand %vm1970, %vm1976
      %vm1982 = vmand %vm1971, %vm1977
      %v1983 = vsel %vm1978, %v1941, 0.0
      %v1984 = vsel %vm1979, %v1942, 0.0
      %v1985 = vsel %vm1980, %v1943, 0.0
      %v1986 = vsel %vm1981, %v1944, 0.0
      %v1987 = vsel %vm1982, %v1945, 0.0
      %v1988 = vsel %vm1978, %v1946, 0.0
      %v1989 = vsel %vm1979, %v1947, 0.0
      %v1990 = vsel %vm1980, %v1948, 0.0
      %v1991 = vsel %vm1981, %v1949, 0.0
      %v1992 = vsel %vm1982, %v1950, 0.0
      %v1994 = vlaneseq
      %v1995 = vshrl.u32 %v1994, 7
      %v1996 = vsub.s32 0, %v1995
      %v1997 = vrot.slane %v558, %v1996
      %v1998 = vlaneseq
      %v1999 = vshrl.u32 %v1998, 7
      %v2000 = vsub.s32 1, %v1999
      %v2001 = vrot.slane %v558, %v2000
      %v2002 = vlaneseq
      %v2003 = vshrl.u32 %v2002, 7
      %v2004 = vsub.s32 2, %v2003
      %v2005 = vrot.slane %v558, %v2004
      %v2006 = vlaneseq
      %v2007 = vshrl.u32 %v2006, 7
      %v2008 = vsub.s32 3, %v2007
      %v2009 = vrot.slane %v558, %v2008
      %v2010 = vlaneseq
      %v2011 = vshrl.u32 %v2010, 7
      %v2012 = vsub.s32 4, %v2011
      %v2013 = vrot.slane %v558, %v2012
      %v2019 = vmul.f32 %v1983, %v1997
      %v2020 = vmul.f32 %v1984, %v2001
      %v2021 = vmul.f32 %v1985, %v2005
      %v2022 = vmul.f32 %v1986, %v2009
      %v2023 = vmul.f32 %v1987, %v2013
      %v2024 = vmul.f32 %v1988, %v1997
      %v2025 = vmul.f32 %v1989, %v2001
      %v2026 = vmul.f32 %v1990, %v2005
      %v2027 = vmul.f32 %v1991, %v2009
      %v2028 = vmul.f32 %v1992, %v2013
      %2029 = vst [vmem:[#allocation2] sm:$0xff] 0.0
      %2030 = vst [vmem:[#allocation2 + $0x8] sm:$0xff] 0.0
      %2031 = vst [vmem:[#allocation2 + $0x10] sm:$0xff] 0.0
      %2032 = vst [vmem:[#allocation2 + $0x18] sm:$0xff] 0.0
      %vm2033 = vcmask 424960
      %2034 = vst.msk [vmem:[#allocation2 + $0x20] sm:$0xff] %vm2033, 0.0
      %2035 = vst [vmem:[#allocation2 + $0x28] sm:$0xf] 0.0
      %2036 = vst [vmem:[#allocation2 + $0x30] sm:$0xf] 0.0
      %2037 = vst [vmem:[#allocation2 + $0x38] sm:$0xf] 0.0
      %2038 = vst [vmem:[#allocation2 + $0x40] sm:$0xf] 0.0
      %vm2039 = vcmask 420864
      %2040 = vst.msk [vmem:[#allocation2 + $0x48] sm:$0xf] %vm2039, 0.0
      %2041 = vst [vmem:[#allocation3] sm:$0xff] 0.0
      %2042 = vst [vmem:[#allocation3 + $0x8] sm:$0xff] 0.0
      %2043 = vst [vmem:[#allocation3 + $0x10] sm:$0xff] 0.0
      %2044 = vst [vmem:[#allocation3 + $0x18] sm:$0xff] 0.0
      %2045 = vst.msk [vmem:[#allocation3 + $0x20] sm:$0xff] %vm2033, 0.0
      %2046 = vst [vmem:[#allocation3 + $0x28] sm:$0xf] 0.0
      %2047 = vst [vmem:[#allocation3 + $0x30] sm:$0xf] 0.0
      %2048 = vst [vmem:[#allocation3 + $0x38] sm:$0xf] 0.0
      %2049 = vst [vmem:[#allocation3 + $0x40] sm:$0xf] 0.0
      %2050 = vst.msk [vmem:[#allocation3 + $0x48] sm:$0xf] %vm2039, 0.0
      %2061 = vrot.lane.b32.xlu0 %v2019, 2
      %v2062 = vpop.permute.xlu0 %2061
      %2063 = vrot.lane.b32.xlu0 %v2020, 2
      %v2064 = vpop.permute.xlu0 %2063
      %2065 = vrot.lane.b32.xlu0 %v2021, 2
      %v2066 = vpop.permute.xlu0 %2065
      %2067 = vrot.lane.b32.xlu0 %v2022, 2
      %v2068 = vpop.permute.xlu0 %2067
      %2069 = vrot.lane.b32.xlu0 %v2023, 2
      %v2070 = vpop.permute.xlu0 %2069
      %2071 = vrot.lane.b32.xlu0 %v2024, 2
      %v2072 = vpop.permute.xlu0 %2071
      %2073 = vrot.lane.b32.xlu0 %v2025, 2
      %v2074 = vpop.permute.xlu0 %2073
      %2075 = vrot.lane.b32.xlu0 %v2026, 2
      %v2076 = vpop.permute.xlu0 %2075
      %2077 = vrot.lane.b32.xlu0 %v2027, 2
      %v2078 = vpop.permute.xlu0 %2077
      %2079 = vrot.lane.b32.xlu0 %v2028, 2
      %v2080 = vpop.permute.xlu0 %2079
      %vm2081 = vcmask 15360
      %v2082 = vsel %vm2081, %v2062, %v2064
      %v2083 = vsel %vm2081, %v2064, %v2066
      %v2084 = vsel %vm2081, %v2066, %v2068
      %v2085 = vsel %vm2081, %v2068, %v2070
      %v2086 = vsel %vm2081, %v2072, %v2074
      %v2087 = vsel %vm2081, %v2074, %v2076
      %v2088 = vsel %vm2081, %v2076, %v2078
      %v2089 = vsel %vm2081, %v2078, %v2080
      %vm2100 = vcmask 1047568
      %2101 = vst.msk [vmem:[#allocation2] sm:$0xff] %vm2100, %v2062
      %2102 = vst [vmem:[#allocation2 + $0x8] sm:$0xff] %v2082
      %2103 = vst [vmem:[#allocation2 + $0x10] sm:$0xff] %v2083
      %2104 = vst [vmem:[#allocation2 + $0x18] sm:$0xff] %v2084
      %vm2105 = vcmask 408576
      %2106 = vst.msk [vmem:[#allocation2 + $0x20] sm:$0xff] %vm2105, %v2085
      %vm2107 = vcmask 1043472
      %2108 = vst.msk [vmem:[#allocation2 + $0x28] sm:$0xf] %vm2107, %v2072
      %2109 = vst [vmem:[#allocation2 + $0x30] sm:$0xf] %v2086
      %2110 = vst [vmem:[#allocation2 + $0x38] sm:$0xf] %v2087
      %2111 = vst [vmem:[#allocation2 + $0x40] sm:$0xf] %v2088
      %vm2112 = vcmask 404480
      %2113 = vst.msk [vmem:[#allocation2 + $0x48] sm:$0xf] %vm2112, %v2089
      %v2114 = vld [vmem:[#allocation2] sm:$0xff]
      %v2115 = vld [vmem:[#allocation2 + $0x8] sm:$0xff]
      %v2116 = vld [vmem:[#allocation2 + $0x10] sm:$0xff]
      %v2117 = vld [vmem:[#allocation2 + $0x18] sm:$0xff]
      %v2118 = vld [vmem:[#allocation2 + $0x20] sm:$0xff]
      %v2119 = vld [vmem:[#allocation2 + $0x28] sm:$0xf]
      %v2120 = vld [vmem:[#allocation2 + $0x30] sm:$0xf]
      %v2121 = vld [vmem:[#allocation2 + $0x38] sm:$0xf]
      %v2122 = vld [vmem:[#allocation2 + $0x40] sm:$0xf]
      %v2123 = vld [vmem:[#allocation2 + $0x48] sm:$0xf]
      %v2124 = vld [vmem:[%s8] sm:$0xff]
      %v2125 = vld [vmem:[%s8 + $0x8] sm:$0xf]
      %v2126 = vld [vmem:[%s9] sm:$0xff]
      %v2127 = vld [vmem:[%s9 + $0x8] sm:$0xf]
      %v2128 = vld [vmem:[%s10] sm:$0xff]
      %v2129 = vld [vmem:[%s10 + $0x8] sm:$0xf]
      %v2140 = vrot.slane %v2114, 4
      %v2141 = vrot.slane %v2115, 4
      %v2142 = vrot.slane %v2116, 4
      %v2143 = vrot.slane %v2117, 4
      %v2144 = vrot.slane %v2118, 4
      %v2145 = vrot.slane %v2119, 4
      %v2146 = vsel %vm941, %v2140, %v2145
      %v2147 = vrot.slane %v2120, 4
      %v2148 = vsel %vm941, %v2141, %v2147
      %v2149 = vrot.slane %v2121, 4
      %v2150 = vsel %vm941, %v2142, %v2149
      %v2151 = vrot.slane %v2122, 4
      %v2152 = vsel %vm941, %v2143, %v2151
      %v2153 = vrot.slane %v2123, 4
      %v2154 = vsel %vm941, %v2144, %v2153
      %2155 = vrot.lane.b32.xlu0 %v2140, 127
      %v2156 = vpop.permute.xlu0 %2155
      %2157 = vrot.lane.b32.xlu0 %v2141, 127
      %v2158 = vpop.permute.xlu0 %2157
      %2159 = vrot.lane.b32.xlu0 %v2142, 127
      %v2160 = vpop.permute.xlu0 %2159
      %2161 = vrot.lane.b32.xlu0 %v2143, 127
      %v2162 = vpop.permute.xlu0 %2161
      %2163 = vrot.lane.b32.xlu0 %v2144, 127
      %v2164 = vpop.permute.xlu0 %2163
      %2165 = vrot.lane.b32.xlu0 %v2146, 127
      %v2166 = vpop.permute.xlu0 %2165
      %2167 = vrot.lane.b32.xlu0 %v2148, 127
      %v2168 = vpop.permute.xlu0 %2167
      %2169 = vrot.lane.b32.xlu0 %v2150, 127
      %v2170 = vpop.permute.xlu0 %2169
      %2171 = vrot.lane.b32.xlu0 %v2152, 127
      %v2172 = vpop.permute.xlu0 %2171
      %2173 = vrot.lane.b32.xlu0 %v2154, 127
      %v2174 = vpop.permute.xlu0 %2173
      %v2175 = vsel %vm605, %v2156, %v2158
      %v2176 = vsel %vm605, %v2158, %v2160
      %v2177 = vsel %vm605, %v2160, %v2162
      %v2178 = vsel %vm605, %v2162, %v2164
      %v2179 = vsel %vm605, %v2166, %v2168
      %v2180 = vsel %vm605, %v2168, %v2170
      %v2181 = vsel %vm605, %v2170, %v2172
      %v2182 = vsel %vm605, %v2172, %v2174
      %2188 = vrot.lane.b32.xlu0 %v2114, 126
      %v2189 = vpop.permute.xlu0 %2188
      %2190 = vrot.lane.b32.xlu0 %v2115, 126
      %v2191 = vpop.permute.xlu0 %2190
      %2192 = vrot.lane.b32.xlu0 %v2116, 126
      %v2193 = vpop.permute.xlu0 %2192
      %2194 = vrot.lane.b32.xlu0 %v2117, 126
      %v2195 = vpop.permute.xlu0 %2194
      %2196 = vrot.lane.b32.xlu0 %v2118, 126
      %v2197 = vpop.permute.xlu0 %2196
      %2198 = vrot.lane.b32.xlu0 %v2119, 126
      %v2199 = vpop.permute.xlu0 %2198
      %2200 = vrot.lane.b32.xlu0 %v2120, 126
      %v2201 = vpop.permute.xlu0 %2200
      %2202 = vrot.lane.b32.xlu0 %v2121, 126
      %v2203 = vpop.permute.xlu0 %2202
      %2204 = vrot.lane.b32.xlu0 %v2122, 126
      %v2205 = vpop.permute.xlu0 %2204
      %2206 = vrot.lane.b32.xlu0 %v2123, 126
      %v2207 = vpop.permute.xlu0 %2206
      %v2208 = vsel %vm630, %v2189, %v2191
      %v2209 = vsel %vm630, %v2191, %v2193
      %v2210 = vsel %vm630, %v2193, %v2195
      %v2211 = vsel %vm630, %v2195, %v2197
      %v2212 = vsel %vm630, %v2199, %v2201
      %v2213 = vsel %vm630, %v2201, %v2203
      %v2214 = vsel %vm630, %v2203, %v2205
      %v2215 = vsel %vm630, %v2205, %v2207
      %2221 = vrot.lane.b32.xlu0 %v2140, 108
      %v2222 = vpop.permute.xlu0 %2221
      %2223 = vrot.lane.b32.xlu0 %v2141, 108
      %v2224 = vpop.permute.xlu0 %2223
      %2225 = vrot.lane.b32.xlu0 %v2142, 108
      %v2226 = vpop.permute.xlu0 %2225
      %2227 = vrot.lane.b32.xlu0 %v2143, 108
      %v2228 = vpop.permute.xlu0 %2227
      %2229 = vrot.lane.b32.xlu0 %v2144, 108
      %v2230 = vpop.permute.xlu0 %2229
      %2231 = vrot.lane.b32.xlu0 %v2146, 108
      %v2232 = vpop.permute.xlu0 %2231
      %2233 = vrot.lane.b32.xlu0 %v2148, 108
      %v2234 = vpop.permute.xlu0 %2233
      %2235 = vrot.lane.b32.xlu0 %v2150, 108
      %v2236 = vpop.permute.xlu0 %2235
      %2237 = vrot.lane.b32.xlu0 %v2152, 108
      %v2238 = vpop.permute.xlu0 %2237
      %2239 = vrot.lane.b32.xlu0 %v2154, 108
      %v2240 = vpop.permute.xlu0 %2239
      %v2241 = vsel %vm703, %v2222, %v2224
      %v2242 = vsel %vm703, %v2224, %v2226
      %v2243 = vsel %vm703, %v2226, %v2228
      %v2244 = vsel %vm703, %v2228, %v2230
      %v2245 = vsel %vm703, %v2232, %v2234
      %v2246 = vsel %vm703, %v2234, %v2236
      %v2247 = vsel %vm703, %v2236, %v2238
      %v2248 = vsel %vm703, %v2238, %v2240
      %2254 = vrot.lane.b32.xlu0 %v2114, 107
      %v2255 = vpop.permute.xlu0 %2254
      %2256 = vrot.lane.b32.xlu0 %v2115, 107
      %v2257 = vpop.permute.xlu0 %2256
      %2258 = vrot.lane.b32.xlu0 %v2116, 107
      %v2259 = vpop.permute.xlu0 %2258
      %2260 = vrot.lane.b32.xlu0 %v2117, 107
      %v2261 = vpop.permute.xlu0 %2260
      %2262 = vrot.lane.b32.xlu0 %v2118, 107
      %v2263 = vpop.permute.xlu0 %2262
      %2264 = vrot.lane.b32.xlu0 %v2119, 107
      %v2265 = vpop.permute.xlu0 %2264
      %2266 = vrot.lane.b32.xlu0 %v2120, 107
      %v2267 = vpop.permute.xlu0 %2266
      %2268 = vrot.lane.b32.xlu0 %v2121, 107
      %v2269 = vpop.permute.xlu0 %2268
      %2270 = vrot.lane.b32.xlu0 %v2122, 107
      %v2271 = vpop.permute.xlu0 %2270
      %2272 = vrot.lane.b32.xlu0 %v2123, 107
      %v2273 = vpop.permute.xlu0 %2272
      %v2274 = vsel %vm728, %v2255, %v2257
      %v2275 = vsel %vm728, %v2257, %v2259
      %v2276 = vsel %vm728, %v2259, %v2261
      %v2277 = vsel %vm728, %v2261, %v2263
      %v2278 = vsel %vm728, %v2265, %v2267
      %v2279 = vsel %vm728, %v2267, %v2269
      %v2280 = vsel %vm728, %v2269, %v2271
      %v2281 = vsel %vm728, %v2271, %v2273
      %2287 = vrot.lane.b32.xlu0 %v2140, 106
      %v2288 = vpop.permute.xlu0 %2287
      %2289 = vrot.lane.b32.xlu0 %v2141, 106
      %v2290 = vpop.permute.xlu0 %2289
      %2291 = vrot.lane.b32.xlu0 %v2142, 106
      %v2292 = vpop.permute.xlu0 %2291
      %2293 = vrot.lane.b32.xlu0 %v2143, 106
      %v2294 = vpop.permute.xlu0 %2293
      %2295 = vrot.lane.b32.xlu0 %v2144, 106
      %v2296 = vpop.permute.xlu0 %2295
      %2297 = vrot.lane.b32.xlu0 %v2146, 106
      %v2298 = vpop.permute.xlu0 %2297
      %2299 = vrot.lane.b32.xlu0 %v2148, 106
      %v2300 = vpop.permute.xlu0 %2299
      %2301 = vrot.lane.b32.xlu0 %v2150, 106
      %v2302 = vpop.permute.xlu0 %2301
      %2303 = vrot.lane.b32.xlu0 %v2152, 106
      %v2304 = vpop.permute.xlu0 %2303
      %2305 = vrot.lane.b32.xlu0 %v2154, 106
      %v2306 = vpop.permute.xlu0 %2305
      %v2307 = vsel %vm753, %v2288, %v2290
      %v2308 = vsel %vm753, %v2290, %v2292
      %v2309 = vsel %vm753, %v2292, %v2294
      %v2310 = vsel %vm753, %v2294, %v2296
      %v2311 = vsel %vm753, %v2298, %v2300
      %v2312 = vsel %vm753, %v2300, %v2302
      %v2313 = vsel %vm753, %v2302, %v2304
      %v2314 = vsel %vm753, %v2304, %v2306
      %2320 = vrot.lane.b32.xlu0 %v2114, 88
      %v2321 = vpop.permute.xlu0 %2320
      %2322 = vrot.lane.b32.xlu0 %v2115, 88
      %v2323 = vpop.permute.xlu0 %2322
      %2324 = vrot.lane.b32.xlu0 %v2116, 88
      %v2325 = vpop.permute.xlu0 %2324
      %2326 = vrot.lane.b32.xlu0 %v2117, 88
      %v2327 = vpop.permute.xlu0 %2326
      %2328 = vrot.lane.b32.xlu0 %v2118, 88
      %v2329 = vpop.permute.xlu0 %2328
      %2330 = vrot.lane.b32.xlu0 %v2119, 88
      %v2331 = vpop.permute.xlu0 %2330
      %2332 = vrot.lane.b32.xlu0 %v2120, 88
      %v2333 = vpop.permute.xlu0 %2332
      %2334 = vrot.lane.b32.xlu0 %v2121, 88
      %v2335 = vpop.permute.xlu0 %2334
      %2336 = vrot.lane.b32.xlu0 %v2122, 88
      %v2337 = vpop.permute.xlu0 %2336
      %2338 = vrot.lane.b32.xlu0 %v2123, 88
      %v2339 = vpop.permute.xlu0 %2338
      %v2340 = vsel %vm813, %v2321, %v2323
      %v2341 = vsel %vm813, %v2323, %v2325
      %v2342 = vsel %vm813, %v2325, %v2327
      %v2343 = vsel %vm813, %v2327, %v2329
      %v2344 = vsel %vm813, %v2331, %v2333
      %v2345 = vsel %vm813, %v2333, %v2335
      %v2346 = vsel %vm813, %v2335, %v2337
      %v2347 = vsel %vm813, %v2337, %v2339
      %2353 = vrot.lane.b32.xlu0 %v2140, 87
      %v2354 = vpop.permute.xlu0 %2353
      %2355 = vrot.lane.b32.xlu0 %v2141, 87
      %v2356 = vpop.permute.xlu0 %2355
      %2357 = vrot.lane.b32.xlu0 %v2142, 87
      %v2358 = vpop.permute.xlu0 %2357
      %2359 = vrot.lane.b32.xlu0 %v2143, 87
      %v2360 = vpop.permute.xlu0 %2359
      %2361 = vrot.lane.b32.xlu0 %v2144, 87
      %v2362 = vpop.permute.xlu0 %2361
      %2363 = vrot.lane.b32.xlu0 %v2146, 87
      %v2364 = vpop.permute.xlu0 %2363
      %2365 = vrot.lane.b32.xlu0 %v2148, 87
      %v2366 = vpop.permute.xlu0 %2365
      %2367 = vrot.lane.b32.xlu0 %v2150, 87
      %v2368 = vpop.permute.xlu0 %2367
      %2369 = vrot.lane.b32.xlu0 %v2152, 87
      %v2370 = vpop.permute.xlu0 %2369
      %2371 = vrot.lane.b32.xlu0 %v2154, 87
      %v2372 = vpop.permute.xlu0 %2371
      %v2373 = vsel %vm833, %v2354, %v2356
      %v2374 = vsel %vm833, %v2356, %v2358
      %v2375 = vsel %vm833, %v2358, %v2360
      %v2376 = vsel %vm833, %v2360, %v2362
      %v2377 = vsel %vm833, %v2364, %v2366
      %v2378 = vsel %vm833, %v2366, %v2368
      %v2379 = vsel %vm833, %v2368, %v2370
      %v2380 = vsel %vm833, %v2370, %v2372
      %2386 = vrot.lane.b32.xlu0 %v2114, 86
      %v2387 = vpop.permute.xlu0 %2386
      %2388 = vrot.lane.b32.xlu0 %v2115, 86
      %v2389 = vpop.permute.xlu0 %2388
      %2390 = vrot.lane.b32.xlu0 %v2116, 86
      %v2391 = vpop.permute.xlu0 %2390
      %2392 = vrot.lane.b32.xlu0 %v2117, 86
      %v2393 = vpop.permute.xlu0 %2392
      %2394 = vrot.lane.b32.xlu0 %v2118, 86
      %v2395 = vpop.permute.xlu0 %2394
      %2396 = vrot.lane.b32.xlu0 %v2119, 86
      %v2397 = vpop.permute.xlu0 %2396
      %2398 = vrot.lane.b32.xlu0 %v2120, 86
      %v2399 = vpop.permute.xlu0 %2398
      %2400 = vrot.lane.b32.xlu0 %v2121, 86
      %v2401 = vpop.permute.xlu0 %2400
      %2402 = vrot.lane.b32.xlu0 %v2122, 86
      %v2403 = vpop.permute.xlu0 %2402
      %2404 = vrot.lane.b32.xlu0 %v2123, 86
      %v2405 = vpop.permute.xlu0 %2404
      %v2406 = vsel %vm853, %v2387, %v2389
      %v2407 = vsel %vm853, %v2389, %v2391
      %v2408 = vsel %vm853, %v2391, %v2393
      %v2409 = vsel %vm853, %v2393, %v2395
      %v2410 = vsel %vm853, %v2397, %v2399
      %v2411 = vsel %vm853, %v2399, %v2401
      %v2412 = vsel %vm853, %v2401, %v2403
      %v2413 = vsel %vm853, %v2403, %v2405
      %v2414 = vsel %vm941, %v2119, %v2175
      %v2415 = vsel %vm941, %v2120, %v2176
      %v2416 = vsel %vm941, %v2121, %v2177
      %v2417 = vsel %vm941, %v2122, %v2178
      %v2418 = vsel %vm941, %v2123, %v2164
      %v2419 = vsel %vm941, %v2212, %v2241
      %v2420 = vsel %vm941, %v2213, %v2242
      %v2421 = vsel %vm941, %v2214, %v2243
      %v2422 = vsel %vm941, %v2215, %v2244
      %v2423 = vsel %vm941, %v2207, %v2230
      %v2424 = vsel %vm941, %v2278, %v2307
      %v2425 = vsel %vm941, %v2279, %v2308
      %v2426 = vsel %vm941, %v2280, %v2309
      %v2427 = vsel %vm941, %v2281, %v2310
      %v2428 = vsel %vm941, %v2273, %v2296
      %v2429 = vsel %vm941, %v2344, %v2373
      %v2430 = vsel %vm941, %v2345, %v2374
      %v2431 = vsel %vm941, %v2346, %v2375
      %v2432 = vsel %vm941, %v2347, %v2376
      %v2433 = vsel %vm941, %v2339, %v2362
      %2435 = vset.pattern.permute.xlu0 0
      %2436 = vperm.xlu0 %2435, %v2126
      %v2437 = vpop.permute.xlu0 %2436
      %2440 = vset.pattern.permute.xlu0 0
      %2441 = vperm.xlu0 %2440, %v2127
      %v2442 = vpop.permute.xlu0 %2441
      %2464 = vrot.lane.b32.xlu0 %v2114, 127
      %v2465 = vpop.permute.xlu0 %2464
      %2466 = vrot.lane.b32.xlu0 %v2115, 127
      %v2467 = vpop.permute.xlu0 %2466
      %2468 = vrot.lane.b32.xlu0 %v2116, 127
      %v2469 = vpop.permute.xlu0 %2468
      %2470 = vrot.lane.b32.xlu0 %v2117, 127
      %v2471 = vpop.permute.xlu0 %2470
      %2472 = vrot.lane.b32.xlu0 %v2118, 127
      %v2473 = vpop.permute.xlu0 %2472
      %2474 = vrot.lane.b32.xlu0 %v2414, 127
      %v2475 = vpop.permute.xlu0 %2474
      %2476 = vrot.lane.b32.xlu0 %v2415, 127
      %v2477 = vpop.permute.xlu0 %2476
      %2478 = vrot.lane.b32.xlu0 %v2416, 127
      %v2479 = vpop.permute.xlu0 %2478
      %2480 = vrot.lane.b32.xlu0 %v2417, 127
      %v2481 = vpop.permute.xlu0 %2480
      %2482 = vrot.lane.b32.xlu0 %v2418, 127
      %v2483 = vpop.permute.xlu0 %2482
      %2484 = vrot.lane.b32.xlu0 %v2179, 127
      %v2485 = vpop.permute.xlu0 %2484
      %2486 = vrot.lane.b32.xlu0 %v2180, 127
      %v2487 = vpop.permute.xlu0 %2486
      %2488 = vrot.lane.b32.xlu0 %v2181, 127
      %v2489 = vpop.permute.xlu0 %2488
      %2490 = vrot.lane.b32.xlu0 %v2182, 127
      %v2491 = vpop.permute.xlu0 %2490
      %2492 = vrot.lane.b32.xlu0 %v2174, 127
      %v2493 = vpop.permute.xlu0 %2492
      %2494 = vrot.lane.b32.xlu0 %v2208, 127
      %v2495 = vpop.permute.xlu0 %2494
      %2496 = vrot.lane.b32.xlu0 %v2209, 127
      %v2497 = vpop.permute.xlu0 %2496
      %2498 = vrot.lane.b32.xlu0 %v2210, 127
      %v2499 = vpop.permute.xlu0 %2498
      %2500 = vrot.lane.b32.xlu0 %v2211, 127
      %v2501 = vpop.permute.xlu0 %2500
      %2502 = vrot.lane.b32.xlu0 %v2197, 127
      %v2503 = vpop.permute.xlu0 %2502
      %2504 = vrot.lane.b32.xlu0 %v2419, 127
      %v2505 = vpop.permute.xlu0 %2504
      %2506 = vrot.lane.b32.xlu0 %v2420, 127
      %v2507 = vpop.permute.xlu0 %2506
      %2508 = vrot.lane.b32.xlu0 %v2421, 127
      %v2509 = vpop.permute.xlu0 %2508
      %2510 = vrot.lane.b32.xlu0 %v2422, 127
      %v2511 = vpop.permute.xlu0 %2510
      %2512 = vrot.lane.b32.xlu0 %v2423, 127
      %v2513 = vpop.permute.xlu0 %2512
      %2514 = vrot.lane.b32.xlu0 %v2245, 127
      %v2515 = vpop.permute.xlu0 %2514
      %2516 = vrot.lane.b32.xlu0 %v2246, 127
      %v2517 = vpop.permute.xlu0 %2516
      %2518 = vrot.lane.b32.xlu0 %v2247, 127
      %v2519 = vpop.permute.xlu0 %2518
      %2520 = vrot.lane.b32.xlu0 %v2248, 127
      %v2521 = vpop.permute.xlu0 %2520
      %2522 = vrot.lane.b32.xlu0 %v2240, 127
      %v2523 = vpop.permute.xlu0 %2522
      %2524 = vrot.lane.b32.xlu0 %v2274, 127
      %v2525 = vpop.permute.xlu0 %2524
      %2526 = vrot.lane.b32.xlu0 %v2275, 127
      %v2527 = vpop.permute.xlu0 %2526
      %2528 = vrot.lane.b32.xlu0 %v2276, 127
      %v2529 = vpop.permute.xlu0 %2528
      %2530 = vrot.lane.b32.xlu0 %v2277, 127
      %v2531 = vpop.permute.xlu0 %2530
      %2532 = vrot.lane.b32.xlu0 %v2263, 127
      %v2533 = vpop.permute.xlu0 %2532
      %2534 = vrot.lane.b32.xlu0 %v2424, 127
      %v2535 = vpop.permute.xlu0 %2534
      %2536 = vrot.lane.b32.xlu0 %v2425, 127
      %v2537 = vpop.permute.xlu0 %2536
      %2538 = vrot.lane.b32.xlu0 %v2426, 127
      %v2539 = vpop.permute.xlu0 %2538
      %2540 = vrot.lane.b32.xlu0 %v2427, 127
      %v2541 = vpop.permute.xlu0 %2540
      %2542 = vrot.lane.b32.xlu0 %v2428, 127
      %v2543 = vpop.permute.xlu0 %2542
      %2544 = vrot.lane.b32.xlu0 %v2311, 127
      %v2545 = vpop.permute.xlu0 %2544
      %2546 = vrot.lane.b32.xlu0 %v2312, 127
      %v2547 = vpop.permute.xlu0 %2546
      %2548 = vrot.lane.b32.xlu0 %v2313, 127
      %v2549 = vpop.permute.xlu0 %2548
      %2550 = vrot.lane.b32.xlu0 %v2314, 127
      %v2551 = vpop.permute.xlu0 %2550
      %2552 = vrot.lane.b32.xlu0 %v2306, 127
      %v2553 = vpop.permute.xlu0 %2552
      %2554 = vrot.lane.b32.xlu0 %v2340, 127
      %v2555 = vpop.permute.xlu0 %2554
      %2556 = vrot.lane.b32.xlu0 %v2341, 127
      %v2557 = vpop.permute.xlu0 %2556
      %2558 = vrot.lane.b32.xlu0 %v2342, 127
      %v2559 = vpop.permute.xlu0 %2558
      %2560 = vrot.lane.b32.xlu0 %v2343, 127
      %v2561 = vpop.permute.xlu0 %2560
      %2562 = vrot.lane.b32.xlu0 %v2329, 127
      %v2563 = vpop.permute.xlu0 %2562
      %2564 = vrot.lane.b32.xlu0 %v2429, 127
      %v2565 = vpop.permute.xlu0 %2564
      %2566 = vrot.lane.b32.xlu0 %v2430, 127
      %v2567 = vpop.permute.xlu0 %2566
      %2568 = vrot.lane.b32.xlu0 %v2431, 127
      %v2569 = vpop.permute.xlu0 %2568
      %2570 = vrot.lane.b32.xlu0 %v2432, 127
      %v2571 = vpop.permute.xlu0 %2570
      %2572 = vrot.lane.b32.xlu0 %v2433, 127
      %v2573 = vpop.permute.xlu0 %2572
      %2574 = vrot.lane.b32.xlu0 %v2377, 127
      %v2575 = vpop.permute.xlu0 %2574
      %2576 = vrot.lane.b32.xlu0 %v2378, 127
      %v2577 = vpop.permute.xlu0 %2576
      %2578 = vrot.lane.b32.xlu0 %v2379, 127
      %v2579 = vpop.permute.xlu0 %2578
      %2580 = vrot.lane.b32.xlu0 %v2380, 127
      %v2581 = vpop.permute.xlu0 %2580
      %2582 = vrot.lane.b32.xlu0 %v2372, 127
      %v2583 = vpop.permute.xlu0 %2582
      %2584 = vrot.lane.b32.xlu0 %v2406, 127
      %v2585 = vpop.permute.xlu0 %2584
      %2586 = vrot.lane.b32.xlu0 %v2407, 127
      %v2587 = vpop.permute.xlu0 %2586
      %2588 = vrot.lane.b32.xlu0 %v2408, 127
      %v2589 = vpop.permute.xlu0 %2588
      %2590 = vrot.lane.b32.xlu0 %v2409, 127
      %v2591 = vpop.permute.xlu0 %2590
      %2592 = vrot.lane.b32.xlu0 %v2395, 127
      %v2593 = vpop.permute.xlu0 %2592
      %2594 = vrot.lane.b32.xlu0 %v2410, 127
      %v2595 = vpop.permute.xlu0 %2594
      %2596 = vrot.lane.b32.xlu0 %v2411, 127
      %v2597 = vpop.permute.xlu0 %2596
      %2598 = vrot.lane.b32.xlu0 %v2412, 127
      %v2599 = vpop.permute.xlu0 %2598
      %2600 = vrot.lane.b32.xlu0 %v2413, 127
      %v2601 = vpop.permute.xlu0 %2600
      %2602 = vrot.lane.b32.xlu0 %v2405, 127
      %v2603 = vpop.permute.xlu0 %2602
      %v2604 = vsel %vm605, %v2465, %v2467
      %v2605 = vsel %vm605, %v2467, %v2469
      %v2606 = vsel %vm605, %v2469, %v2471
      %v2607 = vsel %vm605, %v2471, %v2473
      %v2608 = vsel %vm605, %v2475, %v2477
      %v2609 = vsel %vm605, %v2477, %v2479
      %v2610 = vsel %vm605, %v2479, %v2481
      %v2611 = vsel %vm605, %v2481, %v2483
      %v2612 = vsel %vm605, %v2485, %v2487
      %v2613 = vsel %vm605, %v2487, %v2489
      %v2614 = vsel %vm605, %v2489, %v2491
      %v2615 = vsel %vm605, %v2491, %v2493
      %v2616 = vsel %vm605, %v2495, %v2497
      %v2617 = vsel %vm605, %v2497, %v2499
      %v2618 = vsel %vm605, %v2499, %v2501
      %v2619 = vsel %vm605, %v2501, %v2503
      %v2620 = vsel %vm605, %v2505, %v2507
      %v2621 = vsel %vm605, %v2507, %v2509
      %v2622 = vsel %vm605, %v2509, %v2511
      %v2623 = vsel %vm605, %v2511, %v2513
      %v2624 = vsel %vm605, %v2515, %v2517
      %v2625 = vsel %vm605, %v2517, %v2519
      %v2626 = vsel %vm605, %v2519, %v2521
      %v2627 = vsel %vm605, %v2521, %v2523
      %v2628 = vsel %vm605, %v2525, %v2527
      %v2629 = vsel %vm605, %v2527, %v2529
      %v2630 = vsel %vm605, %v2529, %v2531
      %v2631 = vsel %vm605, %v2531, %v2533
      %v2632 = vsel %vm605, %v2535, %v2537
      %v2633 = vsel %vm605, %v2537, %v2539
      %v2634 = vsel %vm605, %v2539, %v2541
      %v2635 = vsel %vm605, %v2541, %v2543
      %v2636 = vsel %vm605, %v2545, %v2547
      %v2637 = vsel %vm605, %v2547, %v2549
      %v2638 = vsel %vm605, %v2549, %v2551
      %v2639 = vsel %vm605, %v2551, %v2553
      %v2640 = vsel %vm605, %v2555, %v2557
      %v2641 = vsel %vm605, %v2557, %v2559
      %v2642 = vsel %vm605, %v2559, %v2561
      %v2643 = vsel %vm605, %v2561, %v2563
      %v2644 = vsel %vm605, %v2565, %v2567
      %v2645 = vsel %vm605, %v2567, %v2569
      %v2646 = vsel %vm605, %v2569, %v2571
      %v2647 = vsel %vm605, %v2571, %v2573
      %v2648 = vsel %vm605, %v2575, %v2577
      %v2649 = vsel %vm605, %v2577, %v2579
      %v2650 = vsel %vm605, %v2579, %v2581
      %v2651 = vsel %vm605, %v2581, %v2583
      %v2652 = vsel %vm605, %v2585, %v2587
      %v2653 = vsel %vm605, %v2587, %v2589
      %v2654 = vsel %vm605, %v2589, %v2591
      %v2655 = vsel %vm605, %v2591, %v2593
      %v2656 = vsel %vm605, %v2595, %v2597
      %v2657 = vsel %vm605, %v2597, %v2599
      %v2658 = vsel %vm605, %v2599, %v2601
      %v2659 = vsel %vm605, %v2601, %v2603
      %v2726 = vsel %vm703, %v2124, 0
      %v2729 = vsel %vm703, %v2125, 0
      %v2731 = vsel %vm941, %v2656, 0
      %v2733 = vsel %vm941, %v2657, 0
      %v2735 = vsel %vm941, %v2658, 0
      %v2737 = vsel %vm941, %v2659, 0
      %v2739 = vsel %vm941, %v2603, 0
      %2741 = vmatprep.subr.mxu0 0.0
      %2742 = vmatpush1.msra.mxu0 0.0
      %2743 = vmatprep.subr.mxu0 0.0
      %2744 = vmatpush1.msra.mxu0 0.0
      %2745 = vmatprep.subr.mxu0 %v2733
      %2746 = vmatpush1.msra.mxu0 %v2731
      %2747 = vmatprep.subr.mxu0 %v2653
      %2748 = vmatpush1.msra.mxu0 %v2652
      %2749 = vmatprep.subr.mxu0 %v2649
      %2750 = vmatpush1.msra.mxu0 %v2648
      %2751 = vmatprep.subr.mxu0 %v2645
      %2752 = vmatpush1.msra.mxu0 %v2644
      %2753 = vmatprep.subr.mxu0 %v2641
      %2754 = vmatpush1.msra.mxu0 %v2640
      %2755 = vmatprep.subr.mxu0 %v2637
      %2756 = vmatpush1.msra.mxu0 %v2636
      %2757 = vmatprep.subr.mxu0 %v2633
      %2758 = vmatpush1.msra.mxu0 %v2632
      %2759 = vmatprep.subr.mxu0 %v2629
      %2760 = vmatpush1.msra.mxu0 %v2628
      %2761 = vmatprep.subr.mxu0 %v2625
      %2762 = vmatpush1.msra.mxu0 %v2624
      %2763 = vmatprep.subr.mxu0 %v2621
      %2764 = vmatpush1.msra.mxu0 %v2620
      %2765 = vmatprep.subr.mxu0 %v2617
      %2766 = vmatpush1.msra.mxu0 %v2616
      %2767 = vmatprep.subr.mxu0 %v2613
      %2768 = vmatpush1.msra.mxu0 %v2612
      %2769 = vmatprep.subr.mxu0 %v2609
      %2770 = vmatpush1.msra.mxu0 %v2608
      %2771 = vmatprep.subr.mxu0 %v2605
      %2772 = vmatpush1.msra.mxu0 %v2604
      %2773 = vmatprep.subr.mxu0 0.0
      %2774 = vmatpush2.msra.mxu0 0.0
      %2775 = vmatprep.subr.mxu0 0.0
      %2776 = vmatpush2.msra.mxu0 0.0
      %2777 = vmatprep.subr.mxu0 0.0
      %2778 = vmatpush2.msra.mxu0 0.0
      %2779 = vmatprep.subr.mxu0 0.0
      %2780 = vmatpush2.msra.mxu0 0.0
      %2781 = vmatprep.subr.mxu0 0.0
      %2782 = vmatpush2.msra.mxu0 0.0
      %2783 = vmatprep.subr.mxu0 0.0
      %2784 = vmatpush2.msra.mxu0 0.0
      %2785 = vmatprep.subr.mxu0 0.0
      %2786 = vmatpush2.msra.mxu0 0.0
      %2787 = vmatprep.subr.mxu0 0.0
      %2788 = vmatpush2.msra.mxu0 0.0
      %2789 = vmatprep.subr.mxu0 0.0
      %2790 = vmatpush2.msra.mxu0 0.0
      %2791 = vmatprep.subr.mxu0 0.0
      %2792 = vmatpush2.msra.mxu0 0.0
      %2793 = vmatprep.subr.mxu0 0.0
      %2794 = vmatpush2.msra.mxu0 0.0
      %2795 = vmatprep.subr.mxu0 0.0
      %2796 = vmatpush2.msra.mxu0 0.0
      %2797 = vmatprep.subr.mxu0 0.0
      %2798 = vmatpush2.msra.mxu0 0.0
      %2799 = vmatprep.subr.mxu0 0.0
      %2800 = vmatpush2.msra.mxu0 0.0
      %2801 = vmatprep.subr.mxu0 0.0
      %2802 = vmatpush2.msra.mxu0 0.0
      %2803 = vmatprep.subr.mxu0 0.0
      %2804 = vmatpush2.msra.mxu0 0.0
      %2805 = vmatprep.mubr.f32.mxu0 0.0
      %2806 = vmatmul.mubr.f32.gmra.mxu0 %v2726
      %v2807 = vpop.f32.mrf.mxu0
      %v2808 = vadd.f32 %v2437, %v2807
      %v2809 = vpop.f32.mrf.mxu0
      %v2810 = vadd.f32 %v2437, %v2809
      %2811 = vmatprep.mubr.f32.mxu0 0.0
      %2812 = vmatmul.mubr.f32.gmra.mxu0 %v2729
      %v2813 = vpop.f32.mrf.mxu0
      %v2814 = vadd.f32 %v2442, %v2813
      %v2815 = vpop.f32.mrf.mxu0
      %v2816 = vadd.f32 %v2442, %v2815
      %2817 = vdwg.mxu0
      %2818 = vmatprep.subr.mxu0 0.0
      %2819 = vmatpush1.msra.mxu0 0.0
      %2820 = vmatprep.subr.mxu0 0.0
      %2821 = vmatpush1.msra.mxu0 0.0
      %2822 = vmatprep.subr.mxu0 %v2737
      %2823 = vmatpush1.msra.mxu0 %v2735
      %2824 = vmatprep.subr.mxu0 %v2655
      %2825 = vmatpush1.msra.mxu0 %v2654
      %2826 = vmatprep.subr.mxu0 %v2651
      %2827 = vmatpush1.msra.mxu0 %v2650
      %2828 = vmatprep.subr.mxu0 %v2647
      %2829 = vmatpush1.msra.mxu0 %v2646
      %2830 = vmatprep.subr.mxu0 %v2643
      %2831 = vmatpush1.msra.mxu0 %v2642
      %2832 = vmatprep.subr.mxu0 %v2639
      %2833 = vmatpush1.msra.mxu0 %v2638
      %2834 = vmatprep.subr.mxu0 %v2635
      %2835 = vmatpush1.msra.mxu0 %v2634
      %2836 = vmatprep.subr.mxu0 %v2631
      %2837 = vmatpush1.msra.mxu0 %v2630
      %2838 = vmatprep.subr.mxu0 %v2627
      %2839 = vmatpush1.msra.mxu0 %v2626
      %2840 = vmatprep.subr.mxu0 %v2623
      %2841 = vmatpush1.msra.mxu0 %v2622
      %2842 = vmatprep.subr.mxu0 %v2619
      %2843 = vmatpush1.msra.mxu0 %v2618
      %2844 = vmatprep.subr.mxu0 %v2615
      %2845 = vmatpush1.msra.mxu0 %v2614
      %2846 = vmatprep.subr.mxu0 %v2611
      %2847 = vmatpush1.msra.mxu0 %v2610
      %2848 = vmatprep.subr.mxu0 %v2607
      %2849 = vmatpush1.msra.mxu0 %v2606
      %2850 = vmatprep.subr.mxu0 0.0
      %2851 = vmatpush2.msra.mxu0 0.0
      %2852 = vmatprep.subr.mxu0 0.0
      %2853 = vmatpush2.msra.mxu0 0.0
      %2854 = vmatprep.subr.mxu0 0.0
      %2855 = vmatpush2.msra.mxu0 0.0
      %2856 = vmatprep.subr.mxu0 0.0
      %2857 = vmatpush2.msra.mxu0 0.0
      %2858 = vmatprep.subr.mxu0 0.0
      %2859 = vmatpush2.msra.mxu0 0.0
      %2860 = vmatprep.subr.mxu0 0.0
      %2861 = vmatpush2.msra.mxu0 0.0
      %2862 = vmatprep.subr.mxu0 0.0
      %2863 = vmatpush2.msra.mxu0 0.0
      %2864 = vmatprep.subr.mxu0 0.0
      %2865 = vmatpush2.msra.mxu0 0.0
      %2866 = vmatprep.subr.mxu0 0.0
      %2867 = vmatpush2.msra.mxu0 0.0
      %2868 = vmatprep.subr.mxu0 0.0
      %2869 = vmatpush2.msra.mxu0 0.0
      %2870 = vmatprep.subr.mxu0 0.0
      %2871 = vmatpush2.msra.mxu0 0.0
      %2872 = vmatprep.subr.mxu0 0.0
      %2873 = vmatpush2.msra.mxu0 0.0
      %2874 = vmatprep.subr.mxu0 0.0
      %2875 = vmatpush2.msra.mxu0 0.0
      %2876 = vmatprep.subr.mxu0 0.0
      %2877 = vmatpush2.msra.mxu0 0.0
      %2878 = vmatprep.subr.mxu0 0.0
      %2879 = vmatpush2.msra.mxu0 0.0
      %2880 = vmatprep.subr.mxu0 0.0
      %2881 = vmatpush2.msra.mxu0 0.0
      %2882 = vmatprep.mubr.f32.mxu0 0.0
      %2883 = vmatmul.mubr.f32.gmra.mxu0 %v2726
      %v2884 = vpop.f32.mrf.mxu0
      %v2885 = vadd.f32 %v2437, %v2884
      %v2886 = vpop.f32.mrf.mxu0
      %v2887 = vadd.f32 %v2437, %v2886
      %2888 = vmatprep.mubr.f32.mxu0 0.0
      %2889 = vmatmul.mubr.f32.gmra.mxu0 %v2729
      %v2890 = vpop.f32.mrf.mxu0
      %v2891 = vadd.f32 %v2442, %v2890
      %v2892 = vpop.f32.mrf.mxu0
      %v2893 = vadd.f32 %v2442, %v2892
      %2894 = vdwg.mxu0
      %2895 = vmatprep.subr.mxu0 0.0
      %2896 = vmatpush1.msra.mxu0 0.0
      %2897 = vmatprep.subr.mxu0 0.0
      %2898 = vmatpush1.msra.mxu0 0.0
      %2899 = vmatprep.subr.mxu0 0.0
      %2900 = vmatpush1.msra.mxu0 %v2739
      %2901 = vmatprep.subr.mxu0 0.0
      %2902 = vmatpush1.msra.mxu0 %v2593
      %2903 = vmatprep.subr.mxu0 0.0
      %2904 = vmatpush1.msra.mxu0 %v2583
      %2905 = vmatprep.subr.mxu0 0.0
      %2906 = vmatpush1.msra.mxu0 %v2573
      %2907 = vmatprep.subr.mxu0 0.0
      %2908 = vmatpush1.msra.mxu0 %v2563
      %2909 = vmatprep.subr.mxu0 0.0
      %2910 = vmatpush1.msra.mxu0 %v2553
      %2911 = vmatprep.subr.mxu0 0.0
      %2912 = vmatpush1.msra.mxu0 %v2543
      %2913 = vmatprep.subr.mxu0 0.0
      %2914 = vmatpush1.msra.mxu0 %v2533
      %2915 = vmatprep.subr.mxu0 0.0
      %2916 = vmatpush1.msra.mxu0 %v2523
      %2917 = vmatprep.subr.mxu0 0.0
      %2918 = vmatpush1.msra.mxu0 %v2513
      %2919 = vmatprep.subr.mxu0 0.0
      %2920 = vmatpush1.msra.mxu0 %v2503
      %2921 = vmatprep.subr.mxu0 0.0
      %2922 = vmatpush1.msra.mxu0 %v2493
      %2923 = vmatprep.subr.mxu0 0.0
      %2924 = vmatpush1.msra.mxu0 %v2483
      %2925 = vmatprep.subr.mxu0 0.0
      %2926 = vmatpush1.msra.mxu0 %v2473
      %2927 = vmatprep.subr.mxu0 0.0
      %2928 = vmatpush2.msra.mxu0 0.0
      %2929 = vmatprep.subr.mxu0 0.0
      %2930 = vmatpush2.msra.mxu0 0.0
      %2931 = vmatprep.subr.mxu0 0.0
      %2932 = vmatpush2.msra.mxu0 0.0
      %2933 = vmatprep.subr.mxu0 0.0
      %2934 = vmatpush2.msra.mxu0 0.0
      %2935 = vmatprep.subr.mxu0 0.0
      %2936 = vmatpush2.msra.mxu0 0.0
      %2937 = vmatprep.subr.mxu0 0.0
      %2938 = vmatpush2.msra.mxu0 0.0
      %2939 = vmatprep.subr.mxu0 0.0
      %2940 = vmatpush2.msra.mxu0 0.0
      %2941 = vmatprep.subr.mxu0 0.0
      %2942 = vmatpush2.msra.mxu0 0.0
      %2943 = vmatprep.subr.mxu0 0.0
      %2944 = vmatpush2.msra.mxu0 0.0
      %2945 = vmatprep.subr.mxu0 0.0
      %2946 = vmatpush2.msra.mxu0 0.0
      %2947 = vmatprep.subr.mxu0 0.0
      %2948 = vmatpush2.msra.mxu0 0.0
      %2949 = vmatprep.subr.mxu0 0.0
      %2950 = vmatpush2.msra.mxu0 0.0
      %2951 = vmatprep.subr.mxu0 0.0
      %2952 = vmatpush2.msra.mxu0 0.0
      %2953 = vmatprep.subr.mxu0 0.0
      %2954 = vmatpush2.msra.mxu0 0.0
      %2955 = vmatprep.subr.mxu0 0.0
      %2956 = vmatpush2.msra.mxu0 0.0
      %2957 = vmatprep.subr.mxu0 0.0
      %2958 = vmatpush2.msra.mxu0 0.0
      %2959 = vmatprep.mubr.f32.mxu0 0.0
      %2960 = vmatmul.mubr.f32.gmra.mxu0 %v2726
      %v2961 = vpop.f32.mrf.mxu0
      %v2962 = vadd.f32 %v2437, %v2961
      %v2963 = vpop.f32.mrf.mxu0
      %2964 = vmatprep.mubr.f32.mxu0 0.0
      %2965 = vmatmul.mubr.f32.gmra.mxu0 %v2729
      %v2966 = vpop.f32.mrf.mxu0
      %v2967 = vadd.f32 %v2442, %v2966
      %v2968 = vpop.f32.mrf.mxu0
      %2969 = vdwg.mxu0
      %vm2970 = vcmp.gt.f32.partialorder %v2808, 0.0
      %vm2971 = vcmp.gt.f32.partialorder %v2810, 0.0
      %vm2972 = vcmp.gt.f32.partialorder %v2885, 0.0
      %vm2973 = vcmp.gt.f32.partialorder %v2887, 0.0
      %vm2974 = vcmp.gt.f32.partialorder %v2962, 0.0
      %vm2975 = vcmp.gt.f32.partialorder %v2814, 0.0
      %vm2976 = vcmp.gt.f32.partialorder %v2816, 0.0
      %vm2977 = vcmp.gt.f32.partialorder %v2891, 0.0
      %vm2978 = vcmp.gt.f32.partialorder %v2893, 0.0
      %vm2979 = vcmp.gt.f32.partialorder %v2967, 0.0
      %2981 = vset.pattern.permute.xlu0 0
      %2982 = vperm.xlu0 %2981, %v2128
      %v2983 = vpop.permute.xlu0 %2982
      %2986 = vset.pattern.permute.xlu0 0
      %2987 = vperm.xlu0 %2986, %v2129
      %v2988 = vpop.permute.xlu0 %2987
      %v2990 = vmul.f32 %v2808, %v2983
      %v2991 = vmul.f32 %v2810, %v2983
      %v2992 = vmul.f32 %v2885, %v2983
      %v2993 = vmul.f32 %v2887, %v2983
      %v2994 = vmul.f32 %v2962, %v2983
      %v2995 = vmul.f32 %v2814, %v2988
      %v2996 = vmul.f32 %v2816, %v2988
      %v2997 = vmul.f32 %v2891, %v2988
      %v2998 = vmul.f32 %v2893, %v2988
      %v2999 = vmul.f32 %v2967, %v2988
      %v3000 = vsel %vm2970, %v2808, %v2990
      %v3001 = vsel %vm2971, %v2810, %v2991
      %v3002 = vsel %vm2972, %v2885, %v2992
      %v3003 = vsel %vm2973, %v2887, %v2993
      %v3004 = vsel %vm2974, %v2962, %v2994
      %v3005 = vsel %vm2975, %v2814, %v2995
      %v3006 = vsel %vm2976, %v2816, %v2996
      %v3007 = vsel %vm2977, %v2891, %v2997
      %v3008 = vsel %vm2978, %v2893, %v2998
      %v3009 = vsel %vm2979, %v2967, %v2999
      %s3010 = ssub.s32 5, %s1951
      %p3011 = scmp.gt.s32.totalorder %s3010, 0
      %s3012 = scalar_select %p3011, %s3010, 0
      %s3013 = smul.u32 %s3012, 20
      %s3014 = ssub.s32 21, %s1951
      %p3015 = scmp.lt.s32.totalorder %s3014, 26
      %s3016 = scalar_select %p3015, %s3014, 26
      %s3017 = smul.u32 %s3016, 20
      %v3018 = vstv %s3013
      %vm3019 = vcmp.ge.s32.totalorder %v1961, %v3018
      %vm3020 = vcmp.ge.s32.totalorder %v1962, %v3018
      %vm3021 = vcmp.ge.s32.totalorder %v1963, %v3018
      %vm3022 = vcmp.ge.s32.totalorder %v1964, %v3018
      %vm3023 = vcmp.ge.s32.totalorder %v1965, %v3018
      %v3024 = vstv %s3017
      %vm3025 = vcmp.lt.s32.totalorder %v1961, %v3024
      %vm3026 = vcmp.lt.s32.totalorder %v1962, %v3024
      %vm3027 = vcmp.lt.s32.totalorder %v1963, %v3024
      %vm3028 = vcmp.lt.s32.totalorder %v1964, %v3024
      %vm3029 = vcmp.lt.s32.totalorder %v1965, %v3024
      %vm3030 = vmand %vm3019, %vm3025
      %vm3031 = vmand %vm3020, %vm3026
      %vm3032 = vmand %vm3021, %vm3027
      %vm3033 = vmand %vm3022, %vm3028
      %vm3034 = vmand %vm3023, %vm3029
      %v3035 = vsel %vm3030, %v3000, 0.0
      %v3036 = vsel %vm3031, %v3001, 0.0
      %v3037 = vsel %vm3032, %v3002, 0.0
      %v3038 = vsel %vm3033, %v3003, 0.0
      %v3039 = vsel %vm3034, %v3004, 0.0
      %v3040 = vsel %vm3030, %v3005, 0.0
      %v3041 = vsel %vm3031, %v3006, 0.0
      %v3042 = vsel %vm3032, %v3007, 0.0
      %v3043 = vsel %vm3033, %v3008, 0.0
      %v3044 = vsel %vm3034, %v3009, 0.0
      %v3045 = vmul.f32 %v3035, %v1997
      %v3046 = vmul.f32 %v3036, %v2001
      %v3047 = vmul.f32 %v3037, %v2005
      %v3048 = vmul.f32 %v3038, %v2009
      %v3049 = vmul.f32 %v3039, %v2013
      %v3050 = vmul.f32 %v3040, %v1997
      %v3051 = vmul.f32 %v3041, %v2001
      %v3052 = vmul.f32 %v3042, %v2005
      %v3053 = vmul.f32 %v3043, %v2009
      %v3054 = vmul.f32 %v3044, %v2013
      %3065 = vrot.lane.b32.xlu0 %v3045, 2
      %v3066 = vpop.permute.xlu0 %3065
      %3067 = vrot.lane.b32.xlu0 %v3046, 2
      %v3068 = vpop.permute.xlu0 %3067
      %3069 = vrot.lane.b32.xlu0 %v3047, 2
      %v3070 = vpop.permute.xlu0 %3069
      %3071 = vrot.lane.b32.xlu0 %v3048, 2
      %v3072 = vpop.permute.xlu0 %3071
      %3073 = vrot.lane.b32.xlu0 %v3049, 2
      %v3074 = vpop.permute.xlu0 %3073
      %3075 = vrot.lane.b32.xlu0 %v3050, 2
      %v3076 = vpop.permute.xlu0 %3075
      %3077 = vrot.lane.b32.xlu0 %v3051, 2
      %v3078 = vpop.permute.xlu0 %3077
      %3079 = vrot.lane.b32.xlu0 %v3052, 2
      %v3080 = vpop.permute.xlu0 %3079
      %3081 = vrot.lane.b32.xlu0 %v3053, 2
      %v3082 = vpop.permute.xlu0 %3081
      %3083 = vrot.lane.b32.xlu0 %v3054, 2
      %v3084 = vpop.permute.xlu0 %3083
      %v3085 = vsel %vm2081, %v3066, %v3068
      %v3086 = vsel %vm2081, %v3068, %v3070
      %v3087 = vsel %vm2081, %v3070, %v3072
      %v3088 = vsel %vm2081, %v3072, %v3074
      %v3089 = vsel %vm2081, %v3076, %v3078
      %v3090 = vsel %vm2081, %v3078, %v3080
      %v3091 = vsel %vm2081, %v3080, %v3082
      %v3092 = vsel %vm2081, %v3082, %v3084
      %3103 = vst.msk [vmem:[#allocation3] sm:$0xff] %vm2100, %v3066
      %3104 = vst [vmem:[#allocation3 + $0x8] sm:$0xff] %v3085
      %3105 = vst [vmem:[#allocation3 + $0x10] sm:$0xff] %v3086
      %3106 = vst [vmem:[#allocation3 + $0x18] sm:$0xff] %v3087
      %vm3107 = vcmask 80896
      %3108 = vst.msk [vmem:[#allocation3 + $0x20] sm:$0xff] %vm3107, %v3088
      %3109 = vst.msk [vmem:[#allocation3 + $0x28] sm:$0xf] %vm2107, %v3076
      %3110 = vst [vmem:[#allocation3 + $0x30] sm:$0xf] %v3089
      %3111 = vst [vmem:[#allocation3 + $0x38] sm:$0xf] %v3090
      %3112 = vst [vmem:[#allocation3 + $0x40] sm:$0xf] %v3091
      %vm3113 = vcmask 76800
      %3114 = vst.msk [vmem:[#allocation3 + $0x48] sm:$0xf] %vm3113, %v3092
      %v3115 = vld [vmem:[#allocation3] sm:$0xff]
      %v3116 = vld [vmem:[#allocation3 + $0x8] sm:$0xff]
      %v3117 = vld [vmem:[#allocation3 + $0x10] sm:$0xff]
      %v3118 = vld [vmem:[#allocation3 + $0x18] sm:$0xff]
      %v3119 = vld [vmem:[#allocation3 + $0x20] sm:$0xff]
      %v3120 = vld [vmem:[#allocation3 + $0x28] sm:$0xf]
      %v3121 = vld [vmem:[#allocation3 + $0x30] sm:$0xf]
      %v3122 = vld [vmem:[#allocation3 + $0x38] sm:$0xf]
      %v3123 = vld [vmem:[#allocation3 + $0x40] sm:$0xf]
      %v3124 = vld [vmem:[#allocation3 + $0x48] sm:$0xf]
      %s3125 = scalar_lea.vmem %s8, 16
      %v3126 = vld [vmem:[%s3125] sm:$0xff]
      %v3127 = vld [vmem:[%s3125 + $0x8] sm:$0xf]
      %s3128 = scalar_lea.vmem %s9, 16
      %v3129 = vld [vmem:[%s3128] sm:$0xff]
      %v3130 = vld [vmem:[%s3128 + $0x8] sm:$0xf]
      %s3131 = scalar_lea.vmem %s10, 16
      %v3132 = vld [vmem:[%s3131] sm:$0xff]
      %v3133 = vld [vmem:[%s3131 + $0x8] sm:$0xf]
      %v3142 = vrot.slane %v3115, 4
      %v3143 = vrot.slane %v3116, 4
      %v3144 = vrot.slane %v3117, 4
      %v3145 = vrot.slane %v3118, 4
      %v3146 = vrot.slane %v3120, 4
      %v3147 = vsel %vm941, %v3142, %v3146
      %v3148 = vrot.slane %v3121, 4
      %v3149 = vsel %vm941, %v3143, %v3148
      %v3150 = vrot.slane %v3122, 4
      %v3151 = vsel %vm941, %v3144, %v3150
      %v3152 = vrot.slane %v3123, 4
      %v3153 = vsel %vm941, %v3145, %v3152
      %3154 = vrot.lane.b32.xlu0 %v3142, 127
      %v3155 = vpop.permute.xlu0 %3154
      %3156 = vrot.lane.b32.xlu0 %v3143, 127
      %v3157 = vpop.permute.xlu0 %3156
      %3158 = vrot.lane.b32.xlu0 %v3144, 127
      %v3159 = vpop.permute.xlu0 %3158
      %3160 = vrot.lane.b32.xlu0 %v3145, 127
      %v3161 = vpop.permute.xlu0 %3160
      %3162 = vrot.lane.b32.xlu0 %v3147, 127
      %v3163 = vpop.permute.xlu0 %3162
      %3164 = vrot.lane.b32.xlu0 %v3149, 127
      %v3165 = vpop.permute.xlu0 %3164
      %3166 = vrot.lane.b32.xlu0 %v3151, 127
      %v3167 = vpop.permute.xlu0 %3166
      %3168 = vrot.lane.b32.xlu0 %v3153, 127
      %v3169 = vpop.permute.xlu0 %3168
      %v3170 = vsel %vm605, %v3155, %v3157
      %v3171 = vsel %vm605, %v3157, %v3159
      %v3172 = vsel %vm605, %v3159, %v3161
      %v3173 = vsel %vm605, %v3163, %v3165
      %v3174 = vsel %vm605, %v3165, %v3167
      %v3175 = vsel %vm605, %v3167, %v3169
      %3180 = vrot.lane.b32.xlu0 %v3115, 126
      %v3181 = vpop.permute.xlu0 %3180
      %3182 = vrot.lane.b32.xlu0 %v3116, 126
      %v3183 = vpop.permute.xlu0 %3182
      %3184 = vrot.lane.b32.xlu0 %v3117, 126
      %v3185 = vpop.permute.xlu0 %3184
      %3186 = vrot.lane.b32.xlu0 %v3118, 126
      %v3187 = vpop.permute.xlu0 %3186
      %3188 = vrot.lane.b32.xlu0 %v3120, 126
      %v3189 = vpop.permute.xlu0 %3188
      %3190 = vrot.lane.b32.xlu0 %v3121, 126
      %v3191 = vpop.permute.xlu0 %3190
      %3192 = vrot.lane.b32.xlu0 %v3122, 126
      %v3193 = vpop.permute.xlu0 %3192
      %3194 = vrot.lane.b32.xlu0 %v3123, 126
      %v3195 = vpop.permute.xlu0 %3194
      %v3196 = vsel %vm630, %v3181, %v3183
      %v3197 = vsel %vm630, %v3183, %v3185
      %v3198 = vsel %vm630, %v3185, %v3187
      %v3199 = vsel %vm630, %v3189, %v3191
      %v3200 = vsel %vm630, %v3191, %v3193
      %v3201 = vsel %vm630, %v3193, %v3195
      %3206 = vrot.lane.b32.xlu0 %v3142, 108
      %v3207 = vpop.permute.xlu0 %3206
      %3208 = vrot.lane.b32.xlu0 %v3143, 108
      %v3209 = vpop.permute.xlu0 %3208
      %3210 = vrot.lane.b32.xlu0 %v3144, 108
      %v3211 = vpop.permute.xlu0 %3210
      %3212 = vrot.lane.b32.xlu0 %v3145, 108
      %v3213 = vpop.permute.xlu0 %3212
      %3214 = vrot.lane.b32.xlu0 %v3147, 108
      %v3215 = vpop.permute.xlu0 %3214
      %3216 = vrot.lane.b32.xlu0 %v3149, 108
      %v3217 = vpop.permute.xlu0 %3216
      %3218 = vrot.lane.b32.xlu0 %v3151, 108
      %v3219 = vpop.permute.xlu0 %3218
      %3220 = vrot.lane.b32.xlu0 %v3153, 108
      %v3221 = vpop.permute.xlu0 %3220
      %v3222 = vsel %vm703, %v3207, %v3209
      %v3223 = vsel %vm703, %v3209, %v3211
      %v3224 = vsel %vm703, %v3211, %v3213
      %v3225 = vsel %vm703, %v3215, %v3217
      %v3226 = vsel %vm703, %v3217, %v3219
      %v3227 = vsel %vm703, %v3219, %v3221
      %3232 = vrot.lane.b32.xlu0 %v3115, 107
      %v3233 = vpop.permute.xlu0 %3232
      %3234 = vrot.lane.b32.xlu0 %v3116, 107
      %v3235 = vpop.permute.xlu0 %3234
      %3236 = vrot.lane.b32.xlu0 %v3117, 107
      %v3237 = vpop.permute.xlu0 %3236
      %3238 = vrot.lane.b32.xlu0 %v3118, 107
      %v3239 = vpop.permute.xlu0 %3238
      %3240 = vrot.lane.b32.xlu0 %v3120, 107
      %v3241 = vpop.permute.xlu0 %3240
      %3242 = vrot.lane.b32.xlu0 %v3121, 107
      %v3243 = vpop.permute.xlu0 %3242
      %3244 = vrot.lane.b32.xlu0 %v3122, 107
      %v3245 = vpop.permute.xlu0 %3244
      %3246 = vrot.lane.b32.xlu0 %v3123, 107
      %v3247 = vpop.permute.xlu0 %3246
      %v3248 = vsel %vm728, %v3233, %v3235
      %v3249 = vsel %vm728, %v3235, %v3237
      %v3250 = vsel %vm728, %v3237, %v3239
      %v3251 = vsel %vm728, %v3241, %v3243
      %v3252 = vsel %vm728, %v3243, %v3245
      %v3253 = vsel %vm728, %v3245, %v3247
      %3258 = vrot.lane.b32.xlu0 %v3142, 106
      %v3259 = vpop.permute.xlu0 %3258
      %3260 = vrot.lane.b32.xlu0 %v3143, 106
      %v3261 = vpop.permute.xlu0 %3260
      %3262 = vrot.lane.b32.xlu0 %v3144, 106
      %v3263 = vpop.permute.xlu0 %3262
      %3264 = vrot.lane.b32.xlu0 %v3145, 106
      %v3265 = vpop.permute.xlu0 %3264
      %3266 = vrot.lane.b32.xlu0 %v3147, 106
      %v3267 = vpop.permute.xlu0 %3266
      %3268 = vrot.lane.b32.xlu0 %v3149, 106
      %v3269 = vpop.permute.xlu0 %3268
      %3270 = vrot.lane.b32.xlu0 %v3151, 106
      %v3271 = vpop.permute.xlu0 %3270
      %3272 = vrot.lane.b32.xlu0 %v3153, 106
      %v3273 = vpop.permute.xlu0 %3272
      %v3274 = vsel %vm753, %v3259, %v3261
      %v3275 = vsel %vm753, %v3261, %v3263
      %v3276 = vsel %vm753, %v3263, %v3265
      %v3277 = vsel %vm753, %v3267, %v3269
      %v3278 = vsel %vm753, %v3269, %v3271
      %v3279 = vsel %vm753, %v3271, %v3273
      %3286 = vrot.lane.b32.xlu0 %v3115, 88
      %v3287 = vpop.permute.xlu0 %3286
      %3288 = vrot.lane.b32.xlu0 %v3116, 88
      %v3289 = vpop.permute.xlu0 %3288
      %3290 = vrot.lane.b32.xlu0 %v3117, 88
      %v3291 = vpop.permute.xlu0 %3290
      %3292 = vrot.lane.b32.xlu0 %v3118, 88
      %v3293 = vpop.permute.xlu0 %3292
      %3294 = vrot.lane.b32.xlu0 %v3119, 88
      %v3295 = vpop.permute.xlu0 %3294
      %3296 = vrot.lane.b32.xlu0 %v3120, 88
      %v3297 = vpop.permute.xlu0 %3296
      %3298 = vrot.lane.b32.xlu0 %v3121, 88
      %v3299 = vpop.permute.xlu0 %3298
      %3300 = vrot.lane.b32.xlu0 %v3122, 88
      %v3301 = vpop.permute.xlu0 %3300
      %3302 = vrot.lane.b32.xlu0 %v3123, 88
      %v3303 = vpop.permute.xlu0 %3302
      %3304 = vrot.lane.b32.xlu0 %v3124, 88
      %v3305 = vpop.permute.xlu0 %3304
      %v3306 = vsel %vm813, %v3287, %v3289
      %v3307 = vsel %vm813, %v3289, %v3291
      %v3308 = vsel %vm813, %v3291, %v3293
      %v3309 = vsel %vm813, %v3293, %v3295
      %v3310 = vsel %vm813, %v3297, %v3299
      %v3311 = vsel %vm813, %v3299, %v3301
      %v3312 = vsel %vm813, %v3301, %v3303
      %v3313 = vsel %vm813, %v3303, %v3305
      %v3318 = vrot.slane %v3119, 4
      %v3319 = vrot.slane %v3124, 4
      %v3320 = vsel %vm941, %v3318, %v3319
      %3321 = vrot.lane.b32.xlu0 %v3142, 87
      %v3322 = vpop.permute.xlu0 %3321
      %3323 = vrot.lane.b32.xlu0 %v3143, 87
      %v3324 = vpop.permute.xlu0 %3323
      %3325 = vrot.lane.b32.xlu0 %v3144, 87
      %v3326 = vpop.permute.xlu0 %3325
      %3327 = vrot.lane.b32.xlu0 %v3145, 87
      %v3328 = vpop.permute.xlu0 %3327
      %3329 = vrot.lane.b32.xlu0 %v3318, 87
      %v3330 = vpop.permute.xlu0 %3329
      %3331 = vrot.lane.b32.xlu0 %v3147, 87
      %v3332 = vpop.permute.xlu0 %3331
      %3333 = vrot.lane.b32.xlu0 %v3149, 87
      %v3334 = vpop.permute.xlu0 %3333
      %3335 = vrot.lane.b32.xlu0 %v3151, 87
      %v3336 = vpop.permute.xlu0 %3335
      %3337 = vrot.lane.b32.xlu0 %v3153, 87
      %v3338 = vpop.permute.xlu0 %3337
      %3339 = vrot.lane.b32.xlu0 %v3320, 87
      %v3340 = vpop.permute.xlu0 %3339
      %v3341 = vsel %vm833, %v3322, %v3324
      %v3342 = vsel %vm833, %v3324, %v3326
      %v3343 = vsel %vm833, %v3326, %v3328
      %v3344 = vsel %vm833, %v3328, %v3330
      %v3345 = vsel %vm833, %v3332, %v3334
      %v3346 = vsel %vm833, %v3334, %v3336
      %v3347 = vsel %vm833, %v3336, %v3338
      %v3348 = vsel %vm833, %v3338, %v3340
      %3353 = vrot.lane.b32.xlu0 %v3115, 86
      %v3354 = vpop.permute.xlu0 %3353
      %3355 = vrot.lane.b32.xlu0 %v3116, 86
      %v3356 = vpop.permute.xlu0 %3355
      %3357 = vrot.lane.b32.xlu0 %v3117, 86
      %v3358 = vpop.permute.xlu0 %3357
      %3359 = vrot.lane.b32.xlu0 %v3118, 86
      %v3360 = vpop.permute.xlu0 %3359
      %3361 = vrot.lane.b32.xlu0 %v3119, 86
      %v3362 = vpop.permute.xlu0 %3361
      %3363 = vrot.lane.b32.xlu0 %v3120, 86
      %v3364 = vpop.permute.xlu0 %3363
      %3365 = vrot.lane.b32.xlu0 %v3121, 86
      %v3366 = vpop.permute.xlu0 %3365
      %3367 = vrot.lane.b32.xlu0 %v3122, 86
      %v3368 = vpop.permute.xlu0 %3367
      %3369 = vrot.lane.b32.xlu0 %v3123, 86
      %v3370 = vpop.permute.xlu0 %3369
      %3371 = vrot.lane.b32.xlu0 %v3124, 86
      %v3372 = vpop.permute.xlu0 %3371
      %v3373 = vsel %vm853, %v3354, %v3356
      %v3374 = vsel %vm853, %v3356, %v3358
      %v3375 = vsel %vm853, %v3358, %v3360
      %v3376 = vsel %vm853, %v3360, %v3362
      %v3377 = vsel %vm853, %v3364, %v3366
      %v3378 = vsel %vm853, %v3366, %v3368
      %v3379 = vsel %vm853, %v3368, %v3370
      %v3380 = vsel %vm853, %v3370, %v3372
      %v3381 = vsel %vm941, %v3120, %v3170
      %v3382 = vsel %vm941, %v3121, %v3171
      %v3383 = vsel %vm941, %v3122, %v3172
      %v3384 = vsel %vm941, %v3123, %v3161
      %v3385 = vsel %vm941, %v3199, %v3222
      %v3386 = vsel %vm941, %v3200, %v3223
      %v3387 = vsel %vm941, %v3201, %v3224
      %v3388 = vsel %vm941, %v3195, %v3213
      %v3389 = vsel %vm941, %v3251, %v3274
      %v3390 = vsel %vm941, %v3252, %v3275
      %v3391 = vsel %vm941, %v3253, %v3276
      %v3392 = vsel %vm941, %v3247, %v3265
      %v3393 = vsel %vm941, %v3310, %v3341
      %v3394 = vsel %vm941, %v3311, %v3342
      %v3395 = vsel %vm941, %v3312, %v3343
      %v3396 = vsel %vm941, %v3313, %v3344
      %3398 = vset.pattern.permute.xlu0 0
      %3399 = vperm.xlu0 %3398, %v3129
      %v3400 = vpop.permute.xlu0 %3399
      %3403 = vset.pattern.permute.xlu0 0
      %3404 = vperm.xlu0 %3403, %v3130
      %v3405 = vpop.permute.xlu0 %3404
      %3423 = vrot.lane.b32.xlu0 %v3115, 127
      %v3424 = vpop.permute.xlu0 %3423
      %3425 = vrot.lane.b32.xlu0 %v3116, 127
      %v3426 = vpop.permute.xlu0 %3425
      %3427 = vrot.lane.b32.xlu0 %v3117, 127
      %v3428 = vpop.permute.xlu0 %3427
      %3429 = vrot.lane.b32.xlu0 %v3118, 127
      %v3430 = vpop.permute.xlu0 %3429
      %3431 = vrot.lane.b32.xlu0 %v3381, 127
      %v3432 = vpop.permute.xlu0 %3431
      %3433 = vrot.lane.b32.xlu0 %v3382, 127
      %v3434 = vpop.permute.xlu0 %3433
      %3435 = vrot.lane.b32.xlu0 %v3383, 127
      %v3436 = vpop.permute.xlu0 %3435
      %3437 = vrot.lane.b32.xlu0 %v3384, 127
      %v3438 = vpop.permute.xlu0 %3437
      %3439 = vrot.lane.b32.xlu0 %v3173, 127
      %v3440 = vpop.permute.xlu0 %3439
      %3441 = vrot.lane.b32.xlu0 %v3174, 127
      %v3442 = vpop.permute.xlu0 %3441
      %3443 = vrot.lane.b32.xlu0 %v3175, 127
      %v3444 = vpop.permute.xlu0 %3443
      %3445 = vrot.lane.b32.xlu0 %v3169, 127
      %v3446 = vpop.permute.xlu0 %3445
      %3447 = vrot.lane.b32.xlu0 %v3196, 127
      %v3448 = vpop.permute.xlu0 %3447
      %3449 = vrot.lane.b32.xlu0 %v3197, 127
      %v3450 = vpop.permute.xlu0 %3449
      %3451 = vrot.lane.b32.xlu0 %v3198, 127
      %v3452 = vpop.permute.xlu0 %3451
      %3453 = vrot.lane.b32.xlu0 %v3187, 127
      %v3454 = vpop.permute.xlu0 %3453
      %3455 = vrot.lane.b32.xlu0 %v3385, 127
      %v3456 = vpop.permute.xlu0 %3455
      %3457 = vrot.lane.b32.xlu0 %v3386, 127
      %v3458 = vpop.permute.xlu0 %3457
      %3459 = vrot.lane.b32.xlu0 %v3387, 127
      %v3460 = vpop.permute.xlu0 %3459
      %3461 = vrot.lane.b32.xlu0 %v3388, 127
      %v3462 = vpop.permute.xlu0 %3461
      %3463 = vrot.lane.b32.xlu0 %v3225, 127
      %v3464 = vpop.permute.xlu0 %3463
      %3465 = vrot.lane.b32.xlu0 %v3226, 127
      %v3466 = vpop.permute.xlu0 %3465
      %3467 = vrot.lane.b32.xlu0 %v3227, 127
      %v3468 = vpop.permute.xlu0 %3467
      %3469 = vrot.lane.b32.xlu0 %v3221, 127
      %v3470 = vpop.permute.xlu0 %3469
      %3471 = vrot.lane.b32.xlu0 %v3248, 127
      %v3472 = vpop.permute.xlu0 %3471
      %3473 = vrot.lane.b32.xlu0 %v3249, 127
      %v3474 = vpop.permute.xlu0 %3473
      %3475 = vrot.lane.b32.xlu0 %v3250, 127
      %v3476 = vpop.permute.xlu0 %3475
      %3477 = vrot.lane.b32.xlu0 %v3239, 127
      %v3478 = vpop.permute.xlu0 %3477
      %3479 = vrot.lane.b32.xlu0 %v3389, 127
      %v3480 = vpop.permute.xlu0 %3479
      %3481 = vrot.lane.b32.xlu0 %v3390, 127
      %v3482 = vpop.permute.xlu0 %3481
      %3483 = vrot.lane.b32.xlu0 %v3391, 127
      %v3484 = vpop.permute.xlu0 %3483
      %3485 = vrot.lane.b32.xlu0 %v3392, 127
      %v3486 = vpop.permute.xlu0 %3485
      %3487 = vrot.lane.b32.xlu0 %v3277, 127
      %v3488 = vpop.permute.xlu0 %3487
      %3489 = vrot.lane.b32.xlu0 %v3278, 127
      %v3490 = vpop.permute.xlu0 %3489
      %3491 = vrot.lane.b32.xlu0 %v3279, 127
      %v3492 = vpop.permute.xlu0 %3491
      %3493 = vrot.lane.b32.xlu0 %v3273, 127
      %v3494 = vpop.permute.xlu0 %3493
      %3495 = vrot.lane.b32.xlu0 %v3306, 127
      %v3496 = vpop.permute.xlu0 %3495
      %3497 = vrot.lane.b32.xlu0 %v3307, 127
      %v3498 = vpop.permute.xlu0 %3497
      %3499 = vrot.lane.b32.xlu0 %v3308, 127
      %v3500 = vpop.permute.xlu0 %3499
      %3501 = vrot.lane.b32.xlu0 %v3309, 127
      %v3502 = vpop.permute.xlu0 %3501
      %3503 = vrot.lane.b32.xlu0 %v3393, 127
      %v3504 = vpop.permute.xlu0 %3503
      %3505 = vrot.lane.b32.xlu0 %v3394, 127
      %v3506 = vpop.permute.xlu0 %3505
      %3507 = vrot.lane.b32.xlu0 %v3395, 127
      %v3508 = vpop.permute.xlu0 %3507
      %3509 = vrot.lane.b32.xlu0 %v3396, 127
      %v3510 = vpop.permute.xlu0 %3509
      %3511 = vrot.lane.b32.xlu0 %v3345, 127
      %v3512 = vpop.permute.xlu0 %3511
      %3513 = vrot.lane.b32.xlu0 %v3346, 127
      %v3514 = vpop.permute.xlu0 %3513
      %3515 = vrot.lane.b32.xlu0 %v3347, 127
      %v3516 = vpop.permute.xlu0 %3515
      %3517 = vrot.lane.b32.xlu0 %v3348, 127
      %v3518 = vpop.permute.xlu0 %3517
      %3519 = vrot.lane.b32.xlu0 %v3373, 127
      %v3520 = vpop.permute.xlu0 %3519
      %3521 = vrot.lane.b32.xlu0 %v3374, 127
      %v3522 = vpop.permute.xlu0 %3521
      %3523 = vrot.lane.b32.xlu0 %v3375, 127
      %v3524 = vpop.permute.xlu0 %3523
      %3525 = vrot.lane.b32.xlu0 %v3376, 127
      %v3526 = vpop.permute.xlu0 %3525
      %3527 = vrot.lane.b32.xlu0 %v3377, 127
      %v3528 = vpop.permute.xlu0 %3527
      %3529 = vrot.lane.b32.xlu0 %v3378, 127
      %v3530 = vpop.permute.xlu0 %3529
      %3531 = vrot.lane.b32.xlu0 %v3379, 127
      %v3532 = vpop.permute.xlu0 %3531
      %3533 = vrot.lane.b32.xlu0 %v3380, 127
      %v3534 = vpop.permute.xlu0 %3533
      %v3535 = vsel %vm605, %v3424, %v3426
      %v3536 = vsel %vm605, %v3426, %v3428
      %v3537 = vsel %vm605, %v3428, %v3430
      %v3538 = vsel %vm605, %v3432, %v3434
      %v3539 = vsel %vm605, %v3434, %v3436
      %v3540 = vsel %vm605, %v3436, %v3438
      %v3541 = vsel %vm605, %v3440, %v3442
      %v3542 = vsel %vm605, %v3442, %v3444
      %v3543 = vsel %vm605, %v3444, %v3446
      %v3544 = vsel %vm605, %v3448, %v3450
      %v3545 = vsel %vm605, %v3450, %v3452
      %v3546 = vsel %vm605, %v3452, %v3454
      %v3547 = vsel %vm605, %v3456, %v3458
      %v3548 = vsel %vm605, %v3458, %v3460
      %v3549 = vsel %vm605, %v3460, %v3462
      %v3550 = vsel %vm605, %v3464, %v3466
      %v3551 = vsel %vm605, %v3466, %v3468
      %v3552 = vsel %vm605, %v3468, %v3470
      %v3553 = vsel %vm605, %v3472, %v3474
      %v3554 = vsel %vm605, %v3474, %v3476
      %v3555 = vsel %vm605, %v3476, %v3478
      %v3556 = vsel %vm605, %v3480, %v3482
      %v3557 = vsel %vm605, %v3482, %v3484
      %v3558 = vsel %vm605, %v3484, %v3486
      %v3559 = vsel %vm605, %v3488, %v3490
      %v3560 = vsel %vm605, %v3490, %v3492
      %v3561 = vsel %vm605, %v3492, %v3494
      %v3562 = vsel %vm605, %v3496, %v3498
      %v3563 = vsel %vm605, %v3498, %v3500
      %v3564 = vsel %vm605, %v3500, %v3502
      %v3565 = vsel %vm605, %v3504, %v3506
      %v3566 = vsel %vm605, %v3506, %v3508
      %v3567 = vsel %vm605, %v3508, %v3510
      %v3568 = vsel %vm605, %v3512, %v3514
      %v3569 = vsel %vm605, %v3514, %v3516
      %v3570 = vsel %vm605, %v3516, %v3518
      %v3571 = vsel %vm605, %v3520, %v3522
      %v3572 = vsel %vm605, %v3522, %v3524
      %v3573 = vsel %vm605, %v3524, %v3526
      %v3574 = vsel %vm605, %v3528, %v3530
      %v3575 = vsel %vm605, %v3530, %v3532
      %v3576 = vsel %vm605, %v3532, %v3534
      %v3630 = vsel %vm703, %v3126, 0
      %v3633 = vsel %vm703, %v3127, 0
      %v3635 = vsel %vm941, %v3574, 0
      %v3637 = vsel %vm941, %v3575, 0
      %v3639 = vsel %vm941, %v3576, 0
      %v3641 = vsel %vm941, %v3534, 0
      %3643 = vmatprep.subr.mxu0 0.0
      %3644 = vmatpush1.msra.mxu0 0.0
      %3645 = vmatprep.subr.mxu0 0.0
      %3646 = vmatpush1.msra.mxu0 0.0
      %3647 = vmatprep.subr.mxu0 %v3637
      %3648 = vmatpush1.msra.mxu0 %v3635
      %3649 = vmatprep.subr.mxu0 %v3572
      %3650 = vmatpush1.msra.mxu0 %v3571
      %3651 = vmatprep.subr.mxu0 %v3569
      %3652 = vmatpush1.msra.mxu0 %v3568
      %3653 = vmatprep.subr.mxu0 %v3566
      %3654 = vmatpush1.msra.mxu0 %v3565
      %3655 = vmatprep.subr.mxu0 %v3563
      %3656 = vmatpush1.msra.mxu0 %v3562
      %3657 = vmatprep.subr.mxu0 %v3560
      %3658 = vmatpush1.msra.mxu0 %v3559
      %3659 = vmatprep.subr.mxu0 %v3557
      %3660 = vmatpush1.msra.mxu0 %v3556
      %3661 = vmatprep.subr.mxu0 %v3554
      %3662 = vmatpush1.msra.mxu0 %v3553
      %3663 = vmatprep.subr.mxu0 %v3551
      %3664 = vmatpush1.msra.mxu0 %v3550
      %3665 = vmatprep.subr.mxu0 %v3548
      %3666 = vmatpush1.msra.mxu0 %v3547
      %3667 = vmatprep.subr.mxu0 %v3545
      %3668 = vmatpush1.msra.mxu0 %v3544
      %3669 = vmatprep.subr.mxu0 %v3542
      %3670 = vmatpush1.msra.mxu0 %v3541
      %3671 = vmatprep.subr.mxu0 %v3539
      %3672 = vmatpush1.msra.mxu0 %v3538
      %3673 = vmatprep.subr.mxu0 %v3536
      %3674 = vmatpush1.msra.mxu0 %v3535
      %3675 = vmatprep.subr.mxu0 0.0
      %3676 = vmatpush2.msra.mxu0 0.0
      %3677 = vmatprep.subr.mxu0 0.0
      %3678 = vmatpush2.msra.mxu0 0.0
      %3679 = vmatprep.subr.mxu0 0.0
      %3680 = vmatpush2.msra.mxu0 0.0
      %3681 = vmatprep.subr.mxu0 0.0
      %3682 = vmatpush2.msra.mxu0 0.0
      %3683 = vmatprep.subr.mxu0 0.0
      %3684 = vmatpush2.msra.mxu0 0.0
      %3685 = vmatprep.subr.mxu0 0.0
      %3686 = vmatpush2.msra.mxu0 0.0
      %3687 = vmatprep.subr.mxu0 0.0
      %3688 = vmatpush2.msra.mxu0 0.0
      %3689 = vmatprep.subr.mxu0 0.0
      %3690 = vmatpush2.msra.mxu0 0.0
      %3691 = vmatprep.subr.mxu0 0.0
      %3692 = vmatpush2.msra.mxu0 0.0
      %3693 = vmatprep.subr.mxu0 0.0
      %3694 = vmatpush2.msra.mxu0 0.0
      %3695 = vmatprep.subr.mxu0 0.0
      %3696 = vmatpush2.msra.mxu0 0.0
      %3697 = vmatprep.subr.mxu0 0.0
      %3698 = vmatpush2.msra.mxu0 0.0
      %3699 = vmatprep.subr.mxu0 0.0
      %3700 = vmatpush2.msra.mxu0 0.0
      %3701 = vmatprep.subr.mxu0 0.0
      %3702 = vmatpush2.msra.mxu0 0.0
      %3703 = vmatprep.subr.mxu0 0.0
      %3704 = vmatpush2.msra.mxu0 0.0
      %3705 = vmatprep.subr.mxu0 0.0
      %3706 = vmatpush2.msra.mxu0 0.0
      %3707 = vmatprep.mubr.f32.mxu0 0.0
      %3708 = vmatmul.mubr.f32.gmra.mxu0 %v3630
      %v3709 = vpop.f32.mrf.mxu0
      %v3710 = vadd.f32 %v3400, %v3709
      %v3711 = vpop.f32.mrf.mxu0
      %v3712 = vadd.f32 %v3400, %v3711
      %3713 = vmatprep.mubr.f32.mxu0 0.0
      %3714 = vmatmul.mubr.f32.gmra.mxu0 %v3633
      %v3715 = vpop.f32.mrf.mxu0
      %v3716 = vadd.f32 %v3405, %v3715
      %v3717 = vpop.f32.mrf.mxu0
      %v3718 = vadd.f32 %v3405, %v3717
      %3719 = vdwg.mxu0
      %3720 = vmatprep.subr.mxu0 0.0
      %3721 = vmatpush1.msra.mxu0 0.0
      %3722 = vmatprep.subr.mxu0 0.0
      %3723 = vmatpush1.msra.mxu0 0.0
      %3724 = vmatprep.subr.mxu0 %v3641
      %3725 = vmatpush1.msra.mxu0 %v3639
      %3726 = vmatprep.subr.mxu0 %v3526
      %3727 = vmatpush1.msra.mxu0 %v3573
      %3728 = vmatprep.subr.mxu0 %v3518
      %3729 = vmatpush1.msra.mxu0 %v3570
      %3730 = vmatprep.subr.mxu0 %v3510
      %3731 = vmatpush1.msra.mxu0 %v3567
      %3732 = vmatprep.subr.mxu0 %v3502
      %3733 = vmatpush1.msra.mxu0 %v3564
      %3734 = vmatprep.subr.mxu0 %v3494
      %3735 = vmatpush1.msra.mxu0 %v3561
      %3736 = vmatprep.subr.mxu0 %v3486
      %3737 = vmatpush1.msra.mxu0 %v3558
      %3738 = vmatprep.subr.mxu0 %v3478
      %3739 = vmatpush1.msra.mxu0 %v3555
      %3740 = vmatprep.subr.mxu0 %v3470
      %3741 = vmatpush1.msra.mxu0 %v3552
      %3742 = vmatprep.subr.mxu0 %v3462
      %3743 = vmatpush1.msra.mxu0 %v3549
      %3744 = vmatprep.subr.mxu0 %v3454
      %3745 = vmatpush1.msra.mxu0 %v3546
      %3746 = vmatprep.subr.mxu0 %v3446
      %3747 = vmatpush1.msra.mxu0 %v3543
      %3748 = vmatprep.subr.mxu0 %v3438
      %3749 = vmatpush1.msra.mxu0 %v3540
      %3750 = vmatprep.subr.mxu0 %v3430
      %3751 = vmatpush1.msra.mxu0 %v3537
      %3752 = vmatprep.subr.mxu0 0.0
      %3753 = vmatpush2.msra.mxu0 0.0
      %3754 = vmatprep.subr.mxu0 0.0
      %3755 = vmatpush2.msra.mxu0 0.0
      %3756 = vmatprep.subr.mxu0 0.0
      %3757 = vmatpush2.msra.mxu0 0.0
      %3758 = vmatprep.subr.mxu0 0.0
      %3759 = vmatpush2.msra.mxu0 0.0
      %3760 = vmatprep.subr.mxu0 0.0
      %3761 = vmatpush2.msra.mxu0 0.0
      %3762 = vmatprep.subr.mxu0 0.0
      %3763 = vmatpush2.msra.mxu0 0.0
      %3764 = vmatprep.subr.mxu0 0.0
      %3765 = vmatpush2.msra.mxu0 0.0
      %3766 = vmatprep.subr.mxu0 0.0
      %3767 = vmatpush2.msra.mxu0 0.0
      %3768 = vmatprep.subr.mxu0 0.0
      %3769 = vmatpush2.msra.mxu0 0.0
      %3770 = vmatprep.subr.mxu0 0.0
      %3771 = vmatpush2.msra.mxu0 0.0
      %3772 = vmatprep.subr.mxu0 0.0
      %3773 = vmatpush2.msra.mxu0 0.0
      %3774 = vmatprep.subr.mxu0 0.0
      %3775 = vmatpush2.msra.mxu0 0.0
      %3776 = vmatprep.subr.mxu0 0.0
      %3777 = vmatpush2.msra.mxu0 0.0
      %3778 = vmatprep.subr.mxu0 0.0
      %3779 = vmatpush2.msra.mxu0 0.0
      %3780 = vmatprep.subr.mxu0 0.0
      %3781 = vmatpush2.msra.mxu0 0.0
      %3782 = vmatprep.subr.mxu0 0.0
      %3783 = vmatpush2.msra.mxu0 0.0
      %3784 = vmatprep.mubr.f32.mxu0 0.0
      %3785 = vmatmul.mubr.f32.gmra.mxu0 %v3630
      %v3786 = vpop.f32.mrf.mxu0
      %v3787 = vadd.f32 %v3400, %v3786
      %v3788 = vpop.f32.mrf.mxu0
      %v3789 = vadd.f32 %v3400, %v3788
      %3790 = vmatprep.mubr.f32.mxu0 0.0
      %3791 = vmatmul.mubr.f32.gmra.mxu0 %v3633
      %v3792 = vpop.f32.mrf.mxu0
      %v3793 = vadd.f32 %v3405, %v3792
      %v3794 = vpop.f32.mrf.mxu0
      %v3795 = vadd.f32 %v3405, %v3794
      %3796 = vdwg.mxu0
      %vm3797 = vcmp.gt.f32.partialorder %v3710, 0.0
      %vm3798 = vcmp.gt.f32.partialorder %v3712, 0.0
      %vm3799 = vcmp.gt.f32.partialorder %v3787, 0.0
      %vm3800 = vcmp.gt.f32.partialorder %v3789, 0.0
      %vm3801 = vcmp.gt.f32.partialorder %v3716, 0.0
      %vm3802 = vcmp.gt.f32.partialorder %v3718, 0.0
      %vm3803 = vcmp.gt.f32.partialorder %v3793, 0.0
      %vm3804 = vcmp.gt.f32.partialorder %v3795, 0.0
      %3806 = vset.pattern.permute.xlu0 0
      %3807 = vperm.xlu0 %3806, %v3132
      %v3808 = vpop.permute.xlu0 %3807
      %3811 = vset.pattern.permute.xlu0 0
      %3812 = vperm.xlu0 %3811, %v3133
      %v3813 = vpop.permute.xlu0 %3812
      %v3815 = vmul.f32 %v3710, %v3808
      %v3816 = vmul.f32 %v3712, %v3808
      %v3817 = vmul.f32 %v3787, %v3808
      %v3818 = vmul.f32 %v3789, %v3808
      %v3819 = vmul.f32 %v3716, %v3813
      %v3820 = vmul.f32 %v3718, %v3813
      %v3821 = vmul.f32 %v3793, %v3813
      %v3822 = vmul.f32 %v3795, %v3813
      %v3823 = vsel %vm3797, %v3710, %v3815
      %v3824 = vsel %vm3798, %v3712, %v3816
      %v3825 = vsel %vm3799, %v3787, %v3817
      %v3826 = vsel %vm3800, %v3789, %v3818
      %v3827 = vsel %vm3801, %v3716, %v3819
      %v3828 = vsel %vm3802, %v3718, %v3820
      %v3829 = vsel %vm3803, %v3793, %v3821
      %v3830 = vsel %vm3804, %v3795, %v3822
      %s3831 = ssub.s32 4, %s1951
      %p3832 = scmp.gt.s32.totalorder %s3831, 0
      %s3833 = scalar_select %p3832, %s3831, 0
      %s3834 = smul.u32 %s3833, 20
      %s3835 = ssub.s32 20, %s1951
      %p3836 = scmp.lt.s32.totalorder %s3835, 24
      %s3837 = scalar_select %p3836, %s3835, 24
      %s3838 = smul.u32 %s3837, 20
      %v3839 = vstv %s3834
      %vm3840 = vcmp.ge.s32.totalorder %v1961, %v3839
      %vm3841 = vcmp.ge.s32.totalorder %v1962, %v3839
      %vm3842 = vcmp.ge.s32.totalorder %v1963, %v3839
      %vm3843 = vcmp.ge.s32.totalorder %v1964, %v3839
      %v3844 = vstv %s3838
      %vm3845 = vcmp.lt.s32.totalorder %v1961, %v3844
      %vm3846 = vcmp.lt.s32.totalorder %v1962, %v3844
      %vm3847 = vcmp.lt.s32.totalorder %v1963, %v3844
      %vm3848 = vcmp.lt.s32.totalorder %v1964, %v3844
      %vm3849 = vmand %vm3840, %vm3845
      %vm3850 = vmand %vm3841, %vm3846
      %vm3851 = vmand %vm3842, %vm3847
      %vm3852 = vmand %vm3843, %vm3848
      %v3853 = vsel %vm3849, %v3823, 0.0
      %v3854 = vsel %vm3850, %v3824, 0.0
      %v3855 = vsel %vm3851, %v3825, 0.0
      %v3856 = vsel %vm3852, %v3826, 0.0
      %v3857 = vsel %vm3849, %v3827, 0.0
      %v3858 = vsel %vm3850, %v3828, 0.0
      %v3859 = vsel %vm3851, %v3829, 0.0
      %v3860 = vsel %vm3852, %v3830, 0.0
      %v3861 = vmul.f32 %v3853, %v1997
      %v3862 = vmul.f32 %v3854, %v2001
      %v3863 = vmul.f32 %v3855, %v2005
      %v3864 = vmul.f32 %v3856, %v2009
      %v3865 = vmul.f32 %v3857, %v1997
      %v3866 = vmul.f32 %v3858, %v2001
      %v3867 = vmul.f32 %v3859, %v2005
      %v3868 = vmul.f32 %v3860, %v2009
      %3877 = vrot.lane.b32.xlu0 %v3861, 2
      %v3878 = vpop.permute.xlu0 %3877
      %3879 = vrot.lane.b32.xlu0 %v3862, 2
      %v3880 = vpop.permute.xlu0 %3879
      %3881 = vrot.lane.b32.xlu0 %v3863, 2
      %v3882 = vpop.permute.xlu0 %3881
      %3883 = vrot.lane.b32.xlu0 %v3864, 2
      %v3884 = vpop.permute.xlu0 %3883
      %3885 = vrot.lane.b32.xlu0 %v3865, 2
      %v3886 = vpop.permute.xlu0 %3885
      %3887 = vrot.lane.b32.xlu0 %v3866, 2
      %v3888 = vpop.permute.xlu0 %3887
      %3889 = vrot.lane.b32.xlu0 %v3867, 2
      %v3890 = vpop.permute.xlu0 %3889
      %3891 = vrot.lane.b32.xlu0 %v3868, 2
      %v3892 = vpop.permute.xlu0 %3891
      %v3893 = vsel %vm2081, %v3878, %v3880
      %v3894 = vsel %vm2081, %v3880, %v3882
      %v3895 = vsel %vm2081, %v3882, %v3884
      %v3896 = vsel %vm2081, %v3886, %v3888
      %v3897 = vsel %vm2081, %v3888, %v3890
      %v3898 = vsel %vm2081, %v3890, %v3892
      %3907 = vst.msk [vmem:[#allocation2] sm:$0xff] %vm2100, %v3878
      %3908 = vst [vmem:[#allocation2 + $0x8] sm:$0xff] %v3893
      %3909 = vst [vmem:[#allocation2 + $0x10] sm:$0xff] %v3894
      %vm3910 = vcmask 801792
      %3911 = vst.msk [vmem:[#allocation2 + $0x18] sm:$0xff] %vm3910, %v3895
      %3912 = vst.msk [vmem:[#allocation2 + $0x28] sm:$0xf] %vm2107, %v3886
      %3913 = vst [vmem:[#allocation2 + $0x30] sm:$0xf] %v3896
      %3914 = vst [vmem:[#allocation2 + $0x38] sm:$0xf] %v3897
      %vm3915 = vcmask 797696
      %3916 = vst.msk [vmem:[#allocation2 + $0x40] sm:$0xf] %vm3915, %v3898
      %v3917 = vld [vmem:[#allocation2] sm:$0xff]
      %v3918 = vld [vmem:[#allocation2 + $0x8] sm:$0xff]
      %v3919 = vld [vmem:[#allocation2 + $0x10] sm:$0xff]
      %v3920 = vld [vmem:[#allocation2 + $0x18] sm:$0xff]
      %v3921 = vld [vmem:[#allocation2 + $0x28] sm:$0xf]
      %v3922 = vld [vmem:[#allocation2 + $0x30] sm:$0xf]
      %v3923 = vld [vmem:[#allocation2 + $0x38] sm:$0xf]
      %v3924 = vld [vmem:[#allocation2 + $0x40] sm:$0xf]
      %s3925 = scalar_lea.vmem %s8, 32
      %v3926 = vld [vmem:[%s3925] sm:$0xff]
      %v3927 = vld [vmem:[%s3925 + $0x8] sm:$0xf]
      %s3928 = scalar_lea.vmem %s9, 32
      %v3929 = vld [vmem:[%s3928] sm:$0xff]
      %v3930 = vld [vmem:[%s3928 + $0x8] sm:$0xf]
      %s3931 = scalar_lea.vmem %s10, 32
      %v3932 = vld [vmem:[%s3931] sm:$0xff]
      %v3933 = vld [vmem:[%s3931 + $0x8] sm:$0xf]
      %v3942 = vrot.slane %v3917, 4
      %v3943 = vrot.slane %v3918, 4
      %v3944 = vrot.slane %v3919, 4
      %v3945 = vrot.slane %v3920, 4
      %v3946 = vrot.slane %v3921, 4
      %v3947 = vsel %vm941, %v3942, %v3946
      %v3948 = vrot.slane %v3922, 4
      %v3949 = vsel %vm941, %v3943, %v3948
      %v3950 = vrot.slane %v3923, 4
      %v3951 = vsel %vm941, %v3944, %v3950
      %v3952 = vrot.slane %v3924, 4
      %v3953 = vsel %vm941, %v3945, %v3952
      %3954 = vrot.lane.b32.xlu0 %v3942, 127
      %v3955 = vpop.permute.xlu0 %3954
      %3956 = vrot.lane.b32.xlu0 %v3943, 127
      %v3957 = vpop.permute.xlu0 %3956
      %3958 = vrot.lane.b32.xlu0 %v3944, 127
      %v3959 = vpop.permute.xlu0 %3958
      %3960 = vrot.lane.b32.xlu0 %v3945, 127
      %v3961 = vpop.permute.xlu0 %3960
      %3962 = vrot.lane.b32.xlu0 %v3947, 127
      %v3963 = vpop.permute.xlu0 %3962
      %3964 = vrot.lane.b32.xlu0 %v3949, 127
      %v3965 = vpop.permute.xlu0 %3964
      %3966 = vrot.lane.b32.xlu0 %v3951, 127
      %v3967 = vpop.permute.xlu0 %3966
      %3968 = vrot.lane.b32.xlu0 %v3953, 127
      %v3969 = vpop.permute.xlu0 %3968
      %v3970 = vsel %vm605, %v3955, %v3957
      %v3971 = vsel %vm605, %v3957, %v3959
      %v3972 = vsel %vm605, %v3959, %v3961
      %v3973 = vsel %vm605, %v3963, %v3965
      %v3974 = vsel %vm605, %v3965, %v3967
      %v3975 = vsel %vm605, %v3967, %v3969
      %3980 = vrot.lane.b32.xlu0 %v3917, 126
      %v3981 = vpop.permute.xlu0 %3980
      %3982 = vrot.lane.b32.xlu0 %v3918, 126
      %v3983 = vpop.permute.xlu0 %3982
      %3984 = vrot.lane.b32.xlu0 %v3919, 126
      %v3985 = vpop.permute.xlu0 %3984
      %3986 = vrot.lane.b32.xlu0 %v3920, 126
      %v3987 = vpop.permute.xlu0 %3986
      %3988 = vrot.lane.b32.xlu0 %v3921, 126
      %v3989 = vpop.permute.xlu0 %3988
      %3990 = vrot.lane.b32.xlu0 %v3922, 126
      %v3991 = vpop.permute.xlu0 %3990
      %3992 = vrot.lane.b32.xlu0 %v3923, 126
      %v3993 = vpop.permute.xlu0 %3992
      %3994 = vrot.lane.b32.xlu0 %v3924, 126
      %v3995 = vpop.permute.xlu0 %3994
      %v3996 = vsel %vm630, %v3981, %v3983
      %v3997 = vsel %vm630, %v3983, %v3985
      %v3998 = vsel %vm630, %v3985, %v3987
      %v3999 = vsel %vm630, %v3989, %v3991
      %v4000 = vsel %vm630, %v3991, %v3993
      %v4001 = vsel %vm630, %v3993, %v3995
      %4006 = vrot.lane.b32.xlu0 %v3942, 108
      %v4007 = vpop.permute.xlu0 %4006
      %4008 = vrot.lane.b32.xlu0 %v3943, 108
      %v4009 = vpop.permute.xlu0 %4008
      %4010 = vrot.lane.b32.xlu0 %v3944, 108
      %v4011 = vpop.permute.xlu0 %4010
      %4012 = vrot.lane.b32.xlu0 %v3945, 108
      %v4013 = vpop.permute.xlu0 %4012
      %4014 = vrot.lane.b32.xlu0 %v3947, 108
      %v4015 = vpop.permute.xlu0 %4014
      %4016 = vrot.lane.b32.xlu0 %v3949, 108
      %v4017 = vpop.permute.xlu0 %4016
      %4018 = vrot.lane.b32.xlu0 %v3951, 108
      %v4019 = vpop.permute.xlu0 %4018
      %4020 = vrot.lane.b32.xlu0 %v3953, 108
      %v4021 = vpop.permute.xlu0 %4020
      %v4022 = vsel %vm703, %v4007, %v4009
      %v4023 = vsel %vm703, %v4009, %v4011
      %v4024 = vsel %vm703, %v4011, %v4013
      %v4025 = vsel %vm703, %v4015, %v4017
      %v4026 = vsel %vm703, %v4017, %v4019
      %v4027 = vsel %vm703, %v4019, %v4021
      %4032 = vrot.lane.b32.xlu0 %v3917, 107
      %v4033 = vpop.permute.xlu0 %4032
      %4034 = vrot.lane.b32.xlu0 %v3918, 107
      %v4035 = vpop.permute.xlu0 %4034
      %4036 = vrot.lane.b32.xlu0 %v3919, 107
      %v4037 = vpop.permute.xlu0 %4036
      %4038 = vrot.lane.b32.xlu0 %v3920, 107
      %v4039 = vpop.permute.xlu0 %4038
      %4040 = vrot.lane.b32.xlu0 %v3921, 107
      %v4041 = vpop.permute.xlu0 %4040
      %4042 = vrot.lane.b32.xlu0 %v3922, 107
      %v4043 = vpop.permute.xlu0 %4042
      %4044 = vrot.lane.b32.xlu0 %v3923, 107
      %v4045 = vpop.permute.xlu0 %4044
      %4046 = vrot.lane.b32.xlu0 %v3924, 107
      %v4047 = vpop.permute.xlu0 %4046
      %v4048 = vsel %vm728, %v4033, %v4035
      %v4049 = vsel %vm728, %v4035, %v4037
      %v4050 = vsel %vm728, %v4037, %v4039
      %v4051 = vsel %vm728, %v4041, %v4043
      %v4052 = vsel %vm728, %v4043, %v4045
      %v4053 = vsel %vm728, %v4045, %v4047
      %4058 = vrot.lane.b32.xlu0 %v3942, 106
      %v4059 = vpop.permute.xlu0 %4058
      %4060 = vrot.lane.b32.xlu0 %v3943, 106
      %v4061 = vpop.permute.xlu0 %4060
      %4062 = vrot.lane.b32.xlu0 %v3944, 106
      %v4063 = vpop.permute.xlu0 %4062
      %4064 = vrot.lane.b32.xlu0 %v3945, 106
      %v4065 = vpop.permute.xlu0 %4064
      %4066 = vrot.lane.b32.xlu0 %v3947, 106
      %v4067 = vpop.permute.xlu0 %4066
      %4068 = vrot.lane.b32.xlu0 %v3949, 106
      %v4069 = vpop.permute.xlu0 %4068
      %4070 = vrot.lane.b32.xlu0 %v3951, 106
      %v4071 = vpop.permute.xlu0 %4070
      %4072 = vrot.lane.b32.xlu0 %v3953, 106
      %v4073 = vpop.permute.xlu0 %4072
      %v4074 = vsel %vm753, %v4059, %v4061
      %v4075 = vsel %vm753, %v4061, %v4063
      %v4076 = vsel %vm753, %v4063, %v4065
      %v4077 = vsel %vm753, %v4067, %v4069
      %v4078 = vsel %vm753, %v4069, %v4071
      %v4079 = vsel %vm753, %v4071, %v4073
      %4084 = vrot.lane.b32.xlu0 %v3917, 88
      %v4085 = vpop.permute.xlu0 %4084
      %4086 = vrot.lane.b32.xlu0 %v3918, 88
      %v4087 = vpop.permute.xlu0 %4086
      %4088 = vrot.lane.b32.xlu0 %v3919, 88
      %v4089 = vpop.permute.xlu0 %4088
      %4090 = vrot.lane.b32.xlu0 %v3920, 88
      %v4091 = vpop.permute.xlu0 %4090
      %4092 = vrot.lane.b32.xlu0 %v3921, 88
      %v4093 = vpop.permute.xlu0 %4092
      %4094 = vrot.lane.b32.xlu0 %v3922, 88
      %v4095 = vpop.permute.xlu0 %4094
      %4096 = vrot.lane.b32.xlu0 %v3923, 88
      %v4097 = vpop.permute.xlu0 %4096
      %4098 = vrot.lane.b32.xlu0 %v3924, 88
      %v4099 = vpop.permute.xlu0 %4098
      %v4100 = vsel %vm813, %v4085, %v4087
      %v4101 = vsel %vm813, %v4087, %v4089
      %v4102 = vsel %vm813, %v4089, %v4091
      %v4103 = vsel %vm813, %v4093, %v4095
      %v4104 = vsel %vm813, %v4095, %v4097
      %v4105 = vsel %vm813, %v4097, %v4099
      %4110 = vrot.lane.b32.xlu0 %v3942, 87
      %v4111 = vpop.permute.xlu0 %4110
      %4112 = vrot.lane.b32.xlu0 %v3943, 87
      %v4113 = vpop.permute.xlu0 %4112
      %4114 = vrot.lane.b32.xlu0 %v3944, 87
      %v4115 = vpop.permute.xlu0 %4114
      %4116 = vrot.lane.b32.xlu0 %v3945, 87
      %v4117 = vpop.permute.xlu0 %4116
      %4118 = vrot.lane.b32.xlu0 %v3947, 87
      %v4119 = vpop.permute.xlu0 %4118
      %4120 = vrot.lane.b32.xlu0 %v3949, 87
      %v4121 = vpop.permute.xlu0 %4120
      %4122 = vrot.lane.b32.xlu0 %v3951, 87
      %v4123 = vpop.permute.xlu0 %4122
      %4124 = vrot.lane.b32.xlu0 %v3953, 87
      %v4125 = vpop.permute.xlu0 %4124
      %v4126 = vsel %vm833, %v4111, %v4113
      %v4127 = vsel %vm833, %v4113, %v4115
      %v4128 = vsel %vm833, %v4115, %v4117
      %v4129 = vsel %vm833, %v4119, %v4121
      %v4130 = vsel %vm833, %v4121, %v4123
      %v4131 = vsel %vm833, %v4123, %v4125
      %4136 = vrot.lane.b32.xlu0 %v3917, 86
      %v4137 = vpop.permute.xlu0 %4136
      %4138 = vrot.lane.b32.xlu0 %v3918, 86
      %v4139 = vpop.permute.xlu0 %4138
      %4140 = vrot.lane.b32.xlu0 %v3919, 86
      %v4141 = vpop.permute.xlu0 %4140
      %4142 = vrot.lane.b32.xlu0 %v3920, 86
      %v4143 = vpop.permute.xlu0 %4142
      %4144 = vrot.lane.b32.xlu0 %v3921, 86
      %v4145 = vpop.permute.xlu0 %4144
      %4146 = vrot.lane.b32.xlu0 %v3922, 86
      %v4147 = vpop.permute.xlu0 %4146
      %4148 = vrot.lane.b32.xlu0 %v3923, 86
      %v4149 = vpop.permute.xlu0 %4148
      %4150 = vrot.lane.b32.xlu0 %v3924, 86
      %v4151 = vpop.permute.xlu0 %4150
      %v4152 = vsel %vm853, %v4137, %v4139
      %v4153 = vsel %vm853, %v4139, %v4141
      %v4154 = vsel %vm853, %v4141, %v4143
      %v4155 = vsel %vm853, %v4145, %v4147
      %v4156 = vsel %vm853, %v4147, %v4149
      %v4157 = vsel %vm853, %v4149, %v4151
      %v4158 = vsel %vm941, %v3921, %v3970
      %v4159 = vsel %vm941, %v3922, %v3971
      %v4160 = vsel %vm941, %v3923, %v3972
      %v4161 = vsel %vm941, %v3924, %v3961
      %v4162 = vsel %vm941, %v3999, %v4022
      %v4163 = vsel %vm941, %v4000, %v4023
      %v4164 = vsel %vm941, %v4001, %v4024
      %v4165 = vsel %vm941, %v3995, %v4013
      %v4166 = vsel %vm941, %v4051, %v4074
      %v4167 = vsel %vm941, %v4052, %v4075
      %v4168 = vsel %vm941, %v4053, %v4076
      %v4169 = vsel %vm941, %v4047, %v4065
      %v4170 = vsel %vm941, %v4103, %v4126
      %v4171 = vsel %vm941, %v4104, %v4127
      %v4172 = vsel %vm941, %v4105, %v4128
      %v4173 = vsel %vm941, %v4099, %v4117
      %4175 = vset.pattern.permute.xlu0 0
      %4176 = vperm.xlu0 %4175, %v3929
      %v4177 = vpop.permute.xlu0 %4176
      %4180 = vset.pattern.permute.xlu0 0
      %4181 = vperm.xlu0 %4180, %v3930
      %v4182 = vpop.permute.xlu0 %4181
      %4200 = vrot.lane.b32.xlu0 %v3917, 127
      %v4201 = vpop.permute.xlu0 %4200
      %4202 = vrot.lane.b32.xlu0 %v3918, 127
      %v4203 = vpop.permute.xlu0 %4202
      %4204 = vrot.lane.b32.xlu0 %v3919, 127
      %v4205 = vpop.permute.xlu0 %4204
      %4206 = vrot.lane.b32.xlu0 %v3920, 127
      %v4207 = vpop.permute.xlu0 %4206
      %4208 = vrot.lane.b32.xlu0 %v4158, 127
      %v4209 = vpop.permute.xlu0 %4208
      %4210 = vrot.lane.b32.xlu0 %v4159, 127
      %v4211 = vpop.permute.xlu0 %4210
      %4212 = vrot.lane.b32.xlu0 %v4160, 127
      %v4213 = vpop.permute.xlu0 %4212
      %4214 = vrot.lane.b32.xlu0 %v4161, 127
      %v4215 = vpop.permute.xlu0 %4214
      %4216 = vrot.lane.b32.xlu0 %v3973, 127
      %v4217 = vpop.permute.xlu0 %4216
      %4218 = vrot.lane.b32.xlu0 %v3974, 127
      %v4219 = vpop.permute.xlu0 %4218
      %4220 = vrot.lane.b32.xlu0 %v3975, 127
      %v4221 = vpop.permute.xlu0 %4220
      %4222 = vrot.lane.b32.xlu0 %v3969, 127
      %v4223 = vpop.permute.xlu0 %4222
      %4224 = vrot.lane.b32.xlu0 %v3996, 127
      %v4225 = vpop.permute.xlu0 %4224
      %4226 = vrot.lane.b32.xlu0 %v3997, 127
      %v4227 = vpop.permute.xlu0 %4226
      %4228 = vrot.lane.b32.xlu0 %v3998, 127
      %v4229 = vpop.permute.xlu0 %4228
      %4230 = vrot.lane.b32.xlu0 %v3987, 127
      %v4231 = vpop.permute.xlu0 %4230
      %4232 = vrot.lane.b32.xlu0 %v4162, 127
      %v4233 = vpop.permute.xlu0 %4232
      %4234 = vrot.lane.b32.xlu0 %v4163, 127
      %v4235 = vpop.permute.xlu0 %4234
      %4236 = vrot.lane.b32.xlu0 %v4164, 127
      %v4237 = vpop.permute.xlu0 %4236
      %4238 = vrot.lane.b32.xlu0 %v4165, 127
      %v4239 = vpop.permute.xlu0 %4238
      %4240 = vrot.lane.b32.xlu0 %v4025, 127
      %v4241 = vpop.permute.xlu0 %4240
      %4242 = vrot.lane.b32.xlu0 %v4026, 127
      %v4243 = vpop.permute.xlu0 %4242
      %4244 = vrot.lane.b32.xlu0 %v4027, 127
      %v4245 = vpop.permute.xlu0 %4244
      %4246 = vrot.lane.b32.xlu0 %v4021, 127
      %v4247 = vpop.permute.xlu0 %4246
      %4248 = vrot.lane.b32.xlu0 %v4048, 127
      %v4249 = vpop.permute.xlu0 %4248
      %4250 = vrot.lane.b32.xlu0 %v4049, 127
      %v4251 = vpop.permute.xlu0 %4250
      %4252 = vrot.lane.b32.xlu0 %v4050, 127
      %v4253 = vpop.permute.xlu0 %4252
      %4254 = vrot.lane.b32.xlu0 %v4039, 127
      %v4255 = vpop.permute.xlu0 %4254
      %4256 = vrot.lane.b32.xlu0 %v4166, 127
      %v4257 = vpop.permute.xlu0 %4256
      %4258 = vrot.lane.b32.xlu0 %v4167, 127
      %v4259 = vpop.permute.xlu0 %4258
      %4260 = vrot.lane.b32.xlu0 %v4168, 127
      %v4261 = vpop.permute.xlu0 %4260
      %4262 = vrot.lane.b32.xlu0 %v4169, 127
      %v4263 = vpop.permute.xlu0 %4262
      %4264 = vrot.lane.b32.xlu0 %v4077, 127
      %v4265 = vpop.permute.xlu0 %4264
      %4266 = vrot.lane.b32.xlu0 %v4078, 127
      %v4267 = vpop.permute.xlu0 %4266
      %4268 = vrot.lane.b32.xlu0 %v4079, 127
      %v4269 = vpop.permute.xlu0 %4268
      %4270 = vrot.lane.b32.xlu0 %v4073, 127
      %v4271 = vpop.permute.xlu0 %4270
      %4272 = vrot.lane.b32.xlu0 %v4100, 127
      %v4273 = vpop.permute.xlu0 %4272
      %4274 = vrot.lane.b32.xlu0 %v4101, 127
      %v4275 = vpop.permute.xlu0 %4274
      %4276 = vrot.lane.b32.xlu0 %v4102, 127
      %v4277 = vpop.permute.xlu0 %4276
      %4278 = vrot.lane.b32.xlu0 %v4091, 127
      %v4279 = vpop.permute.xlu0 %4278
      %4280 = vrot.lane.b32.xlu0 %v4170, 127
      %v4281 = vpop.permute.xlu0 %4280
      %4282 = vrot.lane.b32.xlu0 %v4171, 127
      %v4283 = vpop.permute.xlu0 %4282
      %4284 = vrot.lane.b32.xlu0 %v4172, 127
      %v4285 = vpop.permute.xlu0 %4284
      %4286 = vrot.lane.b32.xlu0 %v4173, 127
      %v4287 = vpop.permute.xlu0 %4286
      %4288 = vrot.lane.b32.xlu0 %v4129, 127
      %v4289 = vpop.permute.xlu0 %4288
      %4290 = vrot.lane.b32.xlu0 %v4130, 127
      %v4291 = vpop.permute.xlu0 %4290
      %4292 = vrot.lane.b32.xlu0 %v4131, 127
      %v4293 = vpop.permute.xlu0 %4292
      %4294 = vrot.lane.b32.xlu0 %v4125, 127
      %v4295 = vpop.permute.xlu0 %4294
      %4296 = vrot.lane.b32.xlu0 %v4152, 127
      %v4297 = vpop.permute.xlu0 %4296
      %4298 = vrot.lane.b32.xlu0 %v4153, 127
      %v4299 = vpop.permute.xlu0 %4298
      %4300 = vrot.lane.b32.xlu0 %v4154, 127
      %v4301 = vpop.permute.xlu0 %4300
      %4302 = vrot.lane.b32.xlu0 %v4143, 127
      %v4303 = vpop.permute.xlu0 %4302
      %4304 = vrot.lane.b32.xlu0 %v4155, 127
      %v4305 = vpop.permute.xlu0 %4304
      %4306 = vrot.lane.b32.xlu0 %v4156, 127
      %v4307 = vpop.permute.xlu0 %4306
      %4308 = vrot.lane.b32.xlu0 %v4157, 127
      %v4309 = vpop.permute.xlu0 %4308
      %4310 = vrot.lane.b32.xlu0 %v4151, 127
      %v4311 = vpop.permute.xlu0 %4310
      %v4312 = vsel %vm605, %v4201, %v4203
      %v4313 = vsel %vm605, %v4203, %v4205
      %v4314 = vsel %vm605, %v4205, %v4207
      %v4315 = vsel %vm605, %v4209, %v4211
      %v4316 = vsel %vm605, %v4211, %v4213
      %v4317 = vsel %vm605, %v4213, %v4215
      %v4318 = vsel %vm605, %v4217, %v4219
      %v4319 = vsel %vm605, %v4219, %v4221
      %v4320 = vsel %vm605, %v4221, %v4223
      %v4321 = vsel %vm605, %v4225, %v4227
      %v4322 = vsel %vm605, %v4227, %v4229
      %v4323 = vsel %vm605, %v4229, %v4231
      %v4324 = vsel %vm605, %v4233, %v4235
      %v4325 = vsel %vm605, %v4235, %v4237
      %v4326 = vsel %vm605, %v4237, %v4239
      %v4327 = vsel %vm605, %v4241, %v4243
      %v4328 = vsel %vm605, %v4243, %v4245
      %v4329 = vsel %vm605, %v4245, %v4247
      %v4330 = vsel %vm605, %v4249, %v4251
      %v4331 = vsel %vm605, %v4251, %v4253
      %v4332 = vsel %vm605, %v4253, %v4255
      %v4333 = vsel %vm605, %v4257, %v4259
      %v4334 = vsel %vm605, %v4259, %v4261
      %v4335 = vsel %vm605, %v4261, %v4263
      %v4336 = vsel %vm605, %v4265, %v4267
      %v4337 = vsel %vm605, %v4267, %v4269
      %v4338 = vsel %vm605, %v4269, %v4271
      %v4339 = vsel %vm605, %v4273, %v4275
      %v4340 = vsel %vm605, %v4275, %v4277
      %v4341 = vsel %vm605, %v4277, %v4279
      %v4342 = vsel %vm605, %v4281, %v4283
      %v4343 = vsel %vm605, %v4283, %v4285
      %v4344 = vsel %vm605, %v4285, %v4287
      %v4345 = vsel %vm605, %v4289, %v4291
      %v4346 = vsel %vm605, %v4291, %v4293
      %v4347 = vsel %vm605, %v4293, %v4295
      %v4348 = vsel %vm605, %v4297, %v4299
      %v4349 = vsel %vm605, %v4299, %v4301
      %v4350 = vsel %vm605, %v4301, %v4303
      %v4351 = vsel %vm605, %v4305, %v4307
      %v4352 = vsel %vm605, %v4307, %v4309
      %v4353 = vsel %vm605, %v4309, %v4311
      %v4407 = vsel %vm703, %v3926, 0
      %v4410 = vsel %vm703, %v3927, 0
      %v4412 = vsel %vm941, %v4351, 0
      %v4414 = vsel %vm941, %v4352, 0
      %v4416 = vsel %vm941, %v4353, 0
      %v4418 = vsel %vm941, %v4311, 0
      %4420 = vmatprep.subr.mxu0 0.0
      %4421 = vmatpush1.msra.mxu0 0.0
      %4422 = vmatprep.subr.mxu0 0.0
      %4423 = vmatpush1.msra.mxu0 0.0
      %4424 = vmatprep.subr.mxu0 %v4414
      %4425 = vmatpush1.msra.mxu0 %v4412
      %4426 = vmatprep.subr.mxu0 %v4349
      %4427 = vmatpush1.msra.mxu0 %v4348
      %4428 = vmatprep.subr.mxu0 %v4346
      %4429 = vmatpush1.msra.mxu0 %v4345
      %4430 = vmatprep.subr.mxu0 %v4343
      %4431 = vmatpush1.msra.mxu0 %v4342
      %4432 = vmatprep.subr.mxu0 %v4340
      %4433 = vmatpush1.msra.mxu0 %v4339
      %4434 = vmatprep.subr.mxu0 %v4337
      %4435 = vmatpush1.msra.mxu0 %v4336
      %4436 = vmatprep.subr.mxu0 %v4334
      %4437 = vmatpush1.msra.mxu0 %v4333
      %4438 = vmatprep.subr.mxu0 %v4331
      %4439 = vmatpush1.msra.mxu0 %v4330
      %4440 = vmatprep.subr.mxu0 %v4328
      %4441 = vmatpush1.msra.mxu0 %v4327
      %4442 = vmatprep.subr.mxu0 %v4325
      %4443 = vmatpush1.msra.mxu0 %v4324
      %4444 = vmatprep.subr.mxu0 %v4322
      %4445 = vmatpush1.msra.mxu0 %v4321
      %4446 = vmatprep.subr.mxu0 %v4319
      %4447 = vmatpush1.msra.mxu0 %v4318
      %4448 = vmatprep.subr.mxu0 %v4316
      %4449 = vmatpush1.msra.mxu0 %v4315
      %4450 = vmatprep.subr.mxu0 %v4313
      %4451 = vmatpush1.msra.mxu0 %v4312
      %4452 = vmatprep.subr.mxu0 0.0
      %4453 = vmatpush2.msra.mxu0 0.0
      %4454 = vmatprep.subr.mxu0 0.0
      %4455 = vmatpush2.msra.mxu0 0.0
      %4456 = vmatprep.subr.mxu0 0.0
      %4457 = vmatpush2.msra.mxu0 0.0
      %4458 = vmatprep.subr.mxu0 0.0
      %4459 = vmatpush2.msra.mxu0 0.0
      %4460 = vmatprep.subr.mxu0 0.0
      %4461 = vmatpush2.msra.mxu0 0.0
      %4462 = vmatprep.subr.mxu0 0.0
      %4463 = vmatpush2.msra.mxu0 0.0
      %4464 = vmatprep.subr.mxu0 0.0
      %4465 = vmatpush2.msra.mxu0 0.0
      %4466 = vmatprep.subr.mxu0 0.0
      %4467 = vmatpush2.msra.mxu0 0.0
      %4468 = vmatprep.subr.mxu0 0.0
      %4469 = vmatpush2.msra.mxu0 0.0
      %4470 = vmatprep.subr.mxu0 0.0
      %4471 = vmatpush2.msra.mxu0 0.0
      %4472 = vmatprep.subr.mxu0 0.0
      %4473 = vmatpush2.msra.mxu0 0.0
      %4474 = vmatprep.subr.mxu0 0.0
      %4475 = vmatpush2.msra.mxu0 0.0
      %4476 = vmatprep.subr.mxu0 0.0
      %4477 = vmatpush2.msra.mxu0 0.0
      %4478 = vmatprep.subr.mxu0 0.0
      %4479 = vmatpush2.msra.mxu0 0.0
      %4480 = vmatprep.subr.mxu0 0.0
      %4481 = vmatpush2.msra.mxu0 0.0
      %4482 = vmatprep.subr.mxu0 0.0
      %4483 = vmatpush2.msra.mxu0 0.0
      %4484 = vmatprep.mubr.f32.mxu0 0.0
      %4485 = vmatmul.mubr.f32.gmra.mxu0 %v4407
      %v4486 = vpop.f32.mrf.mxu0
      %v4487 = vadd.f32 %v4177, %v4486
      %v4488 = vpop.f32.mrf.mxu0
      %v4489 = vadd.f32 %v4177, %v4488
      %4490 = vmatprep.mubr.f32.mxu0 0.0
      %4491 = vmatmul.mubr.f32.gmra.mxu0 %v4410
      %v4492 = vpop.f32.mrf.mxu0
      %v4493 = vadd.f32 %v4182, %v4492
      %v4494 = vpop.f32.mrf.mxu0
      %v4495 = vadd.f32 %v4182, %v4494
      %4496 = vdwg.mxu0
      %4497 = vmatprep.subr.mxu0 0.0
      %4498 = vmatpush1.msra.mxu0 0.0
      %4499 = vmatprep.subr.mxu0 0.0
      %4500 = vmatpush1.msra.mxu0 0.0
      %4501 = vmatprep.subr.mxu0 %v4418
      %4502 = vmatpush1.msra.mxu0 %v4416
      %4503 = vmatprep.subr.mxu0 %v4303
      %4504 = vmatpush1.msra.mxu0 %v4350
      %4505 = vmatprep.subr.mxu0 %v4295
      %4506 = vmatpush1.msra.mxu0 %v4347
      %4507 = vmatprep.subr.mxu0 %v4287
      %4508 = vmatpush1.msra.mxu0 %v4344
      %4509 = vmatprep.subr.mxu0 %v4279
      %4510 = vmatpush1.msra.mxu0 %v4341
      %4511 = vmatprep.subr.mxu0 %v4271
      %4512 = vmatpush1.msra.mxu0 %v4338
      %4513 = vmatprep.subr.mxu0 %v4263
      %4514 = vmatpush1.msra.mxu0 %v4335
      %4515 = vmatprep.subr.mxu0 %v4255
      %4516 = vmatpush1.msra.mxu0 %v4332
      %4517 = vmatprep.subr.mxu0 %v4247
      %4518 = vmatpush1.msra.mxu0 %v4329
      %4519 = vmatprep.subr.mxu0 %v4239
      %4520 = vmatpush1.msra.mxu0 %v4326
      %4521 = vmatprep.subr.mxu0 %v4231
      %4522 = vmatpush1.msra.mxu0 %v4323
      %4523 = vmatprep.subr.mxu0 %v4223
      %4524 = vmatpush1.msra.mxu0 %v4320
      %4525 = vmatprep.subr.mxu0 %v4215
      %4526 = vmatpush1.msra.mxu0 %v4317
      %4527 = vmatprep.subr.mxu0 %v4207
      %4528 = vmatpush1.msra.mxu0 %v4314
      %4529 = vmatprep.subr.mxu0 0.0
      %4530 = vmatpush2.msra.mxu0 0.0
      %4531 = vmatprep.subr.mxu0 0.0
      %4532 = vmatpush2.msra.mxu0 0.0
      %4533 = vmatprep.subr.mxu0 0.0
      %4534 = vmatpush2.msra.mxu0 0.0
      %4535 = vmatprep.subr.mxu0 0.0
      %4536 = vmatpush2.msra.mxu0 0.0
      %4537 = vmatprep.subr.mxu0 0.0
      %4538 = vmatpush2.msra.mxu0 0.0
      %4539 = vmatprep.subr.mxu0 0.0
      %4540 = vmatpush2.msra.mxu0 0.0
      %4541 = vmatprep.subr.mxu0 0.0
      %4542 = vmatpush2.msra.mxu0 0.0
      %4543 = vmatprep.subr.mxu0 0.0
      %4544 = vmatpush2.msra.mxu0 0.0
      %4545 = vmatprep.subr.mxu0 0.0
      %4546 = vmatpush2.msra.mxu0 0.0
      %4547 = vmatprep.subr.mxu0 0.0
      %4548 = vmatpush2.msra.mxu0 0.0
      %4549 = vmatprep.subr.mxu0 0.0
      %4550 = vmatpush2.msra.mxu0 0.0
      %4551 = vmatprep.subr.mxu0 0.0
      %4552 = vmatpush2.msra.mxu0 0.0
      %4553 = vmatprep.subr.mxu0 0.0
      %4554 = vmatpush2.msra.mxu0 0.0
      %4555 = vmatprep.subr.mxu0 0.0
      %4556 = vmatpush2.msra.mxu0 0.0
      %4557 = vmatprep.subr.mxu0 0.0
      %4558 = vmatpush2.msra.mxu0 0.0
      %4559 = vmatprep.subr.mxu0 0.0
      %4560 = vmatpush2.msra.mxu0 0.0
      %4561 = vmatprep.mubr.f32.mxu0 0.0
      %4562 = vmatmul.mubr.f32.gmra.mxu0 %v4407
      %v4563 = vpop.f32.mrf.mxu0
      %v4564 = vadd.f32 %v4177, %v4563
      %v4565 = vpop.f32.mrf.mxu0
      %v4566 = vadd.f32 %v4177, %v4565
      %4567 = vmatprep.mubr.f32.mxu0 0.0
      %4568 = vmatmul.mubr.f32.gmra.mxu0 %v4410
      %v4569 = vpop.f32.mrf.mxu0
      %v4570 = vadd.f32 %v4182, %v4569
      %v4571 = vpop.f32.mrf.mxu0
      %v4572 = vadd.f32 %v4182, %v4571
      %4573 = vdwg.mxu0
      %vm4574 = vcmp.gt.f32.partialorder %v4487, 0.0
      %vm4575 = vcmp.gt.f32.partialorder %v4489, 0.0
      %vm4576 = vcmp.gt.f32.partialorder %v4564, 0.0
      %vm4577 = vcmp.gt.f32.partialorder %v4566, 0.0
      %vm4578 = vcmp.gt.f32.partialorder %v4493, 0.0
      %vm4579 = vcmp.gt.f32.partialorder %v4495, 0.0
      %vm4580 = vcmp.gt.f32.partialorder %v4570, 0.0
      %vm4581 = vcmp.gt.f32.partialorder %v4572, 0.0
      %4583 = vset.pattern.permute.xlu0 0
      %4584 = vperm.xlu0 %4583, %v3932
      %v4585 = vpop.permute.xlu0 %4584
      %4588 = vset.pattern.permute.xlu0 0
      %4589 = vperm.xlu0 %4588, %v3933
      %v4590 = vpop.permute.xlu0 %4589
      %v4592 = vmul.f32 %v4487, %v4585
      %v4593 = vmul.f32 %v4489, %v4585
      %v4594 = vmul.f32 %v4564, %v4585
      %v4595 = vmul.f32 %v4566, %v4585
      %v4596 = vmul.f32 %v4493, %v4590
      %v4597 = vmul.f32 %v4495, %v4590
      %v4598 = vmul.f32 %v4570, %v4590
      %v4599 = vmul.f32 %v4572, %v4590
      %v4600 = vsel %vm4574, %v4487, %v4592
      %v4601 = vsel %vm4575, %v4489, %v4593
      %v4602 = vsel %vm4576, %v4564, %v4594
      %v4603 = vsel %vm4577, %v4566, %v4595
      %v4604 = vsel %vm4578, %v4493, %v4596
      %v4605 = vsel %vm4579, %v4495, %v4597
      %v4606 = vsel %vm4580, %v4570, %v4598
      %v4607 = vsel %vm4581, %v4572, %v4599
      %s4608 = ssub.s32 3, %s1951
      %p4609 = scmp.gt.s32.totalorder %s4608, 0
      %s4610 = scalar_select %p4609, %s4608, 0
      %s4611 = smul.u32 %s4610, 20
      %s4612 = ssub.s32 19, %s1951
      %p4613 = scmp.lt.s32.totalorder %s4612, 22
      %s4614 = scalar_select %p4613, %s4612, 22
      %s4615 = smul.u32 %s4614, 20
      %v4616 = vstv %s4611
      %vm4617 = vcmp.ge.s32.totalorder %v1961, %v4616
      %vm4618 = vcmp.ge.s32.totalorder %v1962, %v4616
      %vm4619 = vcmp.ge.s32.totalorder %v1963, %v4616
      %vm4620 = vcmp.ge.s32.totalorder %v1964, %v4616
      %v4621 = vstv %s4615
      %vm4622 = vcmp.lt.s32.totalorder %v1961, %v4621
      %vm4623 = vcmp.lt.s32.totalorder %v1962, %v4621
      %vm4624 = vcmp.lt.s32.totalorder %v1963, %v4621
      %vm4625 = vcmp.lt.s32.totalorder %v1964, %v4621
      %vm4626 = vmand %vm4617, %vm4622
      %vm4627 = vmand %vm4618, %vm4623
      %vm4628 = vmand %vm4619, %vm4624
      %vm4629 = vmand %vm4620, %vm4625
      %v4630 = vsel %vm4626, %v4600, 0.0
      %v4631 = vsel %vm4627, %v4601, 0.0
      %v4632 = vsel %vm4628, %v4602, 0.0
      %v4633 = vsel %vm4629, %v4603, 0.0
      %v4634 = vsel %vm4626, %v4604, 0.0
      %v4635 = vsel %vm4627, %v4605, 0.0
      %v4636 = vsel %vm4628, %v4606, 0.0
      %v4637 = vsel %vm4629, %v4607, 0.0
      %v4638 = vmul.f32 %v4630, %v1997
      %v4639 = vmul.f32 %v4631, %v2001
      %v4640 = vmul.f32 %v4632, %v2005
      %v4641 = vmul.f32 %v4633, %v2009
      %v4642 = vmul.f32 %v4634, %v1997
      %v4643 = vmul.f32 %v4635, %v2001
      %v4644 = vmul.f32 %v4636, %v2005
      %v4645 = vmul.f32 %v4637, %v2009
      %4654 = vrot.lane.b32.xlu0 %v4638, 2
      %v4655 = vpop.permute.xlu0 %4654
      %4656 = vrot.lane.b32.xlu0 %v4639, 2
      %v4657 = vpop.permute.xlu0 %4656
      %4658 = vrot.lane.b32.xlu0 %v4640, 2
      %v4659 = vpop.permute.xlu0 %4658
      %4660 = vrot.lane.b32.xlu0 %v4641, 2
      %v4661 = vpop.permute.xlu0 %4660
      %4662 = vrot.lane.b32.xlu0 %v4642, 2
      %v4663 = vpop.permute.xlu0 %4662
      %4664 = vrot.lane.b32.xlu0 %v4643, 2
      %v4665 = vpop.permute.xlu0 %4664
      %4666 = vrot.lane.b32.xlu0 %v4644, 2
      %v4667 = vpop.permute.xlu0 %4666
      %4668 = vrot.lane.b32.xlu0 %v4645, 2
      %v4669 = vpop.permute.xlu0 %4668
      %v4670 = vsel %vm2081, %v4655, %v4657
      %v4671 = vsel %vm2081, %v4657, %v4659
      %v4672 = vsel %vm2081, %v4659, %v4661
      %v4673 = vsel %vm2081, %v4663, %v4665
      %v4674 = vsel %vm2081, %v4665, %v4667
      %v4675 = vsel %vm2081, %v4667, %v4669
      %4684 = vst.msk [vmem:[#allocation3] sm:$0xff] %vm2100, %v4655
      %4685 = vst [vmem:[#allocation3 + $0x8] sm:$0xff] %v4670
      %4686 = vst [vmem:[#allocation3 + $0x10] sm:$0xff] %v4671
      %vm4687 = vcmask 474112
      %4688 = vst.msk [vmem:[#allocation3 + $0x18] sm:$0xff] %vm4687, %v4672
      %4689 = vst.msk [vmem:[#allocation3 + $0x28] sm:$0xf] %vm2107, %v4663
      %4690 = vst [vmem:[#allocation3 + $0x30] sm:$0xf] %v4673
      %4691 = vst [vmem:[#allocation3 + $0x38] sm:$0xf] %v4674
      %vm4692 = vcmask 470016
      %4693 = vst.msk [vmem:[#allocation3 + $0x40] sm:$0xf] %vm4692, %v4675
      %v4694 = vld [vmem:[#allocation3] sm:$0xff]
      %v4695 = vld [vmem:[#allocation3 + $0x8] sm:$0xff]
      %v4696 = vld [vmem:[#allocation3 + $0x10] sm:$0xff]
      %v4697 = vld [vmem:[#allocation3 + $0x18] sm:$0xff]
      %v4698 = vld [vmem:[#allocation3 + $0x28] sm:$0xf]
      %v4699 = vld [vmem:[#allocation3 + $0x30] sm:$0xf]
      %v4700 = vld [vmem:[#allocation3 + $0x38] sm:$0xf]
      %v4701 = vld [vmem:[#allocation3 + $0x40] sm:$0xf]
      %s4702 = scalar_lea.vmem %s8, 48
      %v4703 = vld [vmem:[%s4702] sm:$0xff]
      %v4704 = vld [vmem:[%s4702 + $0x8] sm:$0xf]
      %s4705 = scalar_lea.vmem %s9, 48
      %v4706 = vld [vmem:[%s4705] sm:$0xff]
      %v4707 = vld [vmem:[%s4705 + $0x8] sm:$0xf]
      %s4708 = scalar_lea.vmem %s10, 48
      %v4709 = vld [vmem:[%s4708] sm:$0xff]
      %v4710 = vld [vmem:[%s4708 + $0x8] sm:$0xf]
      %v4719 = vrot.slane %v4694, 4
      %v4720 = vrot.slane %v4695, 4
      %v4721 = vrot.slane %v4696, 4
      %v4722 = vrot.slane %v4697, 4
      %v4723 = vrot.slane %v4698, 4
      %v4724 = vsel %vm941, %v4719, %v4723
      %v4725 = vrot.slane %v4699, 4
      %v4726 = vsel %vm941, %v4720, %v4725
      %v4727 = vrot.slane %v4700, 4
      %v4728 = vsel %vm941, %v4721, %v4727
      %v4729 = vrot.slane %v4701, 4
      %v4730 = vsel %vm941, %v4722, %v4729
      %4731 = vrot.lane.b32.xlu0 %v4719, 127
      %v4732 = vpop.permute.xlu0 %4731
      %4733 = vrot.lane.b32.xlu0 %v4720, 127
      %v4734 = vpop.permute.xlu0 %4733
      %4735 = vrot.lane.b32.xlu0 %v4721, 127
      %v4736 = vpop.permute.xlu0 %4735
      %4737 = vrot.lane.b32.xlu0 %v4722, 127
      %v4738 = vpop.permute.xlu0 %4737
      %4739 = vrot.lane.b32.xlu0 %v4724, 127
      %v4740 = vpop.permute.xlu0 %4739
      %4741 = vrot.lane.b32.xlu0 %v4726, 127
      %v4742 = vpop.permute.xlu0 %4741
      %4743 = vrot.lane.b32.xlu0 %v4728, 127
      %v4744 = vpop.permute.xlu0 %4743
      %4745 = vrot.lane.b32.xlu0 %v4730, 127
      %v4746 = vpop.permute.xlu0 %4745
      %v4747 = vsel %vm605, %v4732, %v4734
      %v4748 = vsel %vm605, %v4734, %v4736
      %v4749 = vsel %vm605, %v4736, %v4738
      %v4750 = vsel %vm605, %v4740, %v4742
      %v4751 = vsel %vm605, %v4742, %v4744
      %v4752 = vsel %vm605, %v4744, %v4746
      %4757 = vrot.lane.b32.xlu0 %v4694, 126
      %v4758 = vpop.permute.xlu0 %4757
      %4759 = vrot.lane.b32.xlu0 %v4695, 126
      %v4760 = vpop.permute.xlu0 %4759
      %4761 = vrot.lane.b32.xlu0 %v4696, 126
      %v4762 = vpop.permute.xlu0 %4761
      %4763 = vrot.lane.b32.xlu0 %v4697, 126
      %v4764 = vpop.permute.xlu0 %4763
      %4765 = vrot.lane.b32.xlu0 %v4698, 126
      %v4766 = vpop.permute.xlu0 %4765
      %4767 = vrot.lane.b32.xlu0 %v4699, 126
      %v4768 = vpop.permute.xlu0 %4767
      %4769 = vrot.lane.b32.xlu0 %v4700, 126
      %v4770 = vpop.permute.xlu0 %4769
      %4771 = vrot.lane.b32.xlu0 %v4701, 126
      %v4772 = vpop.permute.xlu0 %4771
      %v4773 = vsel %vm630, %v4758, %v4760
      %v4774 = vsel %vm630, %v4760, %v4762
      %v4775 = vsel %vm630, %v4762, %v4764
      %v4776 = vsel %vm630, %v4766, %v4768
      %v4777 = vsel %vm630, %v4768, %v4770
      %v4778 = vsel %vm630, %v4770, %v4772
      %4783 = vrot.lane.b32.xlu0 %v4719, 108
      %v4784 = vpop.permute.xlu0 %4783
      %4785 = vrot.lane.b32.xlu0 %v4720, 108
      %v4786 = vpop.permute.xlu0 %4785
      %4787 = vrot.lane.b32.xlu0 %v4721, 108
      %v4788 = vpop.permute.xlu0 %4787
      %4789 = vrot.lane.b32.xlu0 %v4722, 108
      %v4790 = vpop.permute.xlu0 %4789
      %4791 = vrot.lane.b32.xlu0 %v4724, 108
      %v4792 = vpop.permute.xlu0 %4791
      %4793 = vrot.lane.b32.xlu0 %v4726, 108
      %v4794 = vpop.permute.xlu0 %4793
      %4795 = vrot.lane.b32.xlu0 %v4728, 108
      %v4796 = vpop.permute.xlu0 %4795
      %4797 = vrot.lane.b32.xlu0 %v4730, 108
      %v4798 = vpop.permute.xlu0 %4797
      %v4799 = vsel %vm703, %v4784, %v4786
      %v4800 = vsel %vm703, %v4786, %v4788
      %v4801 = vsel %vm703, %v4788, %v4790
      %v4802 = vsel %vm703, %v4792, %v4794
      %v4803 = vsel %vm703, %v4794, %v4796
      %v4804 = vsel %vm703, %v4796, %v4798
      %4809 = vrot.lane.b32.xlu0 %v4694, 107
      %v4810 = vpop.permute.xlu0 %4809
      %4811 = vrot.lane.b32.xlu0 %v4695, 107
      %v4812 = vpop.permute.xlu0 %4811
      %4813 = vrot.lane.b32.xlu0 %v4696, 107
      %v4814 = vpop.permute.xlu0 %4813
      %4815 = vrot.lane.b32.xlu0 %v4697, 107
      %v4816 = vpop.permute.xlu0 %4815
      %4817 = vrot.lane.b32.xlu0 %v4698, 107
      %v4818 = vpop.permute.xlu0 %4817
      %4819 = vrot.lane.b32.xlu0 %v4699, 107
      %v4820 = vpop.permute.xlu0 %4819
      %4821 = vrot.lane.b32.xlu0 %v4700, 107
      %v4822 = vpop.permute.xlu0 %4821
      %4823 = vrot.lane.b32.xlu0 %v4701, 107
      %v4824 = vpop.permute.xlu0 %4823
      %v4825 = vsel %vm728, %v4810, %v4812
      %v4826 = vsel %vm728, %v4812, %v4814
      %v4827 = vsel %vm728, %v4814, %v4816
      %v4828 = vsel %vm728, %v4818, %v4820
      %v4829 = vsel %vm728, %v4820, %v4822
      %v4830 = vsel %vm728, %v4822, %v4824
      %4835 = vrot.lane.b32.xlu0 %v4719, 106
      %v4836 = vpop.permute.xlu0 %4835
      %4837 = vrot.lane.b32.xlu0 %v4720, 106
      %v4838 = vpop.permute.xlu0 %4837
      %4839 = vrot.lane.b32.xlu0 %v4721, 106
      %v4840 = vpop.permute.xlu0 %4839
      %4841 = vrot.lane.b32.xlu0 %v4722, 106
      %v4842 = vpop.permute.xlu0 %4841
      %4843 = vrot.lane.b32.xlu0 %v4724, 106
      %v4844 = vpop.permute.xlu0 %4843
      %4845 = vrot.lane.b32.xlu0 %v4726, 106
      %v4846 = vpop.permute.xlu0 %4845
      %4847 = vrot.lane.b32.xlu0 %v4728, 106
      %v4848 = vpop.permute.xlu0 %4847
      %4849 = vrot.lane.b32.xlu0 %v4730, 106
      %v4850 = vpop.permute.xlu0 %4849
      %v4851 = vsel %vm753, %v4836, %v4838
      %v4852 = vsel %vm753, %v4838, %v4840
      %v4853 = vsel %vm753, %v4840, %v4842
      %v4854 = vsel %vm753, %v4844, %v4846
      %v4855 = vsel %vm753, %v4846, %v4848
      %v4856 = vsel %vm753, %v4848, %v4850
      %4861 = vrot.lane.b32.xlu0 %v4694, 88
      %v4862 = vpop.permute.xlu0 %4861
      %4863 = vrot.lane.b32.xlu0 %v4695, 88
      %v4864 = vpop.permute.xlu0 %4863
      %4865 = vrot.lane.b32.xlu0 %v4696, 88
      %v4866 = vpop.permute.xlu0 %4865
      %4867 = vrot.lane.b32.xlu0 %v4697, 88
      %v4868 = vpop.permute.xlu0 %4867
      %4869 = vrot.lane.b32.xlu0 %v4698, 88
      %v4870 = vpop.permute.xlu0 %4869
      %4871 = vrot.lane.b32.xlu0 %v4699, 88
      %v4872 = vpop.permute.xlu0 %4871
      %4873 = vrot.lane.b32.xlu0 %v4700, 88
      %v4874 = vpop.permute.xlu0 %4873
      %4875 = vrot.lane.b32.xlu0 %v4701, 88
      %v4876 = vpop.permute.xlu0 %4875
      %v4877 = vsel %vm813, %v4862, %v4864
      %v4878 = vsel %vm813, %v4864, %v4866
      %v4879 = vsel %vm813, %v4866, %v4868
      %v4880 = vsel %vm813, %v4870, %v4872
      %v4881 = vsel %vm813, %v4872, %v4874
      %v4882 = vsel %vm813, %v4874, %v4876
      %4887 = vrot.lane.b32.xlu0 %v4719, 87
      %v4888 = vpop.permute.xlu0 %4887
      %4889 = vrot.lane.b32.xlu0 %v4720, 87
      %v4890 = vpop.permute.xlu0 %4889
      %4891 = vrot.lane.b32.xlu0 %v4721, 87
      %v4892 = vpop.permute.xlu0 %4891
      %4893 = vrot.lane.b32.xlu0 %v4722, 87
      %v4894 = vpop.permute.xlu0 %4893
      %4895 = vrot.lane.b32.xlu0 %v4724, 87
      %v4896 = vpop.permute.xlu0 %4895
      %4897 = vrot.lane.b32.xlu0 %v4726, 87
      %v4898 = vpop.permute.xlu0 %4897
      %4899 = vrot.lane.b32.xlu0 %v4728, 87
      %v4900 = vpop.permute.xlu0 %4899
      %4901 = vrot.lane.b32.xlu0 %v4730, 87
      %v4902 = vpop.permute.xlu0 %4901
      %v4903 = vsel %vm833, %v4888, %v4890
      %v4904 = vsel %vm833, %v4890, %v4892
      %v4905 = vsel %vm833, %v4892, %v4894
      %v4906 = vsel %vm833, %v4896, %v4898
      %v4907 = vsel %vm833, %v4898, %v4900
      %v4908 = vsel %vm833, %v4900, %v4902
      %4913 = vrot.lane.b32.xlu0 %v4694, 86
      %v4914 = vpop.permute.xlu0 %4913
      %4915 = vrot.lane.b32.xlu0 %v4695, 86
      %v4916 = vpop.permute.xlu0 %4915
      %4917 = vrot.lane.b32.xlu0 %v4696, 86
      %v4918 = vpop.permute.xlu0 %4917
      %4919 = vrot.lane.b32.xlu0 %v4697, 86
      %v4920 = vpop.permute.xlu0 %4919
      %4921 = vrot.lane.b32.xlu0 %v4698, 86
      %v4922 = vpop.permute.xlu0 %4921
      %4923 = vrot.lane.b32.xlu0 %v4699, 86
      %v4924 = vpop.permute.xlu0 %4923
      %4925 = vrot.lane.b32.xlu0 %v4700, 86
      %v4926 = vpop.permute.xlu0 %4925
      %4927 = vrot.lane.b32.xlu0 %v4701, 86
      %v4928 = vpop.permute.xlu0 %4927
      %v4929 = vsel %vm853, %v4914, %v4916
      %v4930 = vsel %vm853, %v4916, %v4918
      %v4931 = vsel %vm853, %v4918, %v4920
      %v4932 = vsel %vm853, %v4922, %v4924
      %v4933 = vsel %vm853, %v4924, %v4926
      %v4934 = vsel %vm853, %v4926, %v4928
      %v4935 = vsel %vm941, %v4698, %v4747
      %v4936 = vsel %vm941, %v4699, %v4748
      %v4937 = vsel %vm941, %v4700, %v4749
      %v4938 = vsel %vm941, %v4701, %v4738
      %v4939 = vsel %vm941, %v4776, %v4799
      %v4940 = vsel %vm941, %v4777, %v4800
      %v4941 = vsel %vm941, %v4778, %v4801
      %v4942 = vsel %vm941, %v4772, %v4790
      %v4943 = vsel %vm941, %v4828, %v4851
      %v4944 = vsel %vm941, %v4829, %v4852
      %v4945 = vsel %vm941, %v4830, %v4853
      %v4946 = vsel %vm941, %v4824, %v4842
      %v4947 = vsel %vm941, %v4880, %v4903
      %v4948 = vsel %vm941, %v4881, %v4904
      %v4949 = vsel %vm941, %v4882, %v4905
      %v4950 = vsel %vm941, %v4876, %v4894
      %4952 = vset.pattern.permute.xlu0 0
      %4953 = vperm.xlu0 %4952, %v4706
      %v4954 = vpop.permute.xlu0 %4953
      %4957 = vset.pattern.permute.xlu0 0
      %4958 = vperm.xlu0 %4957, %v4707
      %v4959 = vpop.permute.xlu0 %4958
      %4977 = vrot.lane.b32.xlu0 %v4694, 127
      %v4978 = vpop.permute.xlu0 %4977
      %4979 = vrot.lane.b32.xlu0 %v4695, 127
      %v4980 = vpop.permute.xlu0 %4979
      %4981 = vrot.lane.b32.xlu0 %v4696, 127
      %v4982 = vpop.permute.xlu0 %4981
      %4983 = vrot.lane.b32.xlu0 %v4697, 127
      %v4984 = vpop.permute.xlu0 %4983
      %4985 = vrot.lane.b32.xlu0 %v4935, 127
      %v4986 = vpop.permute.xlu0 %4985
      %4987 = vrot.lane.b32.xlu0 %v4936, 127
      %v4988 = vpop.permute.xlu0 %4987
      %4989 = vrot.lane.b32.xlu0 %v4937, 127
      %v4990 = vpop.permute.xlu0 %4989
      %4991 = vrot.lane.b32.xlu0 %v4938, 127
      %v4992 = vpop.permute.xlu0 %4991
      %4993 = vrot.lane.b32.xlu0 %v4750, 127
      %v4994 = vpop.permute.xlu0 %4993
      %4995 = vrot.lane.b32.xlu0 %v4751, 127
      %v4996 = vpop.permute.xlu0 %4995
      %4997 = vrot.lane.b32.xlu0 %v4752, 127
      %v4998 = vpop.permute.xlu0 %4997
      %4999 = vrot.lane.b32.xlu0 %v4746, 127
      %v5000 = vpop.permute.xlu0 %4999
      %5001 = vrot.lane.b32.xlu0 %v4773, 127
      %v5002 = vpop.permute.xlu0 %5001
      %5003 = vrot.lane.b32.xlu0 %v4774, 127
      %v5004 = vpop.permute.xlu0 %5003
      %5005 = vrot.lane.b32.xlu0 %v4775, 127
      %v5006 = vpop.permute.xlu0 %5005
      %5007 = vrot.lane.b32.xlu0 %v4764, 127
      %v5008 = vpop.permute.xlu0 %5007
      %5009 = vrot.lane.b32.xlu0 %v4939, 127
      %v5010 = vpop.permute.xlu0 %5009
      %5011 = vrot.lane.b32.xlu0 %v4940, 127
      %v5012 = vpop.permute.xlu0 %5011
      %5013 = vrot.lane.b32.xlu0 %v4941, 127
      %v5014 = vpop.permute.xlu0 %5013
      %5015 = vrot.lane.b32.xlu0 %v4942, 127
      %v5016 = vpop.permute.xlu0 %5015
      %5017 = vrot.lane.b32.xlu0 %v4802, 127
      %v5018 = vpop.permute.xlu0 %5017
      %5019 = vrot.lane.b32.xlu0 %v4803, 127
      %v5020 = vpop.permute.xlu0 %5019
      %5021 = vrot.lane.b32.xlu0 %v4804, 127
      %v5022 = vpop.permute.xlu0 %5021
      %5023 = vrot.lane.b32.xlu0 %v4798, 127
      %v5024 = vpop.permute.xlu0 %5023
      %5025 = vrot.lane.b32.xlu0 %v4825, 127
      %v5026 = vpop.permute.xlu0 %5025
      %5027 = vrot.lane.b32.xlu0 %v4826, 127
      %v5028 = vpop.permute.xlu0 %5027
      %5029 = vrot.lane.b32.xlu0 %v4827, 127
      %v5030 = vpop.permute.xlu0 %5029
      %5031 = vrot.lane.b32.xlu0 %v4816, 127
      %v5032 = vpop.permute.xlu0 %5031
      %5033 = vrot.lane.b32.xlu0 %v4943, 127
      %v5034 = vpop.permute.xlu0 %5033
      %5035 = vrot.lane.b32.xlu0 %v4944, 127
      %v5036 = vpop.permute.xlu0 %5035
      %5037 = vrot.lane.b32.xlu0 %v4945, 127
      %v5038 = vpop.permute.xlu0 %5037
      %5039 = vrot.lane.b32.xlu0 %v4946, 127
      %v5040 = vpop.permute.xlu0 %5039
      %5041 = vrot.lane.b32.xlu0 %v4854, 127
      %v5042 = vpop.permute.xlu0 %5041
      %5043 = vrot.lane.b32.xlu0 %v4855, 127
      %v5044 = vpop.permute.xlu0 %5043
      %5045 = vrot.lane.b32.xlu0 %v4856, 127
      %v5046 = vpop.permute.xlu0 %5045
      %5047 = vrot.lane.b32.xlu0 %v4850, 127
      %v5048 = vpop.permute.xlu0 %5047
      %5049 = vrot.lane.b32.xlu0 %v4877, 127
      %v5050 = vpop.permute.xlu0 %5049
      %5051 = vrot.lane.b32.xlu0 %v4878, 127
      %v5052 = vpop.permute.xlu0 %5051
      %5053 = vrot.lane.b32.xlu0 %v4879, 127
      %v5054 = vpop.permute.xlu0 %5053
      %5055 = vrot.lane.b32.xlu0 %v4868, 127
      %v5056 = vpop.permute.xlu0 %5055
      %5057 = vrot.lane.b32.xlu0 %v4947, 127
      %v5058 = vpop.permute.xlu0 %5057
      %5059 = vrot.lane.b32.xlu0 %v4948, 127
      %v5060 = vpop.permute.xlu0 %5059
      %5061 = vrot.lane.b32.xlu0 %v4949, 127
      %v5062 = vpop.permute.xlu0 %5061
      %5063 = vrot.lane.b32.xlu0 %v4950, 127
      %v5064 = vpop.permute.xlu0 %5063
      %5065 = vrot.lane.b32.xlu0 %v4906, 127
      %v5066 = vpop.permute.xlu0 %5065
      %5067 = vrot.lane.b32.xlu0 %v4907, 127
      %v5068 = vpop.permute.xlu0 %5067
      %5069 = vrot.lane.b32.xlu0 %v4908, 127
      %v5070 = vpop.permute.xlu0 %5069
      %5071 = vrot.lane.b32.xlu0 %v4902, 127
      %v5072 = vpop.permute.xlu0 %5071
      %5073 = vrot.lane.b32.xlu0 %v4929, 127
      %v5074 = vpop.permute.xlu0 %5073
      %5075 = vrot.lane.b32.xlu0 %v4930, 127
      %v5076 = vpop.permute.xlu0 %5075
      %5077 = vrot.lane.b32.xlu0 %v4931, 127
      %v5078 = vpop.permute.xlu0 %5077
      %5079 = vrot.lane.b32.xlu0 %v4920, 127
      %v5080 = vpop.permute.xlu0 %5079
      %5081 = vrot.lane.b32.xlu0 %v4932, 127
      %v5082 = vpop.permute.xlu0 %5081
      %5083 = vrot.lane.b32.xlu0 %v4933, 127
      %v5084 = vpop.permute.xlu0 %5083
      %5085 = vrot.lane.b32.xlu0 %v4934, 127
      %v5086 = vpop.permute.xlu0 %5085
      %5087 = vrot.lane.b32.xlu0 %v4928, 127
      %v5088 = vpop.permute.xlu0 %5087
      %v5089 = vsel %vm605, %v4978, %v4980
      %v5090 = vsel %vm605, %v4980, %v4982
      %v5091 = vsel %vm605, %v4982, %v4984
      %v5092 = vsel %vm605, %v4986, %v4988
      %v5093 = vsel %vm605, %v4988, %v4990
      %v5094 = vsel %vm605, %v4990, %v4992
      %v5095 = vsel %vm605, %v4994, %v4996
      %v5096 = vsel %vm605, %v4996, %v4998
      %v5097 = vsel %vm605, %v4998, %v5000
      %v5098 = vsel %vm605, %v5002, %v5004
      %v5099 = vsel %vm605, %v5004, %v5006
      %v5100 = vsel %vm605, %v5006, %v5008
      %v5101 = vsel %vm605, %v5010, %v5012
      %v5102 = vsel %vm605, %v5012, %v5014
      %v5103 = vsel %vm605, %v5014, %v5016
      %v5104 = vsel %vm605, %v5018, %v5020
      %v5105 = vsel %vm605, %v5020, %v5022
      %v5106 = vsel %vm605, %v5022, %v5024
      %v5107 = vsel %vm605, %v5026, %v5028
      %v5108 = vsel %vm605, %v5028, %v5030
      %v5109 = vsel %vm605, %v5030, %v5032
      %v5110 = vsel %vm605, %v5034, %v5036
      %v5111 = vsel %vm605, %v5036, %v5038
      %v5112 = vsel %vm605, %v5038, %v5040
      %v5113 = vsel %vm605, %v5042, %v5044
      %v5114 = vsel %vm605, %v5044, %v5046
      %v5115 = vsel %vm605, %v5046, %v5048
      %v5116 = vsel %vm605, %v5050, %v5052
      %v5117 = vsel %vm605, %v5052, %v5054
      %v5118 = vsel %vm605, %v5054, %v5056
      %v5119 = vsel %vm605, %v5058, %v5060
      %v5120 = vsel %vm605, %v5060, %v5062
      %v5121 = vsel %vm605, %v5062, %v5064
      %v5122 = vsel %vm605, %v5066, %v5068
      %v5123 = vsel %vm605, %v5068, %v5070
      %v5124 = vsel %vm605, %v5070, %v5072
      %v5125 = vsel %vm605, %v5074, %v5076
      %v5126 = vsel %vm605, %v5076, %v5078
      %v5127 = vsel %vm605, %v5078, %v5080
      %v5128 = vsel %vm605, %v5082, %v5084
      %v5129 = vsel %vm605, %v5084, %v5086
      %v5130 = vsel %vm605, %v5086, %v5088
      %v5184 = vsel %vm703, %v4703, 0
      %v5187 = vsel %vm703, %v4704, 0
      %v5189 = vsel %vm941, %v5128, 0
      %v5191 = vsel %vm941, %v5129, 0
      %v5193 = vsel %vm941, %v5130, 0
      %v5195 = vsel %vm941, %v5088, 0
      %5197 = vmatprep.subr.mxu0 0.0
      %5198 = vmatpush1.msra.mxu0 0.0
      %5199 = vmatprep.subr.mxu0 0.0
      %5200 = vmatpush1.msra.mxu0 0.0
      %5201 = vmatprep.subr.mxu0 %v5191
      %5202 = vmatpush1.msra.mxu0 %v5189
      %5203 = vmatprep.subr.mxu0 %v5126
      %5204 = vmatpush1.msra.mxu0 %v5125
      %5205 = vmatprep.subr.mxu0 %v5123
      %5206 = vmatpush1.msra.mxu0 %v5122
      %5207 = vmatprep.subr.mxu0 %v5120
      %5208 = vmatpush1.msra.mxu0 %v5119
      %5209 = vmatprep.subr.mxu0 %v5117
      %5210 = vmatpush1.msra.mxu0 %v5116
      %5211 = vmatprep.subr.mxu0 %v5114
      %5212 = vmatpush1.msra.mxu0 %v5113
      %5213 = vmatprep.subr.mxu0 %v5111
      %5214 = vmatpush1.msra.mxu0 %v5110
      %5215 = vmatprep.subr.mxu0 %v5108
      %5216 = vmatpush1.msra.mxu0 %v5107
      %5217 = vmatprep.subr.mxu0 %v5105
      %5218 = vmatpush1.msra.mxu0 %v5104
      %5219 = vmatprep.subr.mxu0 %v5102
      %5220 = vmatpush1.msra.mxu0 %v5101
      %5221 = vmatprep.subr.mxu0 %v5099
      %5222 = vmatpush1.msra.mxu0 %v5098
      %5223 = vmatprep.subr.mxu0 %v5096
      %5224 = vmatpush1.msra.mxu0 %v5095
      %5225 = vmatprep.subr.mxu0 %v5093
      %5226 = vmatpush1.msra.mxu0 %v5092
      %5227 = vmatprep.subr.mxu0 %v5090
      %5228 = vmatpush1.msra.mxu0 %v5089
      %5229 = vmatprep.subr.mxu0 0.0
      %5230 = vmatpush2.msra.mxu0 0.0
      %5231 = vmatprep.subr.mxu0 0.0
      %5232 = vmatpush2.msra.mxu0 0.0
      %5233 = vmatprep.subr.mxu0 0.0
      %5234 = vmatpush2.msra.mxu0 0.0
      %5235 = vmatprep.subr.mxu0 0.0
      %5236 = vmatpush2.msra.mxu0 0.0
      %5237 = vmatprep.subr.mxu0 0.0
      %5238 = vmatpush2.msra.mxu0 0.0
      %5239 = vmatprep.subr.mxu0 0.0
      %5240 = vmatpush2.msra.mxu0 0.0
      %5241 = vmatprep.subr.mxu0 0.0
      %5242 = vmatpush2.msra.mxu0 0.0
      %5243 = vmatprep.subr.mxu0 0.0
      %5244 = vmatpush2.msra.mxu0 0.0
      %5245 = vmatprep.subr.mxu0 0.0
      %5246 = vmatpush2.msra.mxu0 0.0
      %5247 = vmatprep.subr.mxu0 0.0
      %5248 = vmatpush2.msra.mxu0 0.0
      %5249 = vmatprep.subr.mxu0 0.0
      %5250 = vmatpush2.msra.mxu0 0.0
      %5251 = vmatprep.subr.mxu0 0.0
      %5252 = vmatpush2.msra.mxu0 0.0
      %5253 = vmatprep.subr.mxu0 0.0
      %5254 = vmatpush2.msra.mxu0 0.0
      %5255 = vmatprep.subr.mxu0 0.0
      %5256 = vmatpush2.msra.mxu0 0.0
      %5257 = vmatprep.subr.mxu0 0.0
      %5258 = vmatpush2.msra.mxu0 0.0
      %5259 = vmatprep.subr.mxu0 0.0
      %5260 = vmatpush2.msra.mxu0 0.0
      %5261 = vmatprep.mubr.f32.mxu0 0.0
      %5262 = vmatmul.mubr.f32.gmra.mxu0 %v5184
      %v5263 = vpop.f32.mrf.mxu0
      %v5264 = vadd.f32 %v4954, %v5263
      %v5265 = vpop.f32.mrf.mxu0
      %v5266 = vadd.f32 %v4954, %v5265
      %5267 = vmatprep.mubr.f32.mxu0 0.0
      %5268 = vmatmul.mubr.f32.gmra.mxu0 %v5187
      %v5269 = vpop.f32.mrf.mxu0
      %v5270 = vadd.f32 %v4959, %v5269
      %v5271 = vpop.f32.mrf.mxu0
      %v5272 = vadd.f32 %v4959, %v5271
      %5273 = vdwg.mxu0
      %5274 = vmatprep.subr.mxu0 0.0
      %5275 = vmatpush1.msra.mxu0 0.0
      %5276 = vmatprep.subr.mxu0 0.0
      %5277 = vmatpush1.msra.mxu0 0.0
      %5278 = vmatprep.subr.mxu0 %v5195
      %5279 = vmatpush1.msra.mxu0 %v5193
      %5280 = vmatprep.subr.mxu0 %v5080
      %5281 = vmatpush1.msra.mxu0 %v5127
      %5282 = vmatprep.subr.mxu0 %v5072
      %5283 = vmatpush1.msra.mxu0 %v5124
      %5284 = vmatprep.subr.mxu0 %v5064
      %5285 = vmatpush1.msra.mxu0 %v5121
      %5286 = vmatprep.subr.mxu0 %v5056
      %5287 = vmatpush1.msra.mxu0 %v5118
      %5288 = vmatprep.subr.mxu0 %v5048
      %5289 = vmatpush1.msra.mxu0 %v5115
      %5290 = vmatprep.subr.mxu0 %v5040
      %5291 = vmatpush1.msra.mxu0 %v5112
      %5292 = vmatprep.subr.mxu0 %v5032
      %5293 = vmatpush1.msra.mxu0 %v5109
      %5294 = vmatprep.subr.mxu0 %v5024
      %5295 = vmatpush1.msra.mxu0 %v5106
      %5296 = vmatprep.subr.mxu0 %v5016
      %5297 = vmatpush1.msra.mxu0 %v5103
      %5298 = vmatprep.subr.mxu0 %v5008
      %5299 = vmatpush1.msra.mxu0 %v5100
      %5300 = vmatprep.subr.mxu0 %v5000
      %5301 = vmatpush1.msra.mxu0 %v5097
      %5302 = vmatprep.subr.mxu0 %v4992
      %5303 = vmatpush1.msra.mxu0 %v5094
      %5304 = vmatprep.subr.mxu0 %v4984
      %5305 = vmatpush1.msra.mxu0 %v5091
      %5306 = vmatprep.subr.mxu0 0.0
      %5307 = vmatpush2.msra.mxu0 0.0
      %5308 = vmatprep.subr.mxu0 0.0
      %5309 = vmatpush2.msra.mxu0 0.0
      %5310 = vmatprep.subr.mxu0 0.0
      %5311 = vmatpush2.msra.mxu0 0.0
      %5312 = vmatprep.subr.mxu0 0.0
      %5313 = vmatpush2.msra.mxu0 0.0
      %5314 = vmatprep.subr.mxu0 0.0
      %5315 = vmatpush2.msra.mxu0 0.0
      %5316 = vmatprep.subr.mxu0 0.0
      %5317 = vmatpush2.msra.mxu0 0.0
      %5318 = vmatprep.subr.mxu0 0.0
      %5319 = vmatpush2.msra.mxu0 0.0
      %5320 = vmatprep.subr.mxu0 0.0
      %5321 = vmatpush2.msra.mxu0 0.0
      %5322 = vmatprep.subr.mxu0 0.0
      %5323 = vmatpush2.msra.mxu0 0.0
      %5324 = vmatprep.subr.mxu0 0.0
      %5325 = vmatpush2.msra.mxu0 0.0
      %5326 = vmatprep.subr.mxu0 0.0
      %5327 = vmatpush2.msra.mxu0 0.0
      %5328 = vmatprep.subr.mxu0 0.0
      %5329 = vmatpush2.msra.mxu0 0.0
      %5330 = vmatprep.subr.mxu0 0.0
      %5331 = vmatpush2.msra.mxu0 0.0
      %5332 = vmatprep.subr.mxu0 0.0
      %5333 = vmatpush2.msra.mxu0 0.0
      %5334 = vmatprep.subr.mxu0 0.0
      %5335 = vmatpush2.msra.mxu0 0.0
      %5336 = vmatprep.subr.mxu0 0.0
      %5337 = vmatpush2.msra.mxu0 0.0
      %5338 = vmatprep.mubr.f32.mxu0 0.0
      %5339 = vmatmul.mubr.f32.gmra.mxu0 %v5184
      %v5340 = vpop.f32.mrf.mxu0
      %v5341 = vadd.f32 %v4954, %v5340
      %v5342 = vpop.f32.mrf.mxu0
      %v5343 = vadd.f32 %v4954, %v5342
      %5344 = vmatprep.mubr.f32.mxu0 0.0
      %5345 = vmatmul.mubr.f32.gmra.mxu0 %v5187
      %v5346 = vpop.f32.mrf.mxu0
      %v5347 = vadd.f32 %v4959, %v5346
      %v5348 = vpop.f32.mrf.mxu0
      %v5349 = vadd.f32 %v4959, %v5348
      %5350 = vdwg.mxu0
      %vm5351 = vcmp.gt.f32.partialorder %v5264, 0.0
      %vm5352 = vcmp.gt.f32.partialorder %v5266, 0.0
      %vm5353 = vcmp.gt.f32.partialorder %v5341, 0.0
      %vm5354 = vcmp.gt.f32.partialorder %v5343, 0.0
      %vm5355 = vcmp.gt.f32.partialorder %v5270, 0.0
      %vm5356 = vcmp.gt.f32.partialorder %v5272, 0.0
      %vm5357 = vcmp.gt.f32.partialorder %v5347, 0.0
      %vm5358 = vcmp.gt.f32.partialorder %v5349, 0.0
      %5360 = vset.pattern.permute.xlu0 0
      %5361 = vperm.xlu0 %5360, %v4709
      %v5362 = vpop.permute.xlu0 %5361
      %5365 = vset.pattern.permute.xlu0 0
      %5366 = vperm.xlu0 %5365, %v4710
      %v5367 = vpop.permute.xlu0 %5366
      %v5369 = vmul.f32 %v5264, %v5362
      %v5370 = vmul.f32 %v5266, %v5362
      %v5371 = vmul.f32 %v5341, %v5362
      %v5372 = vmul.f32 %v5343, %v5362
      %v5373 = vmul.f32 %v5270, %v5367
      %v5374 = vmul.f32 %v5272, %v5367
      %v5375 = vmul.f32 %v5347, %v5367
      %v5376 = vmul.f32 %v5349, %v5367
      %v5377 = vsel %vm5351, %v5264, %v5369
      %v5378 = vsel %vm5352, %v5266, %v5370
      %v5379 = vsel %vm5353, %v5341, %v5371
      %v5380 = vsel %vm5354, %v5343, %v5372
      %v5381 = vsel %vm5355, %v5270, %v5373
      %v5382 = vsel %vm5356, %v5272, %v5374
      %v5383 = vsel %vm5357, %v5347, %v5375
      %v5384 = vsel %vm5358, %v5349, %v5376
      %s5385 = ssub.s32 2, %s1951
      %p5386 = scmp.gt.s32.totalorder %s5385, 0
      %s5387 = scalar_select %p5386, %s5385, 0
      %s5388 = smul.u32 %s5387, 20
      %s5389 = ssub.s32 18, %s1951
      %p5390 = scmp.lt.s32.totalorder %s5389, 20
      %s5391 = scalar_select %p5390, %s5389, 20
      %s5392 = smul.u32 %s5391, 20
      %v5393 = vstv %s5388
      %vm5394 = vcmp.ge.s32.totalorder %v1961, %v5393
      %vm5395 = vcmp.ge.s32.totalorder %v1962, %v5393
      %vm5396 = vcmp.ge.s32.totalorder %v1963, %v5393
      %vm5397 = vcmp.ge.s32.totalorder %v1964, %v5393
      %v5398 = vstv %s5392
      %vm5399 = vcmp.lt.s32.totalorder %v1961, %v5398
      %vm5400 = vcmp.lt.s32.totalorder %v1962, %v5398
      %vm5401 = vcmp.lt.s32.totalorder %v1963, %v5398
      %vm5402 = vcmp.lt.s32.totalorder %v1964, %v5398
      %vm5403 = vmand %vm5394, %vm5399
      %vm5404 = vmand %vm5395, %vm5400
      %vm5405 = vmand %vm5396, %vm5401
      %vm5406 = vmand %vm5397, %vm5402
      %v5407 = vsel %vm5403, %v5377, 0.0
      %v5408 = vsel %vm5404, %v5378, 0.0
      %v5409 = vsel %vm5405, %v5379, 0.0
      %v5410 = vsel %vm5406, %v5380, 0.0
      %v5411 = vsel %vm5403, %v5381, 0.0
      %v5412 = vsel %vm5404, %v5382, 0.0
      %v5413 = vsel %vm5405, %v5383, 0.0
      %v5414 = vsel %vm5406, %v5384, 0.0
      %v5415 = vmul.f32 %v5407, %v1997
      %v5416 = vmul.f32 %v5408, %v2001
      %v5417 = vmul.f32 %v5409, %v2005
      %v5418 = vmul.f32 %v5410, %v2009
      %v5419 = vmul.f32 %v5411, %v1997
      %v5420 = vmul.f32 %v5412, %v2001
      %v5421 = vmul.f32 %v5413, %v2005
      %v5422 = vmul.f32 %v5414, %v2009
      %v5423 = vld [vmem:[%s11] sm:$0xff]
      %v5424 = vld [vmem:[%s11 + $0x8] sm:$0xff]
      %v5425 = vld [vmem:[%s11 + $0x10] sm:$0xff]
      %v5426 = vld [vmem:[%s11 + $0x18] sm:$0xff]
      %v5427 = vld [vmem:[%s11 + $0x20] sm:$0xff]
      %v5428 = vld [vmem:[%s11 + $0x28] sm:$0xff]
      %v5429 = vld [vmem:[%s11 + $0x30] sm:$0xff]
      %v5430 = vld [vmem:[%s12] sm:$0xff]
      %v5431 = vld [vmem:[%s12 + $0x8] sm:$0xff]
      %v5432 = vld [vmem:[%s12 + $0x10] sm:$0xff]
      %v5433 = vld [vmem:[%s12 + $0x18] sm:$0xff]
      %v5434 = vld [vmem:[%s12 + $0x20] sm:$0xff]
      %v5435 = vld [vmem:[%s12 + $0x28] sm:$0xff]
      %v5436 = vld [vmem:[%s12 + $0x30] sm:$0xff]
      %5438 = vset.pattern.permute.xlu0 0
      %5439 = vperm.xlu0 %5438, %v5430
      %v5440 = vpop.permute.xlu0 %5439
      %5443 = vset.pattern.permute.xlu0 0
      %5444 = vperm.xlu0 %5443, %v5431
      %v5445 = vpop.permute.xlu0 %5444
      %5448 = vset.pattern.permute.xlu0 0
      %5449 = vperm.xlu0 %5448, %v5432
      %v5450 = vpop.permute.xlu0 %5449
      %5453 = vset.pattern.permute.xlu0 0
      %5454 = vperm.xlu0 %5453, %v5433
      %v5455 = vpop.permute.xlu0 %5454
      %5458 = vset.pattern.permute.xlu0 0
      %5459 = vperm.xlu0 %5458, %v5434
      %v5460 = vpop.permute.xlu0 %5459
      %5463 = vset.pattern.permute.xlu0 0
      %5464 = vperm.xlu0 %5463, %v5435
      %v5465 = vpop.permute.xlu0 %5464
      %5468 = vset.pattern.permute.xlu0 0
      %5469 = vperm.xlu0 %5468, %v5436
      %v5470 = vpop.permute.xlu0 %5469
      %vm5472 = vcmask 97280
      %v5474 = vsel %vm5472, %v5423, 0
      %v5477 = vsel %vm5472, %v5424, 0
      %v5480 = vsel %vm5472, %v5425, 0
      %v5483 = vsel %vm5472, %v5426, 0
      %v5486 = vsel %vm5472, %v5427, 0
      %v5489 = vsel %vm5472, %v5428, 0
      %v5492 = vsel %vm5472, %v5429, 0
      %v5495 = vsel %vm941, %v5419, 0
      %v5498 = vsel %vm941, %v5420, 0
      %v5501 = vsel %vm941, %v5421, 0
      %v5504 = vsel %vm941, %v5422, 0
      %5506 = vmatprep.subr.mxu0 0.0
      %5507 = vmatpush1.msra.mxu0 0.0
      %5508 = vmatprep.subr.mxu0 0.0
      %5509 = vmatpush1.msra.mxu0 0.0
      %5510 = vmatprep.subr.mxu0 0.0
      %5511 = vmatpush1.msra.mxu0 0.0
      %5512 = vmatprep.subr.mxu0 0.0
      %5513 = vmatpush1.msra.mxu0 0.0
      %5514 = vmatprep.subr.mxu0 0.0
      %5515 = vmatpush1.msra.mxu0 0.0
      %5516 = vmatprep.subr.mxu0 0.0
      %5517 = vmatpush1.msra.mxu0 0.0
      %5518 = vmatprep.subr.mxu0 0.0
      %5519 = vmatpush1.msra.mxu0 0.0
      %5520 = vmatprep.subr.mxu0 0.0
      %5521 = vmatpush1.msra.mxu0 0.0
      %5522 = vmatprep.subr.mxu0 0.0
      %5523 = vmatpush1.msra.mxu0 0.0
      %5524 = vmatprep.subr.mxu0 0.0
      %5525 = vmatpush1.msra.mxu0 0.0
      %5526 = vmatprep.subr.mxu0 0.0
      %5527 = vmatpush1.msra.mxu0 0.0
      %5528 = vmatprep.subr.mxu0 0.0
      %5529 = vmatpush1.msra.mxu0 0.0
      %5530 = vmatprep.subr.mxu0 0.0
      %5531 = vmatpush1.msra.mxu0 0.0
      %5532 = vmatprep.subr.mxu0 0.0
      %5533 = vmatpush1.msra.mxu0 0.0
      %5534 = vmatprep.subr.mxu0 %v5498
      %5535 = vmatpush1.msra.mxu0 %v5495
      %5536 = vmatprep.subr.mxu0 %v5416
      %5537 = vmatpush1.msra.mxu0 %v5415
      %5538 = vmatprep.subr.mxu0 0.0
      %5539 = vmatpush2.msra.mxu0 0.0
      %5540 = vmatprep.subr.mxu0 0.0
      %5541 = vmatpush2.msra.mxu0 0.0
      %5542 = vmatprep.subr.mxu0 0.0
      %5543 = vmatpush2.msra.mxu0 0.0
      %5544 = vmatprep.subr.mxu0 0.0
      %5545 = vmatpush2.msra.mxu0 0.0
      %5546 = vmatprep.subr.mxu0 0.0
      %5547 = vmatpush2.msra.mxu0 0.0
      %5548 = vmatprep.subr.mxu0 0.0
      %5549 = vmatpush2.msra.mxu0 0.0
      %5550 = vmatprep.subr.mxu0 0.0
      %5551 = vmatpush2.msra.mxu0 0.0
      %5552 = vmatprep.subr.mxu0 0.0
      %5553 = vmatpush2.msra.mxu0 0.0
      %5554 = vmatprep.subr.mxu0 0.0
      %5555 = vmatpush2.msra.mxu0 0.0
      %5556 = vmatprep.subr.mxu0 0.0
      %5557 = vmatpush2.msra.mxu0 0.0
      %5558 = vmatprep.subr.mxu0 0.0
      %5559 = vmatpush2.msra.mxu0 0.0
      %5560 = vmatprep.subr.mxu0 0.0
      %5561 = vmatpush2.msra.mxu0 0.0
      %5562 = vmatprep.subr.mxu0 0.0
      %5563 = vmatpush2.msra.mxu0 0.0
      %5564 = vmatprep.subr.mxu0 0.0
      %5565 = vmatpush2.msra.mxu0 0.0
      %5566 = vmatprep.subr.mxu0 0.0
      %5567 = vmatpush2.msra.mxu0 0.0
      %5568 = vmatprep.subr.mxu0 0.0
      %5569 = vmatpush2.msra.mxu0 0.0
      %5570 = vmatprep.mubr.f32.mxu0 0.0
      %5571 = vmatmul.mubr.f32.gmra.mxu0 %v5474
      %v5572 = vpop.f32.mrf.mxu0
      %v5573 = vadd.f32 %v5440, %v5572
      %v5574 = vpop.f32.mrf.mxu0
      %v5575 = vadd.f32 %v5440, %v5574
      %5576 = vmatprep.mubr.f32.mxu0 0.0
      %5577 = vmatmul.mubr.f32.gmra.mxu0 %v5477
      %v5578 = vpop.f32.mrf.mxu0
      %v5579 = vadd.f32 %v5445, %v5578
      %v5580 = vpop.f32.mrf.mxu0
      %v5581 = vadd.f32 %v5445, %v5580
      %5582 = vmatprep.mubr.f32.mxu0 0.0
      %5583 = vmatmul.mubr.f32.gmra.mxu0 %v5480
      %v5584 = vpop.f32.mrf.mxu0
      %v5585 = vadd.f32 %v5450, %v5584
      %v5586 = vpop.f32.mrf.mxu0
      %v5587 = vadd.f32 %v5450, %v5586
      %5588 = vmatprep.mubr.f32.mxu0 0.0
      %5589 = vmatmul.mubr.f32.gmra.mxu0 %v5483
      %v5590 = vpop.f32.mrf.mxu0
      %v5591 = vadd.f32 %v5455, %v5590
      %v5592 = vpop.f32.mrf.mxu0
      %v5593 = vadd.f32 %v5455, %v5592
      %5594 = vmatprep.mubr.f32.mxu0 0.0
      %5595 = vmatmul.mubr.f32.gmra.mxu0 %v5486
      %v5596 = vpop.f32.mrf.mxu0
      %v5597 = vadd.f32 %v5460, %v5596
      %v5598 = vpop.f32.mrf.mxu0
      %v5599 = vadd.f32 %v5460, %v5598
      %5600 = vmatprep.mubr.f32.mxu0 0.0
      %5601 = vmatmul.mubr.f32.gmra.mxu0 %v5489
      %v5602 = vpop.f32.mrf.mxu0
      %v5603 = vadd.f32 %v5465, %v5602
      %v5604 = vpop.f32.mrf.mxu0
      %v5605 = vadd.f32 %v5465, %v5604
      %5606 = vmatprep.mubr.f32.mxu0 0.0
      %5607 = vmatmul.mubr.f32.gmra.mxu0 %v5492
      %v5608 = vpop.f32.mrf.mxu0
      %v5609 = vadd.f32 %v5470, %v5608
      %v5610 = vpop.f32.mrf.mxu0
      %v5611 = vadd.f32 %v5470, %v5610
      %5612 = vdwg.mxu0
      %5613 = vmatprep.subr.mxu0 0.0
      %5614 = vmatpush1.msra.mxu0 0.0
      %5615 = vmatprep.subr.mxu0 0.0
      %5616 = vmatpush1.msra.mxu0 0.0
      %5617 = vmatprep.subr.mxu0 0.0
      %5618 = vmatpush1.msra.mxu0 0.0
      %5619 = vmatprep.subr.mxu0 0.0
      %5620 = vmatpush1.msra.mxu0 0.0
      %5621 = vmatprep.subr.mxu0 0.0
      %5622 = vmatpush1.msra.mxu0 0.0
      %5623 = vmatprep.subr.mxu0 0.0
      %5624 = vmatpush1.msra.mxu0 0.0
      %5625 = vmatprep.subr.mxu0 0.0
      %5626 = vmatpush1.msra.mxu0 0.0
      %5627 = vmatprep.subr.mxu0 0.0
      %5628 = vmatpush1.msra.mxu0 0.0
      %5629 = vmatprep.subr.mxu0 0.0
      %5630 = vmatpush1.msra.mxu0 0.0
      %5631 = vmatprep.subr.mxu0 0.0
      %5632 = vmatpush1.msra.mxu0 0.0
      %5633 = vmatprep.subr.mxu0 0.0
      %5634 = vmatpush1.msra.mxu0 0.0
      %5635 = vmatprep.subr.mxu0 0.0
      %5636 = vmatpush1.msra.mxu0 0.0
      %5637 = vmatprep.subr.mxu0 0.0
      %5638 = vmatpush1.msra.mxu0 0.0
      %5639 = vmatprep.subr.mxu0 0.0
      %5640 = vmatpush1.msra.mxu0 0.0
      %5641 = vmatprep.subr.mxu0 %v5504
      %5642 = vmatpush1.msra.mxu0 %v5501
      %5643 = vmatprep.subr.mxu0 %v5418
      %5644 = vmatpush1.msra.mxu0 %v5417
      %5645 = vmatprep.subr.mxu0 0.0
      %5646 = vmatpush2.msra.mxu0 0.0
      %5647 = vmatprep.subr.mxu0 0.0
      %5648 = vmatpush2.msra.mxu0 0.0
      %5649 = vmatprep.subr.mxu0 0.0
      %5650 = vmatpush2.msra.mxu0 0.0
      %5651 = vmatprep.subr.mxu0 0.0
      %5652 = vmatpush2.msra.mxu0 0.0
      %5653 = vmatprep.subr.mxu0 0.0
      %5654 = vmatpush2.msra.mxu0 0.0
      %5655 = vmatprep.subr.mxu0 0.0
      %5656 = vmatpush2.msra.mxu0 0.0
      %5657 = vmatprep.subr.mxu0 0.0
      %5658 = vmatpush2.msra.mxu0 0.0
      %5659 = vmatprep.subr.mxu0 0.0
      %5660 = vmatpush2.msra.mxu0 0.0
      %5661 = vmatprep.subr.mxu0 0.0
      %5662 = vmatpush2.msra.mxu0 0.0
      %5663 = vmatprep.subr.mxu0 0.0
      %5664 = vmatpush2.msra.mxu0 0.0
      %5665 = vmatprep.subr.mxu0 0.0
      %5666 = vmatpush2.msra.mxu0 0.0
      %5667 = vmatprep.subr.mxu0 0.0
      %5668 = vmatpush2.msra.mxu0 0.0
      %5669 = vmatprep.subr.mxu0 0.0
      %5670 = vmatpush2.msra.mxu0 0.0
      %5671 = vmatprep.subr.mxu0 0.0
      %5672 = vmatpush2.msra.mxu0 0.0
      %5673 = vmatprep.subr.mxu0 0.0
      %5674 = vmatpush2.msra.mxu0 0.0
      %5675 = vmatprep.subr.mxu0 0.0
      %5676 = vmatpush2.msra.mxu0 0.0
      %5677 = vmatprep.mubr.f32.mxu0 0.0
      %5678 = vmatmul.mubr.f32.gmra.mxu0 %v5474
      %v5679 = vpop.f32.mrf.mxu0
      %v5680 = vadd.f32 %v5440, %v5679
      %v5681 = vpop.f32.mrf.mxu0
      %v5682 = vadd.f32 %v5440, %v5681
      %5683 = vmatprep.mubr.f32.mxu0 0.0
      %5684 = vmatmul.mubr.f32.gmra.mxu0 %v5477
      %v5685 = vpop.f32.mrf.mxu0
      %v5686 = vadd.f32 %v5445, %v5685
      %v5687 = vpop.f32.mrf.mxu0
      %v5688 = vadd.f32 %v5445, %v5687
      %5689 = vmatprep.mubr.f32.mxu0 0.0
      %5690 = vmatmul.mubr.f32.gmra.mxu0 %v5480
      %v5691 = vpop.f32.mrf.mxu0
      %v5692 = vadd.f32 %v5450, %v5691
      %v5693 = vpop.f32.mrf.mxu0
      %v5694 = vadd.f32 %v5450, %v5693
      %5695 = vmatprep.mubr.f32.mxu0 0.0
      %5696 = vmatmul.mubr.f32.gmra.mxu0 %v5483
      %v5697 = vpop.f32.mrf.mxu0
      %v5698 = vadd.f32 %v5455, %v5697
      %v5699 = vpop.f32.mrf.mxu0
      %v5700 = vadd.f32 %v5455, %v5699
      %5701 = vmatprep.mubr.f32.mxu0 0.0
      %5702 = vmatmul.mubr.f32.gmra.mxu0 %v5486
      %v5703 = vpop.f32.mrf.mxu0
      %v5704 = vadd.f32 %v5460, %v5703
      %v5705 = vpop.f32.mrf.mxu0
      %v5706 = vadd.f32 %v5460, %v5705
      %5707 = vmatprep.mubr.f32.mxu0 0.0
      %5708 = vmatmul.mubr.f32.gmra.mxu0 %v5489
      %v5709 = vpop.f32.mrf.mxu0
      %v5710 = vadd.f32 %v5465, %v5709
      %v5711 = vpop.f32.mrf.mxu0
      %v5712 = vadd.f32 %v5465, %v5711
      %5713 = vmatprep.mubr.f32.mxu0 0.0
      %5714 = vmatmul.mubr.f32.gmra.mxu0 %v5492
      %v5715 = vpop.f32.mrf.mxu0
      %v5716 = vadd.f32 %v5470, %v5715
      %v5717 = vpop.f32.mrf.mxu0
      %v5718 = vadd.f32 %v5470, %v5717
      %5719 = vdwg.mxu0
      %v5720 = vld [vmem:[%s13] sm:$0xff]
      %v5721 = vld [vmem:[%s13 + $0x8] sm:$0xff]
      %v5722 = vld [vmem:[%s13 + $0x10] sm:$0xff]
      %v5723 = vld [vmem:[%s13 + $0x18] sm:$0xff]
      %v5724 = vld [vmem:[%s13 + $0x20] sm:$0xff]
      %v5725 = vld [vmem:[%s13 + $0x28] sm:$0xff]
      %v5726 = vld [vmem:[%s13 + $0x30] sm:$0xff]
      %vm5727 = vcmp.gt.f32.partialorder %v5573, 0.0
      %vm5728 = vcmp.gt.f32.partialorder %v5575, 0.0
      %vm5729 = vcmp.gt.f32.partialorder %v5680, 0.0
      %vm5730 = vcmp.gt.f32.partialorder %v5682, 0.0
      %vm5731 = vcmp.gt.f32.partialorder %v5579, 0.0
      %vm5732 = vcmp.gt.f32.partialorder %v5581, 0.0
      %vm5733 = vcmp.gt.f32.partialorder %v5686, 0.0
      %vm5734 = vcmp.gt.f32.partialorder %v5688, 0.0
      %vm5735 = vcmp.gt.f32.partialorder %v5585, 0.0
      %vm5736 = vcmp.gt.f32.partialorder %v5587, 0.0
      %vm5737 = vcmp.gt.f32.partialorder %v5692, 0.0
      %vm5738 = vcmp.gt.f32.partialorder %v5694, 0.0
      %vm5739 = vcmp.gt.f32.partialorder %v5591, 0.0
      %vm5740 = vcmp.gt.f32.partialorder %v5593, 0.0
      %vm5741 = vcmp.gt.f32.partialorder %v5698, 0.0
      %vm5742 = vcmp.gt.f32.partialorder %v5700, 0.0
      %vm5743 = vcmp.gt.f32.partialorder %v5597, 0.0
      %vm5744 = vcmp.gt.f32.partialorder %v5599, 0.0
      %vm5745 = vcmp.gt.f32.partialorder %v5704, 0.0
      %vm5746 = vcmp.gt.f32.partialorder %v5706, 0.0
      %vm5747 = vcmp.gt.f32.partialorder %v5603, 0.0
      %vm5748 = vcmp.gt.f32.partialorder %v5605, 0.0
      %vm5749 = vcmp.gt.f32.partialorder %v5710, 0.0
      %vm5750 = vcmp.gt.f32.partialorder %v5712, 0.0
      %vm5751 = vcmp.gt.f32.partialorder %v5609, 0.0
      %vm5752 = vcmp.gt.f32.partialorder %v5611, 0.0
      %vm5753 = vcmp.gt.f32.partialorder %v5716, 0.0
      %vm5754 = vcmp.gt.f32.partialorder %v5718, 0.0
      %5756 = vset.pattern.permute.xlu0 0
      %5757 = vperm.xlu0 %5756, %v5720
      %v5758 = vpop.permute.xlu0 %5757
      %5761 = vset.pattern.permute.xlu0 0
      %5762 = vperm.xlu0 %5761, %v5721
      %v5763 = vpop.permute.xlu0 %5762
      %5766 = vset.pattern.permute.xlu0 0
      %5767 = vperm.xlu0 %5766, %v5722
      %v5768 = vpop.permute.xlu0 %5767
      %5771 = vset.pattern.permute.xlu0 0
      %5772 = vperm.xlu0 %5771, %v5723
      %v5773 = vpop.permute.xlu0 %5772
      %5776 = vset.pattern.permute.xlu0 0
      %5777 = vperm.xlu0 %5776, %v5724
      %v5778 = vpop.permute.xlu0 %5777
      %5781 = vset.pattern.permute.xlu0 0
      %5782 = vperm.xlu0 %5781, %v5725
      %v5783 = vpop.permute.xlu0 %5782
      %5786 = vset.pattern.permute.xlu0 0
      %5787 = vperm.xlu0 %5786, %v5726
      %v5788 = vpop.permute.xlu0 %5787
      %v5790 = vmul.f32 %v5573, %v5758
      %v5791 = vmul.f32 %v5575, %v5758
      %v5792 = vmul.f32 %v5680, %v5758
      %v5793 = vmul.f32 %v5682, %v5758
      %v5794 = vmul.f32 %v5579, %v5763
      %v5795 = vmul.f32 %v5581, %v5763
      %v5796 = vmul.f32 %v5686, %v5763
      %v5797 = vmul.f32 %v5688, %v5763
      %v5798 = vmul.f32 %v5585, %v5768
      %v5799 = vmul.f32 %v5587, %v5768
      %v5800 = vmul.f32 %v5692, %v5768
      %v5801 = vmul.f32 %v5694, %v5768
      %v5802 = vmul.f32 %v5591, %v5773
      %v5803 = vmul.f32 %v5593, %v5773
      %v5804 = vmul.f32 %v5698, %v5773
      %v5805 = vmul.f32 %v5700, %v5773
      %v5806 = vmul.f32 %v5597, %v5778
      %v5807 = vmul.f32 %v5599, %v5778
      %v5808 = vmul.f32 %v5704, %v5778
      %v5809 = vmul.f32 %v5706, %v5778
      %v5810 = vmul.f32 %v5603, %v5783
      %v5811 = vmul.f32 %v5605, %v5783
      %v5812 = vmul.f32 %v5710, %v5783
      %v5813 = vmul.f32 %v5712, %v5783
      %v5814 = vmul.f32 %v5609, %v5788
      %v5815 = vmul.f32 %v5611, %v5788
      %v5816 = vmul.f32 %v5716, %v5788
      %v5817 = vmul.f32 %v5718, %v5788
      %v5818 = vsel %vm5727, %v5573, %v5790
      %v5819 = vsel %vm5728, %v5575, %v5791
      %v5820 = vsel %vm5729, %v5680, %v5792
      %v5821 = vsel %vm5730, %v5682, %v5793
      %v5822 = vsel %vm5731, %v5579, %v5794
      %v5823 = vsel %vm5732, %v5581, %v5795
      %v5824 = vsel %vm5733, %v5686, %v5796
      %v5825 = vsel %vm5734, %v5688, %v5797
      %v5826 = vsel %vm5735, %v5585, %v5798
      %v5827 = vsel %vm5736, %v5587, %v5799
      %v5828 = vsel %vm5737, %v5692, %v5800
      %v5829 = vsel %vm5738, %v5694, %v5801
      %v5830 = vsel %vm5739, %v5591, %v5802
      %v5831 = vsel %vm5740, %v5593, %v5803
      %v5832 = vsel %vm5741, %v5698, %v5804
      %v5833 = vsel %vm5742, %v5700, %v5805
      %v5834 = vsel %vm5743, %v5597, %v5806
      %v5835 = vsel %vm5744, %v5599, %v5807
      %v5836 = vsel %vm5745, %v5704, %v5808
      %v5837 = vsel %vm5746, %v5706, %v5809
      %v5838 = vsel %vm5747, %v5603, %v5810
      %v5839 = vsel %vm5748, %v5605, %v5811
      %v5840 = vsel %vm5749, %v5710, %v5812
      %v5841 = vsel %vm5750, %v5712, %v5813
      %v5842 = vsel %vm5751, %v5609, %v5814
      %v5843 = vsel %vm5752, %v5611, %v5815
      %v5844 = vsel %vm5753, %v5716, %v5816
      %v5845 = vsel %vm5754, %v5718, %v5817
      %v5846 = vsel %vm5403, %v5818, 0.0
      %v5847 = vsel %vm5404, %v5819, 0.0
      %v5848 = vsel %vm5405, %v5820, 0.0
      %v5849 = vsel %vm5406, %v5821, 0.0
      %v5850 = vsel %vm5403, %v5822, 0.0
      %v5851 = vsel %vm5404, %v5823, 0.0
      %v5852 = vsel %vm5405, %v5824, 0.0
      %v5853 = vsel %vm5406, %v5825, 0.0
      %v5854 = vsel %vm5403, %v5826, 0.0
      %v5855 = vsel %vm5404, %v5827, 0.0
      %v5856 = vsel %vm5405, %v5828, 0.0
      %v5857 = vsel %vm5406, %v5829, 0.0
      %v5858 = vsel %vm5403, %v5830, 0.0
      %v5859 = vsel %vm5404, %v5831, 0.0
      %v5860 = vsel %vm5405, %v5832, 0.0
      %v5861 = vsel %vm5406, %v5833, 0.0
      %v5862 = vsel %vm5403, %v5834, 0.0
      %v5863 = vsel %vm5404, %v5835, 0.0
      %v5864 = vsel %vm5405, %v5836, 0.0
      %v5865 = vsel %vm5406, %v5837, 0.0
      %v5866 = vsel %vm5403, %v5838, 0.0
      %v5867 = vsel %vm5404, %v5839, 0.0
      %v5868 = vsel %vm5405, %v5840, 0.0
      %v5869 = vsel %vm5406, %v5841, 0.0
      %v5870 = vsel %vm5403, %v5842, 0.0
      %v5871 = vsel %vm5404, %v5843, 0.0
      %v5872 = vsel %vm5405, %v5844, 0.0
      %v5873 = vsel %vm5406, %v5845, 0.0
      %v5874 = vmul.f32 %v5846, %v1997
      %v5875 = vmul.f32 %v5847, %v2001
      %v5876 = vmul.f32 %v5848, %v2005
      %v5877 = vmul.f32 %v5849, %v2009
      %v5878 = vmul.f32 %v5850, %v1997
      %v5879 = vmul.f32 %v5851, %v2001
      %v5880 = vmul.f32 %v5852, %v2005
      %v5881 = vmul.f32 %v5853, %v2009
      %v5882 = vmul.f32 %v5854, %v1997
      %v5883 = vmul.f32 %v5855, %v2001
      %v5884 = vmul.f32 %v5856, %v2005
      %v5885 = vmul.f32 %v5857, %v2009
      %v5886 = vmul.f32 %v5858, %v1997
      %v5887 = vmul.f32 %v5859, %v2001
      %v5888 = vmul.f32 %v5860, %v2005
      %v5889 = vmul.f32 %v5861, %v2009
      %v5890 = vmul.f32 %v5862, %v1997
      %v5891 = vmul.f32 %v5863, %v2001
      %v5892 = vmul.f32 %v5864, %v2005
      %v5893 = vmul.f32 %v5865, %v2009
      %v5894 = vmul.f32 %v5866, %v1997
      %v5895 = vmul.f32 %v5867, %v2001
      %v5896 = vmul.f32 %v5868, %v2005
      %v5897 = vmul.f32 %v5869, %v2009
      %v5898 = vmul.f32 %v5870, %v1997
      %v5899 = vmul.f32 %v5871, %v2001
      %v5900 = vmul.f32 %v5872, %v2005
      %v5901 = vmul.f32 %v5873, %v2009
      %5902 = vst [vmem:[#allocation4] sm:$0xff] 0.0
      %5903 = vst [vmem:[#allocation4 + $0x8] sm:$0xff] 0.0
      %5904 = vst [vmem:[#allocation4 + $0x10] sm:$0xff] 0.0
      %vm5905 = vcmask 162816
      %5906 = vst.msk [vmem:[#allocation4 + $0x18] sm:$0xff] %vm5905, 0.0
      %5907 = vst [vmem:[#allocation4 + $0x20] sm:$0xff] 0.0
      %5908 = vst [vmem:[#allocation4 + $0x28] sm:$0xff] 0.0
      %5909 = vst [vmem:[#allocation4 + $0x30] sm:$0xff] 0.0
      %5910 = vst.msk [vmem:[#allocation4 + $0x38] sm:$0xff] %vm5905, 0.0
      %5911 = vst [vmem:[#allocation4 + $0x40] sm:$0xff] 0.0
      %5912 = vst [vmem:[#allocation4 + $0x48] sm:$0xff] 0.0
      %5913 = vst [vmem:[#allocation4 + $0x50] sm:$0xff] 0.0
      %5914 = vst.msk [vmem:[#allocation4 + $0x58] sm:$0xff] %vm5905, 0.0
      %5915 = vst [vmem:[#allocation4 + $0x60] sm:$0xff] 0.0
      %5916 = vst [vmem:[#allocation4 + $0x68] sm:$0xff] 0.0
      %5917 = vst [vmem:[#allocation4 + $0x70] sm:$0xff] 0.0
      %5918 = vst.msk [vmem:[#allocation4 + $0x78] sm:$0xff] %vm5905, 0.0
      %5919 = vst [vmem:[#allocation4 + $0x80] sm:$0xff] 0.0
      %5920 = vst [vmem:[#allocation4 + $0x88] sm:$0xff] 0.0
      %5921 = vst [vmem:[#allocation4 + $0x90] sm:$0xff] 0.0
      %5922 = vst.msk [vmem:[#allocation4 + $0x98] sm:$0xff] %vm5905, 0.0
      %5923 = vst [vmem:[#allocation4 + $0xa0] sm:$0xff] 0.0
      %5924 = vst [vmem:[#allocation4 + $0xa8] sm:$0xff] 0.0
      %5925 = vst [vmem:[#allocation4 + $0xb0] sm:$0xff] 0.0
      %5926 = vst.msk [vmem:[#allocation4 + $0xb8] sm:$0xff] %vm5905, 0.0
      %5927 = vst [vmem:[#allocation4 + $0xc0] sm:$0xff] 0.0
      %5928 = vst [vmem:[#allocation4 + $0xc8] sm:$0xff] 0.0
      %5929 = vst [vmem:[#allocation4 + $0xd0] sm:$0xff] 0.0
      %5930 = vst.msk [vmem:[#allocation4 + $0xd8] sm:$0xff] %vm5905, 0.0
      %5959 = vrot.lane.b32.xlu0 %v5874, 2
      %v5960 = vpop.permute.xlu0 %5959
      %5961 = vrot.lane.b32.xlu0 %v5875, 2
      %v5962 = vpop.permute.xlu0 %5961
      %5963 = vrot.lane.b32.xlu0 %v5876, 2
      %v5964 = vpop.permute.xlu0 %5963
      %5965 = vrot.lane.b32.xlu0 %v5877, 2
      %v5966 = vpop.permute.xlu0 %5965
      %5967 = vrot.lane.b32.xlu0 %v5878, 2
      %v5968 = vpop.permute.xlu0 %5967
      %5969 = vrot.lane.b32.xlu0 %v5879, 2
      %v5970 = vpop.permute.xlu0 %5969
      %5971 = vrot.lane.b32.xlu0 %v5880, 2
      %v5972 = vpop.permute.xlu0 %5971
      %5973 = vrot.lane.b32.xlu0 %v5881, 2
      %v5974 = vpop.permute.xlu0 %5973
      %5975 = vrot.lane.b32.xlu0 %v5882, 2
      %v5976 = vpop.permute.xlu0 %5975
      %5977 = vrot.lane.b32.xlu0 %v5883, 2
      %v5978 = vpop.permute.xlu0 %5977
      %5979 = vrot.lane.b32.xlu0 %v5884, 2
      %v5980 = vpop.permute.xlu0 %5979
      %5981 = vrot.lane.b32.xlu0 %v5885, 2
      %v5982 = vpop.permute.xlu0 %5981
      %5983 = vrot.lane.b32.xlu0 %v5886, 2
      %v5984 = vpop.permute.xlu0 %5983
      %5985 = vrot.lane.b32.xlu0 %v5887, 2
      %v5986 = vpop.permute.xlu0 %5985
      %5987 = vrot.lane.b32.xlu0 %v5888, 2
      %v5988 = vpop.permute.xlu0 %5987
      %5989 = vrot.lane.b32.xlu0 %v5889, 2
      %v5990 = vpop.permute.xlu0 %5989
      %5991 = vrot.lane.b32.xlu0 %v5890, 2
      %v5992 = vpop.permute.xlu0 %5991
      %5993 = vrot.lane.b32.xlu0 %v5891, 2
      %v5994 = vpop.permute.xlu0 %5993
      %5995 = vrot.lane.b32.xlu0 %v5892, 2
      %v5996 = vpop.permute.xlu0 %5995
      %5997 = vrot.lane.b32.xlu0 %v5893, 2
      %v5998 = vpop.permute.xlu0 %5997
      %5999 = vrot.lane.b32.xlu0 %v5894, 2
      %v6000 = vpop.permute.xlu0 %5999
      %6001 = vrot.lane.b32.xlu0 %v5895, 2
      %v6002 = vpop.permute.xlu0 %6001
      %6003 = vrot.lane.b32.xlu0 %v5896, 2
      %v6004 = vpop.permute.xlu0 %6003
      %6005 = vrot.lane.b32.xlu0 %v5897, 2
      %v6006 = vpop.permute.xlu0 %6005
      %6007 = vrot.lane.b32.xlu0 %v5898, 2
      %v6008 = vpop.permute.xlu0 %6007
      %6009 = vrot.lane.b32.xlu0 %v5899, 2
      %v6010 = vpop.permute.xlu0 %6009
      %6011 = vrot.lane.b32.xlu0 %v5900, 2
      %v6012 = vpop.permute.xlu0 %6011
      %6013 = vrot.lane.b32.xlu0 %v5901, 2
      %v6014 = vpop.permute.xlu0 %6013
      %v6015 = vsel %vm2081, %v5960, %v5962
      %v6016 = vsel %vm2081, %v5962, %v5964
      %v6017 = vsel %vm2081, %v5964, %v5966
      %v6018 = vsel %vm2081, %v5968, %v5970
      %v6019 = vsel %vm2081, %v5970, %v5972
      %v6020 = vsel %vm2081, %v5972, %v5974
      %v6021 = vsel %vm2081, %v5976, %v5978
      %v6022 = vsel %vm2081, %v5978, %v5980
      %v6023 = vsel %vm2081, %v5980, %v5982
      %v6024 = vsel %vm2081, %v5984, %v5986
      %v6025 = vsel %vm2081, %v5986, %v5988
      %v6026 = vsel %vm2081, %v5988, %v5990
      %v6027 = vsel %vm2081, %v5992, %v5994
      %v6028 = vsel %vm2081, %v5994, %v5996
      %v6029 = vsel %vm2081, %v5996, %v5998
      %v6030 = vsel %vm2081, %v6000, %v6002
      %v6031 = vsel %vm2081, %v6002, %v6004
      %v6032 = vsel %vm2081, %v6004, %v6006
      %v6033 = vsel %vm2081, %v6008, %v6010
      %v6034 = vsel %vm2081, %v6010, %v6012
      %v6035 = vsel %vm2081, %v6012, %v6014
      %6064 = vst.msk [vmem:[#allocation4] sm:$0xff] %vm2100, %v5960
      %6065 = vst [vmem:[#allocation4 + $0x8] sm:$0xff] %v6015
      %6066 = vst [vmem:[#allocation4 + $0x10] sm:$0xff] %v6016
      %vm6067 = vcmask 146432
      %6068 = vst.msk [vmem:[#allocation4 + $0x18] sm:$0xff] %vm6067, %v6017
      %6069 = vst.msk [vmem:[#allocation4 + $0x20] sm:$0xff] %vm2100, %v5968
      %6070 = vst [vmem:[#allocation4 + $0x28] sm:$0xff] %v6018
      %6071 = vst [vmem:[#allocation4 + $0x30] sm:$0xff] %v6019
      %6072 = vst.msk [vmem:[#allocation4 + $0x38] sm:$0xff] %vm6067, %v6020
      %6073 = vst.msk [vmem:[#allocation4 + $0x40] sm:$0xff] %vm2100, %v5976
      %6074 = vst [vmem:[#allocation4 + $0x48] sm:$0xff] %v6021
      %6075 = vst [vmem:[#allocation4 + $0x50] sm:$0xff] %v6022
      %6076 = vst.msk [vmem:[#allocation4 + $0x58] sm:$0xff] %vm6067, %v6023
      %6077 = vst.msk [vmem:[#allocation4 + $0x60] sm:$0xff] %vm2100, %v5984
      %6078 = vst [vmem:[#allocation4 + $0x68] sm:$0xff] %v6024
      %6079 = vst [vmem:[#allocation4 + $0x70] sm:$0xff] %v6025
      %6080 = vst.msk [vmem:[#allocation4 + $0x78] sm:$0xff] %vm6067, %v6026
      %6081 = vst.msk [vmem:[#allocation4 + $0x80] sm:$0xff] %vm2100, %v5992
      %6082 = vst [vmem:[#allocation4 + $0x88] sm:$0xff] %v6027
      %6083 = vst [vmem:[#allocation4 + $0x90] sm:$0xff] %v6028
      %6084 = vst.msk [vmem:[#allocation4 + $0x98] sm:$0xff] %vm6067, %v6029
      %6085 = vst.msk [vmem:[#allocation4 + $0xa0] sm:$0xff] %vm2100, %v6000
      %6086 = vst [vmem:[#allocation4 + $0xa8] sm:$0xff] %v6030
      %6087 = vst [vmem:[#allocation4 + $0xb0] sm:$0xff] %v6031
      %6088 = vst.msk [vmem:[#allocation4 + $0xb8] sm:$0xff] %vm6067, %v6032
      %6089 = vst.msk [vmem:[#allocation4 + $0xc0] sm:$0xff] %vm2100, %v6008
      %6090 = vst [vmem:[#allocation4 + $0xc8] sm:$0xff] %v6033
      %6091 = vst [vmem:[#allocation4 + $0xd0] sm:$0xff] %v6034
      %6092 = vst.msk [vmem:[#allocation4 + $0xd8] sm:$0xff] %vm6067, %v6035
      %v6093 = vld [vmem:[#allocation4] sm:$0xff]
      %v6094 = vld [vmem:[#allocation4 + $0x8] sm:$0xff]
      %v6095 = vld [vmem:[#allocation4 + $0x10] sm:$0xff]
      %v6096 = vld [vmem:[#allocation4 + $0x18] sm:$0xff]
      %v6097 = vld [vmem:[#allocation4 + $0x20] sm:$0xff]
      %v6098 = vld [vmem:[#allocation4 + $0x28] sm:$0xff]
      %v6099 = vld [vmem:[#allocation4 + $0x30] sm:$0xff]
      %v6100 = vld [vmem:[#allocation4 + $0x38] sm:$0xff]
      %v6101 = vld [vmem:[#allocation4 + $0x40] sm:$0xff]
      %v6102 = vld [vmem:[#allocation4 + $0x48] sm:$0xff]
      %v6103 = vld [vmem:[#allocation4 + $0x50] sm:$0xff]
      %v6104 = vld [vmem:[#allocation4 + $0x58] sm:$0xff]
      %v6105 = vld [vmem:[#allocation4 + $0x60] sm:$0xff]
      %v6106 = vld [vmem:[#allocation4 + $0x68] sm:$0xff]
      %v6107 = vld [vmem:[#allocation4 + $0x70] sm:$0xff]
      %v6108 = vld [vmem:[#allocation4 + $0x78] sm:$0xff]
      %v6109 = vld [vmem:[#allocation4 + $0x80] sm:$0xff]
      %v6110 = vld [vmem:[#allocation4 + $0x88] sm:$0xff]
      %v6111 = vld [vmem:[#allocation4 + $0x90] sm:$0xff]
      %v6112 = vld [vmem:[#allocation4 + $0x98] sm:$0xff]
      %v6113 = vld [vmem:[#allocation4 + $0xa0] sm:$0xff]
      %v6114 = vld [vmem:[#allocation4 + $0xa8] sm:$0xff]
      %v6115 = vld [vmem:[#allocation4 + $0xb0] sm:$0xff]
      %v6116 = vld [vmem:[#allocation4 + $0xb8] sm:$0xff]
      %v6117 = vld [vmem:[#allocation4 + $0xc0] sm:$0xff]
      %v6118 = vld [vmem:[#allocation4 + $0xc8] sm:$0xff]
      %v6119 = vld [vmem:[#allocation4 + $0xd0] sm:$0xff]
      %v6120 = vld [vmem:[#allocation4 + $0xd8] sm:$0xff]
      %6142 = vrot.lane.b32.xlu0 %v6093, 127
      %v6143 = vpop.permute.xlu0 %6142
      %6144 = vrot.lane.b32.xlu0 %v6094, 127
      %v6145 = vpop.permute.xlu0 %6144
      %6146 = vrot.lane.b32.xlu0 %v6095, 127
      %v6147 = vpop.permute.xlu0 %6146
      %6148 = vrot.lane.b32.xlu0 %v6097, 127
      %v6149 = vpop.permute.xlu0 %6148
      %6150 = vrot.lane.b32.xlu0 %v6098, 127
      %v6151 = vpop.permute.xlu0 %6150
      %6152 = vrot.lane.b32.xlu0 %v6099, 127
      %v6153 = vpop.permute.xlu0 %6152
      %6154 = vrot.lane.b32.xlu0 %v6101, 127
      %v6155 = vpop.permute.xlu0 %6154
      %6156 = vrot.lane.b32.xlu0 %v6102, 127
      %v6157 = vpop.permute.xlu0 %6156
      %6158 = vrot.lane.b32.xlu0 %v6103, 127
      %v6159 = vpop.permute.xlu0 %6158
      %6160 = vrot.lane.b32.xlu0 %v6105, 127
      %v6161 = vpop.permute.xlu0 %6160
      %6162 = vrot.lane.b32.xlu0 %v6106, 127
      %v6163 = vpop.permute.xlu0 %6162
      %6164 = vrot.lane.b32.xlu0 %v6107, 127
      %v6165 = vpop.permute.xlu0 %6164
      %6166 = vrot.lane.b32.xlu0 %v6109, 127
      %v6167 = vpop.permute.xlu0 %6166
      %6168 = vrot.lane.b32.xlu0 %v6110, 127
      %v6169 = vpop.permute.xlu0 %6168
      %6170 = vrot.lane.b32.xlu0 %v6111, 127
      %v6171 = vpop.permute.xlu0 %6170
      %6172 = vrot.lane.b32.xlu0 %v6113, 127
      %v6173 = vpop.permute.xlu0 %6172
      %6174 = vrot.lane.b32.xlu0 %v6114, 127
      %v6175 = vpop.permute.xlu0 %6174
      %6176 = vrot.lane.b32.xlu0 %v6115, 127
      %v6177 = vpop.permute.xlu0 %6176
      %6178 = vrot.lane.b32.xlu0 %v6117, 127
      %v6179 = vpop.permute.xlu0 %6178
      %6180 = vrot.lane.b32.xlu0 %v6118, 127
      %v6181 = vpop.permute.xlu0 %6180
      %6182 = vrot.lane.b32.xlu0 %v6119, 127
      %v6183 = vpop.permute.xlu0 %6182
      %v6184 = vsel %vm605, %v6143, %v6145
      %v6185 = vsel %vm605, %v6145, %v6147
      %v6186 = vsel %vm605, %v6149, %v6151
      %v6187 = vsel %vm605, %v6151, %v6153
      %v6188 = vsel %vm605, %v6155, %v6157
      %v6189 = vsel %vm605, %v6157, %v6159
      %v6190 = vsel %vm605, %v6161, %v6163
      %v6191 = vsel %vm605, %v6163, %v6165
      %v6192 = vsel %vm605, %v6167, %v6169
      %v6193 = vsel %vm605, %v6169, %v6171
      %v6194 = vsel %vm605, %v6173, %v6175
      %v6195 = vsel %vm605, %v6175, %v6177
      %v6196 = vsel %vm605, %v6179, %v6181
      %v6197 = vsel %vm605, %v6181, %v6183
      %6219 = vrot.lane.b32.xlu0 %v6093, 126
      %v6220 = vpop.permute.xlu0 %6219
      %6221 = vrot.lane.b32.xlu0 %v6094, 126
      %v6222 = vpop.permute.xlu0 %6221
      %6223 = vrot.lane.b32.xlu0 %v6095, 126
      %v6224 = vpop.permute.xlu0 %6223
      %6225 = vrot.lane.b32.xlu0 %v6097, 126
      %v6226 = vpop.permute.xlu0 %6225
      %6227 = vrot.lane.b32.xlu0 %v6098, 126
      %v6228 = vpop.permute.xlu0 %6227
      %6229 = vrot.lane.b32.xlu0 %v6099, 126
      %v6230 = vpop.permute.xlu0 %6229
      %6231 = vrot.lane.b32.xlu0 %v6101, 126
      %v6232 = vpop.permute.xlu0 %6231
      %6233 = vrot.lane.b32.xlu0 %v6102, 126
      %v6234 = vpop.permute.xlu0 %6233
      %6235 = vrot.lane.b32.xlu0 %v6103, 126
      %v6236 = vpop.permute.xlu0 %6235
      %6237 = vrot.lane.b32.xlu0 %v6105, 126
      %v6238 = vpop.permute.xlu0 %6237
      %6239 = vrot.lane.b32.xlu0 %v6106, 126
      %v6240 = vpop.permute.xlu0 %6239
      %6241 = vrot.lane.b32.xlu0 %v6107, 126
      %v6242 = vpop.permute.xlu0 %6241
      %6243 = vrot.lane.b32.xlu0 %v6109, 126
      %v6244 = vpop.permute.xlu0 %6243
      %6245 = vrot.lane.b32.xlu0 %v6110, 126
      %v6246 = vpop.permute.xlu0 %6245
      %6247 = vrot.lane.b32.xlu0 %v6111, 126
      %v6248 = vpop.permute.xlu0 %6247
      %6249 = vrot.lane.b32.xlu0 %v6113, 126
      %v6250 = vpop.permute.xlu0 %6249
      %6251 = vrot.lane.b32.xlu0 %v6114, 126
      %v6252 = vpop.permute.xlu0 %6251
      %6253 = vrot.lane.b32.xlu0 %v6115, 126
      %v6254 = vpop.permute.xlu0 %6253
      %6255 = vrot.lane.b32.xlu0 %v6117, 126
      %v6256 = vpop.permute.xlu0 %6255
      %6257 = vrot.lane.b32.xlu0 %v6118, 126
      %v6258 = vpop.permute.xlu0 %6257
      %6259 = vrot.lane.b32.xlu0 %v6119, 126
      %v6260 = vpop.permute.xlu0 %6259
      %v6261 = vsel %vm630, %v6220, %v6222
      %v6262 = vsel %vm630, %v6222, %v6224
      %v6263 = vsel %vm630, %v6226, %v6228
      %v6264 = vsel %vm630, %v6228, %v6230
      %v6265 = vsel %vm630, %v6232, %v6234
      %v6266 = vsel %vm630, %v6234, %v6236
      %v6267 = vsel %vm630, %v6238, %v6240
      %v6268 = vsel %vm630, %v6240, %v6242
      %v6269 = vsel %vm630, %v6244, %v6246
      %v6270 = vsel %vm630, %v6246, %v6248
      %v6271 = vsel %vm630, %v6250, %v6252
      %v6272 = vsel %vm630, %v6252, %v6254
      %v6273 = vsel %vm630, %v6256, %v6258
      %v6274 = vsel %vm630, %v6258, %v6260
      %6296 = vrot.lane.b32.xlu0 %v6093, 125
      %v6297 = vpop.permute.xlu0 %6296
      %6298 = vrot.lane.b32.xlu0 %v6094, 125
      %v6299 = vpop.permute.xlu0 %6298
      %6300 = vrot.lane.b32.xlu0 %v6095, 125
      %v6301 = vpop.permute.xlu0 %6300
      %6302 = vrot.lane.b32.xlu0 %v6097, 125
      %v6303 = vpop.permute.xlu0 %6302
      %6304 = vrot.lane.b32.xlu0 %v6098, 125
      %v6305 = vpop.permute.xlu0 %6304
      %6306 = vrot.lane.b32.xlu0 %v6099, 125
      %v6307 = vpop.permute.xlu0 %6306
      %6308 = vrot.lane.b32.xlu0 %v6101, 125
      %v6309 = vpop.permute.xlu0 %6308
      %6310 = vrot.lane.b32.xlu0 %v6102, 125
      %v6311 = vpop.permute.xlu0 %6310
      %6312 = vrot.lane.b32.xlu0 %v6103, 125
      %v6313 = vpop.permute.xlu0 %6312
      %6314 = vrot.lane.b32.xlu0 %v6105, 125
      %v6315 = vpop.permute.xlu0 %6314
      %6316 = vrot.lane.b32.xlu0 %v6106, 125
      %v6317 = vpop.permute.xlu0 %6316
      %6318 = vrot.lane.b32.xlu0 %v6107, 125
      %v6319 = vpop.permute.xlu0 %6318
      %6320 = vrot.lane.b32.xlu0 %v6109, 125
      %v6321 = vpop.permute.xlu0 %6320
      %6322 = vrot.lane.b32.xlu0 %v6110, 125
      %v6323 = vpop.permute.xlu0 %6322
      %6324 = vrot.lane.b32.xlu0 %v6111, 125
      %v6325 = vpop.permute.xlu0 %6324
      %6326 = vrot.lane.b32.xlu0 %v6113, 125
      %v6327 = vpop.permute.xlu0 %6326
      %6328 = vrot.lane.b32.xlu0 %v6114, 125
      %v6329 = vpop.permute.xlu0 %6328
      %6330 = vrot.lane.b32.xlu0 %v6115, 125
      %v6331 = vpop.permute.xlu0 %6330
      %6332 = vrot.lane.b32.xlu0 %v6117, 125
      %v6333 = vpop.permute.xlu0 %6332
      %6334 = vrot.lane.b32.xlu0 %v6118, 125
      %v6335 = vpop.permute.xlu0 %6334
      %6336 = vrot.lane.b32.xlu0 %v6119, 125
      %v6337 = vpop.permute.xlu0 %6336
      %v6338 = vsel %vm655, %v6297, %v6299
      %v6339 = vsel %vm655, %v6299, %v6301
      %v6340 = vsel %vm655, %v6303, %v6305
      %v6341 = vsel %vm655, %v6305, %v6307
      %v6342 = vsel %vm655, %v6309, %v6311
      %v6343 = vsel %vm655, %v6311, %v6313
      %v6344 = vsel %vm655, %v6315, %v6317
      %v6345 = vsel %vm655, %v6317, %v6319
      %v6346 = vsel %vm655, %v6321, %v6323
      %v6347 = vsel %vm655, %v6323, %v6325
      %v6348 = vsel %vm655, %v6327, %v6329
      %v6349 = vsel %vm655, %v6329, %v6331
      %v6350 = vsel %vm655, %v6333, %v6335
      %v6351 = vsel %vm655, %v6335, %v6337
      %6373 = vrot.lane.b32.xlu0 %v6093, 124
      %v6374 = vpop.permute.xlu0 %6373
      %6375 = vrot.lane.b32.xlu0 %v6094, 124
      %v6376 = vpop.permute.xlu0 %6375
      %6377 = vrot.lane.b32.xlu0 %v6095, 124
      %v6378 = vpop.permute.xlu0 %6377
      %6379 = vrot.lane.b32.xlu0 %v6097, 124
      %v6380 = vpop.permute.xlu0 %6379
      %6381 = vrot.lane.b32.xlu0 %v6098, 124
      %v6382 = vpop.permute.xlu0 %6381
      %6383 = vrot.lane.b32.xlu0 %v6099, 124
      %v6384 = vpop.permute.xlu0 %6383
      %6385 = vrot.lane.b32.xlu0 %v6101, 124
      %v6386 = vpop.permute.xlu0 %6385
      %6387 = vrot.lane.b32.xlu0 %v6102, 124
      %v6388 = vpop.permute.xlu0 %6387
      %6389 = vrot.lane.b32.xlu0 %v6103, 124
      %v6390 = vpop.permute.xlu0 %6389
      %6391 = vrot.lane.b32.xlu0 %v6105, 124
      %v6392 = vpop.permute.xlu0 %6391
      %6393 = vrot.lane.b32.xlu0 %v6106, 124
      %v6394 = vpop.permute.xlu0 %6393
      %6395 = vrot.lane.b32.xlu0 %v6107, 124
      %v6396 = vpop.permute.xlu0 %6395
      %6397 = vrot.lane.b32.xlu0 %v6109, 124
      %v6398 = vpop.permute.xlu0 %6397
      %6399 = vrot.lane.b32.xlu0 %v6110, 124
      %v6400 = vpop.permute.xlu0 %6399
      %6401 = vrot.lane.b32.xlu0 %v6111, 124
      %v6402 = vpop.permute.xlu0 %6401
      %6403 = vrot.lane.b32.xlu0 %v6113, 124
      %v6404 = vpop.permute.xlu0 %6403
      %6405 = vrot.lane.b32.xlu0 %v6114, 124
      %v6406 = vpop.permute.xlu0 %6405
      %6407 = vrot.lane.b32.xlu0 %v6115, 124
      %v6408 = vpop.permute.xlu0 %6407
      %6409 = vrot.lane.b32.xlu0 %v6117, 124
      %v6410 = vpop.permute.xlu0 %6409
      %6411 = vrot.lane.b32.xlu0 %v6118, 124
      %v6412 = vpop.permute.xlu0 %6411
      %6413 = vrot.lane.b32.xlu0 %v6119, 124
      %v6414 = vpop.permute.xlu0 %6413
      %v6415 = vsel %vm678, %v6374, %v6376
      %v6416 = vsel %vm678, %v6376, %v6378
      %v6417 = vsel %vm678, %v6380, %v6382
      %v6418 = vsel %vm678, %v6382, %v6384
      %v6419 = vsel %vm678, %v6386, %v6388
      %v6420 = vsel %vm678, %v6388, %v6390
      %v6421 = vsel %vm678, %v6392, %v6394
      %v6422 = vsel %vm678, %v6394, %v6396
      %v6423 = vsel %vm678, %v6398, %v6400
      %v6424 = vsel %vm678, %v6400, %v6402
      %v6425 = vsel %vm678, %v6404, %v6406
      %v6426 = vsel %vm678, %v6406, %v6408
      %v6427 = vsel %vm678, %v6410, %v6412
      %v6428 = vsel %vm678, %v6412, %v6414
      %6450 = vrot.lane.b32.xlu0 %v6093, 108
      %v6451 = vpop.permute.xlu0 %6450
      %6452 = vrot.lane.b32.xlu0 %v6094, 108
      %v6453 = vpop.permute.xlu0 %6452
      %6454 = vrot.lane.b32.xlu0 %v6095, 108
      %v6455 = vpop.permute.xlu0 %6454
      %6456 = vrot.lane.b32.xlu0 %v6097, 108
      %v6457 = vpop.permute.xlu0 %6456
      %6458 = vrot.lane.b32.xlu0 %v6098, 108
      %v6459 = vpop.permute.xlu0 %6458
      %6460 = vrot.lane.b32.xlu0 %v6099, 108
      %v6461 = vpop.permute.xlu0 %6460
      %6462 = vrot.lane.b32.xlu0 %v6101, 108
      %v6463 = vpop.permute.xlu0 %6462
      %6464 = vrot.lane.b32.xlu0 %v6102, 108
      %v6465 = vpop.permute.xlu0 %6464
      %6466 = vrot.lane.b32.xlu0 %v6103, 108
      %v6467 = vpop.permute.xlu0 %6466
      %6468 = vrot.lane.b32.xlu0 %v6105, 108
      %v6469 = vpop.permute.xlu0 %6468
      %6470 = vrot.lane.b32.xlu0 %v6106, 108
      %v6471 = vpop.permute.xlu0 %6470
      %6472 = vrot.lane.b32.xlu0 %v6107, 108
      %v6473 = vpop.permute.xlu0 %6472
      %6474 = vrot.lane.b32.xlu0 %v6109, 108
      %v6475 = vpop.permute.xlu0 %6474
      %6476 = vrot.lane.b32.xlu0 %v6110, 108
      %v6477 = vpop.permute.xlu0 %6476
      %6478 = vrot.lane.b32.xlu0 %v6111, 108
      %v6479 = vpop.permute.xlu0 %6478
      %6480 = vrot.lane.b32.xlu0 %v6113, 108
      %v6481 = vpop.permute.xlu0 %6480
      %6482 = vrot.lane.b32.xlu0 %v6114, 108
      %v6483 = vpop.permute.xlu0 %6482
      %6484 = vrot.lane.b32.xlu0 %v6115, 108
      %v6485 = vpop.permute.xlu0 %6484
      %6486 = vrot.lane.b32.xlu0 %v6117, 108
      %v6487 = vpop.permute.xlu0 %6486
      %6488 = vrot.lane.b32.xlu0 %v6118, 108
      %v6489 = vpop.permute.xlu0 %6488
      %6490 = vrot.lane.b32.xlu0 %v6119, 108
      %v6491 = vpop.permute.xlu0 %6490
      %v6492 = vsel %vm703, %v6451, %v6453
      %v6493 = vsel %vm703, %v6453, %v6455
      %v6494 = vsel %vm703, %v6457, %v6459
      %v6495 = vsel %vm703, %v6459, %v6461
      %v6496 = vsel %vm703, %v6463, %v6465
      %v6497 = vsel %vm703, %v6465, %v6467
      %v6498 = vsel %vm703, %v6469, %v6471
      %v6499 = vsel %vm703, %v6471, %v6473
      %v6500 = vsel %vm703, %v6475, %v6477
      %v6501 = vsel %vm703, %v6477, %v6479
      %v6502 = vsel %vm703, %v6481, %v6483
      %v6503 = vsel %vm703, %v6483, %v6485
      %v6504 = vsel %vm703, %v6487, %v6489
      %v6505 = vsel %vm703, %v6489, %v6491
      %6527 = vrot.lane.b32.xlu0 %v6093, 107
      %v6528 = vpop.permute.xlu0 %6527
      %6529 = vrot.lane.b32.xlu0 %v6094, 107
      %v6530 = vpop.permute.xlu0 %6529
      %6531 = vrot.lane.b32.xlu0 %v6095, 107
      %v6532 = vpop.permute.xlu0 %6531
      %6533 = vrot.lane.b32.xlu0 %v6097, 107
      %v6534 = vpop.permute.xlu0 %6533
      %6535 = vrot.lane.b32.xlu0 %v6098, 107
      %v6536 = vpop.permute.xlu0 %6535
      %6537 = vrot.lane.b32.xlu0 %v6099, 107
      %v6538 = vpop.permute.xlu0 %6537
      %6539 = vrot.lane.b32.xlu0 %v6101, 107
      %v6540 = vpop.permute.xlu0 %6539
      %6541 = vrot.lane.b32.xlu0 %v6102, 107
      %v6542 = vpop.permute.xlu0 %6541
      %6543 = vrot.lane.b32.xlu0 %v6103, 107
      %v6544 = vpop.permute.xlu0 %6543
      %6545 = vrot.lane.b32.xlu0 %v6105, 107
      %v6546 = vpop.permute.xlu0 %6545
      %6547 = vrot.lane.b32.xlu0 %v6106, 107
      %v6548 = vpop.permute.xlu0 %6547
      %6549 = vrot.lane.b32.xlu0 %v6107, 107
      %v6550 = vpop.permute.xlu0 %6549
      %6551 = vrot.lane.b32.xlu0 %v6109, 107
      %v6552 = vpop.permute.xlu0 %6551
      %6553 = vrot.lane.b32.xlu0 %v6110, 107
      %v6554 = vpop.permute.xlu0 %6553
      %6555 = vrot.lane.b32.xlu0 %v6111, 107
      %v6556 = vpop.permute.xlu0 %6555
      %6557 = vrot.lane.b32.xlu0 %v6113, 107
      %v6558 = vpop.permute.xlu0 %6557
      %6559 = vrot.lane.b32.xlu0 %v6114, 107
      %v6560 = vpop.permute.xlu0 %6559
      %6561 = vrot.lane.b32.xlu0 %v6115, 107
      %v6562 = vpop.permute.xlu0 %6561
      %6563 = vrot.lane.b32.xlu0 %v6117, 107
      %v6564 = vpop.permute.xlu0 %6563
      %6565 = vrot.lane.b32.xlu0 %v6118, 107
      %v6566 = vpop.permute.xlu0 %6565
      %6567 = vrot.lane.b32.xlu0 %v6119, 107
      %v6568 = vpop.permute.xlu0 %6567
      %v6569 = vsel %vm728, %v6528, %v6530
      %v6570 = vsel %vm728, %v6530, %v6532
      %v6571 = vsel %vm728, %v6534, %v6536
      %v6572 = vsel %vm728, %v6536, %v6538
      %v6573 = vsel %vm728, %v6540, %v6542
      %v6574 = vsel %vm728, %v6542, %v6544
      %v6575 = vsel %vm728, %v6546, %v6548
      %v6576 = vsel %vm728, %v6548, %v6550
      %v6577 = vsel %vm728, %v6552, %v6554
      %v6578 = vsel %vm728, %v6554, %v6556
      %v6579 = vsel %vm728, %v6558, %v6560
      %v6580 = vsel %vm728, %v6560, %v6562
      %v6581 = vsel %vm728, %v6564, %v6566
      %v6582 = vsel %vm728, %v6566, %v6568
      %6604 = vrot.lane.b32.xlu0 %v6093, 106
      %v6605 = vpop.permute.xlu0 %6604
      %6606 = vrot.lane.b32.xlu0 %v6094, 106
      %v6607 = vpop.permute.xlu0 %6606
      %6608 = vrot.lane.b32.xlu0 %v6095, 106
      %v6609 = vpop.permute.xlu0 %6608
      %6610 = vrot.lane.b32.xlu0 %v6097, 106
      %v6611 = vpop.permute.xlu0 %6610
      %6612 = vrot.lane.b32.xlu0 %v6098, 106
      %v6613 = vpop.permute.xlu0 %6612
      %6614 = vrot.lane.b32.xlu0 %v6099, 106
      %v6615 = vpop.permute.xlu0 %6614
      %6616 = vrot.lane.b32.xlu0 %v6101, 106
      %v6617 = vpop.permute.xlu0 %6616
      %6618 = vrot.lane.b32.xlu0 %v6102, 106
      %v6619 = vpop.permute.xlu0 %6618
      %6620 = vrot.lane.b32.xlu0 %v6103, 106
      %v6621 = vpop.permute.xlu0 %6620
      %6622 = vrot.lane.b32.xlu0 %v6105, 106
      %v6623 = vpop.permute.xlu0 %6622
      %6624 = vrot.lane.b32.xlu0 %v6106, 106
      %v6625 = vpop.permute.xlu0 %6624
      %6626 = vrot.lane.b32.xlu0 %v6107, 106
      %v6627 = vpop.permute.xlu0 %6626
      %6628 = vrot.lane.b32.xlu0 %v6109, 106
      %v6629 = vpop.permute.xlu0 %6628
      %6630 = vrot.lane.b32.xlu0 %v6110, 106
      %v6631 = vpop.permute.xlu0 %6630
      %6632 = vrot.lane.b32.xlu0 %v6111, 106
      %v6633 = vpop.permute.xlu0 %6632
      %6634 = vrot.lane.b32.xlu0 %v6113, 106
      %v6635 = vpop.permute.xlu0 %6634
      %6636 = vrot.lane.b32.xlu0 %v6114, 106
      %v6637 = vpop.permute.xlu0 %6636
      %6638 = vrot.lane.b32.xlu0 %v6115, 106
      %v6639 = vpop.permute.xlu0 %6638
      %6640 = vrot.lane.b32.xlu0 %v6117, 106
      %v6641 = vpop.permute.xlu0 %6640
      %6642 = vrot.lane.b32.xlu0 %v6118, 106
      %v6643 = vpop.permute.xlu0 %6642
      %6644 = vrot.lane.b32.xlu0 %v6119, 106
      %v6645 = vpop.permute.xlu0 %6644
      %v6646 = vsel %vm753, %v6605, %v6607
      %v6647 = vsel %vm753, %v6607, %v6609
      %v6648 = vsel %vm753, %v6611, %v6613
      %v6649 = vsel %vm753, %v6613, %v6615
      %v6650 = vsel %vm753, %v6617, %v6619
      %v6651 = vsel %vm753, %v6619, %v6621
      %v6652 = vsel %vm753, %v6623, %v6625
      %v6653 = vsel %vm753, %v6625, %v6627
      %v6654 = vsel %vm753, %v6629, %v6631
      %v6655 = vsel %vm753, %v6631, %v6633
      %v6656 = vsel %vm753, %v6635, %v6637
      %v6657 = vsel %vm753, %v6637, %v6639
      %v6658 = vsel %vm753, %v6641, %v6643
      %v6659 = vsel %vm753, %v6643, %v6645
      %6681 = vrot.lane.b32.xlu0 %v6093, 105
      %v6682 = vpop.permute.xlu0 %6681
      %6683 = vrot.lane.b32.xlu0 %v6094, 105
      %v6684 = vpop.permute.xlu0 %6683
      %6685 = vrot.lane.b32.xlu0 %v6095, 105
      %v6686 = vpop.permute.xlu0 %6685
      %6687 = vrot.lane.b32.xlu0 %v6097, 105
      %v6688 = vpop.permute.xlu0 %6687
      %6689 = vrot.lane.b32.xlu0 %v6098, 105
      %v6690 = vpop.permute.xlu0 %6689
      %6691 = vrot.lane.b32.xlu0 %v6099, 105
      %v6692 = vpop.permute.xlu0 %6691
      %6693 = vrot.lane.b32.xlu0 %v6101, 105
      %v6694 = vpop.permute.xlu0 %6693
      %6695 = vrot.lane.b32.xlu0 %v6102, 105
      %v6696 = vpop.permute.xlu0 %6695
      %6697 = vrot.lane.b32.xlu0 %v6103, 105
      %v6698 = vpop.permute.xlu0 %6697
      %6699 = vrot.lane.b32.xlu0 %v6105, 105
      %v6700 = vpop.permute.xlu0 %6699
      %6701 = vrot.lane.b32.xlu0 %v6106, 105
      %v6702 = vpop.permute.xlu0 %6701
      %6703 = vrot.lane.b32.xlu0 %v6107, 105
      %v6704 = vpop.permute.xlu0 %6703
      %6705 = vrot.lane.b32.xlu0 %v6109, 105
      %v6706 = vpop.permute.xlu0 %6705
      %6707 = vrot.lane.b32.xlu0 %v6110, 105
      %v6708 = vpop.permute.xlu0 %6707
      %6709 = vrot.lane.b32.xlu0 %v6111, 105
      %v6710 = vpop.permute.xlu0 %6709
      %6711 = vrot.lane.b32.xlu0 %v6113, 105
      %v6712 = vpop.permute.xlu0 %6711
      %6713 = vrot.lane.b32.xlu0 %v6114, 105
      %v6714 = vpop.permute.xlu0 %6713
      %6715 = vrot.lane.b32.xlu0 %v6115, 105
      %v6716 = vpop.permute.xlu0 %6715
      %6717 = vrot.lane.b32.xlu0 %v6117, 105
      %v6718 = vpop.permute.xlu0 %6717
      %6719 = vrot.lane.b32.xlu0 %v6118, 105
      %v6720 = vpop.permute.xlu0 %6719
      %6721 = vrot.lane.b32.xlu0 %v6119, 105
      %v6722 = vpop.permute.xlu0 %6721
      %v6723 = vsel %vm773, %v6682, %v6684
      %v6724 = vsel %vm773, %v6684, %v6686
      %v6725 = vsel %vm773, %v6688, %v6690
      %v6726 = vsel %vm773, %v6690, %v6692
      %v6727 = vsel %vm773, %v6694, %v6696
      %v6728 = vsel %vm773, %v6696, %v6698
      %v6729 = vsel %vm773, %v6700, %v6702
      %v6730 = vsel %vm773, %v6702, %v6704
      %v6731 = vsel %vm773, %v6706, %v6708
      %v6732 = vsel %vm773, %v6708, %v6710
      %v6733 = vsel %vm773, %v6712, %v6714
      %v6734 = vsel %vm773, %v6714, %v6716
      %v6735 = vsel %vm773, %v6718, %v6720
      %v6736 = vsel %vm773, %v6720, %v6722
      %6758 = vrot.lane.b32.xlu0 %v6093, 104
      %v6759 = vpop.permute.xlu0 %6758
      %6760 = vrot.lane.b32.xlu0 %v6094, 104
      %v6761 = vpop.permute.xlu0 %6760
      %6762 = vrot.lane.b32.xlu0 %v6095, 104
      %v6763 = vpop.permute.xlu0 %6762
      %6764 = vrot.lane.b32.xlu0 %v6097, 104
      %v6765 = vpop.permute.xlu0 %6764
      %6766 = vrot.lane.b32.xlu0 %v6098, 104
      %v6767 = vpop.permute.xlu0 %6766
      %6768 = vrot.lane.b32.xlu0 %v6099, 104
      %v6769 = vpop.permute.xlu0 %6768
      %6770 = vrot.lane.b32.xlu0 %v6101, 104
      %v6771 = vpop.permute.xlu0 %6770
      %6772 = vrot.lane.b32.xlu0 %v6102, 104
      %v6773 = vpop.permute.xlu0 %6772
      %6774 = vrot.lane.b32.xlu0 %v6103, 104
      %v6775 = vpop.permute.xlu0 %6774
      %6776 = vrot.lane.b32.xlu0 %v6105, 104
      %v6777 = vpop.permute.xlu0 %6776
      %6778 = vrot.lane.b32.xlu0 %v6106, 104
      %v6779 = vpop.permute.xlu0 %6778
      %6780 = vrot.lane.b32.xlu0 %v6107, 104
      %v6781 = vpop.permute.xlu0 %6780
      %6782 = vrot.lane.b32.xlu0 %v6109, 104
      %v6783 = vpop.permute.xlu0 %6782
      %6784 = vrot.lane.b32.xlu0 %v6110, 104
      %v6785 = vpop.permute.xlu0 %6784
      %6786 = vrot.lane.b32.xlu0 %v6111, 104
      %v6787 = vpop.permute.xlu0 %6786
      %6788 = vrot.lane.b32.xlu0 %v6113, 104
      %v6789 = vpop.permute.xlu0 %6788
      %6790 = vrot.lane.b32.xlu0 %v6114, 104
      %v6791 = vpop.permute.xlu0 %6790
      %6792 = vrot.lane.b32.xlu0 %v6115, 104
      %v6793 = vpop.permute.xlu0 %6792
      %6794 = vrot.lane.b32.xlu0 %v6117, 104
      %v6795 = vpop.permute.xlu0 %6794
      %6796 = vrot.lane.b32.xlu0 %v6118, 104
      %v6797 = vpop.permute.xlu0 %6796
      %6798 = vrot.lane.b32.xlu0 %v6119, 104
      %v6799 = vpop.permute.xlu0 %6798
      %v6800 = vsel %vm793, %v6759, %v6761
      %v6801 = vsel %vm793, %v6761, %v6763
      %v6802 = vsel %vm793, %v6765, %v6767
      %v6803 = vsel %vm793, %v6767, %v6769
      %v6804 = vsel %vm793, %v6771, %v6773
      %v6805 = vsel %vm793, %v6773, %v6775
      %v6806 = vsel %vm793, %v6777, %v6779
      %v6807 = vsel %vm793, %v6779, %v6781
      %v6808 = vsel %vm793, %v6783, %v6785
      %v6809 = vsel %vm793, %v6785, %v6787
      %v6810 = vsel %vm793, %v6789, %v6791
      %v6811 = vsel %vm793, %v6791, %v6793
      %v6812 = vsel %vm793, %v6795, %v6797
      %v6813 = vsel %vm793, %v6797, %v6799
      %6835 = vrot.lane.b32.xlu0 %v6093, 88
      %v6836 = vpop.permute.xlu0 %6835
      %6837 = vrot.lane.b32.xlu0 %v6094, 88
      %v6838 = vpop.permute.xlu0 %6837
      %6839 = vrot.lane.b32.xlu0 %v6095, 88
      %v6840 = vpop.permute.xlu0 %6839
      %6841 = vrot.lane.b32.xlu0 %v6097, 88
      %v6842 = vpop.permute.xlu0 %6841
      %6843 = vrot.lane.b32.xlu0 %v6098, 88
      %v6844 = vpop.permute.xlu0 %6843
      %6845 = vrot.lane.b32.xlu0 %v6099, 88
      %v6846 = vpop.permute.xlu0 %6845
      %6847 = vrot.lane.b32.xlu0 %v6101, 88
      %v6848 = vpop.permute.xlu0 %6847
      %6849 = vrot.lane.b32.xlu0 %v6102, 88
      %v6850 = vpop.permute.xlu0 %6849
      %6851 = vrot.lane.b32.xlu0 %v6103, 88
      %v6852 = vpop.permute.xlu0 %6851
      %6853 = vrot.lane.b32.xlu0 %v6105, 88
      %v6854 = vpop.permute.xlu0 %6853
      %6855 = vrot.lane.b32.xlu0 %v6106, 88
      %v6856 = vpop.permute.xlu0 %6855
      %6857 = vrot.lane.b32.xlu0 %v6107, 88
      %v6858 = vpop.permute.xlu0 %6857
      %6859 = vrot.lane.b32.xlu0 %v6109, 88
      %v6860 = vpop.permute.xlu0 %6859
      %6861 = vrot.lane.b32.xlu0 %v6110, 88
      %v6862 = vpop.permute.xlu0 %6861
      %6863 = vrot.lane.b32.xlu0 %v6111, 88
      %v6864 = vpop.permute.xlu0 %6863
      %6865 = vrot.lane.b32.xlu0 %v6113, 88
      %v6866 = vpop.permute.xlu0 %6865
      %6867 = vrot.lane.b32.xlu0 %v6114, 88
      %v6868 = vpop.permute.xlu0 %6867
      %6869 = vrot.lane.b32.xlu0 %v6115, 88
      %v6870 = vpop.permute.xlu0 %6869
      %6871 = vrot.lane.b32.xlu0 %v6117, 88
      %v6872 = vpop.permute.xlu0 %6871
      %6873 = vrot.lane.b32.xlu0 %v6118, 88
      %v6874 = vpop.permute.xlu0 %6873
      %6875 = vrot.lane.b32.xlu0 %v6119, 88
      %v6876 = vpop.permute.xlu0 %6875
      %v6877 = vsel %vm813, %v6836, %v6838
      %v6878 = vsel %vm813, %v6838, %v6840
      %v6879 = vsel %vm813, %v6842, %v6844
      %v6880 = vsel %vm813, %v6844, %v6846
      %v6881 = vsel %vm813, %v6848, %v6850
      %v6882 = vsel %vm813, %v6850, %v6852
      %v6883 = vsel %vm813, %v6854, %v6856
      %v6884 = vsel %vm813, %v6856, %v6858
      %v6885 = vsel %vm813, %v6860, %v6862
      %v6886 = vsel %vm813, %v6862, %v6864
      %v6887 = vsel %vm813, %v6866, %v6868
      %v6888 = vsel %vm813, %v6868, %v6870
      %v6889 = vsel %vm813, %v6872, %v6874
      %v6890 = vsel %vm813, %v6874, %v6876
      %6912 = vrot.lane.b32.xlu0 %v6093, 87
      %v6913 = vpop.permute.xlu0 %6912
      %6914 = vrot.lane.b32.xlu0 %v6094, 87
      %v6915 = vpop.permute.xlu0 %6914
      %6916 = vrot.lane.b32.xlu0 %v6095, 87
      %v6917 = vpop.permute.xlu0 %6916
      %6918 = vrot.lane.b32.xlu0 %v6097, 87
      %v6919 = vpop.permute.xlu0 %6918
      %6920 = vrot.lane.b32.xlu0 %v6098, 87
      %v6921 = vpop.permute.xlu0 %6920
      %6922 = vrot.lane.b32.xlu0 %v6099, 87
      %v6923 = vpop.permute.xlu0 %6922
      %6924 = vrot.lane.b32.xlu0 %v6101, 87
      %v6925 = vpop.permute.xlu0 %6924
      %6926 = vrot.lane.b32.xlu0 %v6102, 87
      %v6927 = vpop.permute.xlu0 %6926
      %6928 = vrot.lane.b32.xlu0 %v6103, 87
      %v6929 = vpop.permute.xlu0 %6928
      %6930 = vrot.lane.b32.xlu0 %v6105, 87
      %v6931 = vpop.permute.xlu0 %6930
      %6932 = vrot.lane.b32.xlu0 %v6106, 87
      %v6933 = vpop.permute.xlu0 %6932
      %6934 = vrot.lane.b32.xlu0 %v6107, 87
      %v6935 = vpop.permute.xlu0 %6934
      %6936 = vrot.lane.b32.xlu0 %v6109, 87
      %v6937 = vpop.permute.xlu0 %6936
      %6938 = vrot.lane.b32.xlu0 %v6110, 87
      %v6939 = vpop.permute.xlu0 %6938
      %6940 = vrot.lane.b32.xlu0 %v6111, 87
      %v6941 = vpop.permute.xlu0 %6940
      %6942 = vrot.lane.b32.xlu0 %v6113, 87
      %v6943 = vpop.permute.xlu0 %6942
      %6944 = vrot.lane.b32.xlu0 %v6114, 87
      %v6945 = vpop.permute.xlu0 %6944
      %6946 = vrot.lane.b32.xlu0 %v6115, 87
      %v6947 = vpop.permute.xlu0 %6946
      %6948 = vrot.lane.b32.xlu0 %v6117, 87
      %v6949 = vpop.permute.xlu0 %6948
      %6950 = vrot.lane.b32.xlu0 %v6118, 87
      %v6951 = vpop.permute.xlu0 %6950
      %6952 = vrot.lane.b32.xlu0 %v6119, 87
      %v6953 = vpop.permute.xlu0 %6952
      %v6954 = vsel %vm833, %v6913, %v6915
      %v6955 = vsel %vm833, %v6915, %v6917
      %v6956 = vsel %vm833, %v6919, %v6921
      %v6957 = vsel %vm833, %v6921, %v6923
      %v6958 = vsel %vm833, %v6925, %v6927
      %v6959 = vsel %vm833, %v6927, %v6929
      %v6960 = vsel %vm833, %v6931, %v6933
      %v6961 = vsel %vm833, %v6933, %v6935
      %v6962 = vsel %vm833, %v6937, %v6939
      %v6963 = vsel %vm833, %v6939, %v6941
      %v6964 = vsel %vm833, %v6943, %v6945
      %v6965 = vsel %vm833, %v6945, %v6947
      %v6966 = vsel %vm833, %v6949, %v6951
      %v6967 = vsel %vm833, %v6951, %v6953
      %6989 = vrot.lane.b32.xlu0 %v6093, 86
      %v6990 = vpop.permute.xlu0 %6989
      %6991 = vrot.lane.b32.xlu0 %v6094, 86
      %v6992 = vpop.permute.xlu0 %6991
      %6993 = vrot.lane.b32.xlu0 %v6095, 86
      %v6994 = vpop.permute.xlu0 %6993
      %6995 = vrot.lane.b32.xlu0 %v6097, 86
      %v6996 = vpop.permute.xlu0 %6995
      %6997 = vrot.lane.b32.xlu0 %v6098, 86
      %v6998 = vpop.permute.xlu0 %6997
      %6999 = vrot.lane.b32.xlu0 %v6099, 86
      %v7000 = vpop.permute.xlu0 %6999
      %7001 = vrot.lane.b32.xlu0 %v6101, 86
      %v7002 = vpop.permute.xlu0 %7001
      %7003 = vrot.lane.b32.xlu0 %v6102, 86
      %v7004 = vpop.permute.xlu0 %7003
      %7005 = vrot.lane.b32.xlu0 %v6103, 86
      %v7006 = vpop.permute.xlu0 %7005
      %7007 = vrot.lane.b32.xlu0 %v6105, 86
      %v7008 = vpop.permute.xlu0 %7007
      %7009 = vrot.lane.b32.xlu0 %v6106, 86
      %v7010 = vpop.permute.xlu0 %7009
      %7011 = vrot.lane.b32.xlu0 %v6107, 86
      %v7012 = vpop.permute.xlu0 %7011
      %7013 = vrot.lane.b32.xlu0 %v6109, 86
      %v7014 = vpop.permute.xlu0 %7013
      %7015 = vrot.lane.b32.xlu0 %v6110, 86
      %v7016 = vpop.permute.xlu0 %7015
      %7017 = vrot.lane.b32.xlu0 %v6111, 86
      %v7018 = vpop.permute.xlu0 %7017
      %7019 = vrot.lane.b32.xlu0 %v6113, 86
      %v7020 = vpop.permute.xlu0 %7019
      %7021 = vrot.lane.b32.xlu0 %v6114, 86
      %v7022 = vpop.permute.xlu0 %7021
      %7023 = vrot.lane.b32.xlu0 %v6115, 86
      %v7024 = vpop.permute.xlu0 %7023
      %7025 = vrot.lane.b32.xlu0 %v6117, 86
      %v7026 = vpop.permute.xlu0 %7025
      %7027 = vrot.lane.b32.xlu0 %v6118, 86
      %v7028 = vpop.permute.xlu0 %7027
      %7029 = vrot.lane.b32.xlu0 %v6119, 86
      %v7030 = vpop.permute.xlu0 %7029
      %v7031 = vsel %vm853, %v6990, %v6992
      %v7032 = vsel %vm853, %v6992, %v6994
      %v7033 = vsel %vm853, %v6996, %v6998
      %v7034 = vsel %vm853, %v6998, %v7000
      %v7035 = vsel %vm853, %v7002, %v7004
      %v7036 = vsel %vm853, %v7004, %v7006
      %v7037 = vsel %vm853, %v7008, %v7010
      %v7038 = vsel %vm853, %v7010, %v7012
      %v7039 = vsel %vm853, %v7014, %v7016
      %v7040 = vsel %vm853, %v7016, %v7018
      %v7041 = vsel %vm853, %v7020, %v7022
      %v7042 = vsel %vm853, %v7022, %v7024
      %v7043 = vsel %vm853, %v7026, %v7028
      %v7044 = vsel %vm853, %v7028, %v7030
      %7066 = vrot.lane.b32.xlu0 %v6093, 85
      %v7067 = vpop.permute.xlu0 %7066
      %7068 = vrot.lane.b32.xlu0 %v6094, 85
      %v7069 = vpop.permute.xlu0 %7068
      %7070 = vrot.lane.b32.xlu0 %v6095, 85
      %v7071 = vpop.permute.xlu0 %7070
      %7072 = vrot.lane.b32.xlu0 %v6097, 85
      %v7073 = vpop.permute.xlu0 %7072
      %7074 = vrot.lane.b32.xlu0 %v6098, 85
      %v7075 = vpop.permute.xlu0 %7074
      %7076 = vrot.lane.b32.xlu0 %v6099, 85
      %v7077 = vpop.permute.xlu0 %7076
      %7078 = vrot.lane.b32.xlu0 %v6101, 85
      %v7079 = vpop.permute.xlu0 %7078
      %7080 = vrot.lane.b32.xlu0 %v6102, 85
      %v7081 = vpop.permute.xlu0 %7080
      %7082 = vrot.lane.b32.xlu0 %v6103, 85
      %v7083 = vpop.permute.xlu0 %7082
      %7084 = vrot.lane.b32.xlu0 %v6105, 85
      %v7085 = vpop.permute.xlu0 %7084
      %7086 = vrot.lane.b32.xlu0 %v6106, 85
      %v7087 = vpop.permute.xlu0 %7086
      %7088 = vrot.lane.b32.xlu0 %v6107, 85
      %v7089 = vpop.permute.xlu0 %7088
      %7090 = vrot.lane.b32.xlu0 %v6109, 85
      %v7091 = vpop.permute.xlu0 %7090
      %7092 = vrot.lane.b32.xlu0 %v6110, 85
      %v7093 = vpop.permute.xlu0 %7092
      %7094 = vrot.lane.b32.xlu0 %v6111, 85
      %v7095 = vpop.permute.xlu0 %7094
      %7096 = vrot.lane.b32.xlu0 %v6113, 85
      %v7097 = vpop.permute.xlu0 %7096
      %7098 = vrot.lane.b32.xlu0 %v6114, 85
      %v7099 = vpop.permute.xlu0 %7098
      %7100 = vrot.lane.b32.xlu0 %v6115, 85
      %v7101 = vpop.permute.xlu0 %7100
      %7102 = vrot.lane.b32.xlu0 %v6117, 85
      %v7103 = vpop.permute.xlu0 %7102
      %7104 = vrot.lane.b32.xlu0 %v6118, 85
      %v7105 = vpop.permute.xlu0 %7104
      %7106 = vrot.lane.b32.xlu0 %v6119, 85
      %v7107 = vpop.permute.xlu0 %7106
      %v7108 = vsel %vm873, %v7067, %v7069
      %v7109 = vsel %vm873, %v7069, %v7071
      %v7110 = vsel %vm873, %v7073, %v7075
      %v7111 = vsel %vm873, %v7075, %v7077
      %v7112 = vsel %vm873, %v7079, %v7081
      %v7113 = vsel %vm873, %v7081, %v7083
      %v7114 = vsel %vm873, %v7085, %v7087
      %v7115 = vsel %vm873, %v7087, %v7089
      %v7116 = vsel %vm873, %v7091, %v7093
      %v7117 = vsel %vm873, %v7093, %v7095
      %v7118 = vsel %vm873, %v7097, %v7099
      %v7119 = vsel %vm873, %v7099, %v7101
      %v7120 = vsel %vm873, %v7103, %v7105
      %v7121 = vsel %vm873, %v7105, %v7107
      %7143 = vrot.lane.b32.xlu0 %v6093, 84
      %v7144 = vpop.permute.xlu0 %7143
      %7145 = vrot.lane.b32.xlu0 %v6094, 84
      %v7146 = vpop.permute.xlu0 %7145
      %7147 = vrot.lane.b32.xlu0 %v6095, 84
      %v7148 = vpop.permute.xlu0 %7147
      %7149 = vrot.lane.b32.xlu0 %v6097, 84
      %v7150 = vpop.permute.xlu0 %7149
      %7151 = vrot.lane.b32.xlu0 %v6098, 84
      %v7152 = vpop.permute.xlu0 %7151
      %7153 = vrot.lane.b32.xlu0 %v6099, 84
      %v7154 = vpop.permute.xlu0 %7153
      %7155 = vrot.lane.b32.xlu0 %v6101, 84
      %v7156 = vpop.permute.xlu0 %7155
      %7157 = vrot.lane.b32.xlu0 %v6102, 84
      %v7158 = vpop.permute.xlu0 %7157
      %7159 = vrot.lane.b32.xlu0 %v6103, 84
      %v7160 = vpop.permute.xlu0 %7159
      %7161 = vrot.lane.b32.xlu0 %v6105, 84
      %v7162 = vpop.permute.xlu0 %7161
      %7163 = vrot.lane.b32.xlu0 %v6106, 84
      %v7164 = vpop.permute.xlu0 %7163
      %7165 = vrot.lane.b32.xlu0 %v6107, 84
      %v7166 = vpop.permute.xlu0 %7165
      %7167 = vrot.lane.b32.xlu0 %v6109, 84
      %v7168 = vpop.permute.xlu0 %7167
      %7169 = vrot.lane.b32.xlu0 %v6110, 84
      %v7170 = vpop.permute.xlu0 %7169
      %7171 = vrot.lane.b32.xlu0 %v6111, 84
      %v7172 = vpop.permute.xlu0 %7171
      %7173 = vrot.lane.b32.xlu0 %v6113, 84
      %v7174 = vpop.permute.xlu0 %7173
      %7175 = vrot.lane.b32.xlu0 %v6114, 84
      %v7176 = vpop.permute.xlu0 %7175
      %7177 = vrot.lane.b32.xlu0 %v6115, 84
      %v7178 = vpop.permute.xlu0 %7177
      %7179 = vrot.lane.b32.xlu0 %v6117, 84
      %v7180 = vpop.permute.xlu0 %7179
      %7181 = vrot.lane.b32.xlu0 %v6118, 84
      %v7182 = vpop.permute.xlu0 %7181
      %7183 = vrot.lane.b32.xlu0 %v6119, 84
      %v7184 = vpop.permute.xlu0 %7183
      %v7185 = vsel %vm893, %v7144, %v7146
      %v7186 = vsel %vm893, %v7146, %v7148
      %v7187 = vsel %vm893, %v7150, %v7152
      %v7188 = vsel %vm893, %v7152, %v7154
      %v7189 = vsel %vm893, %v7156, %v7158
      %v7190 = vsel %vm893, %v7158, %v7160
      %v7191 = vsel %vm893, %v7162, %v7164
      %v7192 = vsel %vm893, %v7164, %v7166
      %v7193 = vsel %vm893, %v7168, %v7170
      %v7194 = vsel %vm893, %v7170, %v7172
      %v7195 = vsel %vm893, %v7174, %v7176
      %v7196 = vsel %vm893, %v7176, %v7178
      %v7197 = vsel %vm893, %v7180, %v7182
      %v7198 = vsel %vm893, %v7182, %v7184
      %7220 = vrot.lane.b32.xlu0 %v6093, 68
      %v7221 = vpop.permute.xlu0 %7220
      %7222 = vrot.lane.b32.xlu0 %v6094, 68
      %v7223 = vpop.permute.xlu0 %7222
      %7224 = vrot.lane.b32.xlu0 %v6095, 68
      %v7225 = vpop.permute.xlu0 %7224
      %7226 = vrot.lane.b32.xlu0 %v6097, 68
      %v7227 = vpop.permute.xlu0 %7226
      %7228 = vrot.lane.b32.xlu0 %v6098, 68
      %v7229 = vpop.permute.xlu0 %7228
      %7230 = vrot.lane.b32.xlu0 %v6099, 68
      %v7231 = vpop.permute.xlu0 %7230
      %7232 = vrot.lane.b32.xlu0 %v6101, 68
      %v7233 = vpop.permute.xlu0 %7232
      %7234 = vrot.lane.b32.xlu0 %v6102, 68
      %v7235 = vpop.permute.xlu0 %7234
      %7236 = vrot.lane.b32.xlu0 %v6103, 68
      %v7237 = vpop.permute.xlu0 %7236
      %7238 = vrot.lane.b32.xlu0 %v6105, 68
      %v7239 = vpop.permute.xlu0 %7238
      %7240 = vrot.lane.b32.xlu0 %v6106, 68
      %v7241 = vpop.permute.xlu0 %7240
      %7242 = vrot.lane.b32.xlu0 %v6107, 68
      %v7243 = vpop.permute.xlu0 %7242
      %7244 = vrot.lane.b32.xlu0 %v6109, 68
      %v7245 = vpop.permute.xlu0 %7244
      %7246 = vrot.lane.b32.xlu0 %v6110, 68
      %v7247 = vpop.permute.xlu0 %7246
      %7248 = vrot.lane.b32.xlu0 %v6111, 68
      %v7249 = vpop.permute.xlu0 %7248
      %7250 = vrot.lane.b32.xlu0 %v6113, 68
      %v7251 = vpop.permute.xlu0 %7250
      %7252 = vrot.lane.b32.xlu0 %v6114, 68
      %v7253 = vpop.permute.xlu0 %7252
      %7254 = vrot.lane.b32.xlu0 %v6115, 68
      %v7255 = vpop.permute.xlu0 %7254
      %7256 = vrot.lane.b32.xlu0 %v6117, 68
      %v7257 = vpop.permute.xlu0 %7256
      %7258 = vrot.lane.b32.xlu0 %v6118, 68
      %v7259 = vpop.permute.xlu0 %7258
      %7260 = vrot.lane.b32.xlu0 %v6119, 68
      %v7261 = vpop.permute.xlu0 %7260
      %v7262 = vsel %vm913, %v7221, %v7223
      %v7263 = vsel %vm913, %v7223, %v7225
      %v7264 = vsel %vm913, %v7227, %v7229
      %v7265 = vsel %vm913, %v7229, %v7231
      %v7266 = vsel %vm913, %v7233, %v7235
      %v7267 = vsel %vm913, %v7235, %v7237
      %v7268 = vsel %vm913, %v7239, %v7241
      %v7269 = vsel %vm913, %v7241, %v7243
      %v7270 = vsel %vm913, %v7245, %v7247
      %v7271 = vsel %vm913, %v7247, %v7249
      %v7272 = vsel %vm913, %v7251, %v7253
      %v7273 = vsel %vm913, %v7253, %v7255
      %v7274 = vsel %vm913, %v7257, %v7259
      %v7275 = vsel %vm913, %v7259, %v7261
      %7304 = vrot.lane.b32.xlu0 %v6093, 109
      %v7305 = vpop.permute.xlu0 %7304
      %7306 = vrot.lane.b32.xlu0 %v6094, 109
      %v7307 = vpop.permute.xlu0 %7306
      %7308 = vrot.lane.b32.xlu0 %v6095, 109
      %v7309 = vpop.permute.xlu0 %7308
      %7310 = vrot.lane.b32.xlu0 %v6096, 109
      %v7311 = vpop.permute.xlu0 %7310
      %7312 = vrot.lane.b32.xlu0 %v6097, 109
      %v7313 = vpop.permute.xlu0 %7312
      %7314 = vrot.lane.b32.xlu0 %v6098, 109
      %v7315 = vpop.permute.xlu0 %7314
      %7316 = vrot.lane.b32.xlu0 %v6099, 109
      %v7317 = vpop.permute.xlu0 %7316
      %7318 = vrot.lane.b32.xlu0 %v6100, 109
      %v7319 = vpop.permute.xlu0 %7318
      %7320 = vrot.lane.b32.xlu0 %v6101, 109
      %v7321 = vpop.permute.xlu0 %7320
      %7322 = vrot.lane.b32.xlu0 %v6102, 109
      %v7323 = vpop.permute.xlu0 %7322
      %7324 = vrot.lane.b32.xlu0 %v6103, 109
      %v7325 = vpop.permute.xlu0 %7324
      %7326 = vrot.lane.b32.xlu0 %v6104, 109
      %v7327 = vpop.permute.xlu0 %7326
      %7328 = vrot.lane.b32.xlu0 %v6105, 109
      %v7329 = vpop.permute.xlu0 %7328
      %7330 = vrot.lane.b32.xlu0 %v6106, 109
      %v7331 = vpop.permute.xlu0 %7330
      %7332 = vrot.lane.b32.xlu0 %v6107, 109
      %v7333 = vpop.permute.xlu0 %7332
      %7334 = vrot.lane.b32.xlu0 %v6108, 109
      %v7335 = vpop.permute.xlu0 %7334
      %7336 = vrot.lane.b32.xlu0 %v6109, 109
      %v7337 = vpop.permute.xlu0 %7336
      %7338 = vrot.lane.b32.xlu0 %v6110, 109
      %v7339 = vpop.permute.xlu0 %7338
      %7340 = vrot.lane.b32.xlu0 %v6111, 109
      %v7341 = vpop.permute.xlu0 %7340
      %7342 = vrot.lane.b32.xlu0 %v6112, 109
      %v7343 = vpop.permute.xlu0 %7342
      %7344 = vrot.lane.b32.xlu0 %v6113, 109
      %v7345 = vpop.permute.xlu0 %7344
      %7346 = vrot.lane.b32.xlu0 %v6114, 109
      %v7347 = vpop.permute.xlu0 %7346
      %7348 = vrot.lane.b32.xlu0 %v6115, 109
      %v7349 = vpop.permute.xlu0 %7348
      %7350 = vrot.lane.b32.xlu0 %v6116, 109
      %v7351 = vpop.permute.xlu0 %7350
      %7352 = vrot.lane.b32.xlu0 %v6117, 109
      %v7353 = vpop.permute.xlu0 %7352
      %7354 = vrot.lane.b32.xlu0 %v6118, 109
      %v7355 = vpop.permute.xlu0 %7354
      %7356 = vrot.lane.b32.xlu0 %v6119, 109
      %v7357 = vpop.permute.xlu0 %7356
      %7358 = vrot.lane.b32.xlu0 %v6120, 109
      %v7359 = vpop.permute.xlu0 %7358
      %v7360 = vsel %vm1010, %v7305, %v7307
      %v7361 = vsel %vm1010, %v7307, %v7309
      %v7362 = vsel %vm1010, %v7309, %v7311
      %v7363 = vsel %vm1010, %v7313, %v7315
      %v7364 = vsel %vm1010, %v7315, %v7317
      %v7365 = vsel %vm1010, %v7317, %v7319
      %v7366 = vsel %vm1010, %v7321, %v7323
      %v7367 = vsel %vm1010, %v7323, %v7325
      %v7368 = vsel %vm1010, %v7325, %v7327
      %v7369 = vsel %vm1010, %v7329, %v7331
      %v7370 = vsel %vm1010, %v7331, %v7333
      %v7371 = vsel %vm1010, %v7333, %v7335
      %v7372 = vsel %vm1010, %v7337, %v7339
      %v7373 = vsel %vm1010, %v7339, %v7341
      %v7374 = vsel %vm1010, %v7341, %v7343
      %v7375 = vsel %vm1010, %v7345, %v7347
      %v7376 = vsel %vm1010, %v7347, %v7349
      %v7377 = vsel %vm1010, %v7349, %v7351
      %v7378 = vsel %vm1010, %v7353, %v7355
      %v7379 = vsel %vm1010, %v7355, %v7357
      %v7380 = vsel %vm1010, %v7357, %v7359
      %7381 = vrot.lane.b32.xlu0 %v6096, 108
      %v7382 = vpop.permute.xlu0 %7381
      %7383 = vrot.lane.b32.xlu0 %v6100, 108
      %v7384 = vpop.permute.xlu0 %7383
      %7385 = vrot.lane.b32.xlu0 %v6104, 108
      %v7386 = vpop.permute.xlu0 %7385
      %7387 = vrot.lane.b32.xlu0 %v6108, 108
      %v7388 = vpop.permute.xlu0 %7387
      %7389 = vrot.lane.b32.xlu0 %v6112, 108
      %v7390 = vpop.permute.xlu0 %7389
      %7391 = vrot.lane.b32.xlu0 %v6116, 108
      %v7392 = vpop.permute.xlu0 %7391
      %7393 = vrot.lane.b32.xlu0 %v6120, 108
      %v7394 = vpop.permute.xlu0 %7393
      %v7395 = vsel %vm703, %v6455, %v7382
      %v7396 = vsel %vm703, %v6461, %v7384
      %v7397 = vsel %vm703, %v6467, %v7386
      %v7398 = vsel %vm703, %v6473, %v7388
      %v7399 = vsel %vm703, %v6479, %v7390
      %v7400 = vsel %vm703, %v6485, %v7392
      %v7401 = vsel %vm703, %v6491, %v7394
      %7402 = vrot.lane.b32.xlu0 %v6096, 107
      %v7403 = vpop.permute.xlu0 %7402
      %7404 = vrot.lane.b32.xlu0 %v6100, 107
      %v7405 = vpop.permute.xlu0 %7404
      %7406 = vrot.lane.b32.xlu0 %v6104, 107
      %v7407 = vpop.permute.xlu0 %7406
      %7408 = vrot.lane.b32.xlu0 %v6108, 107
      %v7409 = vpop.permute.xlu0 %7408
      %7410 = vrot.lane.b32.xlu0 %v6112, 107
      %v7411 = vpop.permute.xlu0 %7410
      %7412 = vrot.lane.b32.xlu0 %v6116, 107
      %v7413 = vpop.permute.xlu0 %7412
      %7414 = vrot.lane.b32.xlu0 %v6120, 107
      %v7415 = vpop.permute.xlu0 %7414
      %v7416 = vsel %vm728, %v6532, %v7403
      %v7417 = vsel %vm728, %v6538, %v7405
      %v7418 = vsel %vm728, %v6544, %v7407
      %v7419 = vsel %vm728, %v6550, %v7409
      %v7420 = vsel %vm728, %v6556, %v7411
      %v7421 = vsel %vm728, %v6562, %v7413
      %v7422 = vsel %vm728, %v6568, %v7415
      %7423 = vrot.lane.b32.xlu0 %v6096, 106
      %v7424 = vpop.permute.xlu0 %7423
      %7425 = vrot.lane.b32.xlu0 %v6100, 106
      %v7426 = vpop.permute.xlu0 %7425
      %7427 = vrot.lane.b32.xlu0 %v6104, 106
      %v7428 = vpop.permute.xlu0 %7427
      %7429 = vrot.lane.b32.xlu0 %v6108, 106
      %v7430 = vpop.permute.xlu0 %7429
      %7431 = vrot.lane.b32.xlu0 %v6112, 106
      %v7432 = vpop.permute.xlu0 %7431
      %7433 = vrot.lane.b32.xlu0 %v6116, 106
      %v7434 = vpop.permute.xlu0 %7433
      %7435 = vrot.lane.b32.xlu0 %v6120, 106
      %v7436 = vpop.permute.xlu0 %7435
      %v7437 = vsel %vm753, %v6609, %v7424
      %v7438 = vsel %vm753, %v6615, %v7426
      %v7439 = vsel %vm753, %v6621, %v7428
      %v7440 = vsel %vm753, %v6627, %v7430
      %v7441 = vsel %vm753, %v6633, %v7432
      %v7442 = vsel %vm753, %v6639, %v7434
      %v7443 = vsel %vm753, %v6645, %v7436
      %7444 = vrot.lane.b32.xlu0 %v6096, 105
      %v7445 = vpop.permute.xlu0 %7444
      %7446 = vrot.lane.b32.xlu0 %v6100, 105
      %v7447 = vpop.permute.xlu0 %7446
      %7448 = vrot.lane.b32.xlu0 %v6104, 105
      %v7449 = vpop.permute.xlu0 %7448
      %7450 = vrot.lane.b32.xlu0 %v6108, 105
      %v7451 = vpop.permute.xlu0 %7450
      %7452 = vrot.lane.b32.xlu0 %v6112, 105
      %v7453 = vpop.permute.xlu0 %7452
      %7454 = vrot.lane.b32.xlu0 %v6116, 105
      %v7455 = vpop.permute.xlu0 %7454
      %7456 = vrot.lane.b32.xlu0 %v6120, 105
      %v7457 = vpop.permute.xlu0 %7456
      %v7458 = vsel %vm773, %v6686, %v7445
      %v7459 = vsel %vm773, %v6692, %v7447
      %v7460 = vsel %vm773, %v6698, %v7449
      %v7461 = vsel %vm773, %v6704, %v7451
      %v7462 = vsel %vm773, %v6710, %v7453
      %v7463 = vsel %vm773, %v6716, %v7455
      %v7464 = vsel %vm773, %v6722, %v7457
      %7465 = vrot.lane.b32.xlu0 %v6093, 67
      %v7466 = vpop.permute.xlu0 %7465
      %7467 = vrot.lane.b32.xlu0 %v6094, 67
      %v7468 = vpop.permute.xlu0 %7467
      %7469 = vrot.lane.b32.xlu0 %v6095, 67
      %v7470 = vpop.permute.xlu0 %7469
      %7471 = vrot.lane.b32.xlu0 %v6097, 67
      %v7472 = vpop.permute.xlu0 %7471
      %7473 = vrot.lane.b32.xlu0 %v6098, 67
      %v7474 = vpop.permute.xlu0 %7473
      %7475 = vrot.lane.b32.xlu0 %v6099, 67
      %v7476 = vpop.permute.xlu0 %7475
      %7477 = vrot.lane.b32.xlu0 %v6101, 67
      %v7478 = vpop.permute.xlu0 %7477
      %7479 = vrot.lane.b32.xlu0 %v6102, 67
      %v7480 = vpop.permute.xlu0 %7479
      %7481 = vrot.lane.b32.xlu0 %v6103, 67
      %v7482 = vpop.permute.xlu0 %7481
      %7483 = vrot.lane.b32.xlu0 %v6105, 67
      %v7484 = vpop.permute.xlu0 %7483
      %7485 = vrot.lane.b32.xlu0 %v6106, 67
      %v7486 = vpop.permute.xlu0 %7485
      %7487 = vrot.lane.b32.xlu0 %v6107, 67
      %v7488 = vpop.permute.xlu0 %7487
      %7489 = vrot.lane.b32.xlu0 %v6109, 67
      %v7490 = vpop.permute.xlu0 %7489
      %7491 = vrot.lane.b32.xlu0 %v6110, 67
      %v7492 = vpop.permute.xlu0 %7491
      %7493 = vrot.lane.b32.xlu0 %v6111, 67
      %v7494 = vpop.permute.xlu0 %7493
      %7495 = vrot.lane.b32.xlu0 %v6113, 67
      %v7496 = vpop.permute.xlu0 %7495
      %7497 = vrot.lane.b32.xlu0 %v6114, 67
      %v7498 = vpop.permute.xlu0 %7497
      %7499 = vrot.lane.b32.xlu0 %v6115, 67
      %v7500 = vpop.permute.xlu0 %7499
      %7501 = vrot.lane.b32.xlu0 %v6117, 67
      %v7502 = vpop.permute.xlu0 %7501
      %7503 = vrot.lane.b32.xlu0 %v6118, 67
      %v7504 = vpop.permute.xlu0 %7503
      %7505 = vrot.lane.b32.xlu0 %v6119, 67
      %v7506 = vpop.permute.xlu0 %7505
      %7507 = vrot.lane.b32.xlu0 %v6184, 67
      %v7508 = vpop.permute.xlu0 %7507
      %7509 = vrot.lane.b32.xlu0 %v6185, 67
      %v7510 = vpop.permute.xlu0 %7509
      %7511 = vrot.lane.b32.xlu0 %v6147, 67
      %v7512 = vpop.permute.xlu0 %7511
      %7513 = vrot.lane.b32.xlu0 %v6186, 67
      %v7514 = vpop.permute.xlu0 %7513
      %7515 = vrot.lane.b32.xlu0 %v6187, 67
      %v7516 = vpop.permute.xlu0 %7515
      %7517 = vrot.lane.b32.xlu0 %v6153, 67
      %v7518 = vpop.permute.xlu0 %7517
      %7519 = vrot.lane.b32.xlu0 %v6188, 67
      %v7520 = vpop.permute.xlu0 %7519
      %7521 = vrot.lane.b32.xlu0 %v6189, 67
      %v7522 = vpop.permute.xlu0 %7521
      %7523 = vrot.lane.b32.xlu0 %v6159, 67
      %v7524 = vpop.permute.xlu0 %7523
      %7525 = vrot.lane.b32.xlu0 %v6190, 67
      %v7526 = vpop.permute.xlu0 %7525
      %7527 = vrot.lane.b32.xlu0 %v6191, 67
      %v7528 = vpop.permute.xlu0 %7527
      %7529 = vrot.lane.b32.xlu0 %v6165, 67
      %v7530 = vpop.permute.xlu0 %7529
      %7531 = vrot.lane.b32.xlu0 %v6192, 67
      %v7532 = vpop.permute.xlu0 %7531
      %7533 = vrot.lane.b32.xlu0 %v6193, 67
      %v7534 = vpop.permute.xlu0 %7533
      %7535 = vrot.lane.b32.xlu0 %v6171, 67
      %v7536 = vpop.permute.xlu0 %7535
      %7537 = vrot.lane.b32.xlu0 %v6194, 67
      %v7538 = vpop.permute.xlu0 %7537
      %7539 = vrot.lane.b32.xlu0 %v6195, 67
      %v7540 = vpop.permute.xlu0 %7539
      %7541 = vrot.lane.b32.xlu0 %v6177, 67
      %v7542 = vpop.permute.xlu0 %7541
      %7543 = vrot.lane.b32.xlu0 %v6196, 67
      %v7544 = vpop.permute.xlu0 %7543
      %7545 = vrot.lane.b32.xlu0 %v6197, 67
      %v7546 = vpop.permute.xlu0 %7545
      %7547 = vrot.lane.b32.xlu0 %v6183, 67
      %v7548 = vpop.permute.xlu0 %7547
      %7549 = vrot.lane.b32.xlu0 %v6261, 67
      %v7550 = vpop.permute.xlu0 %7549
      %7551 = vrot.lane.b32.xlu0 %v6262, 67
      %v7552 = vpop.permute.xlu0 %7551
      %7553 = vrot.lane.b32.xlu0 %v6224, 67
      %v7554 = vpop.permute.xlu0 %7553
      %7555 = vrot.lane.b32.xlu0 %v6263, 67
      %v7556 = vpop.permute.xlu0 %7555
      %7557 = vrot.lane.b32.xlu0 %v6264, 67
      %v7558 = vpop.permute.xlu0 %7557
      %7559 = vrot.lane.b32.xlu0 %v6230, 67
      %v7560 = vpop.permute.xlu0 %7559
      %7561 = vrot.lane.b32.xlu0 %v6265, 67
      %v7562 = vpop.permute.xlu0 %7561
      %7563 = vrot.lane.b32.xlu0 %v6266, 67
      %v7564 = vpop.permute.xlu0 %7563
      %7565 = vrot.lane.b32.xlu0 %v6236, 67
      %v7566 = vpop.permute.xlu0 %7565
      %7567 = vrot.lane.b32.xlu0 %v6267, 67
      %v7568 = vpop.permute.xlu0 %7567
      %7569 = vrot.lane.b32.xlu0 %v6268, 67
      %v7570 = vpop.permute.xlu0 %7569
      %7571 = vrot.lane.b32.xlu0 %v6242, 67
      %v7572 = vpop.permute.xlu0 %7571
      %7573 = vrot.lane.b32.xlu0 %v6269, 67
      %v7574 = vpop.permute.xlu0 %7573
      %7575 = vrot.lane.b32.xlu0 %v6270, 67
      %v7576 = vpop.permute.xlu0 %7575
      %7577 = vrot.lane.b32.xlu0 %v6248, 67
      %v7578 = vpop.permute.xlu0 %7577
      %7579 = vrot.lane.b32.xlu0 %v6271, 67
      %v7580 = vpop.permute.xlu0 %7579
      %7581 = vrot.lane.b32.xlu0 %v6272, 67
      %v7582 = vpop.permute.xlu0 %7581
      %7583 = vrot.lane.b32.xlu0 %v6254, 67
      %v7584 = vpop.permute.xlu0 %7583
      %7585 = vrot.lane.b32.xlu0 %v6273, 67
      %v7586 = vpop.permute.xlu0 %7585
      %7587 = vrot.lane.b32.xlu0 %v6274, 67
      %v7588 = vpop.permute.xlu0 %7587
      %7589 = vrot.lane.b32.xlu0 %v6260, 67
      %v7590 = vpop.permute.xlu0 %7589
      %7591 = vrot.lane.b32.xlu0 %v6338, 67
      %v7592 = vpop.permute.xlu0 %7591
      %7593 = vrot.lane.b32.xlu0 %v6339, 67
      %v7594 = vpop.permute.xlu0 %7593
      %7595 = vrot.lane.b32.xlu0 %v6301, 67
      %v7596 = vpop.permute.xlu0 %7595
      %7597 = vrot.lane.b32.xlu0 %v6340, 67
      %v7598 = vpop.permute.xlu0 %7597
      %7599 = vrot.lane.b32.xlu0 %v6341, 67
      %v7600 = vpop.permute.xlu0 %7599
      %7601 = vrot.lane.b32.xlu0 %v6307, 67
      %v7602 = vpop.permute.xlu0 %7601
      %7603 = vrot.lane.b32.xlu0 %v6342, 67
      %v7604 = vpop.permute.xlu0 %7603
      %7605 = vrot.lane.b32.xlu0 %v6343, 67
      %v7606 = vpop.permute.xlu0 %7605
      %7607 = vrot.lane.b32.xlu0 %v6313, 67
      %v7608 = vpop.permute.xlu0 %7607
      %7609 = vrot.lane.b32.xlu0 %v6344, 67
      %v7610 = vpop.permute.xlu0 %7609
      %7611 = vrot.lane.b32.xlu0 %v6345, 67
      %v7612 = vpop.permute.xlu0 %7611
      %7613 = vrot.lane.b32.xlu0 %v6319, 67
      %v7614 = vpop.permute.xlu0 %7613
      %7615 = vrot.lane.b32.xlu0 %v6346, 67
      %v7616 = vpop.permute.xlu0 %7615
      %7617 = vrot.lane.b32.xlu0 %v6347, 67
      %v7618 = vpop.permute.xlu0 %7617
      %7619 = vrot.lane.b32.xlu0 %v6325, 67
      %v7620 = vpop.permute.xlu0 %7619
      %7621 = vrot.lane.b32.xlu0 %v6348, 67
      %v7622 = vpop.permute.xlu0 %7621
      %7623 = vrot.lane.b32.xlu0 %v6349, 67
      %v7624 = vpop.permute.xlu0 %7623
      %7625 = vrot.lane.b32.xlu0 %v6331, 67
      %v7626 = vpop.permute.xlu0 %7625
      %7627 = vrot.lane.b32.xlu0 %v6350, 67
      %v7628 = vpop.permute.xlu0 %7627
      %7629 = vrot.lane.b32.xlu0 %v6351, 67
      %v7630 = vpop.permute.xlu0 %7629
      %7631 = vrot.lane.b32.xlu0 %v6337, 67
      %v7632 = vpop.permute.xlu0 %7631
      %7633 = vrot.lane.b32.xlu0 %v7360, 67
      %v7634 = vpop.permute.xlu0 %7633
      %7635 = vrot.lane.b32.xlu0 %v7361, 67
      %v7636 = vpop.permute.xlu0 %7635
      %7637 = vrot.lane.b32.xlu0 %v7362, 67
      %v7638 = vpop.permute.xlu0 %7637
      %7639 = vrot.lane.b32.xlu0 %v7363, 67
      %v7640 = vpop.permute.xlu0 %7639
      %7641 = vrot.lane.b32.xlu0 %v7364, 67
      %v7642 = vpop.permute.xlu0 %7641
      %7643 = vrot.lane.b32.xlu0 %v7365, 67
      %v7644 = vpop.permute.xlu0 %7643
      %7645 = vrot.lane.b32.xlu0 %v7366, 67
      %v7646 = vpop.permute.xlu0 %7645
      %7647 = vrot.lane.b32.xlu0 %v7367, 67
      %v7648 = vpop.permute.xlu0 %7647
      %7649 = vrot.lane.b32.xlu0 %v7368, 67
      %v7650 = vpop.permute.xlu0 %7649
      %7651 = vrot.lane.b32.xlu0 %v7369, 67
      %v7652 = vpop.permute.xlu0 %7651
      %7653 = vrot.lane.b32.xlu0 %v7370, 67
      %v7654 = vpop.permute.xlu0 %7653
      %7655 = vrot.lane.b32.xlu0 %v7371, 67
      %v7656 = vpop.permute.xlu0 %7655
      %7657 = vrot.lane.b32.xlu0 %v7372, 67
      %v7658 = vpop.permute.xlu0 %7657
      %7659 = vrot.lane.b32.xlu0 %v7373, 67
      %v7660 = vpop.permute.xlu0 %7659
      %7661 = vrot.lane.b32.xlu0 %v7374, 67
      %v7662 = vpop.permute.xlu0 %7661
      %7663 = vrot.lane.b32.xlu0 %v7375, 67
      %v7664 = vpop.permute.xlu0 %7663
      %7665 = vrot.lane.b32.xlu0 %v7376, 67
      %v7666 = vpop.permute.xlu0 %7665
      %7667 = vrot.lane.b32.xlu0 %v7377, 67
      %v7668 = vpop.permute.xlu0 %7667
      %7669 = vrot.lane.b32.xlu0 %v7378, 67
      %v7670 = vpop.permute.xlu0 %7669
      %7671 = vrot.lane.b32.xlu0 %v7379, 67
      %v7672 = vpop.permute.xlu0 %7671
      %7673 = vrot.lane.b32.xlu0 %v7380, 67
      %v7674 = vpop.permute.xlu0 %7673
      %7675 = vrot.lane.b32.xlu0 %v6492, 67
      %v7676 = vpop.permute.xlu0 %7675
      %7677 = vrot.lane.b32.xlu0 %v6493, 67
      %v7678 = vpop.permute.xlu0 %7677
      %7679 = vrot.lane.b32.xlu0 %v7395, 67
      %v7680 = vpop.permute.xlu0 %7679
      %7681 = vrot.lane.b32.xlu0 %v6494, 67
      %v7682 = vpop.permute.xlu0 %7681
      %7683 = vrot.lane.b32.xlu0 %v6495, 67
      %v7684 = vpop.permute.xlu0 %7683
      %7685 = vrot.lane.b32.xlu0 %v7396, 67
      %v7686 = vpop.permute.xlu0 %7685
      %7687 = vrot.lane.b32.xlu0 %v6496, 67
      %v7688 = vpop.permute.xlu0 %7687
      %7689 = vrot.lane.b32.xlu0 %v6497, 67
      %v7690 = vpop.permute.xlu0 %7689
      %7691 = vrot.lane.b32.xlu0 %v7397, 67
      %v7692 = vpop.permute.xlu0 %7691
      %7693 = vrot.lane.b32.xlu0 %v6498, 67
      %v7694 = vpop.permute.xlu0 %7693
      %7695 = vrot.lane.b32.xlu0 %v6499, 67
      %v7696 = vpop.permute.xlu0 %7695
      %7697 = vrot.lane.b32.xlu0 %v7398, 67
      %v7698 = vpop.permute.xlu0 %7697
      %7699 = vrot.lane.b32.xlu0 %v6500, 67
      %v7700 = vpop.permute.xlu0 %7699
      %7701 = vrot.lane.b32.xlu0 %v6501, 67
      %v7702 = vpop.permute.xlu0 %7701
      %7703 = vrot.lane.b32.xlu0 %v7399, 67
      %v7704 = vpop.permute.xlu0 %7703
      %7705 = vrot.lane.b32.xlu0 %v6502, 67
      %v7706 = vpop.permute.xlu0 %7705
      %7707 = vrot.lane.b32.xlu0 %v6503, 67
      %v7708 = vpop.permute.xlu0 %7707
      %7709 = vrot.lane.b32.xlu0 %v7400, 67
      %v7710 = vpop.permute.xlu0 %7709
      %7711 = vrot.lane.b32.xlu0 %v6504, 67
      %v7712 = vpop.permute.xlu0 %7711
      %7713 = vrot.lane.b32.xlu0 %v6505, 67
      %v7714 = vpop.permute.xlu0 %7713
      %7715 = vrot.lane.b32.xlu0 %v7401, 67
      %v7716 = vpop.permute.xlu0 %7715
      %7717 = vrot.lane.b32.xlu0 %v6569, 67
      %v7718 = vpop.permute.xlu0 %7717
      %7719 = vrot.lane.b32.xlu0 %v6570, 67
      %v7720 = vpop.permute.xlu0 %7719
      %7721 = vrot.lane.b32.xlu0 %v7416, 67
      %v7722 = vpop.permute.xlu0 %7721
      %7723 = vrot.lane.b32.xlu0 %v6571, 67
      %v7724 = vpop.permute.xlu0 %7723
      %7725 = vrot.lane.b32.xlu0 %v6572, 67
      %v7726 = vpop.permute.xlu0 %7725
      %7727 = vrot.lane.b32.xlu0 %v7417, 67
      %v7728 = vpop.permute.xlu0 %7727
      %7729 = vrot.lane.b32.xlu0 %v6573, 67
      %v7730 = vpop.permute.xlu0 %7729
      %7731 = vrot.lane.b32.xlu0 %v6574, 67
      %v7732 = vpop.permute.xlu0 %7731
      %7733 = vrot.lane.b32.xlu0 %v7418, 67
      %v7734 = vpop.permute.xlu0 %7733
      %7735 = vrot.lane.b32.xlu0 %v6575, 67
      %v7736 = vpop.permute.xlu0 %7735
      %7737 = vrot.lane.b32.xlu0 %v6576, 67
      %v7738 = vpop.permute.xlu0 %7737
      %7739 = vrot.lane.b32.xlu0 %v7419, 67
      %v7740 = vpop.permute.xlu0 %7739
      %7741 = vrot.lane.b32.xlu0 %v6577, 67
      %v7742 = vpop.permute.xlu0 %7741
      %7743 = vrot.lane.b32.xlu0 %v6578, 67
      %v7744 = vpop.permute.xlu0 %7743
      %7745 = vrot.lane.b32.xlu0 %v7420, 67
      %v7746 = vpop.permute.xlu0 %7745
      %7747 = vrot.lane.b32.xlu0 %v6579, 67
      %v7748 = vpop.permute.xlu0 %7747
      %7749 = vrot.lane.b32.xlu0 %v6580, 67
      %v7750 = vpop.permute.xlu0 %7749
      %7751 = vrot.lane.b32.xlu0 %v7421, 67
      %v7752 = vpop.permute.xlu0 %7751
      %7753 = vrot.lane.b32.xlu0 %v6581, 67
      %v7754 = vpop.permute.xlu0 %7753
      %7755 = vrot.lane.b32.xlu0 %v6582, 67
      %v7756 = vpop.permute.xlu0 %7755
      %7757 = vrot.lane.b32.xlu0 %v7422, 67
      %v7758 = vpop.permute.xlu0 %7757
      %7759 = vrot.lane.b32.xlu0 %v6646, 67
      %v7760 = vpop.permute.xlu0 %7759
      %7761 = vrot.lane.b32.xlu0 %v6647, 67
      %v7762 = vpop.permute.xlu0 %7761
      %7763 = vrot.lane.b32.xlu0 %v7437, 67
      %v7764 = vpop.permute.xlu0 %7763
      %7765 = vrot.lane.b32.xlu0 %v6648, 67
      %v7766 = vpop.permute.xlu0 %7765
      %7767 = vrot.lane.b32.xlu0 %v6649, 67
      %v7768 = vpop.permute.xlu0 %7767
      %7769 = vrot.lane.b32.xlu0 %v7438, 67
      %v7770 = vpop.permute.xlu0 %7769
      %7771 = vrot.lane.b32.xlu0 %v6650, 67
      %v7772 = vpop.permute.xlu0 %7771
      %7773 = vrot.lane.b32.xlu0 %v6651, 67
      %v7774 = vpop.permute.xlu0 %7773
      %7775 = vrot.lane.b32.xlu0 %v7439, 67
      %v7776 = vpop.permute.xlu0 %7775
      %7777 = vrot.lane.b32.xlu0 %v6652, 67
      %v7778 = vpop.permute.xlu0 %7777
      %7779 = vrot.lane.b32.xlu0 %v6653, 67
      %v7780 = vpop.permute.xlu0 %7779
      %7781 = vrot.lane.b32.xlu0 %v7440, 67
      %v7782 = vpop.permute.xlu0 %7781
      %7783 = vrot.lane.b32.xlu0 %v6654, 67
      %v7784 = vpop.permute.xlu0 %7783
      %7785 = vrot.lane.b32.xlu0 %v6655, 67
      %v7786 = vpop.permute.xlu0 %7785
      %7787 = vrot.lane.b32.xlu0 %v7441, 67
      %v7788 = vpop.permute.xlu0 %7787
      %7789 = vrot.lane.b32.xlu0 %v6656, 67
      %v7790 = vpop.permute.xlu0 %7789
      %7791 = vrot.lane.b32.xlu0 %v6657, 67
      %v7792 = vpop.permute.xlu0 %7791
      %7793 = vrot.lane.b32.xlu0 %v7442, 67
      %v7794 = vpop.permute.xlu0 %7793
      %7795 = vrot.lane.b32.xlu0 %v6658, 67
      %v7796 = vpop.permute.xlu0 %7795
      %7797 = vrot.lane.b32.xlu0 %v6659, 67
      %v7798 = vpop.permute.xlu0 %7797
      %7799 = vrot.lane.b32.xlu0 %v7443, 67
      %v7800 = vpop.permute.xlu0 %7799
      %7801 = vrot.lane.b32.xlu0 %v6723, 67
      %v7802 = vpop.permute.xlu0 %7801
      %7803 = vrot.lane.b32.xlu0 %v6724, 67
      %v7804 = vpop.permute.xlu0 %7803
      %7805 = vrot.lane.b32.xlu0 %v7458, 67
      %v7806 = vpop.permute.xlu0 %7805
      %7807 = vrot.lane.b32.xlu0 %v6725, 67
      %v7808 = vpop.permute.xlu0 %7807
      %7809 = vrot.lane.b32.xlu0 %v6726, 67
      %v7810 = vpop.permute.xlu0 %7809
      %7811 = vrot.lane.b32.xlu0 %v7459, 67
      %v7812 = vpop.permute.xlu0 %7811
      %7813 = vrot.lane.b32.xlu0 %v6727, 67
      %v7814 = vpop.permute.xlu0 %7813
      %7815 = vrot.lane.b32.xlu0 %v6728, 67
      %v7816 = vpop.permute.xlu0 %7815
      %7817 = vrot.lane.b32.xlu0 %v7460, 67
      %v7818 = vpop.permute.xlu0 %7817
      %7819 = vrot.lane.b32.xlu0 %v6729, 67
      %v7820 = vpop.permute.xlu0 %7819
      %7821 = vrot.lane.b32.xlu0 %v6730, 67
      %v7822 = vpop.permute.xlu0 %7821
      %7823 = vrot.lane.b32.xlu0 %v7461, 67
      %v7824 = vpop.permute.xlu0 %7823
      %7825 = vrot.lane.b32.xlu0 %v6731, 67
      %v7826 = vpop.permute.xlu0 %7825
      %7827 = vrot.lane.b32.xlu0 %v6732, 67
      %v7828 = vpop.permute.xlu0 %7827
      %7829 = vrot.lane.b32.xlu0 %v7462, 67
      %v7830 = vpop.permute.xlu0 %7829
      %7831 = vrot.lane.b32.xlu0 %v6733, 67
      %v7832 = vpop.permute.xlu0 %7831
      %7833 = vrot.lane.b32.xlu0 %v6734, 67
      %v7834 = vpop.permute.xlu0 %7833
      %7835 = vrot.lane.b32.xlu0 %v7463, 67
      %v7836 = vpop.permute.xlu0 %7835
      %7837 = vrot.lane.b32.xlu0 %v6735, 67
      %v7838 = vpop.permute.xlu0 %7837
      %7839 = vrot.lane.b32.xlu0 %v6736, 67
      %v7840 = vpop.permute.xlu0 %7839
      %7841 = vrot.lane.b32.xlu0 %v7464, 67
      %v7842 = vpop.permute.xlu0 %7841
      %v7843 = vsel %vm1106, %v7466, %v7468
      %v7844 = vsel %vm1106, %v7468, %v7470
      %v7845 = vsel %vm1106, %v7472, %v7474
      %v7846 = vsel %vm1106, %v7474, %v7476
      %v7847 = vsel %vm1106, %v7478, %v7480
      %v7848 = vsel %vm1106, %v7480, %v7482
      %v7849 = vsel %vm1106, %v7484, %v7486
      %v7850 = vsel %vm1106, %v7486, %v7488
      %v7851 = vsel %vm1106, %v7490, %v7492
      %v7852 = vsel %vm1106, %v7492, %v7494
      %v7853 = vsel %vm1106, %v7496, %v7498
      %v7854 = vsel %vm1106, %v7498, %v7500
      %v7855 = vsel %vm1106, %v7502, %v7504
      %v7856 = vsel %vm1106, %v7504, %v7506
      %v7857 = vsel %vm1106, %v7508, %v7510
      %v7858 = vsel %vm1106, %v7510, %v7512
      %v7859 = vsel %vm1106, %v7514, %v7516
      %v7860 = vsel %vm1106, %v7516, %v7518
      %v7861 = vsel %vm1106, %v7520, %v7522
      %v7862 = vsel %vm1106, %v7522, %v7524
      %v7863 = vsel %vm1106, %v7526, %v7528
      %v7864 = vsel %vm1106, %v7528, %v7530
      %v7865 = vsel %vm1106, %v7532, %v7534
      %v7866 = vsel %vm1106, %v7534, %v7536
      %v7867 = vsel %vm1106, %v7538, %v7540
      %v7868 = vsel %vm1106, %v7540, %v7542
      %v7869 = vsel %vm1106, %v7544, %v7546
      %v7870 = vsel %vm1106, %v7546, %v7548
      %v7871 = vsel %vm1106, %v7550, %v7552
      %v7872 = vsel %vm1106, %v7552, %v7554
      %v7873 = vsel %vm1106, %v7556, %v7558
      %v7874 = vsel %vm1106, %v7558, %v7560
      %v7875 = vsel %vm1106, %v7562, %v7564
      %v7876 = vsel %vm1106, %v7564, %v7566
      %v7877 = vsel %vm1106, %v7568, %v7570
      %v7878 = vsel %vm1106, %v7570, %v7572
      %v7879 = vsel %vm1106, %v7574, %v7576
      %v7880 = vsel %vm1106, %v7576, %v7578
      %v7881 = vsel %vm1106, %v7580, %v7582
      %v7882 = vsel %vm1106, %v7582, %v7584
      %v7883 = vsel %vm1106, %v7586, %v7588
      %v7884 = vsel %vm1106, %v7588, %v7590
      %v7885 = vsel %vm1106, %v7592, %v7594
      %v7886 = vsel %vm1106, %v7594, %v7596
      %v7887 = vsel %vm1106, %v7598, %v7600
      %v7888 = vsel %vm1106, %v7600, %v7602
      %v7889 = vsel %vm1106, %v7604, %v7606
      %v7890 = vsel %vm1106, %v7606, %v7608
      %v7891 = vsel %vm1106, %v7610, %v7612
      %v7892 = vsel %vm1106, %v7612, %v7614
      %v7893 = vsel %vm1106, %v7616, %v7618
      %v7894 = vsel %vm1106, %v7618, %v7620
      %v7895 = vsel %vm1106, %v7622, %v7624
      %v7896 = vsel %vm1106, %v7624, %v7626
      %v7897 = vsel %vm1106, %v7628, %v7630
      %v7898 = vsel %vm1106, %v7630, %v7632
      %v7899 = vsel %vm1106, %v7634, %v7636
      %v7900 = vsel %vm1106, %v7636, %v7638
      %v7901 = vsel %vm1106, %v7640, %v7642
      %v7902 = vsel %vm1106, %v7642, %v7644
      %v7903 = vsel %vm1106, %v7646, %v7648
      %v7904 = vsel %vm1106, %v7648, %v7650
      %v7905 = vsel %vm1106, %v7652, %v7654
      %v7906 = vsel %vm1106, %v7654, %v7656
      %v7907 = vsel %vm1106, %v7658, %v7660
      %v7908 = vsel %vm1106, %v7660, %v7662
      %v7909 = vsel %vm1106, %v7664, %v7666
      %v7910 = vsel %vm1106, %v7666, %v7668
      %v7911 = vsel %vm1106, %v7670, %v7672
      %v7912 = vsel %vm1106, %v7672, %v7674
      %v7913 = vsel %vm1106, %v7676, %v7678
      %v7914 = vsel %vm1106, %v7678, %v7680
      %v7915 = vsel %vm1106, %v7682, %v7684
      %v7916 = vsel %vm1106, %v7684, %v7686
      %v7917 = vsel %vm1106, %v7688, %v7690
      %v7918 = vsel %vm1106, %v7690, %v7692
      %v7919 = vsel %vm1106, %v7694, %v7696
      %v7920 = vsel %vm1106, %v7696, %v7698
      %v7921 = vsel %vm1106, %v7700, %v7702
      %v7922 = vsel %vm1106, %v7702, %v7704
      %v7923 = vsel %vm1106, %v7706, %v7708
      %v7924 = vsel %vm1106, %v7708, %v7710
      %v7925 = vsel %vm1106, %v7712, %v7714
      %v7926 = vsel %vm1106, %v7714, %v7716
      %v7927 = vsel %vm1106, %v7718, %v7720
      %v7928 = vsel %vm1106, %v7720, %v7722
      %v7929 = vsel %vm1106, %v7724, %v7726
      %v7930 = vsel %vm1106, %v7726, %v7728
      %v7931 = vsel %vm1106, %v7730, %v7732
      %v7932 = vsel %vm1106, %v7732, %v7734
      %v7933 = vsel %vm1106, %v7736, %v7738
      %v7934 = vsel %vm1106, %v7738, %v7740
      %v7935 = vsel %vm1106, %v7742, %v7744
      %v7936 = vsel %vm1106, %v7744, %v7746
      %v7937 = vsel %vm1106, %v7748, %v7750
      %v7938 = vsel %vm1106, %v7750, %v7752
      %v7939 = vsel %vm1106, %v7754, %v7756
      %v7940 = vsel %vm1106, %v7756, %v7758
      %v7941 = vsel %vm1106, %v7760, %v7762
      %v7942 = vsel %vm1106, %v7762, %v7764
      %v7943 = vsel %vm1106, %v7766, %v7768
      %v7944 = vsel %vm1106, %v7768, %v7770
      %v7945 = vsel %vm1106, %v7772, %v7774
      %v7946 = vsel %vm1106, %v7774, %v7776
      %v7947 = vsel %vm1106, %v7778, %v7780
      %v7948 = vsel %vm1106, %v7780, %v7782
      %v7949 = vsel %vm1106, %v7784, %v7786
      %v7950 = vsel %vm1106, %v7786, %v7788
      %v7951 = vsel %vm1106, %v7790, %v7792
      %v7952 = vsel %vm1106, %v7792, %v7794
      %v7953 = vsel %vm1106, %v7796, %v7798
      %v7954 = vsel %vm1106, %v7798, %v7800
      %v7955 = vsel %vm1106, %v7802, %v7804
      %v7956 = vsel %vm1106, %v7804, %v7806
      %v7957 = vsel %vm1106, %v7808, %v7810
      %v7958 = vsel %vm1106, %v7810, %v7812
      %v7959 = vsel %vm1106, %v7814, %v7816
      %v7960 = vsel %vm1106, %v7816, %v7818
      %v7961 = vsel %vm1106, %v7820, %v7822
      %v7962 = vsel %vm1106, %v7822, %v7824
      %v7963 = vsel %vm1106, %v7826, %v7828
      %v7964 = vsel %vm1106, %v7828, %v7830
      %v7965 = vsel %vm1106, %v7832, %v7834
      %v7966 = vsel %vm1106, %v7834, %v7836
      %v7967 = vsel %vm1106, %v7838, %v7840
      %v7968 = vsel %vm1106, %v7840, %v7842
      %v8158 = vld [vmem:[%s14] sm:$0xff]
      %v8159 = vld [vmem:[%s14 + $0x8] sm:$0xff]
      %v8160 = vld [vmem:[%s14 + $0x10] sm:$0xff]
      %v8161 = vld [vmem:[%s14 + $0x18] sm:$0xff]
      %v8162 = vld [vmem:[%s14 + $0x20] sm:$0xff]
      %v8163 = vld [vmem:[%s14 + $0x28] sm:$0xff]
      %v8164 = vld [vmem:[%s14 + $0x30] sm:$0xff]
      %v8165 = vld [vmem:[%s14 + $0x38] sm:$0xff]
      %v8166 = vld [vmem:[%s14 + $0x40] sm:$0xff]
      %v8167 = vld [vmem:[%s14 + $0x48] sm:$0xff]
      %v8168 = vld [vmem:[%s14 + $0x50] sm:$0xff]
      %v8169 = vld [vmem:[%s14 + $0x58] sm:$0xf]
      %v8170 = vld [vmem:[%s14 + $0x60] sm:$0xf]
      %v8171 = vld [vmem:[%s14 + $0x68] sm:$0xf]
      %v8172 = vld [vmem:[%s14 + $0x70] sm:$0xf]
      %v8173 = vld [vmem:[%s14 + $0x78] sm:$0xf]
      %v8174 = vld [vmem:[%s14 + $0x80] sm:$0xf]
      %v8175 = vld [vmem:[%s14 + $0x88] sm:$0xf]
      %v8176 = vld [vmem:[%s14 + $0x90] sm:$0xf]
      %v8177 = vld [vmem:[%s14 + $0x98] sm:$0xf]
      %v8178 = vld [vmem:[%s14 + $0xa0] sm:$0xf]
      %v8179 = vld [vmem:[%s14 + $0xa8] sm:$0xf]
      %v8180 = vld [vmem:[%s15] sm:$0xff]
      %v8181 = vld [vmem:[%s15 + $0x8] sm:$0xf]
      %8183 = vset.pattern.permute.xlu0 0
      %8184 = vperm.xlu0 %8183, %v8180
      %v8185 = vpop.permute.xlu0 %8184
      %8188 = vset.pattern.permute.xlu0 0
      %8189 = vperm.xlu0 %8188, %v8181
      %v8190 = vpop.permute.xlu0 %8189
      %vm8192 = vcmask 982016
      %v8194 = vsel %vm8192, %v8168, 0
      %v8197 = vsel %vm8192, %v8179, 0
      %8199 = vmatprep.subr.mxu0 %v6264
      %8200 = vmatpush1.msra.mxu0 %v6263
      %8201 = vmatprep.subr.mxu0 %v6262
      %8202 = vmatpush1.msra.mxu0 %v6261
      %8203 = vmatprep.subr.mxu0 %v6197
      %8204 = vmatpush1.msra.mxu0 %v6196
      %8205 = vmatprep.subr.mxu0 %v6195
      %8206 = vmatpush1.msra.mxu0 %v6194
      %8207 = vmatprep.subr.mxu0 %v6193
      %8208 = vmatpush1.msra.mxu0 %v6192
      %8209 = vmatprep.subr.mxu0 %v6191
      %8210 = vmatpush1.msra.mxu0 %v6190
      %8211 = vmatprep.subr.mxu0 %v6189
      %8212 = vmatpush1.msra.mxu0 %v6188
      %8213 = vmatprep.subr.mxu0 %v6187
      %8214 = vmatpush1.msra.mxu0 %v6186
      %8215 = vmatprep.subr.mxu0 %v6185
      %8216 = vmatpush1.msra.mxu0 %v6184
      %8217 = vmatprep.subr.mxu0 %v6118
      %8218 = vmatpush1.msra.mxu0 %v6117
      %8219 = vmatprep.subr.mxu0 %v6114
      %8220 = vmatpush1.msra.mxu0 %v6113
      %8221 = vmatprep.subr.mxu0 %v6110
      %8222 = vmatpush1.msra.mxu0 %v6109
      %8223 = vmatprep.subr.mxu0 %v6106
      %8224 = vmatpush1.msra.mxu0 %v6105
      %8225 = vmatprep.subr.mxu0 %v6102
      %8226 = vmatpush1.msra.mxu0 %v6101
      %8227 = vmatprep.subr.mxu0 %v6098
      %8228 = vmatpush1.msra.mxu0 %v6097
      %8229 = vmatprep.subr.mxu0 %v6094
      %8230 = vmatpush1.msra.mxu0 %v6093
      %8231 = vmatprep.subr.mxu0 %v6422
      %8232 = vmatpush2.msra.mxu0 %v6421
      %8233 = vmatprep.subr.mxu0 %v6420
      %8234 = vmatpush2.msra.mxu0 %v6419
      %8235 = vmatprep.subr.mxu0 %v6418
      %8236 = vmatpush2.msra.mxu0 %v6417
      %8237 = vmatprep.subr.mxu0 %v6416
      %8238 = vmatpush2.msra.mxu0 %v6415
      %8239 = vmatprep.subr.mxu0 %v6351
      %8240 = vmatpush2.msra.mxu0 %v6350
      %8241 = vmatprep.subr.mxu0 %v6349
      %8242 = vmatpush2.msra.mxu0 %v6348
      %8243 = vmatprep.subr.mxu0 %v6347
      %8244 = vmatpush2.msra.mxu0 %v6346
      %8245 = vmatprep.subr.mxu0 %v6345
      %8246 = vmatpush2.msra.mxu0 %v6344
      %8247 = vmatprep.subr.mxu0 %v6343
      %8248 = vmatpush2.msra.mxu0 %v6342
      %8249 = vmatprep.subr.mxu0 %v6341
      %8250 = vmatpush2.msra.mxu0 %v6340
      %8251 = vmatprep.subr.mxu0 %v6339
      %8252 = vmatpush2.msra.mxu0 %v6338
      %8253 = vmatprep.subr.mxu0 %v6274
      %8254 = vmatpush2.msra.mxu0 %v6273
      %8255 = vmatprep.subr.mxu0 %v6272
      %8256 = vmatpush2.msra.mxu0 %v6271
      %8257 = vmatprep.subr.mxu0 %v6270
      %8258 = vmatpush2.msra.mxu0 %v6269
      %8259 = vmatprep.subr.mxu0 %v6268
      %8260 = vmatpush2.msra.mxu0 %v6267
      %8261 = vmatprep.subr.mxu0 %v6266
      %8262 = vmatpush2.msra.mxu0 %v6265
      %8263 = vmatprep.mubr.f32.mxu0 %v8159
      %8264 = vmatmul.mubr.f32.gmra.mxu0 %v8158
      %v8265 = vpop.f32.mrf.mxu0
      %v8266 = vadd.f32 %v8185, %v8265
      %v8267 = vpop.f32.mrf.mxu0
      %v8268 = vadd.f32 %v8185, %v8267
      %8269 = vmatprep.mubr.f32.mxu0 %v8170
      %8270 = vmatmul.mubr.f32.gmra.mxu0 %v8169
      %v8271 = vpop.f32.mrf.mxu0
      %v8272 = vadd.f32 %v8190, %v8271
      %v8273 = vpop.f32.mrf.mxu0
      %v8274 = vadd.f32 %v8190, %v8273
      %8275 = vdwg.mxu0
      %8276 = vmatprep.subr.mxu0 %v6580
      %8277 = vmatpush1.msra.mxu0 %v6579
      %8278 = vmatprep.subr.mxu0 %v6578
      %8279 = vmatpush1.msra.mxu0 %v6577
      %8280 = vmatprep.subr.mxu0 %v6576
      %8281 = vmatpush1.msra.mxu0 %v6575
      %8282 = vmatprep.subr.mxu0 %v6574
      %8283 = vmatpush1.msra.mxu0 %v6573
      %8284 = vmatprep.subr.mxu0 %v6572
      %8285 = vmatpush1.msra.mxu0 %v6571
      %8286 = vmatprep.subr.mxu0 %v6570
      %8287 = vmatpush1.msra.mxu0 %v6569
      %8288 = vmatprep.subr.mxu0 %v6505
      %8289 = vmatpush1.msra.mxu0 %v6504
      %8290 = vmatprep.subr.mxu0 %v6503
      %8291 = vmatpush1.msra.mxu0 %v6502
      %8292 = vmatprep.subr.mxu0 %v6501
      %8293 = vmatpush1.msra.mxu0 %v6500
      %8294 = vmatprep.subr.mxu0 %v6499
      %8295 = vmatpush1.msra.mxu0 %v6498
      %8296 = vmatprep.subr.mxu0 %v6497
      %8297 = vmatpush1.msra.mxu0 %v6496
      %8298 = vmatprep.subr.mxu0 %v6495
      %8299 = vmatpush1.msra.mxu0 %v6494
      %8300 = vmatprep.subr.mxu0 %v6493
      %8301 = vmatpush1.msra.mxu0 %v6492
      %8302 = vmatprep.subr.mxu0 %v6428
      %8303 = vmatpush1.msra.mxu0 %v6427
      %8304 = vmatprep.subr.mxu0 %v6426
      %8305 = vmatpush1.msra.mxu0 %v6425
      %8306 = vmatprep.subr.mxu0 %v6424
      %8307 = vmatpush1.msra.mxu0 %v6423
      %8308 = vmatprep.subr.mxu0 %v6801
      %8309 = vmatpush2.msra.mxu0 %v6800
      %8310 = vmatprep.subr.mxu0 %v6736
      %8311 = vmatpush2.msra.mxu0 %v6735
      %8312 = vmatprep.subr.mxu0 %v6734
      %8313 = vmatpush2.msra.mxu0 %v6733
      %8314 = vmatprep.subr.mxu0 %v6732
      %8315 = vmatpush2.msra.mxu0 %v6731
      %8316 = vmatprep.subr.mxu0 %v6730
      %8317 = vmatpush2.msra.mxu0 %v6729
      %8318 = vmatprep.subr.mxu0 %v6728
      %8319 = vmatpush2.msra.mxu0 %v6727
      %8320 = vmatprep.subr.mxu0 %v6726
      %8321 = vmatpush2.msra.mxu0 %v6725
      %8322 = vmatprep.subr.mxu0 %v6724
      %8323 = vmatpush2.msra.mxu0 %v6723
      %8324 = vmatprep.subr.mxu0 %v6659
      %8325 = vmatpush2.msra.mxu0 %v6658
      %8326 = vmatprep.subr.mxu0 %v6657
      %8327 = vmatpush2.msra.mxu0 %v6656
      %8328 = vmatprep.subr.mxu0 %v6655
      %8329 = vmatpush2.msra.mxu0 %v6654
      %8330 = vmatprep.subr.mxu0 %v6653
      %8331 = vmatpush2.msra.mxu0 %v6652
      %8332 = vmatprep.subr.mxu0 %v6651
      %8333 = vmatpush2.msra.mxu0 %v6650
      %8334 = vmatprep.subr.mxu0 %v6649
      %8335 = vmatpush2.msra.mxu0 %v6648
      %8336 = vmatprep.subr.mxu0 %v6647
      %8337 = vmatpush2.msra.mxu0 %v6646
      %8338 = vmatprep.subr.mxu0 %v6582
      %8339 = vmatpush2.msra.mxu0 %v6581
      %8340 = vmatprep.mubr.f32.mxu0 %v8161
      %8341 = vmatmul.mubr.f32.gmra.mxu0 %v8160
      %v8342 = vpop.f32.mrf.mxu0
      %v8343 = vadd.f32 %v8266, %v8342
      %v8344 = vpop.f32.mrf.mxu0
      %v8345 = vadd.f32 %v8268, %v8344
      %8346 = vmatprep.mubr.f32.mxu0 %v8172
      %8347 = vmatmul.mubr.f32.gmra.mxu0 %v8171
      %v8348 = vpop.f32.mrf.mxu0
      %v8349 = vadd.f32 %v8272, %v8348
      %v8350 = vpop.f32.mrf.mxu0
      %v8351 = vadd.f32 %v8274, %v8350
      %8352 = vdwg.mxu0
      %8353 = vmatprep.subr.mxu0 %v6959
      %8354 = vmatpush1.msra.mxu0 %v6958
      %8355 = vmatprep.subr.mxu0 %v6957
      %8356 = vmatpush1.msra.mxu0 %v6956
      %8357 = vmatprep.subr.mxu0 %v6955
      %8358 = vmatpush1.msra.mxu0 %v6954
      %8359 = vmatprep.subr.mxu0 %v6890
      %8360 = vmatpush1.msra.mxu0 %v6889
      %8361 = vmatprep.subr.mxu0 %v6888
      %8362 = vmatpush1.msra.mxu0 %v6887
      %8363 = vmatprep.subr.mxu0 %v6886
      %8364 = vmatpush1.msra.mxu0 %v6885
      %8365 = vmatprep.subr.mxu0 %v6884
      %8366 = vmatpush1.msra.mxu0 %v6883
      %8367 = vmatprep.subr.mxu0 %v6882
      %8368 = vmatpush1.msra.mxu0 %v6881
      %8369 = vmatprep.subr.mxu0 %v6880
      %8370 = vmatpush1.msra.mxu0 %v6879
      %8371 = vmatprep.subr.mxu0 %v6878
      %8372 = vmatpush1.msra.mxu0 %v6877
      %8373 = vmatprep.subr.mxu0 %v6813
      %8374 = vmatpush1.msra.mxu0 %v6812
      %8375 = vmatprep.subr.mxu0 %v6811
      %8376 = vmatpush1.msra.mxu0 %v6810
      %8377 = vmatprep.subr.mxu0 %v6809
      %8378 = vmatpush1.msra.mxu0 %v6808
      %8379 = vmatprep.subr.mxu0 %v6807
      %8380 = vmatpush1.msra.mxu0 %v6806
      %8381 = vmatprep.subr.mxu0 %v6805
      %8382 = vmatpush1.msra.mxu0 %v6804
      %8383 = vmatprep.subr.mxu0 %v6803
      %8384 = vmatpush1.msra.mxu0 %v6802
      %8385 = vmatprep.subr.mxu0 %v7117
      %8386 = vmatpush2.msra.mxu0 %v7116
      %8387 = vmatprep.subr.mxu0 %v7115
      %8388 = vmatpush2.msra.mxu0 %v7114
      %8389 = vmatprep.subr.mxu0 %v7113
      %8390 = vmatpush2.msra.mxu0 %v7112
      %8391 = vmatprep.subr.mxu0 %v7111
      %8392 = vmatpush2.msra.mxu0 %v7110
      %8393 = vmatprep.subr.mxu0 %v7109
      %8394 = vmatpush2.msra.mxu0 %v7108
      %8395 = vmatprep.subr.mxu0 %v7044
      %8396 = vmatpush2.msra.mxu0 %v7043
      %8397 = vmatprep.subr.mxu0 %v7042
      %8398 = vmatpush2.msra.mxu0 %v7041
      %8399 = vmatprep.subr.mxu0 %v7040
      %8400 = vmatpush2.msra.mxu0 %v7039
      %8401 = vmatprep.subr.mxu0 %v7038
      %8402 = vmatpush2.msra.mxu0 %v7037
      %8403 = vmatprep.subr.mxu0 %v7036
      %8404 = vmatpush2.msra.mxu0 %v7035
      %8405 = vmatprep.subr.mxu0 %v7034
      %8406 = vmatpush2.msra.mxu0 %v7033
      %8407 = vmatprep.subr.mxu0 %v7032
      %8408 = vmatpush2.msra.mxu0 %v7031
      %8409 = vmatprep.subr.mxu0 %v6967
      %8410 = vmatpush2.msra.mxu0 %v6966
      %8411 = vmatprep.subr.mxu0 %v6965
      %8412 = vmatpush2.msra.mxu0 %v6964
      %8413 = vmatprep.subr.mxu0 %v6963
      %8414 = vmatpush2.msra.mxu0 %v6962
      %8415 = vmatprep.subr.mxu0 %v6961
      %8416 = vmatpush2.msra.mxu0 %v6960
      %8417 = vmatprep.mubr.f32.mxu0 %v8163
      %8418 = vmatmul.mubr.f32.gmra.mxu0 %v8162
      %v8419 = vpop.f32.mrf.mxu0
      %v8420 = vadd.f32 %v8343, %v8419
      %v8421 = vpop.f32.mrf.mxu0
      %v8422 = vadd.f32 %v8345, %v8421
      %8423 = vmatprep.mubr.f32.mxu0 %v8174
      %8424 = vmatmul.mubr.f32.gmra.mxu0 %v8173
      %v8425 = vpop.f32.mrf.mxu0
      %v8426 = vadd.f32 %v8349, %v8425
      %v8427 = vpop.f32.mrf.mxu0
      %v8428 = vadd.f32 %v8351, %v8427
      %8429 = vdwg.mxu0
      %8430 = vmatprep.subr.mxu0 %v7275
      %8431 = vmatpush1.msra.mxu0 %v7274
      %8432 = vmatprep.subr.mxu0 %v7273
      %8433 = vmatpush1.msra.mxu0 %v7272
      %8434 = vmatprep.subr.mxu0 %v7271
      %8435 = vmatpush1.msra.mxu0 %v7270
      %8436 = vmatprep.subr.mxu0 %v7269
      %8437 = vmatpush1.msra.mxu0 %v7268
      %8438 = vmatprep.subr.mxu0 %v7267
      %8439 = vmatpush1.msra.mxu0 %v7266
      %8440 = vmatprep.subr.mxu0 %v7265
      %8441 = vmatpush1.msra.mxu0 %v7264
      %8442 = vmatprep.subr.mxu0 %v7263
      %8443 = vmatpush1.msra.mxu0 %v7262
      %8444 = vmatprep.subr.mxu0 %v7198
      %8445 = vmatpush1.msra.mxu0 %v7197
      %8446 = vmatprep.subr.mxu0 %v7196
      %8447 = vmatpush1.msra.mxu0 %v7195
      %8448 = vmatprep.subr.mxu0 %v7194
      %8449 = vmatpush1.msra.mxu0 %v7193
      %8450 = vmatprep.subr.mxu0 %v7192
      %8451 = vmatpush1.msra.mxu0 %v7191
      %8452 = vmatprep.subr.mxu0 %v7190
      %8453 = vmatpush1.msra.mxu0 %v7189
      %8454 = vmatprep.subr.mxu0 %v7188
      %8455 = vmatpush1.msra.mxu0 %v7187
      %8456 = vmatprep.subr.mxu0 %v7186
      %8457 = vmatpush1.msra.mxu0 %v7185
      %8458 = vmatprep.subr.mxu0 %v7121
      %8459 = vmatpush1.msra.mxu0 %v7120
      %8460 = vmatprep.subr.mxu0 %v7119
      %8461 = vmatpush1.msra.mxu0 %v7118
      %8462 = vmatprep.subr.mxu0 %v7874
      %8463 = vmatpush2.msra.mxu0 %v7873
      %8464 = vmatprep.subr.mxu0 %v7872
      %8465 = vmatpush2.msra.mxu0 %v7871
      %8466 = vmatprep.subr.mxu0 %v7870
      %8467 = vmatpush2.msra.mxu0 %v7869
      %8468 = vmatprep.subr.mxu0 %v7868
      %8469 = vmatpush2.msra.mxu0 %v7867
      %8470 = vmatprep.subr.mxu0 %v7866
      %8471 = vmatpush2.msra.mxu0 %v7865
      %8472 = vmatprep.subr.mxu0 %v7864
      %8473 = vmatpush2.msra.mxu0 %v7863
      %8474 = vmatprep.subr.mxu0 %v7862
      %8475 = vmatpush2.msra.mxu0 %v7861
      %8476 = vmatprep.subr.mxu0 %v7860
      %8477 = vmatpush2.msra.mxu0 %v7859
      %8478 = vmatprep.subr.mxu0 %v7858
      %8479 = vmatpush2.msra.mxu0 %v7857
      %8480 = vmatprep.subr.mxu0 %v7856
      %8481 = vmatpush2.msra.mxu0 %v7855
      %8482 = vmatprep.subr.mxu0 %v7854
      %8483 = vmatpush2.msra.mxu0 %v7853
      %8484 = vmatprep.subr.mxu0 %v7852
      %8485 = vmatpush2.msra.mxu0 %v7851
      %8486 = vmatprep.subr.mxu0 %v7850
      %8487 = vmatpush2.msra.mxu0 %v7849
      %8488 = vmatprep.subr.mxu0 %v7848
      %8489 = vmatpush2.msra.mxu0 %v7847
      %8490 = vmatprep.subr.mxu0 %v7846
      %8491 = vmatpush2.msra.mxu0 %v7845
      %8492 = vmatprep.subr.mxu0 %v7844
      %8493 = vmatpush2.msra.mxu0 %v7843
      %8494 = vmatprep.mubr.f32.mxu0 %v8165
      %8495 = vmatmul.mubr.f32.gmra.mxu0 %v8164
      %v8496 = vpop.f32.mrf.mxu0
      %v8497 = vadd.f32 %v8420, %v8496
      %v8498 = vpop.f32.mrf.mxu0
      %v8499 = vadd.f32 %v8422, %v8498
      %8500 = vmatprep.mubr.f32.mxu0 %v8176
      %8501 = vmatmul.mubr.f32.gmra.mxu0 %v8175
      %v8502 = vpop.f32.mrf.mxu0
      %v8503 = vadd.f32 %v8426, %v8502
      %v8504 = vpop.f32.mrf.mxu0
      %v8505 = vadd.f32 %v8428, %v8504
      %8506 = vdwg.mxu0
      %8507 = vmatprep.subr.mxu0 %v7906
      %8508 = vmatpush1.msra.mxu0 %v7905
      %8509 = vmatprep.subr.mxu0 %v7904
      %8510 = vmatpush1.msra.mxu0 %v7903
      %8511 = vmatprep.subr.mxu0 %v7902
      %8512 = vmatpush1.msra.mxu0 %v7901
      %8513 = vmatprep.subr.mxu0 %v7900
      %8514 = vmatpush1.msra.mxu0 %v7899
      %8515 = vmatprep.subr.mxu0 %v7898
      %8516 = vmatpush1.msra.mxu0 %v7897
      %8517 = vmatprep.subr.mxu0 %v7896
      %8518 = vmatpush1.msra.mxu0 %v7895
      %8519 = vmatprep.subr.mxu0 %v7894
      %8520 = vmatpush1.msra.mxu0 %v7893
      %8521 = vmatprep.subr.mxu0 %v7892
      %8522 = vmatpush1.msra.mxu0 %v7891
      %8523 = vmatprep.subr.mxu0 %v7890
      %8524 = vmatpush1.msra.mxu0 %v7889
      %8525 = vmatprep.subr.mxu0 %v7888
      %8526 = vmatpush1.msra.mxu0 %v7887
      %8527 = vmatprep.subr.mxu0 %v7886
      %8528 = vmatpush1.msra.mxu0 %v7885
      %8529 = vmatprep.subr.mxu0 %v7884
      %8530 = vmatpush1.msra.mxu0 %v7883
      %8531 = vmatprep.subr.mxu0 %v7882
      %8532 = vmatpush1.msra.mxu0 %v7881
      %8533 = vmatprep.subr.mxu0 %v7880
      %8534 = vmatpush1.msra.mxu0 %v7879
      %8535 = vmatprep.subr.mxu0 %v7878
      %8536 = vmatpush1.msra.mxu0 %v7877
      %8537 = vmatprep.subr.mxu0 %v7876
      %8538 = vmatpush1.msra.mxu0 %v7875
      %8539 = vmatprep.subr.mxu0 %v7938
      %8540 = vmatpush2.msra.mxu0 %v7937
      %8541 = vmatprep.subr.mxu0 %v7936
      %8542 = vmatpush2.msra.mxu0 %v7935
      %8543 = vmatprep.subr.mxu0 %v7934
      %8544 = vmatpush2.msra.mxu0 %v7933
      %8545 = vmatprep.subr.mxu0 %v7932
      %8546 = vmatpush2.msra.mxu0 %v7931
      %8547 = vmatprep.subr.mxu0 %v7930
      %8548 = vmatpush2.msra.mxu0 %v7929
      %8549 = vmatprep.subr.mxu0 %v7928
      %8550 = vmatpush2.msra.mxu0 %v7927
      %8551 = vmatprep.subr.mxu0 %v7926
      %8552 = vmatpush2.msra.mxu0 %v7925
      %8553 = vmatprep.subr.mxu0 %v7924
      %8554 = vmatpush2.msra.mxu0 %v7923
      %8555 = vmatprep.subr.mxu0 %v7922
      %8556 = vmatpush2.msra.mxu0 %v7921
      %8557 = vmatprep.subr.mxu0 %v7920
      %8558 = vmatpush2.msra.mxu0 %v7919
      %8559 = vmatprep.subr.mxu0 %v7918
      %8560 = vmatpush2.msra.mxu0 %v7917
      %8561 = vmatprep.subr.mxu0 %v7916
      %8562 = vmatpush2.msra.mxu0 %v7915
      %8563 = vmatprep.subr.mxu0 %v7914
      %8564 = vmatpush2.msra.mxu0 %v7913
      %8565 = vmatprep.subr.mxu0 %v7912
      %8566 = vmatpush2.msra.mxu0 %v7911
      %8567 = vmatprep.subr.mxu0 %v7910
      %8568 = vmatpush2.msra.mxu0 %v7909
      %8569 = vmatprep.subr.mxu0 %v7908
      %8570 = vmatpush2.msra.mxu0 %v7907
      %8571 = vmatprep.mubr.f32.mxu0 %v8167
      %8572 = vmatmul.mubr.f32.gmra.mxu0 %v8166
      %v8573 = vpop.f32.mrf.mxu0
      %v8574 = vadd.f32 %v8497, %v8573
      %v8575 = vpop.f32.mrf.mxu0
      %v8576 = vadd.f32 %v8499, %v8575
      %8577 = vmatprep.mubr.f32.mxu0 %v8178
      %8578 = vmatmul.mubr.f32.gmra.mxu0 %v8177
      %v8579 = vpop.f32.mrf.mxu0
      %v8580 = vadd.f32 %v8503, %v8579
      %v8581 = vpop.f32.mrf.mxu0
      %v8582 = vadd.f32 %v8505, %v8581
      %8583 = vdwg.mxu0
      %8584 = vmatprep.subr.mxu0 0.0
      %8585 = vmatpush1.msra.mxu0 0.0
      %8586 = vmatprep.subr.mxu0 %v7968
      %8587 = vmatpush1.msra.mxu0 %v7967
      %8588 = vmatprep.subr.mxu0 %v7966
      %8589 = vmatpush1.msra.mxu0 %v7965
      %8590 = vmatprep.subr.mxu0 %v7964
      %8591 = vmatpush1.msra.mxu0 %v7963
      %8592 = vmatprep.subr.mxu0 %v7962
      %8593 = vmatpush1.msra.mxu0 %v7961
      %8594 = vmatprep.subr.mxu0 %v7960
      %8595 = vmatpush1.msra.mxu0 %v7959
      %8596 = vmatprep.subr.mxu0 %v7958
      %8597 = vmatpush1.msra.mxu0 %v7957
      %8598 = vmatprep.subr.mxu0 %v7956
      %8599 = vmatpush1.msra.mxu0 %v7955
      %8600 = vmatprep.subr.mxu0 %v7954
      %8601 = vmatpush1.msra.mxu0 %v7953
      %8602 = vmatprep.subr.mxu0 %v7952
      %8603 = vmatpush1.msra.mxu0 %v7951
      %8604 = vmatprep.subr.mxu0 %v7950
      %8605 = vmatpush1.msra.mxu0 %v7949
      %8606 = vmatprep.subr.mxu0 %v7948
      %8607 = vmatpush1.msra.mxu0 %v7947
      %8608 = vmatprep.subr.mxu0 %v7946
      %8609 = vmatpush1.msra.mxu0 %v7945
      %8610 = vmatprep.subr.mxu0 %v7944
      %8611 = vmatpush1.msra.mxu0 %v7943
      %8612 = vmatprep.subr.mxu0 %v7942
      %8613 = vmatpush1.msra.mxu0 %v7941
      %8614 = vmatprep.subr.mxu0 %v7940
      %8615 = vmatpush1.msra.mxu0 %v7939
      %8616 = vmatprep.subr.mxu0 0.0
      %8617 = vmatpush2.msra.mxu0 0.0
      %8618 = vmatprep.subr.mxu0 0.0
      %8619 = vmatpush2.msra.mxu0 0.0
      %8620 = vmatprep.subr.mxu0 0.0
      %8621 = vmatpush2.msra.mxu0 0.0
      %8622 = vmatprep.subr.mxu0 0.0
      %8623 = vmatpush2.msra.mxu0 0.0
      %8624 = vmatprep.subr.mxu0 0.0
      %8625 = vmatpush2.msra.mxu0 0.0
      %8626 = vmatprep.subr.mxu0 0.0
      %8627 = vmatpush2.msra.mxu0 0.0
      %8628 = vmatprep.subr.mxu0 0.0
      %8629 = vmatpush2.msra.mxu0 0.0
      %8630 = vmatprep.subr.mxu0 0.0
      %8631 = vmatpush2.msra.mxu0 0.0
      %8632 = vmatprep.subr.mxu0 0.0
      %8633 = vmatpush2.msra.mxu0 0.0
      %8634 = vmatprep.subr.mxu0 0.0
      %8635 = vmatpush2.msra.mxu0 0.0
      %8636 = vmatprep.subr.mxu0 0.0
      %8637 = vmatpush2.msra.mxu0 0.0
      %8638 = vmatprep.subr.mxu0 0.0
      %8639 = vmatpush2.msra.mxu0 0.0
      %8640 = vmatprep.subr.mxu0 0.0
      %8641 = vmatpush2.msra.mxu0 0.0
      %8642 = vmatprep.subr.mxu0 0.0
      %8643 = vmatpush2.msra.mxu0 0.0
      %8644 = vmatprep.subr.mxu0 0.0
      %8645 = vmatpush2.msra.mxu0 0.0
      %8646 = vmatprep.subr.mxu0 0.0
      %8647 = vmatpush2.msra.mxu0 0.0
      %8648 = vmatprep.mubr.f32.mxu0 0.0
      %8649 = vmatmul.mubr.f32.gmra.mxu0 %v8194
      %v8650 = vpop.f32.mrf.mxu0
      %v8651 = vadd.f32 %v8574, %v8650
      %v8652 = vpop.f32.mrf.mxu0
      %v8653 = vadd.f32 %v8576, %v8652
      %8654 = vmatprep.mubr.f32.mxu0 0.0
      %8655 = vmatmul.mubr.f32.gmra.mxu0 %v8197
      %v8656 = vpop.f32.mrf.mxu0
      %v8657 = vadd.f32 %v8580, %v8656
      %v8658 = vpop.f32.mrf.mxu0
      %v8659 = vadd.f32 %v8582, %v8658
      %8660 = vdwg.mxu0
      %8661 = vmatprep.subr.mxu0 0.0
      %8662 = vmatpush1.msra.mxu0 %v6230
      %8663 = vmatprep.subr.mxu0 0.0
      %8664 = vmatpush1.msra.mxu0 %v6224
      %8665 = vmatprep.subr.mxu0 0.0
      %8666 = vmatpush1.msra.mxu0 %v6183
      %8667 = vmatprep.subr.mxu0 0.0
      %8668 = vmatpush1.msra.mxu0 %v6177
      %8669 = vmatprep.subr.mxu0 0.0
      %8670 = vmatpush1.msra.mxu0 %v6171
      %8671 = vmatprep.subr.mxu0 0.0
      %8672 = vmatpush1.msra.mxu0 %v6165
      %8673 = vmatprep.subr.mxu0 0.0
      %8674 = vmatpush1.msra.mxu0 %v6159
      %8675 = vmatprep.subr.mxu0 0.0
      %8676 = vmatpush1.msra.mxu0 %v6153
      %8677 = vmatprep.subr.mxu0 0.0
      %8678 = vmatpush1.msra.mxu0 %v6147
      %8679 = vmatprep.subr.mxu0 0.0
      %8680 = vmatpush1.msra.mxu0 %v6119
      %8681 = vmatprep.subr.mxu0 0.0
      %8682 = vmatpush1.msra.mxu0 %v6115
      %8683 = vmatprep.subr.mxu0 0.0
      %8684 = vmatpush1.msra.mxu0 %v6111
      %8685 = vmatprep.subr.mxu0 0.0
      %8686 = vmatpush1.msra.mxu0 %v6107
      %8687 = vmatprep.subr.mxu0 0.0
      %8688 = vmatpush1.msra.mxu0 %v6103
      %8689 = vmatprep.subr.mxu0 0.0
      %8690 = vmatpush1.msra.mxu0 %v6099
      %8691 = vmatprep.subr.mxu0 0.0
      %8692 = vmatpush1.msra.mxu0 %v6095
      %8693 = vmatprep.subr.mxu0 0.0
      %8694 = vmatpush2.msra.mxu0 %v6396
      %8695 = vmatprep.subr.mxu0 0.0
      %8696 = vmatpush2.msra.mxu0 %v6390
      %8697 = vmatprep.subr.mxu0 0.0
      %8698 = vmatpush2.msra.mxu0 %v6384
      %8699 = vmatprep.subr.mxu0 0.0
      %8700 = vmatpush2.msra.mxu0 %v6378
      %8701 = vmatprep.subr.mxu0 0.0
      %8702 = vmatpush2.msra.mxu0 %v6337
      %8703 = vmatprep.subr.mxu0 0.0
      %8704 = vmatpush2.msra.mxu0 %v6331
      %8705 = vmatprep.subr.mxu0 0.0
      %8706 = vmatpush2.msra.mxu0 %v6325
      %8707 = vmatprep.subr.mxu0 0.0
      %8708 = vmatpush2.msra.mxu0 %v6319
      %8709 = vmatprep.subr.mxu0 0.0
      %8710 = vmatpush2.msra.mxu0 %v6313
      %8711 = vmatprep.subr.mxu0 0.0
      %8712 = vmatpush2.msra.mxu0 %v6307
      %8713 = vmatprep.subr.mxu0 0.0
      %8714 = vmatpush2.msra.mxu0 %v6301
      %8715 = vmatprep.subr.mxu0 0.0
      %8716 = vmatpush2.msra.mxu0 %v6260
      %8717 = vmatprep.subr.mxu0 0.0
      %8718 = vmatpush2.msra.mxu0 %v6254
      %8719 = vmatprep.subr.mxu0 0.0
      %8720 = vmatpush2.msra.mxu0 %v6248
      %8721 = vmatprep.subr.mxu0 0.0
      %8722 = vmatpush2.msra.mxu0 %v6242
      %8723 = vmatprep.subr.mxu0 0.0
      %8724 = vmatpush2.msra.mxu0 %v6236
      %8725 = vmatprep.mubr.f32.mxu0 %v8159
      %8726 = vmatmul.mubr.f32.gmra.mxu0 %v8158
      %v8727 = vpop.f32.mrf.mxu0
      %v8728 = vadd.f32 %v8185, %v8727
      %v8729 = vpop.f32.mrf.mxu0
      %8730 = vmatprep.mubr.f32.mxu0 %v8170
      %8731 = vmatmul.mubr.f32.gmra.mxu0 %v8169
      %v8732 = vpop.f32.mrf.mxu0
      %v8733 = vadd.f32 %v8190, %v8732
      %v8734 = vpop.f32.mrf.mxu0
      %8735 = vdwg.mxu0
      %8736 = vmatprep.subr.mxu0 0.0
      %8737 = vmatpush1.msra.mxu0 %v6562
      %8738 = vmatprep.subr.mxu0 0.0
      %8739 = vmatpush1.msra.mxu0 %v6556
      %8740 = vmatprep.subr.mxu0 0.0
      %8741 = vmatpush1.msra.mxu0 %v6550
      %8742 = vmatprep.subr.mxu0 0.0
      %8743 = vmatpush1.msra.mxu0 %v6544
      %8744 = vmatprep.subr.mxu0 0.0
      %8745 = vmatpush1.msra.mxu0 %v6538
      %8746 = vmatprep.subr.mxu0 0.0
      %8747 = vmatpush1.msra.mxu0 %v6532
      %8748 = vmatprep.subr.mxu0 0.0
      %8749 = vmatpush1.msra.mxu0 %v6491
      %8750 = vmatprep.subr.mxu0 0.0
      %8751 = vmatpush1.msra.mxu0 %v6485
      %8752 = vmatprep.subr.mxu0 0.0
      %8753 = vmatpush1.msra.mxu0 %v6479
      %8754 = vmatprep.subr.mxu0 0.0
      %8755 = vmatpush1.msra.mxu0 %v6473
      %8756 = vmatprep.subr.mxu0 0.0
      %8757 = vmatpush1.msra.mxu0 %v6467
      %8758 = vmatprep.subr.mxu0 0.0
      %8759 = vmatpush1.msra.mxu0 %v6461
      %8760 = vmatprep.subr.mxu0 0.0
      %8761 = vmatpush1.msra.mxu0 %v6455
      %8762 = vmatprep.subr.mxu0 0.0
      %8763 = vmatpush1.msra.mxu0 %v6414
      %8764 = vmatprep.subr.mxu0 0.0
      %8765 = vmatpush1.msra.mxu0 %v6408
      %8766 = vmatprep.subr.mxu0 0.0
      %8767 = vmatpush1.msra.mxu0 %v6402
      %8768 = vmatprep.subr.mxu0 0.0
      %8769 = vmatpush2.msra.mxu0 %v6763
      %8770 = vmatprep.subr.mxu0 0.0
      %8771 = vmatpush2.msra.mxu0 %v6722
      %8772 = vmatprep.subr.mxu0 0.0
      %8773 = vmatpush2.msra.mxu0 %v6716
      %8774 = vmatprep.subr.mxu0 0.0
      %8775 = vmatpush2.msra.mxu0 %v6710
      %8776 = vmatprep.subr.mxu0 0.0
      %8777 = vmatpush2.msra.mxu0 %v6704
      %8778 = vmatprep.subr.mxu0 0.0
      %8779 = vmatpush2.msra.mxu0 %v6698
      %8780 = vmatprep.subr.mxu0 0.0
      %8781 = vmatpush2.msra.mxu0 %v6692
      %8782 = vmatprep.subr.mxu0 0.0
      %8783 = vmatpush2.msra.mxu0 %v6686
      %8784 = vmatprep.subr.mxu0 0.0
      %8785 = vmatpush2.msra.mxu0 %v6645
      %8786 = vmatprep.subr.mxu0 0.0
      %8787 = vmatpush2.msra.mxu0 %v6639
      %8788 = vmatprep.subr.mxu0 0.0
      %8789 = vmatpush2.msra.mxu0 %v6633
      %8790 = vmatprep.subr.mxu0 0.0
      %8791 = vmatpush2.msra.mxu0 %v6627
      %8792 = vmatprep.subr.mxu0 0.0
      %8793 = vmatpush2.msra.mxu0 %v6621
      %8794 = vmatprep.subr.mxu0 0.0
      %8795 = vmatpush2.msra.mxu0 %v6615
      %8796 = vmatprep.subr.mxu0 0.0
      %8797 = vmatpush2.msra.mxu0 %v6609
      %8798 = vmatprep.subr.mxu0 0.0
      %8799 = vmatpush2.msra.mxu0 %v6568
      %8800 = vmatprep.mubr.f32.mxu0 %v8161
      %8801 = vmatmul.mubr.f32.gmra.mxu0 %v8160
      %v8802 = vpop.f32.mrf.mxu0
      %v8803 = vadd.f32 %v8728, %v8802
      %v8804 = vpop.f32.mrf.mxu0
      %8805 = vmatprep.mubr.f32.mxu0 %v8172
      %8806 = vmatmul.mubr.f32.gmra.mxu0 %v8171
      %v8807 = vpop.f32.mrf.mxu0
      %v8808 = vadd.f32 %v8733, %v8807
      %v8809 = vpop.f32.mrf.mxu0
      %8810 = vdwg.mxu0
      %8811 = vmatprep.subr.mxu0 0.0
      %8812 = vmatpush1.msra.mxu0 %v6929
      %8813 = vmatprep.subr.mxu0 0.0
      %8814 = vmatpush1.msra.mxu0 %v6923
      %8815 = vmatprep.subr.mxu0 0.0
      %8816 = vmatpush1.msra.mxu0 %v6917
      %8817 = vmatprep.subr.mxu0 0.0
      %8818 = vmatpush1.msra.mxu0 %v6876
      %8819 = vmatprep.subr.mxu0 0.0
      %8820 = vmatpush1.msra.mxu0 %v6870
      %8821 = vmatprep.subr.mxu0 0.0
      %8822 = vmatpush1.msra.mxu0 %v6864
      %8823 = vmatprep.subr.mxu0 0.0
      %8824 = vmatpush1.msra.mxu0 %v6858
      %8825 = vmatprep.subr.mxu0 0.0
      %8826 = vmatpush1.msra.mxu0 %v6852
      %8827 = vmatprep.subr.mxu0 0.0
      %8828 = vmatpush1.msra.mxu0 %v6846
      %8829 = vmatprep.subr.mxu0 0.0
      %8830 = vmatpush1.msra.mxu0 %v6840
      %8831 = vmatprep.subr.mxu0 0.0
      %8832 = vmatpush1.msra.mxu0 %v6799
      %8833 = vmatprep.subr.mxu0 0.0
      %8834 = vmatpush1.msra.mxu0 %v6793
      %8835 = vmatprep.subr.mxu0 0.0
      %8836 = vmatpush1.msra.mxu0 %v6787
      %8837 = vmatprep.subr.mxu0 0.0
      %8838 = vmatpush1.msra.mxu0 %v6781
      %8839 = vmatprep.subr.mxu0 0.0
      %8840 = vmatpush1.msra.mxu0 %v6775
      %8841 = vmatprep.subr.mxu0 0.0
      %8842 = vmatpush1.msra.mxu0 %v6769
      %8843 = vmatprep.subr.mxu0 0.0
      %8844 = vmatpush2.msra.mxu0 %v7095
      %8845 = vmatprep.subr.mxu0 0.0
      %8846 = vmatpush2.msra.mxu0 %v7089
      %8847 = vmatprep.subr.mxu0 0.0
      %8848 = vmatpush2.msra.mxu0 %v7083
      %8849 = vmatprep.subr.mxu0 0.0
      %8850 = vmatpush2.msra.mxu0 %v7077
      %8851 = vmatprep.subr.mxu0 0.0
      %8852 = vmatpush2.msra.mxu0 %v7071
      %8853 = vmatprep.subr.mxu0 0.0
      %8854 = vmatpush2.msra.mxu0 %v7030
      %8855 = vmatprep.subr.mxu0 0.0
      %8856 = vmatpush2.msra.mxu0 %v7024
      %8857 = vmatprep.subr.mxu0 0.0
      %8858 = vmatpush2.msra.mxu0 %v7018
      %8859 = vmatprep.subr.mxu0 0.0
      %8860 = vmatpush2.msra.mxu0 %v7012
      %8861 = vmatprep.subr.mxu0 0.0
      %8862 = vmatpush2.msra.mxu0 %v7006
      %8863 = vmatprep.subr.mxu0 0.0
      %8864 = vmatpush2.msra.mxu0 %v7000
      %8865 = vmatprep.subr.mxu0 0.0
      %8866 = vmatpush2.msra.mxu0 %v6994
      %8867 = vmatprep.subr.mxu0 0.0
      %8868 = vmatpush2.msra.mxu0 %v6953
      %8869 = vmatprep.subr.mxu0 0.0
      %8870 = vmatpush2.msra.mxu0 %v6947
      %8871 = vmatprep.subr.mxu0 0.0
      %8872 = vmatpush2.msra.mxu0 %v6941
      %8873 = vmatprep.subr.mxu0 0.0
      %8874 = vmatpush2.msra.mxu0 %v6935
      %8875 = vmatprep.mubr.f32.mxu0 %v8163
      %8876 = vmatmul.mubr.f32.gmra.mxu0 %v8162
      %v8877 = vpop.f32.mrf.mxu0
      %v8878 = vadd.f32 %v8803, %v8877
      %v8879 = vpop.f32.mrf.mxu0
      %8880 = vmatprep.mubr.f32.mxu0 %v8174
      %8881 = vmatmul.mubr.f32.gmra.mxu0 %v8173
      %v8882 = vpop.f32.mrf.mxu0
      %v8883 = vadd.f32 %v8808, %v8882
      %v8884 = vpop.f32.mrf.mxu0
      %8885 = vdwg.mxu0
      %8886 = vmatprep.subr.mxu0 0.0
      %8887 = vmatpush1.msra.mxu0 %v7261
      %8888 = vmatprep.subr.mxu0 0.0
      %8889 = vmatpush1.msra.mxu0 %v7255
      %8890 = vmatprep.subr.mxu0 0.0
      %8891 = vmatpush1.msra.mxu0 %v7249
      %8892 = vmatprep.subr.mxu0 0.0
      %8893 = vmatpush1.msra.mxu0 %v7243
      %8894 = vmatprep.subr.mxu0 0.0
      %8895 = vmatpush1.msra.mxu0 %v7237
      %8896 = vmatprep.subr.mxu0 0.0
      %8897 = vmatpush1.msra.mxu0 %v7231
      %8898 = vmatprep.subr.mxu0 0.0
      %8899 = vmatpush1.msra.mxu0 %v7225
      %8900 = vmatprep.subr.mxu0 0.0
      %8901 = vmatpush1.msra.mxu0 %v7184
      %8902 = vmatprep.subr.mxu0 0.0
      %8903 = vmatpush1.msra.mxu0 %v7178
      %8904 = vmatprep.subr.mxu0 0.0
      %8905 = vmatpush1.msra.mxu0 %v7172
      %8906 = vmatprep.subr.mxu0 0.0
      %8907 = vmatpush1.msra.mxu0 %v7166
      %8908 = vmatprep.subr.mxu0 0.0
      %8909 = vmatpush1.msra.mxu0 %v7160
      %8910 = vmatprep.subr.mxu0 0.0
      %8911 = vmatpush1.msra.mxu0 %v7154
      %8912 = vmatprep.subr.mxu0 0.0
      %8913 = vmatpush1.msra.mxu0 %v7148
      %8914 = vmatprep.subr.mxu0 0.0
      %8915 = vmatpush1.msra.mxu0 %v7107
      %8916 = vmatprep.subr.mxu0 0.0
      %8917 = vmatpush1.msra.mxu0 %v7101
      %8918 = vmatprep.subr.mxu0 0.0
      %8919 = vmatpush2.msra.mxu0 %v7560
      %8920 = vmatprep.subr.mxu0 0.0
      %8921 = vmatpush2.msra.mxu0 %v7554
      %8922 = vmatprep.subr.mxu0 0.0
      %8923 = vmatpush2.msra.mxu0 %v7548
      %8924 = vmatprep.subr.mxu0 0.0
      %8925 = vmatpush2.msra.mxu0 %v7542
      %8926 = vmatprep.subr.mxu0 0.0
      %8927 = vmatpush2.msra.mxu0 %v7536
      %8928 = vmatprep.subr.mxu0 0.0
      %8929 = vmatpush2.msra.mxu0 %v7530
      %8930 = vmatprep.subr.mxu0 0.0
      %8931 = vmatpush2.msra.mxu0 %v7524
      %8932 = vmatprep.subr.mxu0 0.0
      %8933 = vmatpush2.msra.mxu0 %v7518
      %8934 = vmatprep.subr.mxu0 0.0
      %8935 = vmatpush2.msra.mxu0 %v7512
      %8936 = vmatprep.subr.mxu0 0.0
      %8937 = vmatpush2.msra.mxu0 %v7506
      %8938 = vmatprep.subr.mxu0 0.0
      %8939 = vmatpush2.msra.mxu0 %v7500
      %8940 = vmatprep.subr.mxu0 0.0
      %8941 = vmatpush2.msra.mxu0 %v7494
      %8942 = vmatprep.subr.mxu0 0.0
      %8943 = vmatpush2.msra.mxu0 %v7488
      %8944 = vmatprep.subr.mxu0 0.0
      %8945 = vmatpush2.msra.mxu0 %v7482
      %8946 = vmatprep.subr.mxu0 0.0
      %8947 = vmatpush2.msra.mxu0 %v7476
      %8948 = vmatprep.subr.mxu0 0.0
      %8949 = vmatpush2.msra.mxu0 %v7470
      %8950 = vmatprep.mubr.f32.mxu0 %v8165
      %8951 = vmatmul.mubr.f32.gmra.mxu0 %v8164
      %v8952 = vpop.f32.mrf.mxu0
      %v8953 = vadd.f32 %v8878, %v8952
      %v8954 = vpop.f32.mrf.mxu0
      %8955 = vmatprep.mubr.f32.mxu0 %v8176
      %8956 = vmatmul.mubr.f32.gmra.mxu0 %v8175
      %v8957 = vpop.f32.mrf.mxu0
      %v8958 = vadd.f32 %v8883, %v8957
      %v8959 = vpop.f32.mrf.mxu0
      %8960 = vdwg.mxu0
      %8961 = vmatprep.subr.mxu0 0.0
      %8962 = vmatpush1.msra.mxu0 %v7656
      %8963 = vmatprep.subr.mxu0 0.0
      %8964 = vmatpush1.msra.mxu0 %v7650
      %8965 = vmatprep.subr.mxu0 0.0
      %8966 = vmatpush1.msra.mxu0 %v7644
      %8967 = vmatprep.subr.mxu0 0.0
      %8968 = vmatpush1.msra.mxu0 %v7638
      %8969 = vmatprep.subr.mxu0 0.0
      %8970 = vmatpush1.msra.mxu0 %v7632
      %8971 = vmatprep.subr.mxu0 0.0
      %8972 = vmatpush1.msra.mxu0 %v7626
      %8973 = vmatprep.subr.mxu0 0.0
      %8974 = vmatpush1.msra.mxu0 %v7620
      %8975 = vmatprep.subr.mxu0 0.0
      %8976 = vmatpush1.msra.mxu0 %v7614
      %8977 = vmatprep.subr.mxu0 0.0
      %8978 = vmatpush1.msra.mxu0 %v7608
      %8979 = vmatprep.subr.mxu0 0.0
      %8980 = vmatpush1.msra.mxu0 %v7602
      %8981 = vmatprep.subr.mxu0 0.0
      %8982 = vmatpush1.msra.mxu0 %v7596
      %8983 = vmatprep.subr.mxu0 0.0
      %8984 = vmatpush1.msra.mxu0 %v7590
      %8985 = vmatprep.subr.mxu0 0.0
      %8986 = vmatpush1.msra.mxu0 %v7584
      %8987 = vmatprep.subr.mxu0 0.0
      %8988 = vmatpush1.msra.mxu0 %v7578
      %8989 = vmatprep.subr.mxu0 0.0
      %8990 = vmatpush1.msra.mxu0 %v7572
      %8991 = vmatprep.subr.mxu0 0.0
      %8992 = vmatpush1.msra.mxu0 %v7566
      %8993 = vmatprep.subr.mxu0 0.0
      %8994 = vmatpush2.msra.mxu0 %v7752
      %8995 = vmatprep.subr.mxu0 0.0
      %8996 = vmatpush2.msra.mxu0 %v7746
      %8997 = vmatprep.subr.mxu0 0.0
      %8998 = vmatpush2.msra.mxu0 %v7740
      %8999 = vmatprep.subr.mxu0 0.0
      %9000 = vmatpush2.msra.mxu0 %v7734
      %9001 = vmatprep.subr.mxu0 0.0
      %9002 = vmatpush2.msra.mxu0 %v7728
      %9003 = vmatprep.subr.mxu0 0.0
      %9004 = vmatpush2.msra.mxu0 %v7722
      %9005 = vmatprep.subr.mxu0 0.0
      %9006 = vmatpush2.msra.mxu0 %v7716
      %9007 = vmatprep.subr.mxu0 0.0
      %9008 = vmatpush2.msra.mxu0 %v7710
      %9009 = vmatprep.subr.mxu0 0.0
      %9010 = vmatpush2.msra.mxu0 %v7704
      %9011 = vmatprep.subr.mxu0 0.0
      %9012 = vmatpush2.msra.mxu0 %v7698
      %9013 = vmatprep.subr.mxu0 0.0
      %9014 = vmatpush2.msra.mxu0 %v7692
      %9015 = vmatprep.subr.mxu0 0.0
      %9016 = vmatpush2.msra.mxu0 %v7686
      %9017 = vmatprep.subr.mxu0 0.0
      %9018 = vmatpush2.msra.mxu0 %v7680
      %9019 = vmatprep.subr.mxu0 0.0
      %9020 = vmatpush2.msra.mxu0 %v7674
      %9021 = vmatprep.subr.mxu0 0.0
      %9022 = vmatpush2.msra.mxu0 %v7668
      %9023 = vmatprep.subr.mxu0 0.0
      %9024 = vmatpush2.msra.mxu0 %v7662
      %9025 = vmatprep.mubr.f32.mxu0 %v8167
      %9026 = vmatmul.mubr.f32.gmra.mxu0 %v8166
      %v9027 = vpop.f32.mrf.mxu0
      %v9028 = vadd.f32 %v8953, %v9027
      %v9029 = vpop.f32.mrf.mxu0
      %9030 = vmatprep.mubr.f32.mxu0 %v8178
      %9031 = vmatmul.mubr.f32.gmra.mxu0 %v8177
      %v9032 = vpop.f32.mrf.mxu0
      %v9033 = vadd.f32 %v8958, %v9032
      %v9034 = vpop.f32.mrf.mxu0
      %9035 = vdwg.mxu0
      %9036 = vmatprep.subr.mxu0 0.0
      %9037 = vmatpush1.msra.mxu0 0.0
      %9038 = vmatprep.subr.mxu0 0.0
      %9039 = vmatpush1.msra.mxu0 %v7842
      %9040 = vmatprep.subr.mxu0 0.0
      %9041 = vmatpush1.msra.mxu0 %v7836
      %9042 = vmatprep.subr.mxu0 0.0
      %9043 = vmatpush1.msra.mxu0 %v7830
      %9044 = vmatprep.subr.mxu0 0.0
      %9045 = vmatpush1.msra.mxu0 %v7824
      %9046 = vmatprep.subr.mxu0 0.0
      %9047 = vmatpush1.msra.mxu0 %v7818
      %9048 = vmatprep.subr.mxu0 0.0
      %9049 = vmatpush1.msra.mxu0 %v7812
      %9050 = vmatprep.subr.mxu0 0.0
      %9051 = vmatpush1.msra.mxu0 %v7806
      %9052 = vmatprep.subr.mxu0 0.0
      %9053 = vmatpush1.msra.mxu0 %v7800
      %9054 = vmatprep.subr.mxu0 0.0
      %9055 = vmatpush1.msra.mxu0 %v7794
      %9056 = vmatprep.subr.mxu0 0.0
      %9057 = vmatpush1.msra.mxu0 %v7788
      %9058 = vmatprep.subr.mxu0 0.0
      %9059 = vmatpush1.msra.mxu0 %v7782
      %9060 = vmatprep.subr.mxu0 0.0
      %9061 = vmatpush1.msra.mxu0 %v7776
      %9062 = vmatprep.subr.mxu0 0.0
      %9063 = vmatpush1.msra.mxu0 %v7770
      %9064 = vmatprep.subr.mxu0 0.0
      %9065 = vmatpush1.msra.mxu0 %v7764
      %9066 = vmatprep.subr.mxu0 0.0
      %9067 = vmatpush1.msra.mxu0 %v7758
      %9068 = vmatprep.subr.mxu0 0.0
      %9069 = vmatpush2.msra.mxu0 0.0
      %9070 = vmatprep.subr.mxu0 0.0
      %9071 = vmatpush2.msra.mxu0 0.0
      %9072 = vmatprep.subr.mxu0 0.0
      %9073 = vmatpush2.msra.mxu0 0.0
      %9074 = vmatprep.subr.mxu0 0.0
      %9075 = vmatpush2.msra.mxu0 0.0
      %9076 = vmatprep.subr.mxu0 0.0
      %9077 = vmatpush2.msra.mxu0 0.0
      %9078 = vmatprep.subr.mxu0 0.0
      %9079 = vmatpush2.msra.mxu0 0.0
      %9080 = vmatprep.subr.mxu0 0.0
      %9081 = vmatpush2.msra.mxu0 0.0
      %9082 = vmatprep.subr.mxu0 0.0
      %9083 = vmatpush2.msra.mxu0 0.0
      %9084 = vmatprep.subr.mxu0 0.0
      %9085 = vmatpush2.msra.mxu0 0.0
      %9086 = vmatprep.subr.mxu0 0.0
      %9087 = vmatpush2.msra.mxu0 0.0
      %9088 = vmatprep.subr.mxu0 0.0
      %9089 = vmatpush2.msra.mxu0 0.0
      %9090 = vmatprep.subr.mxu0 0.0
      %9091 = vmatpush2.msra.mxu0 0.0
      %9092 = vmatprep.subr.mxu0 0.0
      %9093 = vmatpush2.msra.mxu0 0.0
      %9094 = vmatprep.subr.mxu0 0.0
      %9095 = vmatpush2.msra.mxu0 0.0
      %9096 = vmatprep.subr.mxu0 0.0
      %9097 = vmatpush2.msra.mxu0 0.0
      %9098 = vmatprep.subr.mxu0 0.0
      %9099 = vmatpush2.msra.mxu0 0.0
      %9100 = vmatprep.mubr.f32.mxu0 0.0
      %9101 = vmatmul.mubr.f32.gmra.mxu0 %v8194
      %v9102 = vpop.f32.mrf.mxu0
      %v9103 = vadd.f32 %v9028, %v9102
      %v9104 = vpop.f32.mrf.mxu0
      %9105 = vmatprep.mubr.f32.mxu0 0.0
      %9106 = vmatmul.mubr.f32.gmra.mxu0 %v8197
      %v9107 = vpop.f32.mrf.mxu0
      %v9108 = vadd.f32 %v9033, %v9107
      %v9109 = vpop.f32.mrf.mxu0
      %9110 = vdwg.mxu0
      %9111 = vst [vmem:[%s557] sm:$0xff] %v8651
      %9112 = vst [vmem:[%s557 + $0x8] sm:$0xff] %v8653
      %vm9113 = vcmask 523264
      %9114 = vst.msk [vmem:[%s557 + $0x10] sm:$0xff] %vm9113, %v9103
      %9115 = vst [vmem:[%s557 + $0x18] sm:$0xf] %v8657
      %9116 = vst [vmem:[%s557 + $0x20] sm:$0xf] %v8659
      %vm9117 = vcmask 519168
      %9118 = vst.msk [vmem:[%s557 + $0x28] sm:$0xf] %vm9117, %v9108
      %p9119 = scmp.lt.s32.totalorder %s31, 1
      %s9120 = scalar_select %p9119, %s31, 1
      %p9121 = scmp.lt.s32.totalorder %s32, 0
      %s9122 = scalar_select %p9121, %s32, 0
      %s9123 = smul.addr %s9122, 6
      %s9124 = smul.addr %s9120, 6
      %s9125 = sadd.s32 %s9123, %s9124
      %s9126 = smul.addr %s9125, 8
      %s9127 = scalar_lea.vmem %s16, %s9126
      // Predicated region
      $region85: #{tpu_custom_call.1} parent=83 // pred_check
        %p9128 = pneg %p402
      $region86: #{tpu_custom_call.1} parent=83 // pred_check_branch
        %9130 = sbr.rel (%p9128) target = $region88
      $region87: #{tpu_custom_call.1} parent=83 // pred_region
        _
      $region88: #{tpu_custom_call.1} parent=83 // pred_fallthru
        _
    $region84: #{tpu_custom_call.1} parent=5 // pred_fallthru
      _
    %p9131 = scmp.le.s32.totalorder 2, %s22
    // Predicated region
    $region89: #{tpu_custom_call.1} parent=5 // pred_check
      %p9132 = pneg %p9131
    $region90: #{tpu_custom_call.1} parent=5 // pred_check_branch
      %9134 = sbr.rel (%p9132) target = $region92
    $region91: #{tpu_custom_call.1} parent=5 // pred_region
      %s9135 = ssub.s32 %s22, 2
      // Predicated region
      $region93: #{tpu_custom_call.1} parent=91 // pred_check
        %p9136 = pneg %p408
      $region94: #{tpu_custom_call.1} parent=91 // pred_check_branch
        %9138 = sbr.rel (%p9136) target = $region96
      $region95: #{tpu_custom_call.1} parent=91 // pred_region
        %p9139 = scmp.lt.s32.totalorder %s33, 1
        %s9140 = scalar_select %p9139, %s33, 1
        %p9141 = scmp.lt.s32.totalorder %s34, 0
        %s9142 = scalar_select %p9141, %s34, 0
        %s9143 = smul.addr %s9142, 6
        %s9144 = smul.addr %s9140, 6
        %s9145 = sadd.s32 %s9143, %s9144
        %s9146 = smul.addr %s9145, 8
        %s9147 = scalar_lea.vmem %s16, %s9146
      $region96: #{tpu_custom_call.1} parent=91 // pred_fallthru
        _
    $region92: #{tpu_custom_call.1} parent=5 // pred_fallthru
      _
  $region6: #{tpu_custom_call.1} parent=0 // loop_footer
    %s26 = sadd.s32 1, %s22
  $region7: #{tpu_custom_call.1} parent=0 // loop_footer_branch
    %21 = sbr.rel target = $region3
  $region8: #{tpu_custom_call.1} parent=0 // loop_exit
    _

</llo_original>
